<compile_context>
chip_gen: v6e
topology: v6e:2x2x1
jax: 0.10.0
libtpu: 0.0.40
codegen_flags: <defaults>
</compile_context>

<pallas_src>
import jax
import jax.numpy as jnp
import numpy as np
from jax import lax
from jax.experimental import pallas as pl
from jax.experimental.pallas import tpu as pltpu


def _make_basic_block_kernel(H, W, C, use_im2col):
    """Fused conv1+bn1+relu -> conv2+bn2+residual+relu for one NHWC image."""
    HW = H * W
    taps = [(kh, kw) for kh in range(3) for kw in range(3)]

    def kernel(x_ref, w1_ref, w2_ref, s1_ref, b1_ref, s2_ref, b2_ref,
               out_ref, pad_scr, work_scr):
        # SAME-pad halo: zero the BORDER only (the interior is fully written
        # below and again before conv2). bf16 halo => half the store bytes.
        zrow = jnp.zeros((1, W + 2, C), pad_scr.dtype)
        zcol = jnp.zeros((H, 1, C), pad_scr.dtype)
        pad_scr[pl.ds(0, 1), :, :] = zrow
        pad_scr[pl.ds(H + 1, 1), :, :] = zrow
        pad_scr[pl.ds(1, H), pl.ds(0, 1), :] = zcol
        pad_scr[pl.ds(1, H), pl.ds(W + 1, 1), :] = zcol

        x = x_ref[0]                                        # (H, W, C) bf16
        pad_scr[pl.ds(1, H), pl.ds(1, W), :] = x.astype(pad_scr.dtype)

        if use_im2col:
            # Deep-K path (C % 128 == 0): lane-aligned column offsets, one
            # K = 9*C MXU matmul per conv. Halo is already bf16 -> no casts.
            def conv_bn(w_ref, s_ref, b_ref):
                for t, (kh, kw) in enumerate(taps):
                    tap = pad_scr[pl.ds(kh, H), pl.ds(kw, W), :]
                    work_scr[:, pl.ds(t * C, C)] = tap.reshape(HW, C)
                acc = jnp.dot(work_scr[...], w_ref[...],
                              preferred_element_type=jnp.float32)
                return acc * s_ref[...] + b_ref[...]        # folded BN
        else:
            # Small / lane-misaligned C: 9 shifted-window matmuls accumulated
            # into an f32 VMEM scratch -- no masked im2col stores at all.
            def conv_bn(w_ref, s_ref, b_ref):
                for t, (kh, kw) in enumerate(taps):
                    lhs = pad_scr[pl.ds(kh, H), pl.ds(kw, W), :].reshape(HW, C)
                    part = jnp.dot(lhs, w_ref[t],
                                   preferred_element_type=jnp.float32)
                    if t == 0:
                        work_scr[...] = part
                    else:
                        work_scr[...] += part
                return work_scr[...] * s_ref[...] + b_ref[...]   # folded BN

        # conv1 + bn1 + relu -- intermediate never leaves VMEM.
        y1 = jnp.maximum(conv_bn(w1_ref, s1_ref, b1_ref), 0.0)   # (HW, C) f32
        pad_scr[pl.ds(1, H), pl.ds(1, W), :] = (
            y1.reshape(H, W, C).astype(pad_scr.dtype))

        # conv2 + bn2 + residual add + relu (f32 math, bf16 store).
        y2 = conv_bn(w2_ref, s2_ref, b2_ref).reshape(H, W, C)
        out = jnp.maximum(y2 + x.astype(jnp.float32), 0.0)
        out_ref[0] = out.astype(out_ref.dtype)

    return kernel


def _pick_vmem_limit(needed_bytes):
    """Per-generation VMEM limit: generous, but capped below physical VMEM."""
    cap = None
    try:
        cap = getattr(pltpu.get_tpu_info(), "vmem_capacity_bytes", None)
    except Exception:
        cap = None
    if not cap:
        cap = 64 * 1024 * 1024            # conservative fallback (v7x per-TC)
    hi = (int(cap) * 3) // 4              # headroom for compiler scratch
    want = int(needed_bytes) * 2 + (8 << 20)
    return int(max(min(want, hi), min(32 << 20, hi)))


def basic_block_forward_nhwc(x_nhwc, params, *, eps=1e-5):
    """Fused BasicBlock forward, bf16 NHWC in / bf16 NHWC out at the kernel
    boundary (keep activations in bf16 NHWC end-to-end across blocks)."""
    N, H, W, C = x_nhwc.shape
    HW = H * W
    x = x_nhwc.astype(jnp.bfloat16)

    # Fold BN (eval mode): y = conv * scale + bias.
    s1 = params["bn1_gamma"] / jnp.sqrt(params["bn1_var"] + eps)
    b1 = params["bn1_beta"] - params["bn1_mean"] * s1
    s2 = params["bn2_gamma"] / jnp.sqrt(params["bn2_var"] + eps)
    b2 = params["bn2_beta"] - params["bn2_mean"] * s2

    use_im2col = (C % 128 == 0)

    def pack_w(w_oihw):
        # OIHW -> HWIO, then (9*Cin, Cout) for the deep-K matmul, or
        # (9, Cin, Cout) per-tap weights (clean static first-dim indexing,
        # no sublane-misaligned weight slices when C is small).
        w = jnp.transpose(w_oihw, (2, 3, 1, 0)).astype(jnp.bfloat16)
        return w.reshape(9 * C, C) if use_im2col else w.reshape(9, C, C)

    w1 = pack_w(params["conv1_w"])
    w2 = pack_w(params["conv2_w"])
    s1 = s1.reshape(1, C).astype(jnp.float32)
    b1 = b1.reshape(1, C).astype(jnp.float32)
    s2 = s2.reshape(1, C).astype(jnp.float32)
    b2 = b2.reshape(1, C).astype(jnp.float32)

    img_spec = pl.BlockSpec((1, H, W, C), lambda n: (n, 0, 0, 0))
    # Constant index maps -> params DMA'd once, VMEM-resident across the grid.
    if use_im2col:
        w_spec = pl.BlockSpec((9 * C, C), lambda n: (0, 0))
    else:
        w_spec = pl.BlockSpec((9, C, C), lambda n: (0, 0, 0))
    v_spec = pl.BlockSpec((1, C), lambda n: (0, 0))

    if use_im2col:
        work_scratch = pltpu.VMEM((HW, 9 * C), jnp.bfloat16)   # im2col (K=9*C)
        work_bytes = HW * 9 * C * 2
    else:
        work_scratch = pltpu.VMEM((HW, C), jnp.float32)        # f32 conv acc
        work_bytes = HW * C * 4

    # VMEM budget: double-buffered bf16 image in/out + resident params + scratch.
    img_bytes = HW * C * 2
    pad_bytes = (H + 2) * (W + 2) * C * 2
    param_bytes = 2 * (9 * C * C * 2) + 4 * C * 4
    needed = 4 * img_bytes + 2 * param_bytes + pad_bytes + work_bytes

    flops = 2 * (2 * HW * 9 * C * C) * N                       # two 3x3 convs
    bytes_accessed = 2 * N * img_bytes + param_bytes           # x read + out + params

    out = pl.pallas_call(
        _make_basic_block_kernel(H, W, C, use_im2col),
        out_shape=jax.ShapeDtypeStruct((N, H, W, C), jnp.bfloat16),
        grid_spec=pltpu.PrefetchScalarGridSpec(
            num_scalar_prefetch=0,
            grid=(N,),
            in_specs=[img_spec, w_spec, w_spec, v_spec, v_spec, v_spec, v_spec],
            out_specs=img_spec,
            scratch_shapes=[
                pltpu.VMEM((H + 2, W + 2, C), jnp.bfloat16),   # bf16 halo buffer
                work_scratch,
            ]),
        compiler_params=pltpu.CompilerParams(
            dimension_semantics=("parallel",),
            vmem_limit_bytes=_pick_vmem_limit(needed)),
        cost_estimate=pl.CostEstimate(
            flops=int(flops), transcendentals=0,
            bytes_accessed=int(bytes_accessed)),
    )(x, w1, w2, s1, b1, s2, b2)
    return out


def basic_block_forward(x_nchw, params):
    """NCHW (PyTorch) boundary wrapper around the NHWC bf16 fused kernel."""
    x = jnp.transpose(x_nchw, (0, 2, 3, 1))                  # -> NHWC
    out = basic_block_forward_nhwc(x, params)
    return jnp.transpose(out, (0, 3, 1, 2)).astype(x_nchw.dtype)   # -> NCHW


def _reference_forward(x_nchw, params):
    """Pure-JAX f32 reference (lax.conv) for correctness checking."""
    x = jnp.transpose(x_nchw, (0, 2, 3, 1)).astype(jnp.float32)
    eps = 1e-5
    dn = ("NHWC", "HWIO", "NHWC")

    def conv_bn(z, w_oihw, gamma, beta, mean, var):
        w = jnp.transpose(w_oihw, (2, 3, 1, 0))
        y = lax.conv_general_dilated(z, w, (1, 1), "SAME",
                                     dimension_numbers=dn)
        return (y - mean) / jnp.sqrt(var + eps) * gamma + beta

    identity = x
    out = conv_bn(x, params["conv1_w"], params["bn1_gamma"],
                  params["bn1_beta"], params["bn1_mean"], params["bn1_var"])
    out = jnp.maximum(out, 0.0)
    out = conv_bn(out, params["conv2_w"], params["bn2_gamma"],
                  params["bn2_beta"], params["bn2_mean"], params["bn2_var"])
    out = out + identity
    out = jnp.maximum(out, 0.0)
    return jnp.transpose(out, (0, 3, 1, 2))


def make_params(key, inplanes, planes):
    ks = jax.random.split(key, 8)
    fan_in = inplanes * 9
    params = {
        "conv1_w": jax.random.normal(ks[0], (planes, inplanes, 3, 3),
                                     jnp.float32) / np.sqrt(fan_in),
        "conv2_w": jax.random.normal(ks[1], (planes, planes, 3, 3),
                                     jnp.float32) / np.sqrt(planes * 9),
        "bn1_gamma": 1.0 + 0.1 * jax.random.normal(ks[2], (planes,), jnp.float32),
        "bn1_beta": 0.1 * jax.random.normal(ks[3], (planes,), jnp.float32),
        "bn1_mean": 0.05 * jax.random.normal(ks[4], (planes,), jnp.float32),
        "bn1_var": jnp.abs(1.0 + 0.1 * jax.random.normal(ks[5], (planes,),
                                                         jnp.float32)),
        "bn2_gamma": 1.0 + 0.1 * jax.random.normal(ks[6], (planes,), jnp.float32),
        "bn2_beta": 0.1 * jax.random.normal(ks[7], (planes,), jnp.float32),
        "bn2_mean": jnp.zeros((planes,), jnp.float32),
        "bn2_var": jnp.ones((planes,), jnp.float32),
    }
    return params


if __name__ == "__main__":
    key = jax.random.PRNGKey(0)
    k_x, k_p = jax.random.split(key)

    # NOTE: toy shape for the harness; tune / benchmark at realistic ResNet
    # channel counts (C >= 64), where the layout decisions actually matter.
    N, C, H, W = 2, 4, 16, 16          # inplanes = planes = 4, stride = 1
    x = jax.random.normal(k_x, (N, C, H, W), jnp.float32)
    params = make_params(k_p, C, C)

    fwd = jax.jit(basic_block_forward)
    out = jax.block_until_ready(fwd(x, params))

    ref = _reference_forward(x, params)
    # bf16 kernel I/O + bf16 MXU operands (f32 accumulation) vs f32 reference
    # => loosened tolerance.
    np.testing.assert_allclose(np.asarray(out, dtype=np.float32),
                               np.asarray(ref, dtype=np.float32),
                               rtol=5e-2, atol=5e-2)
    assert out.shape == (N, C, H, W)

    print("KERNEL_OK")
</pallas_src>

<mosaic_0001>
module attributes {stable_mosaic.version = 11 : i64} {
  func.func @kernel(%arg0: i32, %arg1: memref<1x16x16x4xbf16, #tpu.memory_space<vmem>>, %arg2: memref<9x4x4xbf16, #tpu.memory_space<vmem>>, %arg3: memref<9x4x4xbf16, #tpu.memory_space<vmem>>, %arg4: memref<1x4xf32, #tpu.memory_space<vmem>>, %arg5: memref<1x4xf32, #tpu.memory_space<vmem>>, %arg6: memref<1x4xf32, #tpu.memory_space<vmem>>, %arg7: memref<1x4xf32, #tpu.memory_space<vmem>>, %arg8: memref<1x16x16x4xbf16, #tpu.memory_space<vmem>>, %arg9: memref<18x18x4xbf16, #tpu.memory_space<vmem>>, %arg10: memref<256x4xf32, #tpu.memory_space<vmem>>) attributes {dimension_semantics = [#tpu.dimension_semantics<parallel>], iteration_bounds = array<i64: 2>, scalar_prefetch = 0 : i64, scratch_operands = 2 : i64, tpu.core_type = #tpu.core_type<tc>, window_params = [{transform_indices = @transform_0, window_bounds = array<i64: 1, 16, 16, 4>}, {pipeline_mode = #tpu.pipeline_mode<synchronous>, transform_indices = @transform_1, window_bounds = array<i64: 9, 4, 4>}, {pipeline_mode = #tpu.pipeline_mode<synchronous>, transform_indices = @transform_2, window_bounds = array<i64: 9, 4, 4>}, {pipeline_mode = #tpu.pipeline_mode<synchronous>, transform_indices = @transform_3, window_bounds = array<i64: 1, 4>}, {pipeline_mode = #tpu.pipeline_mode<synchronous>, transform_indices = @transform_4, window_bounds = array<i64: 1, 4>}, {pipeline_mode = #tpu.pipeline_mode<synchronous>, transform_indices = @transform_5, window_bounds = array<i64: 1, 4>}, {pipeline_mode = #tpu.pipeline_mode<synchronous>, transform_indices = @transform_6, window_bounds = array<i64: 1, 4>}, {transform_indices = @transform_7, window_bounds = array<i64: 1, 16, 16, 4>}]} {
    %cst = arith.constant 0.000000e+00 : bf16
    %0 = vector.broadcast %cst : bf16 to vector<1x18x4xbf16>
    %cst_0 = arith.constant 0.000000e+00 : bf16
    %1 = vector.broadcast %cst_0 : bf16 to vector<16x1x4xbf16>
    %c0 = arith.constant 0 : index
    %c0_1 = arith.constant 0 : index
    %c0_2 = arith.constant 0 : index
    %2 = vector.load %arg9[%c0, %c0_1, %c0_2] : memref<18x18x4xbf16, #tpu.memory_space<vmem>>, vector<1x18x4xbf16>
    tpu.vector_store %arg9[%c0, %c0_1, %c0_2], %0 {strides = array<i32>} : memref<18x18x4xbf16, #tpu.memory_space<vmem>>, vector<1x18x4xbf16>,
    %c17 = arith.constant 17 : index
    %c0_3 = arith.constant 0 : index
    %c0_4 = arith.constant 0 : index
    %3 = vector.load %arg9[%c17, %c0_3, %c0_4] : memref<18x18x4xbf16, #tpu.memory_space<vmem>>, vector<1x18x4xbf16>
    tpu.vector_store %arg9[%c17, %c0_3, %c0_4], %0 {strides = array<i32>} : memref<18x18x4xbf16, #tpu.memory_space<vmem>>, vector<1x18x4xbf16>,
    %c1 = arith.constant 1 : index
    %c0_5 = arith.constant 0 : index
    %c0_6 = arith.constant 0 : index
    %4 = vector.load %arg9[%c1, %c0_5, %c0_6] : memref<18x18x4xbf16, #tpu.memory_space<vmem>>, vector<16x1x4xbf16>
    tpu.vector_store %arg9[%c1, %c0_5, %c0_6], %1 {strides = array<i32>} : memref<18x18x4xbf16, #tpu.memory_space<vmem>>, vector<16x1x4xbf16>,
    %c1_7 = arith.constant 1 : index
    %c17_8 = arith.constant 17 : index
    %c0_9 = arith.constant 0 : index
    %5 = vector.load %arg9[%c1_7, %c17_8, %c0_9] : memref<18x18x4xbf16, #tpu.memory_space<vmem>>, vector<16x1x4xbf16>
    tpu.vector_store %arg9[%c1_7, %c17_8, %c0_9], %1 {strides = array<i32>} : memref<18x18x4xbf16, #tpu.memory_space<vmem>>, vector<16x1x4xbf16>,
    %c0_10 = arith.constant 0 : index
    %c0_11 = arith.constant 0 : index
    %c0_12 = arith.constant 0 : index
    %c0_13 = arith.constant 0 : index
    %6 = vector.load %arg1[%c0_10, %c0_11, %c0_12, %c0_13] : memref<1x16x16x4xbf16, #tpu.memory_space<vmem>>, vector<1x16x16x4xbf16>
    %7 = vector.shape_cast %6 : vector<1x16x16x4xbf16> to vector<16x16x4xbf16>
    %c1_14 = arith.constant 1 : index
    %c1_15 = arith.constant 1 : index
    %c0_16 = arith.constant 0 : index
    %8 = vector.load %arg9[%c1_14, %c1_15, %c0_16] : memref<18x18x4xbf16, #tpu.memory_space<vmem>>, vector<16x16x4xbf16>
    tpu.vector_store %arg9[%c1_14, %c1_15, %c0_16], %7 {strides = array<i32>} : memref<18x18x4xbf16, #tpu.memory_space<vmem>>, vector<16x16x4xbf16>,
    %c0_17 = arith.constant 0 : index
    %c0_18 = arith.constant 0 : index
    %c0_19 = arith.constant 0 : index
    %9 = vector.load %arg9[%c0_17, %c0_18, %c0_19] : memref<18x18x4xbf16, #tpu.memory_space<vmem>>, vector<16x16x4xbf16>
    %10 = vector.shape_cast %9 : vector<16x16x4xbf16> to vector<256x4xbf16>
    %c0_20 = arith.constant 0 : index
    %c0_21 = arith.constant 0 : index
    %c0_22 = arith.constant 0 : index
    %11 = vector.load %arg2[%c0_20, %c0_21, %c0_22] : memref<9x4x4xbf16, #tpu.memory_space<vmem>>, vector<1x4x4xbf16>
    %12 = vector.shape_cast %11 : vector<1x4x4xbf16> to vector<4x4xbf16>
    %cst_23 = arith.constant dense<0.000000e+00> : vector<256x4xf32>
    %13 = tpu.matmul %10, %12, %cst_23 {dimension_numbers = #tpu.dot_dimension_numbers<[1], [0], [0], [1], [0, 0, 1, 1], [], []>} : vector<256x4xbf16>, vector<4x4xbf16>, vector<256x4xf32> -> vector<256x4xf32>
    %c0_24 = arith.constant 0 : index
    %c0_25 = arith.constant 0 : index
    %14 = vector.load %arg10[%c0_24, %c0_25] : memref<256x4xf32, #tpu.memory_space<vmem>>, vector<256x4xf32>
    tpu.vector_store %arg10[%c0_24, %c0_25], %13 {strides = array<i32>} : memref<256x4xf32, #tpu.memory_space<vmem>>, vector<256x4xf32>,
    %c0_26 = arith.constant 0 : index
    %c1_27 = arith.constant 1 : index
    %c0_28 = arith.constant 0 : index
    %15 = vector.load %arg9[%c0_26, %c1_27, %c0_28] : memref<18x18x4xbf16, #tpu.memory_space<vmem>>, vector<16x16x4xbf16>
    %16 = vector.shape_cast %15 : vector<16x16x4xbf16> to vector<256x4xbf16>
    %c1_29 = arith.constant 1 : index
    %c0_30 = arith.constant 0 : index
    %c0_31 = arith.constant 0 : index
    %17 = vector.load %arg2[%c1_29, %c0_30, %c0_31] : memref<9x4x4xbf16, #tpu.memory_space<vmem>>, vector<1x4x4xbf16>
    %18 = vector.shape_cast %17 : vector<1x4x4xbf16> to vector<4x4xbf16>
    %cst_32 = arith.constant dense<0.000000e+00> : vector<256x4xf32>
    %19 = tpu.matmul %16, %18, %cst_32 {dimension_numbers = #tpu.dot_dimension_numbers<[1], [0], [0], [1], [0, 0, 1, 1], [], []>} : vector<256x4xbf16>, vector<4x4xbf16>, vector<256x4xf32> -> vector<256x4xf32>
    %c0_33 = arith.constant 0 : index
    %c0_34 = arith.constant 0 : index
    %20 = vector.load %arg10[%c0_33, %c0_34] : memref<256x4xf32, #tpu.memory_space<vmem>>, vector<256x4xf32>
    %21 = arith.addf %20, %19 : vector<256x4xf32>
    %c0_35 = arith.constant 0 : index
    %c0_36 = arith.constant 0 : index
    %22 = vector.load %arg10[%c0_35, %c0_36] : memref<256x4xf32, #tpu.memory_space<vmem>>, vector<256x4xf32>
    tpu.vector_store %arg10[%c0_35, %c0_36], %21 {strides = array<i32>} : memref<256x4xf32, #tpu.memory_space<vmem>>, vector<256x4xf32>,
    %c0_37 = arith.constant 0 : index
    %c2 = arith.constant 2 : index
    %c0_38 = arith.constant 0 : index
    %23 = vector.load %arg9[%c0_37, %c2, %c0_38] : memref<18x18x4xbf16, #tpu.memory_space<vmem>>, vector<16x16x4xbf16>
    %24 = vector.shape_cast %23 : vector<16x16x4xbf16> to vector<256x4xbf16>
    %c2_39 = arith.constant 2 : index
    %c0_40 = arith.constant 0 : index
    %c0_41 = arith.constant 0 : index
    %25 = vector.load %arg2[%c2_39, %c0_40, %c0_41] : memref<9x4x4xbf16, #tpu.memory_space<vmem>>, vector<1x4x4xbf16>
    %26 = vector.shape_cast %25 : vector<1x4x4xbf16> to vector<4x4xbf16>
    %cst_42 = arith.constant dense<0.000000e+00> : vector<256x4xf32>
    %27 = tpu.matmul %24, %26, %cst_42 {dimension_numbers = #tpu.dot_dimension_numbers<[1], [0], [0], [1], [0, 0, 1, 1], [], []>} : vector<256x4xbf16>, vector<4x4xbf16>, vector<256x4xf32> -> vector<256x4xf32>
    %c0_43 = arith.constant 0 : index
    %c0_44 = arith.constant 0 : index
    %28 = vector.load %arg10[%c0_43, %c0_44] : memref<256x4xf32, #tpu.memory_space<vmem>>, vector<256x4xf32>
    %29 = arith.addf %28, %27 : vector<256x4xf32>
    %c0_45 = arith.constant 0 : index
    %c0_46 = arith.constant 0 : index
    %30 = vector.load %arg10[%c0_45, %c0_46] : memref<256x4xf32, #tpu.memory_space<vmem>>, vector<256x4xf32>
    tpu.vector_store %arg10[%c0_45, %c0_46], %29 {strides = array<i32>} : memref<256x4xf32, #tpu.memory_space<vmem>>, vector<256x4xf32>,
    %c1_47 = arith.constant 1 : index
    %c0_48 = arith.constant 0 : index
    %c0_49 = arith.constant 0 : index
    %31 = vector.load %arg9[%c1_47, %c0_48, %c0_49] : memref<18x18x4xbf16, #tpu.memory_space<vmem>>, vector<16x16x4xbf16>
    %32 = vector.shape_cast %31 : vector<16x16x4xbf16> to vector<256x4xbf16>
    %c3 = arith.constant 3 : index
    %c0_50 = arith.constant 0 : index
    %c0_51 = arith.constant 0 : index
    %33 = vector.load %arg2[%c3, %c0_50, %c0_51] : memref<9x4x4xbf16, #tpu.memory_space<vmem>>, vector<1x4x4xbf16>
    %34 = vector.shape_cast %33 : vector<1x4x4xbf16> to vector<4x4xbf16>
    %cst_52 = arith.constant dense<0.000000e+00> : vector<256x4xf32>
    %35 = tpu.matmul %32, %34, %cst_52 {dimension_numbers = #tpu.dot_dimension_numbers<[1], [0], [0], [1], [0, 0, 1, 1], [], []>} : vector<256x4xbf16>, vector<4x4xbf16>, vector<256x4xf32> -> vector<256x4xf32>
    %c0_53 = arith.constant 0 : index
    %c0_54 = arith.constant 0 : index
    %36 = vector.load %arg10[%c0_53, %c0_54] : memref<256x4xf32, #tpu.memory_space<vmem>>, vector<256x4xf32>
    %37 = arith.addf %36, %35 : vector<256x4xf32>
    %c0_55 = arith.constant 0 : index
    %c0_56 = arith.constant 0 : index
    %38 = vector.load %arg10[%c0_55, %c0_56] : memref<256x4xf32, #tpu.memory_space<vmem>>, vector<256x4xf32>
    tpu.vector_store %arg10[%c0_55, %c0_56], %37 {strides = array<i32>} : memref<256x4xf32, #tpu.memory_space<vmem>>, vector<256x4xf32>,
    %c1_57 = arith.constant 1 : index
    %c1_58 = arith.constant 1 : index
    %c0_59 = arith.constant 0 : index
    %39 = vector.load %arg9[%c1_57, %c1_58, %c0_59] : memref<18x18x4xbf16, #tpu.memory_space<vmem>>, vector<16x16x4xbf16>
    %40 = vector.shape_cast %39 : vector<16x16x4xbf16> to vector<256x4xbf16>
    %c4 = arith.constant 4 : index
    %c0_60 = arith.constant 0 : index
    %c0_61 = arith.constant 0 : index
    %41 = vector.load %arg2[%c4, %c0_60, %c0_61] : memref<9x4x4xbf16, #tpu.memory_space<vmem>>, vector<1x4x4xbf16>
    %42 = vector.shape_cast %41 : vector<1x4x4xbf16> to vector<4x4xbf16>
    %cst_62 = arith.constant dense<0.000000e+00> : vector<256x4xf32>
    %43 = tpu.matmul %40, %42, %cst_62 {dimension_numbers = #tpu.dot_dimension_numbers<[1], [0], [0], [1], [0, 0, 1, 1], [], []>} : vector<256x4xbf16>, vector<4x4xbf16>, vector<256x4xf32> -> vector<256x4xf32>
    %c0_63 = arith.constant 0 : index
    %c0_64 = arith.constant 0 : index
    %44 = vector.load %arg10[%c0_63, %c0_64] : memref<256x4xf32, #tpu.memory_space<vmem>>, vector<256x4xf32>
    %45 = arith.addf %44, %43 : vector<256x4xf32>
    %c0_65 = arith.constant 0 : index
    %c0_66 = arith.constant 0 : index
    %46 = vector.load %arg10[%c0_65, %c0_66] : memref<256x4xf32, #tpu.memory_space<vmem>>, vector<256x4xf32>
    tpu.vector_store %arg10[%c0_65, %c0_66], %45 {strides = array<i32>} : memref<256x4xf32, #tpu.memory_space<vmem>>, vector<256x4xf32>,
    %c1_67 = arith.constant 1 : index
    %c2_68 = arith.constant 2 : index
    %c0_69 = arith.constant 0 : index
    %47 = vector.load %arg9[%c1_67, %c2_68, %c0_69] : memref<18x18x4xbf16, #tpu.memory_space<vmem>>, vector<16x16x4xbf16>
    %48 = vector.shape_cast %47 : vector<16x16x4xbf16> to vector<256x4xbf16>
    %c5 = arith.constant 5 : index
    %c0_70 = arith.constant 0 : index
    %c0_71 = arith.constant 0 : index
    %49 = vector.load %arg2[%c5, %c0_70, %c0_71] : memref<9x4x4xbf16, #tpu.memory_space<vmem>>, vector<1x4x4xbf16>
    %50 = vector.shape_cast %49 : vector<1x4x4xbf16> to vector<4x4xbf16>
    %cst_72 = arith.constant dense<0.000000e+00> : vector<256x4xf32>
    %51 = tpu.matmul %48, %50, %cst_72 {dimension_numbers = #tpu.dot_dimension_numbers<[1], [0], [0], [1], [0, 0, 1, 1], [], []>} : vector<256x4xbf16>, vector<4x4xbf16>, vector<256x4xf32> -> vector<256x4xf32>
    %c0_73 = arith.constant 0 : index
    %c0_74 = arith.constant 0 : index
    %52 = vector.load %arg10[%c0_73, %c0_74] : memref<256x4xf32, #tpu.memory_space<vmem>>, vector<256x4xf32>
    %53 = arith.addf %52, %51 : vector<256x4xf32>
    %c0_75 = arith.constant 0 : index
    %c0_76 = arith.constant 0 : index
    %54 = vector.load %arg10[%c0_75, %c0_76] : memref<256x4xf32, #tpu.memory_space<vmem>>, vector<256x4xf32>
    tpu.vector_store %arg10[%c0_75, %c0_76], %53 {strides = array<i32>} : memref<256x4xf32, #tpu.memory_space<vmem>>, vector<256x4xf32>,
    %c2_77 = arith.constant 2 : index
    %c0_78 = arith.constant 0 : index
    %c0_79 = arith.constant 0 : index
    %55 = vector.load %arg9[%c2_77, %c0_78, %c0_79] : memref<18x18x4xbf16, #tpu.memory_space<vmem>>, vector<16x16x4xbf16>
    %56 = vector.shape_cast %55 : vector<16x16x4xbf16> to vector<256x4xbf16>
    %c6 = arith.constant 6 : index
    %c0_80 = arith.constant 0 : index
    %c0_81 = arith.constant 0 : index
    %57 = vector.load %arg2[%c6, %c0_80, %c0_81] : memref<9x4x4xbf16, #tpu.memory_space<vmem>>, vector<1x4x4xbf16>
    %58 = vector.shape_cast %57 : vector<1x4x4xbf16> to vector<4x4xbf16>
    %cst_82 = arith.constant dense<0.000000e+00> : vector<256x4xf32>
    %59 = tpu.matmul %56, %58, %cst_82 {dimension_numbers = #tpu.dot_dimension_numbers<[1], [0], [0], [1], [0, 0, 1, 1], [], []>} : vector<256x4xbf16>, vector<4x4xbf16>, vector<256x4xf32> -> vector<256x4xf32>
    %c0_83 = arith.constant 0 : index
    %c0_84 = arith.constant 0 : index
    %60 = vector.load %arg10[%c0_83, %c0_84] : memref<256x4xf32, #tpu.memory_space<vmem>>, vector<256x4xf32>
    %61 = arith.addf %60, %59 : vector<256x4xf32>
    %c0_85 = arith.constant 0 : index
    %c0_86 = arith.constant 0 : index
    %62 = vector.load %arg10[%c0_85, %c0_86] : memref<256x4xf32, #tpu.memory_space<vmem>>, vector<256x4xf32>
    tpu.vector_store %arg10[%c0_85, %c0_86], %61 {strides = array<i32>} : memref<256x4xf32, #tpu.memory_space<vmem>>, vector<256x4xf32>,
    %c2_87 = arith.constant 2 : index
    %c1_88 = arith.constant 1 : index
    %c0_89 = arith.constant 0 : index
    %63 = vector.load %arg9[%c2_87, %c1_88, %c0_89] : memref<18x18x4xbf16, #tpu.memory_space<vmem>>, vector<16x16x4xbf16>
    %64 = vector.shape_cast %63 : vector<16x16x4xbf16> to vector<256x4xbf16>
    %c7 = arith.constant 7 : index
    %c0_90 = arith.constant 0 : index
    %c0_91 = arith.constant 0 : index
    %65 = vector.load %arg2[%c7, %c0_90, %c0_91] : memref<9x4x4xbf16, #tpu.memory_space<vmem>>, vector<1x4x4xbf16>
    %66 = vector.shape_cast %65 : vector<1x4x4xbf16> to vector<4x4xbf16>
    %cst_92 = arith.constant dense<0.000000e+00> : vector<256x4xf32>
    %67 = tpu.matmul %64, %66, %cst_92 {dimension_numbers = #tpu.dot_dimension_numbers<[1], [0], [0], [1], [0, 0, 1, 1], [], []>} : vector<256x4xbf16>, vector<4x4xbf16>, vector<256x4xf32> -> vector<256x4xf32>
    %c0_93 = arith.constant 0 : index
    %c0_94 = arith.constant 0 : index
    %68 = vector.load %arg10[%c0_93, %c0_94] : memref<256x4xf32, #tpu.memory_space<vmem>>, vector<256x4xf32>
    %69 = arith.addf %68, %67 : vector<256x4xf32>
    %c0_95 = arith.constant 0 : index
    %c0_96 = arith.constant 0 : index
    %70 = vector.load %arg10[%c0_95, %c0_96] : memref<256x4xf32, #tpu.memory_space<vmem>>, vector<256x4xf32>
    tpu.vector_store %arg10[%c0_95, %c0_96], %69 {strides = array<i32>} : memref<256x4xf32, #tpu.memory_space<vmem>>, vector<256x4xf32>,
    %c2_97 = arith.constant 2 : index
    %c2_98 = arith.constant 2 : index
    %c0_99 = arith.constant 0 : index
    %71 = vector.load %arg9[%c2_97, %c2_98, %c0_99] : memref<18x18x4xbf16, #tpu.memory_space<vmem>>, vector<16x16x4xbf16>
    %72 = vector.shape_cast %71 : vector<16x16x4xbf16> to vector<256x4xbf16>
    %c8 = arith.constant 8 : index
    %c0_100 = arith.constant 0 : index
    %c0_101 = arith.constant 0 : index
    %73 = vector.load %arg2[%c8, %c0_100, %c0_101] : memref<9x4x4xbf16, #tpu.memory_space<vmem>>, vector<1x4x4xbf16>
    %74 = vector.shape_cast %73 : vector<1x4x4xbf16> to vector<4x4xbf16>
    %cst_102 = arith.constant dense<0.000000e+00> : vector<256x4xf32>
    %75 = tpu.matmul %72, %74, %cst_102 {dimension_numbers = #tpu.dot_dimension_numbers<[1], [0], [0], [1], [0, 0, 1, 1], [], []>} : vector<256x4xbf16>, vector<4x4xbf16>, vector<256x4xf32> -> vector<256x4xf32>
    %c0_103 = arith.constant 0 : index
    %c0_104 = arith.constant 0 : index
    %76 = vector.load %arg10[%c0_103, %c0_104] : memref<256x4xf32, #tpu.memory_space<vmem>>, vector<256x4xf32>
    %77 = arith.addf %76, %75 : vector<256x4xf32>
    %c0_105 = arith.constant 0 : index
    %c0_106 = arith.constant 0 : index
    %78 = vector.load %arg10[%c0_105, %c0_106] : memref<256x4xf32, #tpu.memory_space<vmem>>, vector<256x4xf32>
    tpu.vector_store %arg10[%c0_105, %c0_106], %77 {strides = array<i32>} : memref<256x4xf32, #tpu.memory_space<vmem>>, vector<256x4xf32>,
    %c0_107 = arith.constant 0 : index
    %c0_108 = arith.constant 0 : index
    %79 = vector.load %arg10[%c0_107, %c0_108] : memref<256x4xf32, #tpu.memory_space<vmem>>, vector<256x4xf32>
    %c0_109 = arith.constant 0 : index
    %c0_110 = arith.constant 0 : index
    %80 = vector.load %arg4[%c0_109, %c0_110] : memref<1x4xf32, #tpu.memory_space<vmem>>, vector<1x4xf32>
    %81 = vector.broadcast %80 : vector<1x4xf32> to vector<256x4xf32>
    %82 = arith.mulf %79, %81 : vector<256x4xf32>
    %c0_111 = arith.constant 0 : index
    %c0_112 = arith.constant 0 : index
    %83 = vector.load %arg5[%c0_111, %c0_112] : memref<1x4xf32, #tpu.memory_space<vmem>>, vector<1x4xf32>
    %84 = vector.broadcast %83 : vector<1x4xf32> to vector<256x4xf32>
    %85 = arith.addf %82, %84 : vector<256x4xf32>
    %cst_113 = arith.constant 0.000000e+00 : f32
    %86 = vector.broadcast %cst_113 : f32 to vector<256x4xf32>
    %87 = arith.maximumf %85, %86 : vector<256x4xf32>
    %88 = vector.shape_cast %87 : vector<256x4xf32> to vector<16x16x4xf32>
    %89 = arith.truncf %88 : vector<16x16x4xf32> to vector<16x16x4xbf16>
    %c1_114 = arith.constant 1 : index
    %c1_115 = arith.constant 1 : index
    %c0_116 = arith.constant 0 : index
    %90 = vector.load %arg9[%c1_114, %c1_115, %c0_116] : memref<18x18x4xbf16, #tpu.memory_space<vmem>>, vector<16x16x4xbf16>
    tpu.vector_store %arg9[%c1_114, %c1_115, %c0_116], %89 {strides = array<i32>} : memref<18x18x4xbf16, #tpu.memory_space<vmem>>, vector<16x16x4xbf16>,
    %c0_117 = arith.constant 0 : index
    %c0_118 = arith.constant 0 : index
    %c0_119 = arith.constant 0 : index
    %91 = vector.load %arg9[%c0_117, %c0_118, %c0_119] : memref<18x18x4xbf16, #tpu.memory_space<vmem>>, vector<16x16x4xbf16>
    %92 = vector.shape_cast %91 : vector<16x16x4xbf16> to vector<256x4xbf16>
    %c0_120 = arith.constant 0 : index
    %c0_121 = arith.constant 0 : index
    %c0_122 = arith.constant 0 : index
    %93 = vector.load %arg3[%c0_120, %c0_121, %c0_122] : memref<9x4x4xbf16, #tpu.memory_space<vmem>>, vector<1x4x4xbf16>
    %94 = vector.shape_cast %93 : vector<1x4x4xbf16> to vector<4x4xbf16>
    %cst_123 = arith.constant dense<0.000000e+00> : vector<256x4xf32>
    %95 = tpu.matmul %92, %94, %cst_123 {dimension_numbers = #tpu.dot_dimension_numbers<[1], [0], [0], [1], [0, 0, 1, 1], [], []>} : vector<256x4xbf16>, vector<4x4xbf16>, vector<256x4xf32> -> vector<256x4xf32>
    %c0_124 = arith.constant 0 : index
    %c0_125 = arith.constant 0 : index
    %96 = vector.load %arg10[%c0_124, %c0_125] : memref<256x4xf32, #tpu.memory_space<vmem>>, vector<256x4xf32>
    tpu.vector_store %arg10[%c0_124, %c0_125], %95 {strides = array<i32>} : memref<256x4xf32, #tpu.memory_space<vmem>>, vector<256x4xf32>,
    %c0_126 = arith.constant 0 : index
    %c1_127 = arith.constant 1 : index
    %c0_128 = arith.constant 0 : index
    %97 = vector.load %arg9[%c0_126, %c1_127, %c0_128] : memref<18x18x4xbf16, #tpu.memory_space<vmem>>, vector<16x16x4xbf16>
    %98 = vector.shape_cast %97 : vector<16x16x4xbf16> to vector<256x4xbf16>
    %c1_129 = arith.constant 1 : index
    %c0_130 = arith.constant 0 : index
    %c0_131 = arith.constant 0 : index
    %99 = vector.load %arg3[%c1_129, %c0_130, %c0_131] : memref<9x4x4xbf16, #tpu.memory_space<vmem>>, vector<1x4x4xbf16>
    %100 = vector.shape_cast %99 : vector<1x4x4xbf16> to vector<4x4xbf16>
    %cst_132 = arith.constant dense<0.000000e+00> : vector<256x4xf32>
    %101 = tpu.matmul %98, %100, %cst_132 {dimension_numbers = #tpu.dot_dimension_numbers<[1], [0], [0], [1], [0, 0, 1, 1], [], []>} : vector<256x4xbf16>, vector<4x4xbf16>, vector<256x4xf32> -> vector<256x4xf32>
    %c0_133 = arith.constant 0 : index
    %c0_134 = arith.constant 0 : index
    %102 = vector.load %arg10[%c0_133, %c0_134] : memref<256x4xf32, #tpu.memory_space<vmem>>, vector<256x4xf32>
    %103 = arith.addf %102, %101 : vector<256x4xf32>
    %c0_135 = arith.constant 0 : index
    %c0_136 = arith.constant 0 : index
    %104 = vector.load %arg10[%c0_135, %c0_136] : memref<256x4xf32, #tpu.memory_space<vmem>>, vector<256x4xf32>
    tpu.vector_store %arg10[%c0_135, %c0_136], %103 {strides = array<i32>} : memref<256x4xf32, #tpu.memory_space<vmem>>, vector<256x4xf32>,
    %c0_137 = arith.constant 0 : index
    %c2_138 = arith.constant 2 : index
    %c0_139 = arith.constant 0 : index
    %105 = vector.load %arg9[%c0_137, %c2_138, %c0_139] : memref<18x18x4xbf16, #tpu.memory_space<vmem>>, vector<16x16x4xbf16>
    %106 = vector.shape_cast %105 : vector<16x16x4xbf16> to vector<256x4xbf16>
    %c2_140 = arith.constant 2 : index
    %c0_141 = arith.constant 0 : index
    %c0_142 = arith.constant 0 : index
    %107 = vector.load %arg3[%c2_140, %c0_141, %c0_142] : memref<9x4x4xbf16, #tpu.memory_space<vmem>>, vector<1x4x4xbf16>
    %108 = vector.shape_cast %107 : vector<1x4x4xbf16> to vector<4x4xbf16>
    %cst_143 = arith.constant dense<0.000000e+00> : vector<256x4xf32>
    %109 = tpu.matmul %106, %108, %cst_143 {dimension_numbers = #tpu.dot_dimension_numbers<[1], [0], [0], [1], [0, 0, 1, 1], [], []>} : vector<256x4xbf16>, vector<4x4xbf16>, vector<256x4xf32> -> vector<256x4xf32>
    %c0_144 = arith.constant 0 : index
    %c0_145 = arith.constant 0 : index
    %110 = vector.load %arg10[%c0_144, %c0_145] : memref<256x4xf32, #tpu.memory_space<vmem>>, vector<256x4xf32>
    %111 = arith.addf %110, %109 : vector<256x4xf32>
    %c0_146 = arith.constant 0 : index
    %c0_147 = arith.constant 0 : index
    %112 = vector.load %arg10[%c0_146, %c0_147] : memref<256x4xf32, #tpu.memory_space<vmem>>, vector<256x4xf32>
    tpu.vector_store %arg10[%c0_146, %c0_147], %111 {strides = array<i32>} : memref<256x4xf32, #tpu.memory_space<vmem>>, vector<256x4xf32>,
    %c1_148 = arith.constant 1 : index
    %c0_149 = arith.constant 0 : index
    %c0_150 = arith.constant 0 : index
    %113 = vector.load %arg9[%c1_148, %c0_149, %c0_150] : memref<18x18x4xbf16, #tpu.memory_space<vmem>>, vector<16x16x4xbf16>
    %114 = vector.shape_cast %113 : vector<16x16x4xbf16> to vector<256x4xbf16>
    %c3_151 = arith.constant 3 : index
    %c0_152 = arith.constant 0 : index
    %c0_153 = arith.constant 0 : index
    %115 = vector.load %arg3[%c3_151, %c0_152, %c0_153] : memref<9x4x4xbf16, #tpu.memory_space<vmem>>, vector<1x4x4xbf16>
    %116 = vector.shape_cast %115 : vector<1x4x4xbf16> to vector<4x4xbf16>
    %cst_154 = arith.constant dense<0.000000e+00> : vector<256x4xf32>
    %117 = tpu.matmul %114, %116, %cst_154 {dimension_numbers = #tpu.dot_dimension_numbers<[1], [0], [0], [1], [0, 0, 1, 1], [], []>} : vector<256x4xbf16>, vector<4x4xbf16>, vector<256x4xf32> -> vector<256x4xf32>
    %c0_155 = arith.constant 0 : index
    %c0_156 = arith.constant 0 : index
    %118 = vector.load %arg10[%c0_155, %c0_156] : memref<256x4xf32, #tpu.memory_space<vmem>>, vector<256x4xf32>
    %119 = arith.addf %118, %117 : vector<256x4xf32>
    %c0_157 = arith.constant 0 : index
    %c0_158 = arith.constant 0 : index
    %120 = vector.load %arg10[%c0_157, %c0_158] : memref<256x4xf32, #tpu.memory_space<vmem>>, vector<256x4xf32>
    tpu.vector_store %arg10[%c0_157, %c0_158], %119 {strides = array<i32>} : memref<256x4xf32, #tpu.memory_space<vmem>>, vector<256x4xf32>,
    %c1_159 = arith.constant 1 : index
    %c1_160 = arith.constant 1 : index
    %c0_161 = arith.constant 0 : index
    %121 = vector.load %arg9[%c1_159, %c1_160, %c0_161] : memref<18x18x4xbf16, #tpu.memory_space<vmem>>, vector<16x16x4xbf16>
    %122 = vector.shape_cast %121 : vector<16x16x4xbf16> to vector<256x4xbf16>
    %c4_162 = arith.constant 4 : index
    %c0_163 = arith.constant 0 : index
    %c0_164 = arith.constant 0 : index
    %123 = vector.load %arg3[%c4_162, %c0_163, %c0_164] : memref<9x4x4xbf16, #tpu.memory_space<vmem>>, vector<1x4x4xbf16>
    %124 = vector.shape_cast %123 : vector<1x4x4xbf16> to vector<4x4xbf16>
    %cst_165 = arith.constant dense<0.000000e+00> : vector<256x4xf32>
    %125 = tpu.matmul %122, %124, %cst_165 {dimension_numbers = #tpu.dot_dimension_numbers<[1], [0], [0], [1], [0, 0, 1, 1], [], []>} : vector<256x4xbf16>, vector<4x4xbf16>, vector<256x4xf32> -> vector<256x4xf32>
    %c0_166 = arith.constant 0 : index
    %c0_167 = arith.constant 0 : index
    %126 = vector.load %arg10[%c0_166, %c0_167] : memref<256x4xf32, #tpu.memory_space<vmem>>, vector<256x4xf32>
    %127 = arith.addf %126, %125 : vector<256x4xf32>
    %c0_168 = arith.constant 0 : index
    %c0_169 = arith.constant 0 : index
    %128 = vector.load %arg10[%c0_168, %c0_169] : memref<256x4xf32, #tpu.memory_space<vmem>>, vector<256x4xf32>
    tpu.vector_store %arg10[%c0_168, %c0_169], %127 {strides = array<i32>} : memref<256x4xf32, #tpu.memory_space<vmem>>, vector<256x4xf32>,
    %c1_170 = arith.constant 1 : index
    %c2_171 = arith.constant 2 : index
    %c0_172 = arith.constant 0 : index
    %129 = vector.load %arg9[%c1_170, %c2_171, %c0_172] : memref<18x18x4xbf16, #tpu.memory_space<vmem>>, vector<16x16x4xbf16>
    %130 = vector.shape_cast %129 : vector<16x16x4xbf16> to vector<256x4xbf16>
    %c5_173 = arith.constant 5 : index
    %c0_174 = arith.constant 0 : index
    %c0_175 = arith.constant 0 : index
    %131 = vector.load %arg3[%c5_173, %c0_174, %c0_175] : memref<9x4x4xbf16, #tpu.memory_space<vmem>>, vector<1x4x4xbf16>
    %132 = vector.shape_cast %131 : vector<1x4x4xbf16> to vector<4x4xbf16>
    %cst_176 = arith.constant dense<0.000000e+00> : vector<256x4xf32>
    %133 = tpu.matmul %130, %132, %cst_176 {dimension_numbers = #tpu.dot_dimension_numbers<[1], [0], [0], [1], [0, 0, 1, 1], [], []>} : vector<256x4xbf16>, vector<4x4xbf16>, vector<256x4xf32> -> vector<256x4xf32>
    %c0_177 = arith.constant 0 : index
    %c0_178 = arith.constant 0 : index
    %134 = vector.load %arg10[%c0_177, %c0_178] : memref<256x4xf32, #tpu.memory_space<vmem>>, vector<256x4xf32>
    %135 = arith.addf %134, %133 : vector<256x4xf32>
    %c0_179 = arith.constant 0 : index
    %c0_180 = arith.constant 0 : index
    %136 = vector.load %arg10[%c0_179, %c0_180] : memref<256x4xf32, #tpu.memory_space<vmem>>, vector<256x4xf32>
    tpu.vector_store %arg10[%c0_179, %c0_180], %135 {strides = array<i32>} : memref<256x4xf32, #tpu.memory_space<vmem>>, vector<256x4xf32>,
    %c2_181 = arith.constant 2 : index
    %c0_182 = arith.constant 0 : index
    %c0_183 = arith.constant 0 : index
    %137 = vector.load %arg9[%c2_181, %c0_182, %c0_183] : memref<18x18x4xbf16, #tpu.memory_space<vmem>>, vector<16x16x4xbf16>
    %138 = vector.shape_cast %137 : vector<16x16x4xbf16> to vector<256x4xbf16>
    %c6_184 = arith.constant 6 : index
    %c0_185 = arith.constant 0 : index
    %c0_186 = arith.constant 0 : index
    %139 = vector.load %arg3[%c6_184, %c0_185, %c0_186] : memref<9x4x4xbf16, #tpu.memory_space<vmem>>, vector<1x4x4xbf16>
    %140 = vector.shape_cast %139 : vector<1x4x4xbf16> to vector<4x4xbf16>
    %cst_187 = arith.constant dense<0.000000e+00> : vector<256x4xf32>
    %141 = tpu.matmul %138, %140, %cst_187 {dimension_numbers = #tpu.dot_dimension_numbers<[1], [0], [0], [1], [0, 0, 1, 1], [], []>} : vector<256x4xbf16>, vector<4x4xbf16>, vector<256x4xf32> -> vector<256x4xf32>
    %c0_188 = arith.constant 0 : index
    %c0_189 = arith.constant 0 : index
    %142 = vector.load %arg10[%c0_188, %c0_189] : memref<256x4xf32, #tpu.memory_space<vmem>>, vector<256x4xf32>
    %143 = arith.addf %142, %141 : vector<256x4xf32>
    %c0_190 = arith.constant 0 : index
    %c0_191 = arith.constant 0 : index
    %144 = vector.load %arg10[%c0_190, %c0_191] : memref<256x4xf32, #tpu.memory_space<vmem>>, vector<256x4xf32>
    tpu.vector_store %arg10[%c0_190, %c0_191], %143 {strides = array<i32>} : memref<256x4xf32, #tpu.memory_space<vmem>>, vector<256x4xf32>,
    %c2_192 = arith.constant 2 : index
    %c1_193 = arith.constant 1 : index
    %c0_194 = arith.constant 0 : index
    %145 = vector.load %arg9[%c2_192, %c1_193, %c0_194] : memref<18x18x4xbf16, #tpu.memory_space<vmem>>, vector<16x16x4xbf16>
    %146 = vector.shape_cast %145 : vector<16x16x4xbf16> to vector<256x4xbf16>
    %c7_195 = arith.constant 7 : index
    %c0_196 = arith.constant 0 : index
    %c0_197 = arith.constant 0 : index
    %147 = vector.load %arg3[%c7_195, %c0_196, %c0_197] : memref<9x4x4xbf16, #tpu.memory_space<vmem>>, vector<1x4x4xbf16>
    %148 = vector.shape_cast %147 : vector<1x4x4xbf16> to vector<4x4xbf16>
    %cst_198 = arith.constant dense<0.000000e+00> : vector<256x4xf32>
    %149 = tpu.matmul %146, %148, %cst_198 {dimension_numbers = #tpu.dot_dimension_numbers<[1], [0], [0], [1], [0, 0, 1, 1], [], []>} : vector<256x4xbf16>, vector<4x4xbf16>, vector<256x4xf32> -> vector<256x4xf32>
    %c0_199 = arith.constant 0 : index
    %c0_200 = arith.constant 0 : index
    %150 = vector.load %arg10[%c0_199, %c0_200] : memref<256x4xf32, #tpu.memory_space<vmem>>, vector<256x4xf32>
    %151 = arith.addf %150, %149 : vector<256x4xf32>
    %c0_201 = arith.constant 0 : index
    %c0_202 = arith.constant 0 : index
    %152 = vector.load %arg10[%c0_201, %c0_202] : memref<256x4xf32, #tpu.memory_space<vmem>>, vector<256x4xf32>
    tpu.vector_store %arg10[%c0_201, %c0_202], %151 {strides = array<i32>} : memref<256x4xf32, #tpu.memory_space<vmem>>, vector<256x4xf32>,
    %c2_203 = arith.constant 2 : index
    %c2_204 = arith.constant 2 : index
    %c0_205 = arith.constant 0 : index
    %153 = vector.load %arg9[%c2_203, %c2_204, %c0_205] : memref<18x18x4xbf16, #tpu.memory_space<vmem>>, vector<16x16x4xbf16>
    %154 = vector.shape_cast %153 : vector<16x16x4xbf16> to vector<256x4xbf16>
    %c8_206 = arith.constant 8 : index
    %c0_207 = arith.constant 0 : index
    %c0_208 = arith.constant 0 : index
    %155 = vector.load %arg3[%c8_206, %c0_207, %c0_208] : memref<9x4x4xbf16, #tpu.memory_space<vmem>>, vector<1x4x4xbf16>
    %156 = vector.shape_cast %155 : vector<1x4x4xbf16> to vector<4x4xbf16>
    %cst_209 = arith.constant dense<0.000000e+00> : vector<256x4xf32>
    %157 = tpu.matmul %154, %156, %cst_209 {dimension_numbers = #tpu.dot_dimension_numbers<[1], [0], [0], [1], [0, 0, 1, 1], [], []>} : vector<256x4xbf16>, vector<4x4xbf16>, vector<256x4xf32> -> vector<256x4xf32>
    %c0_210 = arith.constant 0 : index
    %c0_211 = arith.constant 0 : index
    %158 = vector.load %arg10[%c0_210, %c0_211] : memref<256x4xf32, #tpu.memory_space<vmem>>, vector<256x4xf32>
    %159 = arith.addf %158, %157 : vector<256x4xf32>
    %c0_212 = arith.constant 0 : index
    %c0_213 = arith.constant 0 : index
    %160 = vector.load %arg10[%c0_212, %c0_213] : memref<256x4xf32, #tpu.memory_space<vmem>>, vector<256x4xf32>
    tpu.vector_store %arg10[%c0_212, %c0_213], %159 {strides = array<i32>} : memref<256x4xf32, #tpu.memory_space<vmem>>, vector<256x4xf32>,
    %c0_214 = arith.constant 0 : index
    %c0_215 = arith.constant 0 : index
    %161 = vector.load %arg10[%c0_214, %c0_215] : memref<256x4xf32, #tpu.memory_space<vmem>>, vector<256x4xf32>
    %c0_216 = arith.constant 0 : index
    %c0_217 = arith.constant 0 : index
    %162 = vector.load %arg6[%c0_216, %c0_217] : memref<1x4xf32, #tpu.memory_space<vmem>>, vector<1x4xf32>
    %163 = vector.broadcast %162 : vector<1x4xf32> to vector<256x4xf32>
    %164 = arith.mulf %161, %163 : vector<256x4xf32>
    %c0_218 = arith.constant 0 : index
    %c0_219 = arith.constant 0 : index
    %165 = vector.load %arg7[%c0_218, %c0_219] : memref<1x4xf32, #tpu.memory_space<vmem>>, vector<1x4xf32>
    %166 = vector.broadcast %165 : vector<1x4xf32> to vector<256x4xf32>
    %167 = arith.addf %164, %166 : vector<256x4xf32>
    %168 = vector.shape_cast %167 : vector<256x4xf32> to vector<16x16x4xf32>
    %169 = arith.extf %7 : vector<16x16x4xbf16> to vector<16x16x4xf32>
    %170 = arith.addf %168, %169 : vector<16x16x4xf32>
    %cst_220 = arith.constant 0.000000e+00 : f32
    %171 = vector.broadcast %cst_220 : f32 to vector<16x16x4xf32>
    %172 = arith.maximumf %170, %171 : vector<16x16x4xf32>
    %173 = arith.truncf %172 : vector<16x16x4xf32> to vector<16x16x4xbf16>
    %c0_221 = arith.constant 0 : index
    %c0_222 = arith.constant 0 : index
    %c0_223 = arith.constant 0 : index
    %c0_224 = arith.constant 0 : index
    %174 = vector.load %arg8[%c0_221, %c0_222, %c0_223, %c0_224] : memref<1x16x16x4xbf16, #tpu.memory_space<vmem>>, vector<1x16x16x4xbf16>
    %175 = vector.shape_cast %174 : vector<1x16x16x4xbf16> to vector<16x16x4xbf16>
    %176 = vector.shape_cast %173 : vector<16x16x4xbf16> to vector<1x16x16x4xbf16>
    tpu.vector_store %arg8[%c0_221, %c0_222, %c0_223, %c0_224], %176 {strides = array<i32>} : memref<1x16x16x4xbf16, #tpu.memory_space<vmem>>, vector<1x16x16x4xbf16>,
    return
  }
  func.func @transform_0(%arg0: i32) -> (i32, i32, i32, i32) {
    %c0_i32 = arith.constant 0 : i32
    %c0_i32_0 = arith.constant 0 : i32
    %c0_i32_1 = arith.constant 0 : i32
    %c0_i32_2 = arith.constant 0 : i32
    return %arg0, %c0_i32, %c0_i32_0, %c0_i32_1 : i32, i32, i32, i32
  }
  func.func @transform_1(%arg0: i32) -> (i32, i32, i32) {
    %c0_i32 = arith.constant 0 : i32
    %c0_i32_0 = arith.constant 0 : i32
    %c0_i32_1 = arith.constant 0 : i32
    %c0_i32_2 = arith.constant 0 : i32
    return %c0_i32, %c0_i32_0, %c0_i32_1 : i32, i32, i32
  }
  func.func @transform_2(%arg0: i32) -> (i32, i32, i32) {
    %c0_i32 = arith.constant 0 : i32
    %c0_i32_0 = arith.constant 0 : i32
    %c0_i32_1 = arith.constant 0 : i32
    %c0_i32_2 = arith.constant 0 : i32
    return %c0_i32, %c0_i32_0, %c0_i32_1 : i32, i32, i32
  }
  func.func @transform_3(%arg0: i32) -> (i32, i32) {
    %c0_i32 = arith.constant 0 : i32
    %c0_i32_0 = arith.constant 0 : i32
    %c0_i32_1 = arith.constant 0 : i32
    return %c0_i32, %c0_i32_0 : i32, i32
  }
  func.func @transform_4(%arg0: i32) -> (i32, i32) {
    %c0_i32 = arith.constant 0 : i32
    %c0_i32_0 = arith.constant 0 : i32
    %c0_i32_1 = arith.constant 0 : i32
    return %c0_i32, %c0_i32_0 : i32, i32
  }
  func.func @transform_5(%arg0: i32) -> (i32, i32) {
    %c0_i32 = arith.constant 0 : i32
    %c0_i32_0 = arith.constant 0 : i32
    %c0_i32_1 = arith.constant 0 : i32
    return %c0_i32, %c0_i32_0 : i32, i32
  }
  func.func @transform_6(%arg0: i32) -> (i32, i32) {
    %c0_i32 = arith.constant 0 : i32
    %c0_i32_0 = arith.constant 0 : i32
    %c0_i32_1 = arith.constant 0 : i32
    return %c0_i32, %c0_i32_0 : i32, i32
  }
  func.func @transform_7(%arg0: i32) -> (i32, i32, i32, i32) {
    %c0_i32 = arith.constant 0 : i32
    %c0_i32_0 = arith.constant 0 : i32
    %c0_i32_1 = arith.constant 0 : i32
    %c0_i32_2 = arith.constant 0 : i32
    return %arg0, %c0_i32, %c0_i32_0, %c0_i32_1 : i32, i32, i32, i32
  }
}

</mosaic_0001>

<llo_original>
// kernel: basic_block_forward.1
$region0: #{basic_block_forward.1}
  #allocation0 [shape = 'u32[]', space=smem, size = 0x4, offset = 0x4, fixed_abs, tag = 'smem constant byte address 0x4 - core index']
  #allocation1 [shape = 'u32[144,128]{1,0:T(1,128)}', space=vmem, size = 0x12000, scoped, tag = 'internal scratch']
  #allocation2 [shape = 'bf16[18,18,4]{2,1,0:T(8,128)(2,1)}', space=vmem, size = 0x1b000, scoped, tag = 'scratch operand']
  #allocation3 [shape = 'f32[256,4]{1,0:T(8,128)}', space=vmem, size = 0x20000, scoped, tag = 'scratch operand']
  %s0 = inlined_call_operand.vmem [shape: bf16[2,16,16,4], index: 0, kind: input, shape index: {}]
  %s1 = inlined_call_operand.vmem [shape: bf16[9,4,4], index: 1, kind: input, shape index: {}]
  %s2 = inlined_call_operand.vmem [shape: bf16[9,4,4], index: 2, kind: input, shape index: {}]
  %s3 = inlined_call_operand.vmem [shape: f32[1,4], index: 3, kind: input, shape index: {}]
  %s4 = inlined_call_operand.vmem [shape: f32[1,4], index: 4, kind: input, shape index: {}]
  %s5 = inlined_call_operand.vmem [shape: f32[1,4], index: 5, kind: input, shape index: {}]
  %s6 = inlined_call_operand.vmem [shape: f32[1,4], index: 6, kind: input, shape index: {}]
  %s7 = inlined_call_operand.vmem [shape: bf16[2,16,16,4], index: 7, kind: output, shape index: {}]
  %s8 = sld [smem:[#allocation0]]
  $region61: #{basic_block_forward.1} parent=0
    _
  %s10 = ssub.s32 1, %s8
  %s11 = scalar_select 0, %s10, %s8
  loop: start=0, step=1, limit=4
  $region2: #{basic_block_forward.1} parent=0 // loop_pre_header
    _
  $region3: #{basic_block_forward.1} parent=0 // loop_header
    %s13 = sphi 0, %s17
    %p14 = scmp.ge.s32.totalorder %s13, 4
    %s23 = sphi 0, %s25
    %s26 = sphi 0, %s23
    %s27 = sphi 0, %s26
    %s43 = sphi 0, %s27
    %s47 = sphi 0, %s47
    %s49 = sphi 0, %s47
    %s50 = sphi 0, %s49
    %s64 = sphi 0, %s50
    %s68 = sphi 0, %s68
    %s70 = sphi 0, %s68
    %s71 = sphi 0, %s70
    %s85 = sphi 0, %s71
    %s89 = sphi 0, %s89
    %s91 = sphi 0, %s89
    %s92 = sphi 0, %s91
    %s106 = sphi 0, %s92
    %s110 = sphi 0, %s110
    %s112 = sphi 0, %s110
    %s113 = sphi 0, %s112
    %s127 = sphi 0, %s113
    %s131 = sphi 0, %s131
    %s133 = sphi 0, %s131
    %s134 = sphi 0, %s133
    %s148 = sphi 0, %s134
    %s152 = sphi 0, %s152
    %s154 = sphi 0, %s152
    %s155 = sphi 0, %s154
    %s169 = sphi 0, %s155
    %s175 = sphi 0, %s177
    %s178 = sphi 0, %s175
    %s179 = sphi 0, %s178
    %s195 = sphi 0, %s179
  $region4: #{basic_block_forward.1} parent=0 // loop_header_branch
    %16 = sbr.rel (%p14) target = $region8
  $region5: #{basic_block_forward.1} parent=0 // loop_body
    %s18 = ssub.s32 %s13, 1
    %s19 = ssub.s32 %s13, 2
    %s20 = sadd.s32 %s13, 1
    %s21 = ssub.s32 %s13, %s20
    %p22 = scmp.eq.s32.totalorder %s21, 0
    %s24 = sadd.s32 %s23, 1
    %s25 = scalar_select %p22, %s23, %s24
    %p28 = pneg %p22
    %p29 = scmp.eq.s32.totalorder %s13, 1
    %p30 = por %p28, %p29
    %p31 = scmp.ne.s32.totalorder %s23, %s26
    %p32 = scmp.eq.s32.totalorder %s13, 0
    %p33 = por %p31, %p32
    %p34 = scmp.ne.s32.totalorder %s23, %s26
    %p35 = scmp.eq.s32.totalorder %s18, 1
    %p36 = por %p34, %p35
    %p37 = scmp.ne.s32.totalorder %s26, %s27
    %p38 = scmp.eq.s32.totalorder %s18, 0
    %p39 = por %p37, %p38
    %p40 = scmp.ne.s32.totalorder %s26, %s27
    %p41 = scmp.eq.s32.totalorder %s19, 1
    %p42 = por %p40, %p41
    %p44 = scmp.ne.s32.totalorder %s27, %s43
    %p45 = scmp.eq.s32.totalorder %s19, 0
    %p46 = por %p44, %p45
    %s48 = sadd.s32 %s47, 1
    %p51 = scmp.eq.s32.totalorder %s13, 1
    %p52 = scmp.ne.s32.totalorder %s47, %s49
    %p53 = scmp.eq.s32.totalorder %s13, 0
    %p54 = por %p52, %p53
    %p55 = scmp.ne.s32.totalorder %s47, %s49
    %p56 = scmp.eq.s32.totalorder %s18, 1
    %p57 = por %p55, %p56
    %p58 = scmp.ne.s32.totalorder %s49, %s50
    %p59 = scmp.eq.s32.totalorder %s18, 0
    %p60 = por %p58, %p59
    %p61 = scmp.ne.s32.totalorder %s49, %s50
    %p62 = scmp.eq.s32.totalorder %s19, 1
    %p63 = por %p61, %p62
    %p65 = scmp.ne.s32.totalorder %s50, %s64
    %p66 = scmp.eq.s32.totalorder %s19, 0
    %p67 = por %p65, %p66
    %s69 = sadd.s32 %s68, 1
    %p72 = scmp.eq.s32.totalorder %s13, 1
    %p73 = scmp.ne.s32.totalorder %s68, %s70
    %p74 = scmp.eq.s32.totalorder %s13, 0
    %p75 = por %p73, %p74
    %p76 = scmp.ne.s32.totalorder %s68, %s70
    %p77 = scmp.eq.s32.totalorder %s18, 1
    %p78 = por %p76, %p77
    %p79 = scmp.ne.s32.totalorder %s70, %s71
    %p80 = scmp.eq.s32.totalorder %s18, 0
    %p81 = por %p79, %p80
    %p82 = scmp.ne.s32.totalorder %s70, %s71
    %p83 = scmp.eq.s32.totalorder %s19, 1
    %p84 = por %p82, %p83
    %p86 = scmp.ne.s32.totalorder %s71, %s85
    %p87 = scmp.eq.s32.totalorder %s19, 0
    %p88 = por %p86, %p87
    %s90 = sadd.s32 %s89, 1
    %p93 = scmp.eq.s32.totalorder %s13, 1
    %p94 = scmp.ne.s32.totalorder %s89, %s91
    %p95 = scmp.eq.s32.totalorder %s13, 0
    %p96 = por %p94, %p95
    %p97 = scmp.ne.s32.totalorder %s89, %s91
    %p98 = scmp.eq.s32.totalorder %s18, 1
    %p99 = por %p97, %p98
    %p100 = scmp.ne.s32.totalorder %s91, %s92
    %p101 = scmp.eq.s32.totalorder %s18, 0
    %p102 = por %p100, %p101
    %p103 = scmp.ne.s32.totalorder %s91, %s92
    %p104 = scmp.eq.s32.totalorder %s19, 1
    %p105 = por %p103, %p104
    %p107 = scmp.ne.s32.totalorder %s92, %s106
    %p108 = scmp.eq.s32.totalorder %s19, 0
    %p109 = por %p107, %p108
    %s111 = sadd.s32 %s110, 1
    %p114 = scmp.eq.s32.totalorder %s13, 1
    %p115 = scmp.ne.s32.totalorder %s110, %s112
    %p116 = scmp.eq.s32.totalorder %s13, 0
    %p117 = por %p115, %p116
    %p118 = scmp.ne.s32.totalorder %s110, %s112
    %p119 = scmp.eq.s32.totalorder %s18, 1
    %p120 = por %p118, %p119
    %p121 = scmp.ne.s32.totalorder %s112, %s113
    %p122 = scmp.eq.s32.totalorder %s18, 0
    %p123 = por %p121, %p122
    %p124 = scmp.ne.s32.totalorder %s112, %s113
    %p125 = scmp.eq.s32.totalorder %s19, 1
    %p126 = por %p124, %p125
    %p128 = scmp.ne.s32.totalorder %s113, %s127
    %p129 = scmp.eq.s32.totalorder %s19, 0
    %p130 = por %p128, %p129
    %s132 = sadd.s32 %s131, 1
    %p135 = scmp.eq.s32.totalorder %s13, 1
    %p136 = scmp.ne.s32.totalorder %s131, %s133
    %p137 = scmp.eq.s32.totalorder %s13, 0
    %p138 = por %p136, %p137
    %p139 = scmp.ne.s32.totalorder %s131, %s133
    %p140 = scmp.eq.s32.totalorder %s18, 1
    %p141 = por %p139, %p140
    %p142 = scmp.ne.s32.totalorder %s133, %s134
    %p143 = scmp.eq.s32.totalorder %s18, 0
    %p144 = por %p142, %p143
    %p145 = scmp.ne.s32.totalorder %s133, %s134
    %p146 = scmp.eq.s32.totalorder %s19, 1
    %p147 = por %p145, %p146
    %p149 = scmp.ne.s32.totalorder %s134, %s148
    %p150 = scmp.eq.s32.totalorder %s19, 0
    %p151 = por %p149, %p150
    %s153 = sadd.s32 %s152, 1
    %p156 = scmp.eq.s32.totalorder %s13, 1
    %p157 = scmp.ne.s32.totalorder %s152, %s154
    %p158 = scmp.eq.s32.totalorder %s13, 0
    %p159 = por %p157, %p158
    %p160 = scmp.ne.s32.totalorder %s152, %s154
    %p161 = scmp.eq.s32.totalorder %s18, 1
    %p162 = por %p160, %p161
    %p163 = scmp.ne.s32.totalorder %s154, %s155
    %p164 = scmp.eq.s32.totalorder %s18, 0
    %p165 = por %p163, %p164
    %p166 = scmp.ne.s32.totalorder %s154, %s155
    %p167 = scmp.eq.s32.totalorder %s19, 1
    %p168 = por %p166, %p167
    %p170 = scmp.ne.s32.totalorder %s155, %s169
    %p171 = scmp.eq.s32.totalorder %s19, 0
    %p172 = por %p170, %p171
    %s173 = ssub.s32 %s13, %s20
    %p174 = scmp.eq.s32.totalorder %s173, 0
    %s176 = sadd.s32 %s175, 1
    %s177 = scalar_select %p174, %s175, %s176
    %p180 = pneg %p174
    %p181 = scmp.eq.s32.totalorder %s13, 1
    %p182 = por %p180, %p181
    %p183 = scmp.ne.s32.totalorder %s175, %s178
    %p184 = scmp.eq.s32.totalorder %s13, 0
    %p185 = por %p183, %p184
    %p186 = scmp.ne.s32.totalorder %s175, %s178
    %p187 = scmp.eq.s32.totalorder %s18, 1
    %p188 = por %p186, %p187
    %p189 = scmp.ne.s32.totalorder %s178, %s179
    %p190 = scmp.eq.s32.totalorder %s18, 0
    %p191 = por %p189, %p190
    %p192 = scmp.ne.s32.totalorder %s178, %s179
    %p193 = scmp.eq.s32.totalorder %s19, 1
    %p194 = por %p192, %p193
    %p196 = scmp.ne.s32.totalorder %s179, %s195
    %p197 = scmp.eq.s32.totalorder %s19, 0
    %p198 = por %p196, %p197
    %p199 = scmp.le.s32.totalorder 1, %s13
    %p200 = scmp.lt.s32.totalorder %s13, 3
    %p201 = pnand %p199, %p200
    %p202 = pneg %p201
    // Predicated region
    $region9: #{basic_block_forward.1} parent=5 // pred_check
      _
    $region10: #{basic_block_forward.1} parent=5 // pred_check_branch
      %204 = sbr.rel (%p201) target = $region12
    $region11: #{basic_block_forward.1} parent=5 // pred_region
      %s205 = ssub.s32 %s13, 1
      // Predicated region
      $region13: #{basic_block_forward.1} parent=11 // pred_check
        %p206 = pneg %p60
      $region14: #{basic_block_forward.1} parent=11 // pred_check_branch
        %208 = sbr.rel (%p206) target = $region16
      $region15: #{basic_block_forward.1} parent=11 // pred_region
        _
      $region16: #{basic_block_forward.1} parent=11 // pred_fallthru
        _
      // Predicated region
      $region17: #{basic_block_forward.1} parent=11 // pred_check
        %p209 = pneg %p81
      $region18: #{basic_block_forward.1} parent=11 // pred_check_branch
        %211 = sbr.rel (%p209) target = $region20
      $region19: #{basic_block_forward.1} parent=11 // pred_region
        _
      $region20: #{basic_block_forward.1} parent=11 // pred_fallthru
        _
      // Predicated region
      $region21: #{basic_block_forward.1} parent=11 // pred_check
        %p212 = pneg %p102
      $region22: #{basic_block_forward.1} parent=11 // pred_check_branch
        %214 = sbr.rel (%p212) target = $region24
      $region23: #{basic_block_forward.1} parent=11 // pred_region
        _
      $region24: #{basic_block_forward.1} parent=11 // pred_fallthru
        _
      // Predicated region
      $region25: #{basic_block_forward.1} parent=11 // pred_check
        %p215 = pneg %p123
      $region26: #{basic_block_forward.1} parent=11 // pred_check_branch
        %217 = sbr.rel (%p215) target = $region28
      $region27: #{basic_block_forward.1} parent=11 // pred_region
        _
      $region28: #{basic_block_forward.1} parent=11 // pred_fallthru
        _
      // Predicated region
      $region29: #{basic_block_forward.1} parent=11 // pred_check
        %p218 = pneg %p144
      $region30: #{basic_block_forward.1} parent=11 // pred_check_branch
        %220 = sbr.rel (%p218) target = $region32
      $region31: #{basic_block_forward.1} parent=11 // pred_region
        _
      $region32: #{basic_block_forward.1} parent=11 // pred_fallthru
        _
      // Predicated region
      $region33: #{basic_block_forward.1} parent=11 // pred_check
        %p221 = pneg %p165
      $region34: #{basic_block_forward.1} parent=11 // pred_check_branch
        %223 = sbr.rel (%p221) target = $region36
      $region35: #{basic_block_forward.1} parent=11 // pred_region
        _
      $region36: #{basic_block_forward.1} parent=11 // pred_fallthru
        _
    $region12: #{basic_block_forward.1} parent=5 // pred_fallthru
      _
    %p224 = scmp.lt.s32.totalorder %s13, 2
    // Predicated region
    $region37: #{basic_block_forward.1} parent=5 // pred_check
      %p225 = pneg %p224
    $region38: #{basic_block_forward.1} parent=5 // pred_check_branch
      %227 = sbr.rel (%p225) target = $region40
    $region39: #{basic_block_forward.1} parent=5 // pred_region
      // Predicated region
      $region41: #{basic_block_forward.1} parent=39 // pred_check
        %p228 = pneg %p33
      $region42: #{basic_block_forward.1} parent=39 // pred_check_branch
        %230 = sbr.rel (%p228) target = $region44
      $region43: #{basic_block_forward.1} parent=39 // pred_region
        %p231 = scmp.lt.s32.totalorder %s13, 1
        %s232 = scalar_select %p231, %s13, 1
        %s233 = smul.addr %s232, 32
        %s234 = smul.addr %s233, 4
        %s235 = scalar_lea.vmem %s0, %s234
      $region44: #{basic_block_forward.1} parent=39 // pred_fallthru
        _
    $region40: #{basic_block_forward.1} parent=5 // pred_fallthru
      _
    %p236 = scmp.le.s32.totalorder 1, %s13
    %p237 = scmp.lt.s32.totalorder %s13, 3
    %p238 = pnand %p236, %p237
    %p239 = pneg %p238
    // Predicated region
    $region45: #{basic_block_forward.1} parent=5 // pred_check
      _
    $region46: #{basic_block_forward.1} parent=5 // pred_check_branch
      %241 = sbr.rel (%p238) target = $region48
    $region47: #{basic_block_forward.1} parent=5 // pred_region
      %s242 = ssub.s32 %s13, 1
      %p243 = scmp.lt.s32.totalorder %s18, 1
      %s244 = scalar_select %p243, %s18, 1
      %s245 = smul.addr %s244, 32
      %s246 = smul.addr %s245, 4
      %s247 = scalar_lea.vmem %s0, %s246
      %p248 = pneg %p39
      %p249 = pneg %p36
      %p250 = pneg %p60
      %p251 = pneg %p57
      %p252 = pneg %p81
      %p253 = pneg %p78
      %p254 = pneg %p102
      %p255 = pneg %p99
      %p256 = pneg %p123
      %p257 = pneg %p120
      %p258 = pneg %p144
      %p259 = pneg %p141
      %p260 = pneg %p165
      %p261 = pneg %p162
      %p262 = pneg %p191
      %p263 = pneg %p188
      %p264 = scmp.lt.s32.totalorder %s18, 1
      %s265 = scalar_select %p264, %s18, 1
      %s266 = smul.addr %s265, 32
      %s267 = smul.addr %s266, 4
      %s268 = scalar_lea.vmem %s7, %s267
      %p269 = scmp.lt.s32.totalorder %s18, 1
      %s270 = scalar_select %p269, %s18, 1
      %s271 = smul.addr %s270, 32
      %s272 = smul.addr %s271, 4
      %s273 = scalar_lea.vmem %s0, %s272
      %p274 = scmp.lt.s32.totalorder %s18, 1
      %s275 = scalar_select %p274, %s18, 1
      %s276 = smul.addr %s275, 32
      %s277 = smul.addr %s276, 4
      %s278 = scalar_lea.vmem %s7, %s277
      %vm280 = vcmask 27648
      %281 = vst.msk [vmem:[#allocation2] sm:$0xf] %vm280, 0
      %282 = vst.msk [vmem:[#allocation2 + $0x4] sm:$0xf] %vm280, 0
      %vm283 = vcmask 24576
      %284 = vst.msk [vmem:[#allocation2 + $0x8] sm:$0x1] %vm283, 0
      %s285 = scalar_lea.vmem [#allocation2], 204
      %286 = vst.msk [vmem:[%s285] sm:$0xf] %vm280, 0
      %287 = vst.msk [vmem:[%s285 + $0x4] sm:$0xf] %vm280, 0
      %288 = vst.msk [vmem:[%s285 + $0x8] sm:$0x1] %vm283, 0
      %s289 = scalar_lea.vmem [#allocation2], 12
      %vm290 = vcmask 24576
      %vm291 = vsmask.f32 256
      %vm292 = vmand %vm290, %vm291
      %v293 = vld [vmem:[%s289] sm:$0x1]
      %v294 = vsel %vm292, 0, %v293
      %295 = vst [vmem:[%s289] sm:$0x1] %v294
      %v296 = vld [vmem:[%s289 + $0xc] sm:$0x1]
      %v297 = vsel %vm292, 0, %v296
      %298 = vst [vmem:[%s289 + $0xc] sm:$0x1] %v297
      %v299 = vld [vmem:[%s289 + $0x18] sm:$0x1]
      %v300 = vsel %vm292, 0, %v299
      %301 = vst [vmem:[%s289 + $0x18] sm:$0x1] %v300
      %v302 = vld [vmem:[%s289 + $0x24] sm:$0x1]
      %v303 = vsel %vm292, 0, %v302
      %304 = vst [vmem:[%s289 + $0x24] sm:$0x1] %v303
      %v305 = vld [vmem:[%s289 + $0x30] sm:$0x1]
      %v306 = vsel %vm292, 0, %v305
      %307 = vst [vmem:[%s289 + $0x30] sm:$0x1] %v306
      %v308 = vld [vmem:[%s289 + $0x3c] sm:$0x1]
      %v309 = vsel %vm292, 0, %v308
      %310 = vst [vmem:[%s289 + $0x3c] sm:$0x1] %v309
      %v311 = vld [vmem:[%s289 + $0x48] sm:$0x1]
      %v312 = vsel %vm292, 0, %v311
      %313 = vst [vmem:[%s289 + $0x48] sm:$0x1] %v312
      %v314 = vld [vmem:[%s289 + $0x54] sm:$0x1]
      %v315 = vsel %vm292, 0, %v314
      %316 = vst [vmem:[%s289 + $0x54] sm:$0x1] %v315
      %v317 = vld [vmem:[%s289 + $0x60] sm:$0x1]
      %v318 = vsel %vm292, 0, %v317
      %319 = vst [vmem:[%s289 + $0x60] sm:$0x1] %v318
      %v320 = vld [vmem:[%s289 + $0x6c] sm:$0x1]
      %v321 = vsel %vm292, 0, %v320
      %322 = vst [vmem:[%s289 + $0x6c] sm:$0x1] %v321
      %v323 = vld [vmem:[%s289 + $0x78] sm:$0x1]
      %v324 = vsel %vm292, 0, %v323
      %325 = vst [vmem:[%s289 + $0x78] sm:$0x1] %v324
      %v326 = vld [vmem:[%s289 + $0x84] sm:$0x1]
      %v327 = vsel %vm292, 0, %v326
      %328 = vst [vmem:[%s289 + $0x84] sm:$0x1] %v327
      %v329 = vld [vmem:[%s289 + $0x90] sm:$0x1]
      %v330 = vsel %vm292, 0, %v329
      %331 = vst [vmem:[%s289 + $0x90] sm:$0x1] %v330
      %v332 = vld [vmem:[%s289 + $0x9c] sm:$0x1]
      %v333 = vsel %vm292, 0, %v332
      %334 = vst [vmem:[%s289 + $0x9c] sm:$0x1] %v333
      %v335 = vld [vmem:[%s289 + $0xa8] sm:$0x1]
      %v336 = vsel %vm292, 0, %v335
      %337 = vst [vmem:[%s289 + $0xa8] sm:$0x1] %v336
      %v338 = vld [vmem:[%s289 + $0xb4] sm:$0x1]
      %v339 = vsel %vm292, 0, %v338
      %340 = vst [vmem:[%s289 + $0xb4] sm:$0x1] %v339
      %vm341 = vsmask.f32 7938
      %vm342 = vmand %vm290, %vm341
      %v343 = vld [vmem:[%s289 + $0x8] sm:$0x1]
      %v344 = vsel %vm342, 0, %v343
      %345 = vst [vmem:[%s289 + $0x8] sm:$0x1] %v344
      %v346 = vld [vmem:[%s289 + $0x14] sm:$0x1]
      %v347 = vsel %vm342, 0, %v346
      %348 = vst [vmem:[%s289 + $0x14] sm:$0x1] %v347
      %v349 = vld [vmem:[%s289 + $0x20] sm:$0x1]
      %v350 = vsel %vm342, 0, %v349
      %351 = vst [vmem:[%s289 + $0x20] sm:$0x1] %v350
      %v352 = vld [vmem:[%s289 + $0x2c] sm:$0x1]
      %v353 = vsel %vm342, 0, %v352
      %354 = vst [vmem:[%s289 + $0x2c] sm:$0x1] %v353
      %v355 = vld [vmem:[%s289 + $0x38] sm:$0x1]
      %v356 = vsel %vm342, 0, %v355
      %357 = vst [vmem:[%s289 + $0x38] sm:$0x1] %v356
      %v358 = vld [vmem:[%s289 + $0x44] sm:$0x1]
      %v359 = vsel %vm342, 0, %v358
      %360 = vst [vmem:[%s289 + $0x44] sm:$0x1] %v359
      %v361 = vld [vmem:[%s289 + $0x50] sm:$0x1]
      %v362 = vsel %vm342, 0, %v361
      %363 = vst [vmem:[%s289 + $0x50] sm:$0x1] %v362
      %v364 = vld [vmem:[%s289 + $0x5c] sm:$0x1]
      %v365 = vsel %vm342, 0, %v364
      %366 = vst [vmem:[%s289 + $0x5c] sm:$0x1] %v365
      %v367 = vld [vmem:[%s289 + $0x68] sm:$0x1]
      %v368 = vsel %vm342, 0, %v367
      %369 = vst [vmem:[%s289 + $0x68] sm:$0x1] %v368
      %v370 = vld [vmem:[%s289 + $0x74] sm:$0x1]
      %v371 = vsel %vm342, 0, %v370
      %372 = vst [vmem:[%s289 + $0x74] sm:$0x1] %v371
      %v373 = vld [vmem:[%s289 + $0x80] sm:$0x1]
      %v374 = vsel %vm342, 0, %v373
      %375 = vst [vmem:[%s289 + $0x80] sm:$0x1] %v374
      %v376 = vld [vmem:[%s289 + $0x8c] sm:$0x1]
      %v377 = vsel %vm342, 0, %v376
      %378 = vst [vmem:[%s289 + $0x8c] sm:$0x1] %v377
      %v379 = vld [vmem:[%s289 + $0x98] sm:$0x1]
      %v380 = vsel %vm342, 0, %v379
      %381 = vst [vmem:[%s289 + $0x98] sm:$0x1] %v380
      %v382 = vld [vmem:[%s289 + $0xa4] sm:$0x1]
      %v383 = vsel %vm342, 0, %v382
      %384 = vst [vmem:[%s289 + $0xa4] sm:$0x1] %v383
      %v385 = vld [vmem:[%s289 + $0xb0] sm:$0x1]
      %v386 = vsel %vm342, 0, %v385
      %387 = vst [vmem:[%s289 + $0xb0] sm:$0x1] %v386
      %v388 = vld [vmem:[%s289 + $0xbc] sm:$0x1]
      %v389 = vsel %vm342, 0, %v388
      %390 = vst [vmem:[%s289 + $0xbc] sm:$0x1] %v389
      %v391 = vld [vmem:[%s273] sm:$0xf]
      %v392 = vld [vmem:[%s273 + $0x4] sm:$0xf]
      %v393 = vld [vmem:[%s273 + $0x8] sm:$0xf]
      %v394 = vld [vmem:[%s273 + $0xc] sm:$0xf]
      %v395 = vld [vmem:[%s273 + $0x10] sm:$0xf]
      %v396 = vld [vmem:[%s273 + $0x14] sm:$0xf]
      %v397 = vld [vmem:[%s273 + $0x18] sm:$0xf]
      %v398 = vld [vmem:[%s273 + $0x1c] sm:$0xf]
      %v399 = vld [vmem:[%s273 + $0x20] sm:$0xf]
      %v400 = vld [vmem:[%s273 + $0x24] sm:$0xf]
      %v401 = vld [vmem:[%s273 + $0x28] sm:$0xf]
      %v402 = vld [vmem:[%s273 + $0x2c] sm:$0xf]
      %v403 = vld [vmem:[%s273 + $0x30] sm:$0xf]
      %v404 = vld [vmem:[%s273 + $0x34] sm:$0xf]
      %v405 = vld [vmem:[%s273 + $0x38] sm:$0xf]
      %v406 = vld [vmem:[%s273 + $0x3c] sm:$0xf]
      %v407 = vld [vmem:[%s273 + $0x40] sm:$0xf]
      %v408 = vld [vmem:[%s273 + $0x44] sm:$0xf]
      %v409 = vld [vmem:[%s273 + $0x48] sm:$0xf]
      %v410 = vld [vmem:[%s273 + $0x4c] sm:$0xf]
      %v411 = vld [vmem:[%s273 + $0x50] sm:$0xf]
      %v412 = vld [vmem:[%s273 + $0x54] sm:$0xf]
      %v413 = vld [vmem:[%s273 + $0x58] sm:$0xf]
      %v414 = vld [vmem:[%s273 + $0x5c] sm:$0xf]
      %v415 = vld [vmem:[%s273 + $0x60] sm:$0xf]
      %v416 = vld [vmem:[%s273 + $0x64] sm:$0xf]
      %v417 = vld [vmem:[%s273 + $0x68] sm:$0xf]
      %v418 = vld [vmem:[%s273 + $0x6c] sm:$0xf]
      %v419 = vld [vmem:[%s273 + $0x70] sm:$0xf]
      %v420 = vld [vmem:[%s273 + $0x74] sm:$0xf]
      %v421 = vld [vmem:[%s273 + $0x78] sm:$0xf]
      %v422 = vld [vmem:[%s273 + $0x7c] sm:$0xf]
      %vm423 = vsmask.f32 4368
      %vm424 = vmor %vm291, %vm423
      %v426 = vshrl.u32 %v391, 16
      %v428 = vrot.slane %v426, 7
      %v429 = vshll.u32 %v391, 16
      %v431 = vor.u32 %v428, %v429
      %v432 = vrot.slane %v428, 4
      %v434 = vshrl.u32 %v392, 16
      %v436 = vrot.slane %v434, 7
      %v437 = vshll.u32 %v392, 16
      %v439 = vor.u32 %v436, %v437
      %v440 = vsel %vm424, %v432, %v439
      %v441 = vrot.slane %v436, 4
      %v443 = vshrl.u32 %v393, 16
      %v445 = vrot.slane %v443, 7
      %v446 = vshll.u32 %v393, 16
      %v448 = vor.u32 %v445, %v446
      %v449 = vrot.slane %v445, 4
      %v451 = vshrl.u32 %v394, 16
      %v453 = vrot.slane %v451, 7
      %v454 = vshll.u32 %v394, 16
      %v456 = vor.u32 %v453, %v454
      %v457 = vsel %vm424, %v449, %v456
      %v458 = vrot.slane %v453, 4
      %v460 = vshrl.u32 %v395, 16
      %v462 = vrot.slane %v460, 7
      %v463 = vshll.u32 %v395, 16
      %v465 = vor.u32 %v462, %v463
      %v466 = vrot.slane %v462, 4
      %v468 = vshrl.u32 %v396, 16
      %v470 = vrot.slane %v468, 7
      %v471 = vshll.u32 %v396, 16
      %v473 = vor.u32 %v470, %v471
      %v474 = vsel %vm424, %v466, %v473
      %v475 = vrot.slane %v470, 4
      %v477 = vshrl.u32 %v397, 16
      %v479 = vrot.slane %v477, 7
      %v480 = vshll.u32 %v397, 16
      %v482 = vor.u32 %v479, %v480
      %v483 = vrot.slane %v479, 4
      %v485 = vshrl.u32 %v398, 16
      %v487 = vrot.slane %v485, 7
      %v488 = vshll.u32 %v398, 16
      %v490 = vor.u32 %v487, %v488
      %v491 = vsel %vm424, %v483, %v490
      %v492 = vrot.slane %v487, 4
      %v494 = vshrl.u32 %v399, 16
      %v496 = vrot.slane %v494, 7
      %v497 = vshll.u32 %v399, 16
      %v499 = vor.u32 %v496, %v497
      %v500 = vrot.slane %v496, 4
      %v502 = vshrl.u32 %v400, 16
      %v504 = vrot.slane %v502, 7
      %v505 = vshll.u32 %v400, 16
      %v507 = vor.u32 %v504, %v505
      %v508 = vsel %vm424, %v500, %v507
      %v509 = vrot.slane %v504, 4
      %v511 = vshrl.u32 %v401, 16
      %v513 = vrot.slane %v511, 7
      %v514 = vshll.u32 %v401, 16
      %v516 = vor.u32 %v513, %v514
      %v517 = vrot.slane %v513, 4
      %v519 = vshrl.u32 %v402, 16
      %v521 = vrot.slane %v519, 7
      %v522 = vshll.u32 %v402, 16
      %v524 = vor.u32 %v521, %v522
      %v525 = vsel %vm424, %v517, %v524
      %v526 = vrot.slane %v521, 4
      %v528 = vshrl.u32 %v403, 16
      %v530 = vrot.slane %v528, 7
      %v531 = vshll.u32 %v403, 16
      %v533 = vor.u32 %v530, %v531
      %v534 = vrot.slane %v530, 4
      %v536 = vshrl.u32 %v404, 16
      %v538 = vrot.slane %v536, 7
      %v539 = vshll.u32 %v404, 16
      %v541 = vor.u32 %v538, %v539
      %v542 = vsel %vm424, %v534, %v541
      %v543 = vrot.slane %v538, 4
      %v545 = vshrl.u32 %v405, 16
      %v547 = vrot.slane %v545, 7
      %v548 = vshll.u32 %v405, 16
      %v550 = vor.u32 %v547, %v548
      %v551 = vrot.slane %v547, 4
      %v553 = vshrl.u32 %v406, 16
      %v555 = vrot.slane %v553, 7
      %v556 = vshll.u32 %v406, 16
      %v558 = vor.u32 %v555, %v556
      %v559 = vsel %vm424, %v551, %v558
      %v560 = vrot.slane %v555, 4
      %v562 = vshrl.u32 %v407, 16
      %v564 = vrot.slane %v562, 7
      %v565 = vshll.u32 %v407, 16
      %v567 = vor.u32 %v564, %v565
      %v568 = vrot.slane %v564, 4
      %v570 = vshrl.u32 %v408, 16
      %v572 = vrot.slane %v570, 7
      %v573 = vshll.u32 %v408, 16
      %v575 = vor.u32 %v572, %v573
      %v576 = vsel %vm424, %v568, %v575
      %v577 = vrot.slane %v572, 4
      %v579 = vshrl.u32 %v409, 16
      %v581 = vrot.slane %v579, 7
      %v582 = vshll.u32 %v409, 16
      %v584 = vor.u32 %v581, %v582
      %v585 = vrot.slane %v581, 4
      %v587 = vshrl.u32 %v410, 16
      %v589 = vrot.slane %v587, 7
      %v590 = vshll.u32 %v410, 16
      %v592 = vor.u32 %v589, %v590
      %v593 = vsel %vm424, %v585, %v592
      %v594 = vrot.slane %v589, 4
      %v596 = vshrl.u32 %v411, 16
      %v598 = vrot.slane %v596, 7
      %v599 = vshll.u32 %v411, 16
      %v601 = vor.u32 %v598, %v599
      %v602 = vrot.slane %v598, 4
      %v604 = vshrl.u32 %v412, 16
      %v606 = vrot.slane %v604, 7
      %v607 = vshll.u32 %v412, 16
      %v609 = vor.u32 %v606, %v607
      %v610 = vsel %vm424, %v602, %v609
      %v611 = vrot.slane %v606, 4
      %v613 = vshrl.u32 %v413, 16
      %v615 = vrot.slane %v613, 7
      %v616 = vshll.u32 %v413, 16
      %v618 = vor.u32 %v615, %v616
      %v619 = vrot.slane %v615, 4
      %v621 = vshrl.u32 %v414, 16
      %v623 = vrot.slane %v621, 7
      %v624 = vshll.u32 %v414, 16
      %v626 = vor.u32 %v623, %v624
      %v627 = vsel %vm424, %v619, %v626
      %v628 = vrot.slane %v623, 4
      %v630 = vshrl.u32 %v415, 16
      %v632 = vrot.slane %v630, 7
      %v633 = vshll.u32 %v415, 16
      %v635 = vor.u32 %v632, %v633
      %v636 = vrot.slane %v632, 4
      %v638 = vshrl.u32 %v416, 16
      %v640 = vrot.slane %v638, 7
      %v641 = vshll.u32 %v416, 16
      %v643 = vor.u32 %v640, %v641
      %v644 = vsel %vm424, %v636, %v643
      %v645 = vrot.slane %v640, 4
      %v647 = vshrl.u32 %v417, 16
      %v649 = vrot.slane %v647, 7
      %v650 = vshll.u32 %v417, 16
      %v652 = vor.u32 %v649, %v650
      %v653 = vrot.slane %v649, 4
      %v655 = vshrl.u32 %v418, 16
      %v657 = vrot.slane %v655, 7
      %v658 = vshll.u32 %v418, 16
      %v660 = vor.u32 %v657, %v658
      %v661 = vsel %vm424, %v653, %v660
      %v662 = vrot.slane %v657, 4
      %v664 = vshrl.u32 %v419, 16
      %v666 = vrot.slane %v664, 7
      %v667 = vshll.u32 %v419, 16
      %v669 = vor.u32 %v666, %v667
      %v670 = vrot.slane %v666, 4
      %v672 = vshrl.u32 %v420, 16
      %v674 = vrot.slane %v672, 7
      %v675 = vshll.u32 %v420, 16
      %v677 = vor.u32 %v674, %v675
      %v678 = vsel %vm424, %v670, %v677
      %v679 = vrot.slane %v674, 4
      %v681 = vshrl.u32 %v421, 16
      %v683 = vrot.slane %v681, 7
      %v684 = vshll.u32 %v421, 16
      %v686 = vor.u32 %v683, %v684
      %v687 = vrot.slane %v683, 4
      %v689 = vshrl.u32 %v422, 16
      %v691 = vrot.slane %v689, 7
      %v692 = vshll.u32 %v422, 16
      %v694 = vor.u32 %v691, %v692
      %v695 = vsel %vm424, %v687, %v694
      %v696 = vrot.slane %v691, 4
      %vm745 = vcmask 27648
      %vm746 = vmand %vm745, %vm341
      %v747 = vld [vmem:[%s289] sm:$0xf]
      %v748 = vsel %vm746, %v431, %v747
      %749 = vst [vmem:[%s289] sm:$0xf] %v748
      %750 = vst.msk [vmem:[%s289 + $0x4] sm:$0xf] %vm280, %v440
      %v751 = vld [vmem:[%s289 + $0x8] sm:$0x1]
      %v752 = vsel %vm292, %v441, %v751
      %753 = vst [vmem:[%s289 + $0x8] sm:$0x1] %v752
      %v754 = vld [vmem:[%s289 + $0xc] sm:$0xf]
      %v755 = vsel %vm746, %v448, %v754
      %756 = vst [vmem:[%s289 + $0xc] sm:$0xf] %v755
      %757 = vst.msk [vmem:[%s289 + $0x10] sm:$0xf] %vm280, %v457
      %v758 = vld [vmem:[%s289 + $0x14] sm:$0x1]
      %v759 = vsel %vm292, %v458, %v758
      %760 = vst [vmem:[%s289 + $0x14] sm:$0x1] %v759
      %v761 = vld [vmem:[%s289 + $0x18] sm:$0xf]
      %v762 = vsel %vm746, %v465, %v761
      %763 = vst [vmem:[%s289 + $0x18] sm:$0xf] %v762
      %764 = vst.msk [vmem:[%s289 + $0x1c] sm:$0xf] %vm280, %v474
      %v765 = vld [vmem:[%s289 + $0x20] sm:$0x1]
      %v766 = vsel %vm292, %v475, %v765
      %767 = vst [vmem:[%s289 + $0x20] sm:$0x1] %v766
      %v768 = vld [vmem:[%s289 + $0x24] sm:$0xf]
      %v769 = vsel %vm746, %v482, %v768
      %770 = vst [vmem:[%s289 + $0x24] sm:$0xf] %v769
      %771 = vst.msk [vmem:[%s289 + $0x28] sm:$0xf] %vm280, %v491
      %v772 = vld [vmem:[%s289 + $0x2c] sm:$0x1]
      %v773 = vsel %vm292, %v492, %v772
      %774 = vst [vmem:[%s289 + $0x2c] sm:$0x1] %v773
      %v775 = vld [vmem:[%s289 + $0x30] sm:$0xf]
      %v776 = vsel %vm746, %v499, %v775
      %777 = vst [vmem:[%s289 + $0x30] sm:$0xf] %v776
      %778 = vst.msk [vmem:[%s289 + $0x34] sm:$0xf] %vm280, %v508
      %v779 = vld [vmem:[%s289 + $0x38] sm:$0x1]
      %v780 = vsel %vm292, %v509, %v779
      %781 = vst [vmem:[%s289 + $0x38] sm:$0x1] %v780
      %v782 = vld [vmem:[%s289 + $0x3c] sm:$0xf]
      %v783 = vsel %vm746, %v516, %v782
      %784 = vst [vmem:[%s289 + $0x3c] sm:$0xf] %v783
      %785 = vst.msk [vmem:[%s289 + $0x40] sm:$0xf] %vm280, %v525
      %v786 = vld [vmem:[%s289 + $0x44] sm:$0x1]
      %v787 = vsel %vm292, %v526, %v786
      %788 = vst [vmem:[%s289 + $0x44] sm:$0x1] %v787
      %v789 = vld [vmem:[%s289 + $0x48] sm:$0xf]
      %v790 = vsel %vm746, %v533, %v789
      %791 = vst [vmem:[%s289 + $0x48] sm:$0xf] %v790
      %792 = vst.msk [vmem:[%s289 + $0x4c] sm:$0xf] %vm280, %v542
      %v793 = vld [vmem:[%s289 + $0x50] sm:$0x1]
      %v794 = vsel %vm292, %v543, %v793
      %795 = vst [vmem:[%s289 + $0x50] sm:$0x1] %v794
      %v796 = vld [vmem:[%s289 + $0x54] sm:$0xf]
      %v797 = vsel %vm746, %v550, %v796
      %798 = vst [vmem:[%s289 + $0x54] sm:$0xf] %v797
      %799 = vst.msk [vmem:[%s289 + $0x58] sm:$0xf] %vm280, %v559
      %v800 = vld [vmem:[%s289 + $0x5c] sm:$0x1]
      %v801 = vsel %vm292, %v560, %v800
      %802 = vst [vmem:[%s289 + $0x5c] sm:$0x1] %v801
      %v803 = vld [vmem:[%s289 + $0x60] sm:$0xf]
      %v804 = vsel %vm746, %v567, %v803
      %805 = vst [vmem:[%s289 + $0x60] sm:$0xf] %v804
      %806 = vst.msk [vmem:[%s289 + $0x64] sm:$0xf] %vm280, %v576
      %v807 = vld [vmem:[%s289 + $0x68] sm:$0x1]
      %v808 = vsel %vm292, %v577, %v807
      %809 = vst [vmem:[%s289 + $0x68] sm:$0x1] %v808
      %v810 = vld [vmem:[%s289 + $0x6c] sm:$0xf]
      %v811 = vsel %vm746, %v584, %v810
      %812 = vst [vmem:[%s289 + $0x6c] sm:$0xf] %v811
      %813 = vst.msk [vmem:[%s289 + $0x70] sm:$0xf] %vm280, %v593
      %v814 = vld [vmem:[%s289 + $0x74] sm:$0x1]
      %v815 = vsel %vm292, %v594, %v814
      %816 = vst [vmem:[%s289 + $0x74] sm:$0x1] %v815
      %v817 = vld [vmem:[%s289 + $0x78] sm:$0xf]
      %v818 = vsel %vm746, %v601, %v817
      %819 = vst [vmem:[%s289 + $0x78] sm:$0xf] %v818
      %820 = vst.msk [vmem:[%s289 + $0x7c] sm:$0xf] %vm280, %v610
      %v821 = vld [vmem:[%s289 + $0x80] sm:$0x1]
      %v822 = vsel %vm292, %v611, %v821
      %823 = vst [vmem:[%s289 + $0x80] sm:$0x1] %v822
      %v824 = vld [vmem:[%s289 + $0x84] sm:$0xf]
      %v825 = vsel %vm746, %v618, %v824
      %826 = vst [vmem:[%s289 + $0x84] sm:$0xf] %v825
      %827 = vst.msk [vmem:[%s289 + $0x88] sm:$0xf] %vm280, %v627
      %v828 = vld [vmem:[%s289 + $0x8c] sm:$0x1]
      %v829 = vsel %vm292, %v628, %v828
      %830 = vst [vmem:[%s289 + $0x8c] sm:$0x1] %v829
      %v831 = vld [vmem:[%s289 + $0x90] sm:$0xf]
      %v832 = vsel %vm746, %v635, %v831
      %833 = vst [vmem:[%s289 + $0x90] sm:$0xf] %v832
      %834 = vst.msk [vmem:[%s289 + $0x94] sm:$0xf] %vm280, %v644
      %v835 = vld [vmem:[%s289 + $0x98] sm:$0x1]
      %v836 = vsel %vm292, %v645, %v835
      %837 = vst [vmem:[%s289 + $0x98] sm:$0x1] %v836
      %v838 = vld [vmem:[%s289 + $0x9c] sm:$0xf]
      %v839 = vsel %vm746, %v652, %v838
      %840 = vst [vmem:[%s289 + $0x9c] sm:$0xf] %v839
      %841 = vst.msk [vmem:[%s289 + $0xa0] sm:$0xf] %vm280, %v661
      %v842 = vld [vmem:[%s289 + $0xa4] sm:$0x1]
      %v843 = vsel %vm292, %v662, %v842
      %844 = vst [vmem:[%s289 + $0xa4] sm:$0x1] %v843
      %v845 = vld [vmem:[%s289 + $0xa8] sm:$0xf]
      %v846 = vsel %vm746, %v669, %v845
      %847 = vst [vmem:[%s289 + $0xa8] sm:$0xf] %v846
      %848 = vst.msk [vmem:[%s289 + $0xac] sm:$0xf] %vm280, %v678
      %v849 = vld [vmem:[%s289 + $0xb0] sm:$0x1]
      %v850 = vsel %vm292, %v679, %v849
      %851 = vst [vmem:[%s289 + $0xb0] sm:$0x1] %v850
      %v852 = vld [vmem:[%s289 + $0xb4] sm:$0xf]
      %v853 = vsel %vm746, %v686, %v852
      %854 = vst [vmem:[%s289 + $0xb4] sm:$0xf] %v853
      %855 = vst.msk [vmem:[%s289 + $0xb8] sm:$0xf] %vm280, %v695
      %v856 = vld [vmem:[%s289 + $0xbc] sm:$0x1]
      %v857 = vsel %vm292, %v696, %v856
      %858 = vst [vmem:[%s289 + $0xbc] sm:$0x1] %v857
      %v859 = vld [vmem:[#allocation2] sm:$0xf]
      %v860 = vld [vmem:[#allocation2 + $0x4] sm:$0xf]
      %v861 = vld [vmem:[#allocation2 + $0xc] sm:$0xf]
      %v862 = vld [vmem:[#allocation2 + $0x10] sm:$0xf]
      %v863 = vld [vmem:[#allocation2 + $0x18] sm:$0xf]
      %v864 = vld [vmem:[#allocation2 + $0x1c] sm:$0xf]
      %v865 = vld [vmem:[#allocation2 + $0x24] sm:$0xf]
      %v866 = vld [vmem:[#allocation2 + $0x28] sm:$0xf]
      %v867 = vld [vmem:[#allocation2 + $0x30] sm:$0xf]
      %v868 = vld [vmem:[#allocation2 + $0x34] sm:$0xf]
      %v869 = vld [vmem:[#allocation2 + $0x3c] sm:$0xf]
      %v870 = vld [vmem:[#allocation2 + $0x40] sm:$0xf]
      %v871 = vld [vmem:[#allocation2 + $0x48] sm:$0xf]
      %v872 = vld [vmem:[#allocation2 + $0x4c] sm:$0xf]
      %v873 = vld [vmem:[#allocation2 + $0x54] sm:$0xf]
      %v874 = vld [vmem:[#allocation2 + $0x58] sm:$0xf]
      %v875 = vld [vmem:[#allocation2 + $0x60] sm:$0xf]
      %v876 = vld [vmem:[#allocation2 + $0x64] sm:$0xf]
      %v877 = vld [vmem:[#allocation2 + $0x6c] sm:$0xf]
      %v878 = vld [vmem:[#allocation2 + $0x70] sm:$0xf]
      %v879 = vld [vmem:[#allocation2 + $0x78] sm:$0xf]
      %v880 = vld [vmem:[#allocation2 + $0x7c] sm:$0xf]
      %v881 = vld [vmem:[#allocation2 + $0x84] sm:$0xf]
      %v882 = vld [vmem:[#allocation2 + $0x88] sm:$0xf]
      %v883 = vld [vmem:[#allocation2 + $0x90] sm:$0xf]
      %v884 = vld [vmem:[#allocation2 + $0x94] sm:$0xf]
      %v885 = vld [vmem:[#allocation2 + $0x9c] sm:$0xf]
      %v886 = vld [vmem:[#allocation2 + $0xa0] sm:$0xf]
      %v887 = vld [vmem:[#allocation2 + $0xa8] sm:$0xf]
      %v888 = vld [vmem:[#allocation2 + $0xac] sm:$0xf]
      %v889 = vld [vmem:[#allocation2 + $0xb4] sm:$0xf]
      %v890 = vld [vmem:[#allocation2 + $0xb8] sm:$0xf]
      %v891 = vld [vmem:[%s1] sm:$0x3]
      %v924 = vunpack.c.l.b16 %v859
      %v925 = vunpack.c.l.b16 %v860
      %v926 = vunpack.c.l.b16 %v861
      %v927 = vunpack.c.l.b16 %v862
      %v928 = vunpack.c.l.b16 %v863
      %v929 = vunpack.c.l.b16 %v864
      %v930 = vunpack.c.l.b16 %v865
      %v931 = vunpack.c.l.b16 %v866
      %v932 = vunpack.c.l.b16 %v867
      %v933 = vunpack.c.l.b16 %v868
      %v934 = vunpack.c.l.b16 %v869
      %v935 = vunpack.c.l.b16 %v870
      %v936 = vunpack.c.l.b16 %v871
      %v937 = vunpack.c.l.b16 %v872
      %v938 = vunpack.c.l.b16 %v873
      %v939 = vunpack.c.l.b16 %v874
      %v940 = vunpack.c.l.b16 %v875
      %v941 = vunpack.c.l.b16 %v876
      %v942 = vunpack.c.l.b16 %v877
      %v943 = vunpack.c.l.b16 %v878
      %v944 = vunpack.c.l.b16 %v879
      %v945 = vunpack.c.l.b16 %v880
      %v946 = vunpack.c.l.b16 %v881
      %v947 = vunpack.c.l.b16 %v882
      %v948 = vunpack.c.l.b16 %v883
      %v949 = vunpack.c.l.b16 %v884
      %v950 = vunpack.c.l.b16 %v885
      %v951 = vunpack.c.l.b16 %v886
      %v952 = vunpack.c.l.b16 %v887
      %v953 = vunpack.c.l.b16 %v888
      %v954 = vunpack.c.l.b16 %v889
      %v955 = vunpack.c.l.b16 %v890
      %v956 = vpack.c.b16 %v925, %v924
      %v957 = vpack.c.b16 %v927, %v926
      %v958 = vpack.c.b16 %v929, %v928
      %v959 = vpack.c.b16 %v931, %v930
      %v960 = vpack.c.b16 %v933, %v932
      %v961 = vpack.c.b16 %v935, %v934
      %v962 = vpack.c.b16 %v937, %v936
      %v963 = vpack.c.b16 %v939, %v938
      %v964 = vpack.c.b16 %v941, %v940
      %v965 = vpack.c.b16 %v943, %v942
      %v966 = vpack.c.b16 %v945, %v944
      %v967 = vpack.c.b16 %v947, %v946
      %v968 = vpack.c.b16 %v949, %v948
      %v969 = vpack.c.b16 %v951, %v950
      %v970 = vpack.c.b16 %v953, %v952
      %v971 = vpack.c.b16 %v955, %v954
      %vm972 = vcmask 31744
      %v974 = vsel %vm972, %v956, 0
      %v977 = vsel %vm972, %v957, 0
      %v980 = vsel %vm972, %v958, 0
      %v983 = vsel %vm972, %v959, 0
      %v986 = vsel %vm972, %v960, 0
      %v989 = vsel %vm972, %v961, 0
      %v992 = vsel %vm972, %v962, 0
      %v995 = vsel %vm972, %v963, 0
      %v998 = vsel %vm972, %v964, 0
      %v1001 = vsel %vm972, %v965, 0
      %v1004 = vsel %vm972, %v966, 0
      %v1007 = vsel %vm972, %v967, 0
      %v1010 = vsel %vm972, %v968, 0
      %v1013 = vsel %vm972, %v969, 0
      %v1016 = vsel %vm972, %v970, 0
      %v1019 = vsel %vm972, %v971, 0
      %vm1021 = vcmask 1041408
      %v1023 = vsel %vm1021, %v891, 0
      %1025 = vmatprep.subr.bf16.mxu0 0
      %1026 = vmatpush1.bf16.msra.mxu0 0
      %1027 = vmatprep.subr.bf16.mxu0 0
      %1028 = vmatpush1.bf16.msra.mxu0 0
      %1029 = vmatprep.subr.bf16.mxu0 0
      %1030 = vmatpush1.bf16.msra.mxu0 0
      %1031 = vmatprep.subr.bf16.mxu0 0
      %1032 = vmatpush1.bf16.msra.mxu0 0
      %1033 = vmatprep.subr.bf16.mxu0 0
      %1034 = vmatpush1.bf16.msra.mxu0 0
      %1035 = vmatprep.subr.bf16.mxu0 0
      %1036 = vmatpush1.bf16.msra.mxu0 0
      %1037 = vmatprep.subr.bf16.mxu0 0
      %1038 = vmatpush1.bf16.msra.mxu0 0
      %1039 = vmatprep.subr.bf16.mxu0 0
      %1040 = vmatpush1.bf16.msra.mxu0 %v1023
      %1041 = vmatprep.subr.bf16.mxu0 0
      %1042 = vmatpush2.bf16.msra.mxu0 0
      %1043 = vmatprep.subr.bf16.mxu0 0
      %1044 = vmatpush2.bf16.msra.mxu0 0
      %1045 = vmatprep.subr.bf16.mxu0 0
      %1046 = vmatpush2.bf16.msra.mxu0 0
      %1047 = vmatprep.subr.bf16.mxu0 0
      %1048 = vmatpush2.bf16.msra.mxu0 0
      %1049 = vmatprep.subr.bf16.mxu0 0
      %1050 = vmatpush2.bf16.msra.mxu0 0
      %1051 = vmatprep.subr.bf16.mxu0 0
      %1052 = vmatpush2.bf16.msra.mxu0 0
      %1053 = vmatprep.subr.bf16.mxu0 0
      %1054 = vmatpush2.bf16.msra.mxu0 0
      %1055 = vmatprep.subr.bf16.mxu0 0
      %1056 = vmatpush2.bf16.msra.mxu0 0
      %1057 = vmatprep.mubr.bf16.mxu0 0
      %1058 = vmatmul.mubr.bf16.gmra.mxu0 %v974
      %v1059 = vpop.f32.mrf.mxu0
      %v1060 = vadd.f32 0.0, %v1059
      %v1061 = vpop.f32.mrf.mxu0
      %v1062 = vpop.f32.mrf.mxu0
      %v1063 = vadd.f32 0.0, %v1062
      %v1064 = vpop.f32.mrf.mxu0
      %1065 = vmatprep.mubr.bf16.mxu0 0
      %1066 = vmatmul.mubr.bf16.gmra.mxu0 %v977
      %v1067 = vpop.f32.mrf.mxu0
      %v1068 = vadd.f32 0.0, %v1067
      %v1069 = vpop.f32.mrf.mxu0
      %v1070 = vpop.f32.mrf.mxu0
      %v1071 = vadd.f32 0.0, %v1070
      %v1072 = vpop.f32.mrf.mxu0
      %1073 = vmatprep.mubr.bf16.mxu0 0
      %1074 = vmatmul.mubr.bf16.gmra.mxu0 %v980
      %v1075 = vpop.f32.mrf.mxu0
      %v1076 = vadd.f32 0.0, %v1075
      %v1077 = vpop.f32.mrf.mxu0
      %v1078 = vpop.f32.mrf.mxu0
      %v1079 = vadd.f32 0.0, %v1078
      %v1080 = vpop.f32.mrf.mxu0
      %1081 = vmatprep.mubr.bf16.mxu0 0
      %1082 = vmatmul.mubr.bf16.gmra.mxu0 %v983
      %v1083 = vpop.f32.mrf.mxu0
      %v1084 = vadd.f32 0.0, %v1083
      %v1085 = vpop.f32.mrf.mxu0
      %v1086 = vpop.f32.mrf.mxu0
      %v1087 = vadd.f32 0.0, %v1086
      %v1088 = vpop.f32.mrf.mxu0
      %1089 = vmatprep.mubr.bf16.mxu0 0
      %1090 = vmatmul.mubr.bf16.gmra.mxu0 %v986
      %v1091 = vpop.f32.mrf.mxu0
      %v1092 = vadd.f32 0.0, %v1091
      %v1093 = vpop.f32.mrf.mxu0
      %v1094 = vpop.f32.mrf.mxu0
      %v1095 = vadd.f32 0.0, %v1094
      %v1096 = vpop.f32.mrf.mxu0
      %1097 = vmatprep.mubr.bf16.mxu0 0
      %1098 = vmatmul.mubr.bf16.gmra.mxu0 %v989
      %v1099 = vpop.f32.mrf.mxu0
      %v1100 = vadd.f32 0.0, %v1099
      %v1101 = vpop.f32.mrf.mxu0
      %v1102 = vpop.f32.mrf.mxu0
      %v1103 = vadd.f32 0.0, %v1102
      %v1104 = vpop.f32.mrf.mxu0
      %1105 = vmatprep.mubr.bf16.mxu0 0
      %1106 = vmatmul.mubr.bf16.gmra.mxu0 %v992
      %v1107 = vpop.f32.mrf.mxu0
      %v1108 = vadd.f32 0.0, %v1107
      %v1109 = vpop.f32.mrf.mxu0
      %v1110 = vpop.f32.mrf.mxu0
      %v1111 = vadd.f32 0.0, %v1110
      %v1112 = vpop.f32.mrf.mxu0
      %1113 = vmatprep.mubr.bf16.mxu0 0
      %1114 = vmatmul.mubr.bf16.gmra.mxu0 %v995
      %v1115 = vpop.f32.mrf.mxu0
      %v1116 = vadd.f32 0.0, %v1115
      %v1117 = vpop.f32.mrf.mxu0
      %v1118 = vpop.f32.mrf.mxu0
      %v1119 = vadd.f32 0.0, %v1118
      %v1120 = vpop.f32.mrf.mxu0
      %1121 = vmatprep.mubr.bf16.mxu0 0
      %1122 = vmatmul.mubr.bf16.gmra.mxu0 %v998
      %v1123 = vpop.f32.mrf.mxu0
      %v1124 = vadd.f32 0.0, %v1123
      %v1125 = vpop.f32.mrf.mxu0
      %v1126 = vpop.f32.mrf.mxu0
      %v1127 = vadd.f32 0.0, %v1126
      %v1128 = vpop.f32.mrf.mxu0
      %1129 = vmatprep.mubr.bf16.mxu0 0
      %1130 = vmatmul.mubr.bf16.gmra.mxu0 %v1001
      %v1131 = vpop.f32.mrf.mxu0
      %v1132 = vadd.f32 0.0, %v1131
      %v1133 = vpop.f32.mrf.mxu0
      %v1134 = vpop.f32.mrf.mxu0
      %v1135 = vadd.f32 0.0, %v1134
      %v1136 = vpop.f32.mrf.mxu0
      %1137 = vmatprep.mubr.bf16.mxu0 0
      %1138 = vmatmul.mubr.bf16.gmra.mxu0 %v1004
      %v1139 = vpop.f32.mrf.mxu0
      %v1140 = vadd.f32 0.0, %v1139
      %v1141 = vpop.f32.mrf.mxu0
      %v1142 = vpop.f32.mrf.mxu0
      %v1143 = vadd.f32 0.0, %v1142
      %v1144 = vpop.f32.mrf.mxu0
      %1145 = vmatprep.mubr.bf16.mxu0 0
      %1146 = vmatmul.mubr.bf16.gmra.mxu0 %v1007
      %v1147 = vpop.f32.mrf.mxu0
      %v1148 = vadd.f32 0.0, %v1147
      %v1149 = vpop.f32.mrf.mxu0
      %v1150 = vpop.f32.mrf.mxu0
      %v1151 = vadd.f32 0.0, %v1150
      %v1152 = vpop.f32.mrf.mxu0
      %1153 = vmatprep.mubr.bf16.mxu0 0
      %1154 = vmatmul.mubr.bf16.gmra.mxu0 %v1010
      %v1155 = vpop.f32.mrf.mxu0
      %v1156 = vadd.f32 0.0, %v1155
      %v1157 = vpop.f32.mrf.mxu0
      %v1158 = vpop.f32.mrf.mxu0
      %v1159 = vadd.f32 0.0, %v1158
      %v1160 = vpop.f32.mrf.mxu0
      %1161 = vmatprep.mubr.bf16.mxu0 0
      %1162 = vmatmul.mubr.bf16.gmra.mxu0 %v1013
      %v1163 = vpop.f32.mrf.mxu0
      %v1164 = vadd.f32 0.0, %v1163
      %v1165 = vpop.f32.mrf.mxu0
      %v1166 = vpop.f32.mrf.mxu0
      %v1167 = vadd.f32 0.0, %v1166
      %v1168 = vpop.f32.mrf.mxu0
      %1169 = vmatprep.mubr.bf16.mxu0 0
      %1170 = vmatmul.mubr.bf16.gmra.mxu0 %v1016
      %v1171 = vpop.f32.mrf.mxu0
      %v1172 = vadd.f32 0.0, %v1171
      %v1173 = vpop.f32.mrf.mxu0
      %v1174 = vpop.f32.mrf.mxu0
      %v1175 = vadd.f32 0.0, %v1174
      %v1176 = vpop.f32.mrf.mxu0
      %1177 = vmatprep.mubr.bf16.mxu0 0
      %1178 = vmatmul.mubr.bf16.gmra.mxu0 %v1019
      %v1179 = vpop.f32.mrf.mxu0
      %v1180 = vadd.f32 0.0, %v1179
      %v1181 = vpop.f32.mrf.mxu0
      %v1182 = vpop.f32.mrf.mxu0
      %v1183 = vadd.f32 0.0, %v1182
      %v1184 = vpop.f32.mrf.mxu0
      %1185 = vdwg.mxu0
      %1186 = vst.msk [vmem:[#allocation3] sm:$0xff] %vm972, %v1060
      %1187 = vst.msk [vmem:[#allocation3 + $0x8] sm:$0xff] %vm972, %v1063
      %1188 = vst.msk [vmem:[#allocation3 + $0x10] sm:$0xff] %vm972, %v1068
      %1189 = vst.msk [vmem:[#allocation3 + $0x18] sm:$0xff] %vm972, %v1071
      %1190 = vst.msk [vmem:[#allocation3 + $0x20] sm:$0xff] %vm972, %v1076
      %1191 = vst.msk [vmem:[#allocation3 + $0x28] sm:$0xff] %vm972, %v1079
      %1192 = vst.msk [vmem:[#allocation3 + $0x30] sm:$0xff] %vm972, %v1084
      %1193 = vst.msk [vmem:[#allocation3 + $0x38] sm:$0xff] %vm972, %v1087
      %1194 = vst.msk [vmem:[#allocation3 + $0x40] sm:$0xff] %vm972, %v1092
      %1195 = vst.msk [vmem:[#allocation3 + $0x48] sm:$0xff] %vm972, %v1095
      %1196 = vst.msk [vmem:[#allocation3 + $0x50] sm:$0xff] %vm972, %v1100
      %1197 = vst.msk [vmem:[#allocation3 + $0x58] sm:$0xff] %vm972, %v1103
      %1198 = vst.msk [vmem:[#allocation3 + $0x60] sm:$0xff] %vm972, %v1108
      %1199 = vst.msk [vmem:[#allocation3 + $0x68] sm:$0xff] %vm972, %v1111
      %1200 = vst.msk [vmem:[#allocation3 + $0x70] sm:$0xff] %vm972, %v1116
      %1201 = vst.msk [vmem:[#allocation3 + $0x78] sm:$0xff] %vm972, %v1119
      %1202 = vst.msk [vmem:[#allocation3 + $0x80] sm:$0xff] %vm972, %v1124
      %1203 = vst.msk [vmem:[#allocation3 + $0x88] sm:$0xff] %vm972, %v1127
      %1204 = vst.msk [vmem:[#allocation3 + $0x90] sm:$0xff] %vm972, %v1132
      %1205 = vst.msk [vmem:[#allocation3 + $0x98] sm:$0xff] %vm972, %v1135
      %1206 = vst.msk [vmem:[#allocation3 + $0xa0] sm:$0xff] %vm972, %v1140
      %1207 = vst.msk [vmem:[#allocation3 + $0xa8] sm:$0xff] %vm972, %v1143
      %1208 = vst.msk [vmem:[#allocation3 + $0xb0] sm:$0xff] %vm972, %v1148
      %1209 = vst.msk [vmem:[#allocation3 + $0xb8] sm:$0xff] %vm972, %v1151
      %1210 = vst.msk [vmem:[#allocation3 + $0xc0] sm:$0xff] %vm972, %v1156
      %1211 = vst.msk [vmem:[#allocation3 + $0xc8] sm:$0xff] %vm972, %v1159
      %1212 = vst.msk [vmem:[#allocation3 + $0xd0] sm:$0xff] %vm972, %v1164
      %1213 = vst.msk [vmem:[#allocation3 + $0xd8] sm:$0xff] %vm972, %v1167
      %1214 = vst.msk [vmem:[#allocation3 + $0xe0] sm:$0xff] %vm972, %v1172
      %1215 = vst.msk [vmem:[#allocation3 + $0xe8] sm:$0xff] %vm972, %v1175
      %1216 = vst.msk [vmem:[#allocation3 + $0xf0] sm:$0xff] %vm972, %v1180
      %1217 = vst.msk [vmem:[#allocation3 + $0xf8] sm:$0xff] %vm972, %v1183
      %v1218 = vld [vmem:[#allocation2] sm:$0xf]
      %v1219 = vld [vmem:[#allocation2 + $0x4] sm:$0xf]
      %v1220 = vld [vmem:[#allocation2 + $0x8] sm:$0x1]
      %v1221 = vld [vmem:[#allocation2 + $0xc] sm:$0xf]
      %v1222 = vld [vmem:[#allocation2 + $0x10] sm:$0xf]
      %v1223 = vld [vmem:[#allocation2 + $0x14] sm:$0x1]
      %v1224 = vld [vmem:[#allocation2 + $0x18] sm:$0xf]
      %v1225 = vld [vmem:[#allocation2 + $0x1c] sm:$0xf]
      %v1226 = vld [vmem:[#allocation2 + $0x20] sm:$0x1]
      %v1227 = vld [vmem:[#allocation2 + $0x24] sm:$0xf]
      %v1228 = vld [vmem:[#allocation2 + $0x28] sm:$0xf]
      %v1229 = vld [vmem:[#allocation2 + $0x2c] sm:$0x1]
      %v1230 = vld [vmem:[#allocation2 + $0x30] sm:$0xf]
      %v1231 = vld [vmem:[#allocation2 + $0x34] sm:$0xf]
      %v1232 = vld [vmem:[#allocation2 + $0x38] sm:$0x1]
      %v1233 = vld [vmem:[#allocation2 + $0x3c] sm:$0xf]
      %v1234 = vld [vmem:[#allocation2 + $0x40] sm:$0xf]
      %v1235 = vld [vmem:[#allocation2 + $0x44] sm:$0x1]
      %v1236 = vld [vmem:[#allocation2 + $0x48] sm:$0xf]
      %v1237 = vld [vmem:[#allocation2 + $0x4c] sm:$0xf]
      %v1238 = vld [vmem:[#allocation2 + $0x50] sm:$0x1]
      %v1239 = vld [vmem:[#allocation2 + $0x54] sm:$0xf]
      %v1240 = vld [vmem:[#allocation2 + $0x58] sm:$0xf]
      %v1241 = vld [vmem:[#allocation2 + $0x5c] sm:$0x1]
      %v1242 = vld [vmem:[#allocation2 + $0x60] sm:$0xf]
      %v1243 = vld [vmem:[#allocation2 + $0x64] sm:$0xf]
      %v1244 = vld [vmem:[#allocation2 + $0x68] sm:$0x1]
      %v1245 = vld [vmem:[#allocation2 + $0x6c] sm:$0xf]
      %v1246 = vld [vmem:[#allocation2 + $0x70] sm:$0xf]
      %v1247 = vld [vmem:[#allocation2 + $0x74] sm:$0x1]
      %v1248 = vld [vmem:[#allocation2 + $0x78] sm:$0xf]
      %v1249 = vld [vmem:[#allocation2 + $0x7c] sm:$0xf]
      %v1250 = vld [vmem:[#allocation2 + $0x80] sm:$0x1]
      %v1251 = vld [vmem:[#allocation2 + $0x84] sm:$0xf]
      %v1252 = vld [vmem:[#allocation2 + $0x88] sm:$0xf]
      %v1253 = vld [vmem:[#allocation2 + $0x8c] sm:$0x1]
      %v1254 = vld [vmem:[#allocation2 + $0x90] sm:$0xf]
      %v1255 = vld [vmem:[#allocation2 + $0x94] sm:$0xf]
      %v1256 = vld [vmem:[#allocation2 + $0x98] sm:$0x1]
      %v1257 = vld [vmem:[#allocation2 + $0x9c] sm:$0xf]
      %v1258 = vld [vmem:[#allocation2 + $0xa0] sm:$0xf]
      %v1259 = vld [vmem:[#allocation2 + $0xa4] sm:$0x1]
      %v1260 = vld [vmem:[#allocation2 + $0xa8] sm:$0xf]
      %v1261 = vld [vmem:[#allocation2 + $0xac] sm:$0xf]
      %v1262 = vld [vmem:[#allocation2 + $0xb0] sm:$0x1]
      %v1263 = vld [vmem:[#allocation2 + $0xb4] sm:$0xf]
      %v1264 = vld [vmem:[#allocation2 + $0xb8] sm:$0xf]
      %v1265 = vld [vmem:[#allocation2 + $0xbc] sm:$0x1]
      %vm1266 = vsmask.f32 3328
      %vm1267 = vsmask.f32 7440
      %vm1268 = vmor %vm1266, %vm1267
      %v1270 = vshrl.u32 %v1218, 16
      %v1272 = vrot.slane %v1270, 4
      %v1273 = vshll.u32 %v1218, 16
      %v1275 = vrot.slane %v1273, 5
      %v1276 = vor.u32 %v1272, %v1275
      %v1277 = vrot.slane %v1276, 4
      %v1279 = vshll.u32 %v1219, 16
      %v1281 = vrot.slane %v1279, 5
      %v1282 = vsel %vm1268, %v1277, %v1281
      %v1283 = vshrl.u32 %v1219, 16
      %v1285 = vrot.slane %v1283, 4
      %v1286 = vor.u32 %v1285, %v1281
      %v1287 = vrot.slane %v1286, 4
      %v1289 = vshll.u32 %v1220, 16
      %v1291 = vrot.slane %v1289, 5
      %v1292 = vsel %vm1268, %v1287, %v1291
      %v1294 = vshrl.u32 %v1221, 16
      %v1296 = vrot.slane %v1294, 4
      %v1297 = vshll.u32 %v1221, 16
      %v1299 = vrot.slane %v1297, 5
      %v1300 = vor.u32 %v1296, %v1299
      %v1301 = vrot.slane %v1300, 4
      %v1303 = vshll.u32 %v1222, 16
      %v1305 = vrot.slane %v1303, 5
      %v1306 = vsel %vm1268, %v1301, %v1305
      %v1307 = vshrl.u32 %v1222, 16
      %v1309 = vrot.slane %v1307, 4
      %v1310 = vor.u32 %v1309, %v1305
      %v1311 = vrot.slane %v1310, 4
      %v1313 = vshll.u32 %v1223, 16
      %v1315 = vrot.slane %v1313, 5
      %v1316 = vsel %vm1268, %v1311, %v1315
      %v1318 = vshrl.u32 %v1224, 16
      %v1320 = vrot.slane %v1318, 4
      %v1321 = vshll.u32 %v1224, 16
      %v1323 = vrot.slane %v1321, 5
      %v1324 = vor.u32 %v1320, %v1323
      %v1325 = vrot.slane %v1324, 4
      %v1327 = vshll.u32 %v1225, 16
      %v1329 = vrot.slane %v1327, 5
      %v1330 = vsel %vm1268, %v1325, %v1329
      %v1331 = vshrl.u32 %v1225, 16
      %v1333 = vrot.slane %v1331, 4
      %v1334 = vor.u32 %v1333, %v1329
      %v1335 = vrot.slane %v1334, 4
      %v1337 = vshll.u32 %v1226, 16
      %v1339 = vrot.slane %v1337, 5
      %v1340 = vsel %vm1268, %v1335, %v1339
      %v1342 = vshrl.u32 %v1227, 16
      %v1344 = vrot.slane %v1342, 4
      %v1345 = vshll.u32 %v1227, 16
      %v1347 = vrot.slane %v1345, 5
      %v1348 = vor.u32 %v1344, %v1347
      %v1349 = vrot.slane %v1348, 4
      %v1351 = vshll.u32 %v1228, 16
      %v1353 = vrot.slane %v1351, 5
      %v1354 = vsel %vm1268, %v1349, %v1353
      %v1355 = vshrl.u32 %v1228, 16
      %v1357 = vrot.slane %v1355, 4
      %v1358 = vor.u32 %v1357, %v1353
      %v1359 = vrot.slane %v1358, 4
      %v1361 = vshll.u32 %v1229, 16
      %v1363 = vrot.slane %v1361, 5
      %v1364 = vsel %vm1268, %v1359, %v1363
      %v1366 = vshrl.u32 %v1230, 16
      %v1368 = vrot.slane %v1366, 4
      %v1369 = vshll.u32 %v1230, 16
      %v1371 = vrot.slane %v1369, 5
      %v1372 = vor.u32 %v1368, %v1371
      %v1373 = vrot.slane %v1372, 4
      %v1375 = vshll.u32 %v1231, 16
      %v1377 = vrot.slane %v1375, 5
      %v1378 = vsel %vm1268, %v1373, %v1377
      %v1379 = vshrl.u32 %v1231, 16
      %v1381 = vrot.slane %v1379, 4
      %v1382 = vor.u32 %v1381, %v1377
      %v1383 = vrot.slane %v1382, 4
      %v1385 = vshll.u32 %v1232, 16
      %v1387 = vrot.slane %v1385, 5
      %v1388 = vsel %vm1268, %v1383, %v1387
      %v1390 = vshrl.u32 %v1233, 16
      %v1392 = vrot.slane %v1390, 4
      %v1393 = vshll.u32 %v1233, 16
      %v1395 = vrot.slane %v1393, 5
      %v1396 = vor.u32 %v1392, %v1395
      %v1397 = vrot.slane %v1396, 4
      %v1399 = vshll.u32 %v1234, 16
      %v1401 = vrot.slane %v1399, 5
      %v1402 = vsel %vm1268, %v1397, %v1401
      %v1403 = vshrl.u32 %v1234, 16
      %v1405 = vrot.slane %v1403, 4
      %v1406 = vor.u32 %v1405, %v1401
      %v1407 = vrot.slane %v1406, 4
      %v1409 = vshll.u32 %v1235, 16
      %v1411 = vrot.slane %v1409, 5
      %v1412 = vsel %vm1268, %v1407, %v1411
      %v1414 = vshrl.u32 %v1236, 16
      %v1416 = vrot.slane %v1414, 4
      %v1417 = vshll.u32 %v1236, 16
      %v1419 = vrot.slane %v1417, 5
      %v1420 = vor.u32 %v1416, %v1419
      %v1421 = vrot.slane %v1420, 4
      %v1423 = vshll.u32 %v1237, 16
      %v1425 = vrot.slane %v1423, 5
      %v1426 = vsel %vm1268, %v1421, %v1425
      %v1427 = vshrl.u32 %v1237, 16
      %v1429 = vrot.slane %v1427, 4
      %v1430 = vor.u32 %v1429, %v1425
      %v1431 = vrot.slane %v1430, 4
      %v1433 = vshll.u32 %v1238, 16
      %v1435 = vrot.slane %v1433, 5
      %v1436 = vsel %vm1268, %v1431, %v1435
      %v1438 = vshrl.u32 %v1239, 16
      %v1440 = vrot.slane %v1438, 4
      %v1441 = vshll.u32 %v1239, 16
      %v1443 = vrot.slane %v1441, 5
      %v1444 = vor.u32 %v1440, %v1443
      %v1445 = vrot.slane %v1444, 4
      %v1447 = vshll.u32 %v1240, 16
      %v1449 = vrot.slane %v1447, 5
      %v1450 = vsel %vm1268, %v1445, %v1449
      %v1451 = vshrl.u32 %v1240, 16
      %v1453 = vrot.slane %v1451, 4
      %v1454 = vor.u32 %v1453, %v1449
      %v1455 = vrot.slane %v1454, 4
      %v1457 = vshll.u32 %v1241, 16
      %v1459 = vrot.slane %v1457, 5
      %v1460 = vsel %vm1268, %v1455, %v1459
      %v1462 = vshrl.u32 %v1242, 16
      %v1464 = vrot.slane %v1462, 4
      %v1465 = vshll.u32 %v1242, 16
      %v1467 = vrot.slane %v1465, 5
      %v1468 = vor.u32 %v1464, %v1467
      %v1469 = vrot.slane %v1468, 4
      %v1471 = vshll.u32 %v1243, 16
      %v1473 = vrot.slane %v1471, 5
      %v1474 = vsel %vm1268, %v1469, %v1473
      %v1475 = vshrl.u32 %v1243, 16
      %v1477 = vrot.slane %v1475, 4
      %v1478 = vor.u32 %v1477, %v1473
      %v1479 = vrot.slane %v1478, 4
      %v1481 = vshll.u32 %v1244, 16
      %v1483 = vrot.slane %v1481, 5
      %v1484 = vsel %vm1268, %v1479, %v1483
      %v1486 = vshrl.u32 %v1245, 16
      %v1488 = vrot.slane %v1486, 4
      %v1489 = vshll.u32 %v1245, 16
      %v1491 = vrot.slane %v1489, 5
      %v1492 = vor.u32 %v1488, %v1491
      %v1493 = vrot.slane %v1492, 4
      %v1495 = vshll.u32 %v1246, 16
      %v1497 = vrot.slane %v1495, 5
      %v1498 = vsel %vm1268, %v1493, %v1497
      %v1499 = vshrl.u32 %v1246, 16
      %v1501 = vrot.slane %v1499, 4
      %v1502 = vor.u32 %v1501, %v1497
      %v1503 = vrot.slane %v1502, 4
      %v1505 = vshll.u32 %v1247, 16
      %v1507 = vrot.slane %v1505, 5
      %v1508 = vsel %vm1268, %v1503, %v1507
      %v1510 = vshrl.u32 %v1248, 16
      %v1512 = vrot.slane %v1510, 4
      %v1513 = vshll.u32 %v1248, 16
      %v1515 = vrot.slane %v1513, 5
      %v1516 = vor.u32 %v1512, %v1515
      %v1517 = vrot.slane %v1516, 4
      %v1519 = vshll.u32 %v1249, 16
      %v1521 = vrot.slane %v1519, 5
      %v1522 = vsel %vm1268, %v1517, %v1521
      %v1523 = vshrl.u32 %v1249, 16
      %v1525 = vrot.slane %v1523, 4
      %v1526 = vor.u32 %v1525, %v1521
      %v1527 = vrot.slane %v1526, 4
      %v1529 = vshll.u32 %v1250, 16
      %v1531 = vrot.slane %v1529, 5
      %v1532 = vsel %vm1268, %v1527, %v1531
      %v1534 = vshrl.u32 %v1251, 16
      %v1536 = vrot.slane %v1534, 4
      %v1537 = vshll.u32 %v1251, 16
      %v1539 = vrot.slane %v1537, 5
      %v1540 = vor.u32 %v1536, %v1539
      %v1541 = vrot.slane %v1540, 4
      %v1543 = vshll.u32 %v1252, 16
      %v1545 = vrot.slane %v1543, 5
      %v1546 = vsel %vm1268, %v1541, %v1545
      %v1547 = vshrl.u32 %v1252, 16
      %v1549 = vrot.slane %v1547, 4
      %v1550 = vor.u32 %v1549, %v1545
      %v1551 = vrot.slane %v1550, 4
      %v1553 = vshll.u32 %v1253, 16
      %v1555 = vrot.slane %v1553, 5
      %v1556 = vsel %vm1268, %v1551, %v1555
      %v1558 = vshrl.u32 %v1254, 16
      %v1560 = vrot.slane %v1558, 4
      %v1561 = vshll.u32 %v1254, 16
      %v1563 = vrot.slane %v1561, 5
      %v1564 = vor.u32 %v1560, %v1563
      %v1565 = vrot.slane %v1564, 4
      %v1567 = vshll.u32 %v1255, 16
      %v1569 = vrot.slane %v1567, 5
      %v1570 = vsel %vm1268, %v1565, %v1569
      %v1571 = vshrl.u32 %v1255, 16
      %v1573 = vrot.slane %v1571, 4
      %v1574 = vor.u32 %v1573, %v1569
      %v1575 = vrot.slane %v1574, 4
      %v1577 = vshll.u32 %v1256, 16
      %v1579 = vrot.slane %v1577, 5
      %v1580 = vsel %vm1268, %v1575, %v1579
      %v1582 = vshrl.u32 %v1257, 16
      %v1584 = vrot.slane %v1582, 4
      %v1585 = vshll.u32 %v1257, 16
      %v1587 = vrot.slane %v1585, 5
      %v1588 = vor.u32 %v1584, %v1587
      %v1589 = vrot.slane %v1588, 4
      %v1591 = vshll.u32 %v1258, 16
      %v1593 = vrot.slane %v1591, 5
      %v1594 = vsel %vm1268, %v1589, %v1593
      %v1595 = vshrl.u32 %v1258, 16
      %v1597 = vrot.slane %v1595, 4
      %v1598 = vor.u32 %v1597, %v1593
      %v1599 = vrot.slane %v1598, 4
      %v1601 = vshll.u32 %v1259, 16
      %v1603 = vrot.slane %v1601, 5
      %v1604 = vsel %vm1268, %v1599, %v1603
      %v1606 = vshrl.u32 %v1260, 16
      %v1608 = vrot.slane %v1606, 4
      %v1609 = vshll.u32 %v1260, 16
      %v1611 = vrot.slane %v1609, 5
      %v1612 = vor.u32 %v1608, %v1611
      %v1613 = vrot.slane %v1612, 4
      %v1615 = vshll.u32 %v1261, 16
      %v1617 = vrot.slane %v1615, 5
      %v1618 = vsel %vm1268, %v1613, %v1617
      %v1619 = vshrl.u32 %v1261, 16
      %v1621 = vrot.slane %v1619, 4
      %v1622 = vor.u32 %v1621, %v1617
      %v1623 = vrot.slane %v1622, 4
      %v1625 = vshll.u32 %v1262, 16
      %v1627 = vrot.slane %v1625, 5
      %v1628 = vsel %vm1268, %v1623, %v1627
      %v1630 = vshrl.u32 %v1263, 16
      %v1632 = vrot.slane %v1630, 4
      %v1633 = vshll.u32 %v1263, 16
      %v1635 = vrot.slane %v1633, 5
      %v1636 = vor.u32 %v1632, %v1635
      %v1637 = vrot.slane %v1636, 4
      %v1639 = vshll.u32 %v1264, 16
      %v1641 = vrot.slane %v1639, 5
      %v1642 = vsel %vm1268, %v1637, %v1641
      %v1643 = vshrl.u32 %v1264, 16
      %v1645 = vrot.slane %v1643, 4
      %v1646 = vor.u32 %v1645, %v1641
      %v1647 = vrot.slane %v1646, 4
      %v1649 = vshll.u32 %v1265, 16
      %v1651 = vrot.slane %v1649, 5
      %v1652 = vsel %vm1268, %v1647, %v1651
      %s1653 = scalar_lea.vmem %s1, 2
      %v1654 = vld [vmem:[%s1653] sm:$0x3]
      %v1655 = vunpack.c.l.b16 %v1282
      %v1656 = vunpack.c.l.b16 %v1292
      %v1657 = vunpack.c.l.b16 %v1306
      %v1658 = vunpack.c.l.b16 %v1316
      %v1659 = vunpack.c.l.b16 %v1330
      %v1660 = vunpack.c.l.b16 %v1340
      %v1661 = vunpack.c.l.b16 %v1354
      %v1662 = vunpack.c.l.b16 %v1364
      %v1663 = vunpack.c.l.b16 %v1378
      %v1664 = vunpack.c.l.b16 %v1388
      %v1665 = vunpack.c.l.b16 %v1402
      %v1666 = vunpack.c.l.b16 %v1412
      %v1667 = vunpack.c.l.b16 %v1426
      %v1668 = vunpack.c.l.b16 %v1436
      %v1669 = vunpack.c.l.b16 %v1450
      %v1670 = vunpack.c.l.b16 %v1460
      %v1671 = vunpack.c.l.b16 %v1474
      %v1672 = vunpack.c.l.b16 %v1484
      %v1673 = vunpack.c.l.b16 %v1498
      %v1674 = vunpack.c.l.b16 %v1508
      %v1675 = vunpack.c.l.b16 %v1522
      %v1676 = vunpack.c.l.b16 %v1532
      %v1677 = vunpack.c.l.b16 %v1546
      %v1678 = vunpack.c.l.b16 %v1556
      %v1679 = vunpack.c.l.b16 %v1570
      %v1680 = vunpack.c.l.b16 %v1580
      %v1681 = vunpack.c.l.b16 %v1594
      %v1682 = vunpack.c.l.b16 %v1604
      %v1683 = vunpack.c.l.b16 %v1618
      %v1684 = vunpack.c.l.b16 %v1628
      %v1685 = vunpack.c.l.b16 %v1642
      %v1686 = vunpack.c.l.b16 %v1652
      %v1687 = vpack.c.b16 %v1656, %v1655
      %v1688 = vpack.c.b16 %v1658, %v1657
      %v1689 = vpack.c.b16 %v1660, %v1659
      %v1690 = vpack.c.b16 %v1662, %v1661
      %v1691 = vpack.c.b16 %v1664, %v1663
      %v1692 = vpack.c.b16 %v1666, %v1665
      %v1693 = vpack.c.b16 %v1668, %v1667
      %v1694 = vpack.c.b16 %v1670, %v1669
      %v1695 = vpack.c.b16 %v1672, %v1671
      %v1696 = vpack.c.b16 %v1674, %v1673
      %v1697 = vpack.c.b16 %v1676, %v1675
      %v1698 = vpack.c.b16 %v1678, %v1677
      %v1699 = vpack.c.b16 %v1680, %v1679
      %v1700 = vpack.c.b16 %v1682, %v1681
      %v1701 = vpack.c.b16 %v1684, %v1683
      %v1702 = vpack.c.b16 %v1686, %v1685
      %v1704 = vsel %vm972, %v1687, 0
      %v1707 = vsel %vm972, %v1688, 0
      %v1710 = vsel %vm972, %v1689, 0
      %v1713 = vsel %vm972, %v1690, 0
      %v1716 = vsel %vm972, %v1691, 0
      %v1719 = vsel %vm972, %v1692, 0
      %v1722 = vsel %vm972, %v1693, 0
      %v1725 = vsel %vm972, %v1694, 0
      %v1728 = vsel %vm972, %v1695, 0
      %v1731 = vsel %vm972, %v1696, 0
      %v1734 = vsel %vm972, %v1697, 0
      %v1737 = vsel %vm972, %v1698, 0
      %v1740 = vsel %vm972, %v1699, 0
      %v1743 = vsel %vm972, %v1700, 0
      %v1746 = vsel %vm972, %v1701, 0
      %v1749 = vsel %vm972, %v1702, 0
      %v1752 = vsel %vm1021, %v1654, 0
      %1754 = vmatprep.subr.bf16.mxu0 0
      %1755 = vmatpush1.bf16.msra.mxu0 0
      %1756 = vmatprep.subr.bf16.mxu0 0
      %1757 = vmatpush1.bf16.msra.mxu0 0
      %1758 = vmatprep.subr.bf16.mxu0 0
      %1759 = vmatpush1.bf16.msra.mxu0 0
      %1760 = vmatprep.subr.bf16.mxu0 0
      %1761 = vmatpush1.bf16.msra.mxu0 0
      %1762 = vmatprep.subr.bf16.mxu0 0
      %1763 = vmatpush1.bf16.msra.mxu0 0
      %1764 = vmatprep.subr.bf16.mxu0 0
      %1765 = vmatpush1.bf16.msra.mxu0 0
      %1766 = vmatprep.subr.bf16.mxu0 0
      %1767 = vmatpush1.bf16.msra.mxu0 0
      %1768 = vmatprep.subr.bf16.mxu0 0
      %1769 = vmatpush1.bf16.msra.mxu0 %v1752
      %1770 = vmatprep.subr.bf16.mxu0 0
      %1771 = vmatpush2.bf16.msra.mxu0 0
      %1772 = vmatprep.subr.bf16.mxu0 0
      %1773 = vmatpush2.bf16.msra.mxu0 0
      %1774 = vmatprep.subr.bf16.mxu0 0
      %1775 = vmatpush2.bf16.msra.mxu0 0
      %1776 = vmatprep.subr.bf16.mxu0 0
      %1777 = vmatpush2.bf16.msra.mxu0 0
      %1778 = vmatprep.subr.bf16.mxu0 0
      %1779 = vmatpush2.bf16.msra.mxu0 0
      %1780 = vmatprep.subr.bf16.mxu0 0
      %1781 = vmatpush2.bf16.msra.mxu0 0
      %1782 = vmatprep.subr.bf16.mxu0 0
      %1783 = vmatpush2.bf16.msra.mxu0 0
      %1784 = vmatprep.subr.bf16.mxu0 0
      %1785 = vmatpush2.bf16.msra.mxu0 0
      %1786 = vmatprep.mubr.bf16.mxu0 0
      %1787 = vmatmul.mubr.bf16.gmra.mxu0 %v1704
      %v1788 = vpop.f32.mrf.mxu0
      %v1789 = vadd.f32 0.0, %v1788
      %v1790 = vpop.f32.mrf.mxu0
      %v1791 = vpop.f32.mrf.mxu0
      %v1792 = vadd.f32 0.0, %v1791
      %v1793 = vpop.f32.mrf.mxu0
      %1794 = vmatprep.mubr.bf16.mxu0 0
      %1795 = vmatmul.mubr.bf16.gmra.mxu0 %v1707
      %v1796 = vpop.f32.mrf.mxu0
      %v1797 = vadd.f32 0.0, %v1796
      %v1798 = vpop.f32.mrf.mxu0
      %v1799 = vpop.f32.mrf.mxu0
      %v1800 = vadd.f32 0.0, %v1799
      %v1801 = vpop.f32.mrf.mxu0
      %1802 = vmatprep.mubr.bf16.mxu0 0
      %1803 = vmatmul.mubr.bf16.gmra.mxu0 %v1710
      %v1804 = vpop.f32.mrf.mxu0
      %v1805 = vadd.f32 0.0, %v1804
      %v1806 = vpop.f32.mrf.mxu0
      %v1807 = vpop.f32.mrf.mxu0
      %v1808 = vadd.f32 0.0, %v1807
      %v1809 = vpop.f32.mrf.mxu0
      %1810 = vmatprep.mubr.bf16.mxu0 0
      %1811 = vmatmul.mubr.bf16.gmra.mxu0 %v1713
      %v1812 = vpop.f32.mrf.mxu0
      %v1813 = vadd.f32 0.0, %v1812
      %v1814 = vpop.f32.mrf.mxu0
      %v1815 = vpop.f32.mrf.mxu0
      %v1816 = vadd.f32 0.0, %v1815
      %v1817 = vpop.f32.mrf.mxu0
      %1818 = vmatprep.mubr.bf16.mxu0 0
      %1819 = vmatmul.mubr.bf16.gmra.mxu0 %v1716
      %v1820 = vpop.f32.mrf.mxu0
      %v1821 = vadd.f32 0.0, %v1820
      %v1822 = vpop.f32.mrf.mxu0
      %v1823 = vpop.f32.mrf.mxu0
      %v1824 = vadd.f32 0.0, %v1823
      %v1825 = vpop.f32.mrf.mxu0
      %1826 = vmatprep.mubr.bf16.mxu0 0
      %1827 = vmatmul.mubr.bf16.gmra.mxu0 %v1719
      %v1828 = vpop.f32.mrf.mxu0
      %v1829 = vadd.f32 0.0, %v1828
      %v1830 = vpop.f32.mrf.mxu0
      %v1831 = vpop.f32.mrf.mxu0
      %v1832 = vadd.f32 0.0, %v1831
      %v1833 = vpop.f32.mrf.mxu0
      %1834 = vmatprep.mubr.bf16.mxu0 0
      %1835 = vmatmul.mubr.bf16.gmra.mxu0 %v1722
      %v1836 = vpop.f32.mrf.mxu0
      %v1837 = vadd.f32 0.0, %v1836
      %v1838 = vpop.f32.mrf.mxu0
      %v1839 = vpop.f32.mrf.mxu0
      %v1840 = vadd.f32 0.0, %v1839
      %v1841 = vpop.f32.mrf.mxu0
      %1842 = vmatprep.mubr.bf16.mxu0 0
      %1843 = vmatmul.mubr.bf16.gmra.mxu0 %v1725
      %v1844 = vpop.f32.mrf.mxu0
      %v1845 = vadd.f32 0.0, %v1844
      %v1846 = vpop.f32.mrf.mxu0
      %v1847 = vpop.f32.mrf.mxu0
      %v1848 = vadd.f32 0.0, %v1847
      %v1849 = vpop.f32.mrf.mxu0
      %1850 = vmatprep.mubr.bf16.mxu0 0
      %1851 = vmatmul.mubr.bf16.gmra.mxu0 %v1728
      %v1852 = vpop.f32.mrf.mxu0
      %v1853 = vadd.f32 0.0, %v1852
      %v1854 = vpop.f32.mrf.mxu0
      %v1855 = vpop.f32.mrf.mxu0
      %v1856 = vadd.f32 0.0, %v1855
      %v1857 = vpop.f32.mrf.mxu0
      %1858 = vmatprep.mubr.bf16.mxu0 0
      %1859 = vmatmul.mubr.bf16.gmra.mxu0 %v1731
      %v1860 = vpop.f32.mrf.mxu0
      %v1861 = vadd.f32 0.0, %v1860
      %v1862 = vpop.f32.mrf.mxu0
      %v1863 = vpop.f32.mrf.mxu0
      %v1864 = vadd.f32 0.0, %v1863
      %v1865 = vpop.f32.mrf.mxu0
      %1866 = vmatprep.mubr.bf16.mxu0 0
      %1867 = vmatmul.mubr.bf16.gmra.mxu0 %v1734
      %v1868 = vpop.f32.mrf.mxu0
      %v1869 = vadd.f32 0.0, %v1868
      %v1870 = vpop.f32.mrf.mxu0
      %v1871 = vpop.f32.mrf.mxu0
      %v1872 = vadd.f32 0.0, %v1871
      %v1873 = vpop.f32.mrf.mxu0
      %1874 = vmatprep.mubr.bf16.mxu0 0
      %1875 = vmatmul.mubr.bf16.gmra.mxu0 %v1737
      %v1876 = vpop.f32.mrf.mxu0
      %v1877 = vadd.f32 0.0, %v1876
      %v1878 = vpop.f32.mrf.mxu0
      %v1879 = vpop.f32.mrf.mxu0
      %v1880 = vadd.f32 0.0, %v1879
      %v1881 = vpop.f32.mrf.mxu0
      %1882 = vmatprep.mubr.bf16.mxu0 0
      %1883 = vmatmul.mubr.bf16.gmra.mxu0 %v1740
      %v1884 = vpop.f32.mrf.mxu0
      %v1885 = vadd.f32 0.0, %v1884
      %v1886 = vpop.f32.mrf.mxu0
      %v1887 = vpop.f32.mrf.mxu0
      %v1888 = vadd.f32 0.0, %v1887
      %v1889 = vpop.f32.mrf.mxu0
      %1890 = vmatprep.mubr.bf16.mxu0 0
      %1891 = vmatmul.mubr.bf16.gmra.mxu0 %v1743
      %v1892 = vpop.f32.mrf.mxu0
      %v1893 = vadd.f32 0.0, %v1892
      %v1894 = vpop.f32.mrf.mxu0
      %v1895 = vpop.f32.mrf.mxu0
      %v1896 = vadd.f32 0.0, %v1895
      %v1897 = vpop.f32.mrf.mxu0
      %1898 = vmatprep.mubr.bf16.mxu0 0
      %1899 = vmatmul.mubr.bf16.gmra.mxu0 %v1746
      %v1900 = vpop.f32.mrf.mxu0
      %v1901 = vadd.f32 0.0, %v1900
      %v1902 = vpop.f32.mrf.mxu0
      %v1903 = vpop.f32.mrf.mxu0
      %v1904 = vadd.f32 0.0, %v1903
      %v1905 = vpop.f32.mrf.mxu0
      %1906 = vmatprep.mubr.bf16.mxu0 0
      %1907 = vmatmul.mubr.bf16.gmra.mxu0 %v1749
      %v1908 = vpop.f32.mrf.mxu0
      %v1909 = vadd.f32 0.0, %v1908
      %v1910 = vpop.f32.mrf.mxu0
      %v1911 = vpop.f32.mrf.mxu0
      %v1912 = vadd.f32 0.0, %v1911
      %v1913 = vpop.f32.mrf.mxu0
      %1914 = vdwg.mxu0
      %v1915 = vld [vmem:[#allocation3] sm:$0xff]
      %v1916 = vld [vmem:[#allocation3 + $0x8] sm:$0xff]
      %v1917 = vld [vmem:[#allocation3 + $0x10] sm:$0xff]
      %v1918 = vld [vmem:[#allocation3 + $0x18] sm:$0xff]
      %v1919 = vld [vmem:[#allocation3 + $0x20] sm:$0xff]
      %v1920 = vld [vmem:[#allocation3 + $0x28] sm:$0xff]
      %v1921 = vld [vmem:[#allocation3 + $0x30] sm:$0xff]
      %v1922 = vld [vmem:[#allocation3 + $0x38] sm:$0xff]
      %v1923 = vld [vmem:[#allocation3 + $0x40] sm:$0xff]
      %v1924 = vld [vmem:[#allocation3 + $0x48] sm:$0xff]
      %v1925 = vld [vmem:[#allocation3 + $0x50] sm:$0xff]
      %v1926 = vld [vmem:[#allocation3 + $0x58] sm:$0xff]
      %v1927 = vld [vmem:[#allocation3 + $0x60] sm:$0xff]
      %v1928 = vld [vmem:[#allocation3 + $0x68] sm:$0xff]
      %v1929 = vld [vmem:[#allocation3 + $0x70] sm:$0xff]
      %v1930 = vld [vmem:[#allocation3 + $0x78] sm:$0xff]
      %v1931 = vld [vmem:[#allocation3 + $0x80] sm:$0xff]
      %v1932 = vld [vmem:[#allocation3 + $0x88] sm:$0xff]
      %v1933 = vld [vmem:[#allocation3 + $0x90] sm:$0xff]
      %v1934 = vld [vmem:[#allocation3 + $0x98] sm:$0xff]
      %v1935 = vld [vmem:[#allocation3 + $0xa0] sm:$0xff]
      %v1936 = vld [vmem:[#allocation3 + $0xa8] sm:$0xff]
      %v1937 = vld [vmem:[#allocation3 + $0xb0] sm:$0xff]
      %v1938 = vld [vmem:[#allocation3 + $0xb8] sm:$0xff]
      %v1939 = vld [vmem:[#allocation3 + $0xc0] sm:$0xff]
      %v1940 = vld [vmem:[#allocation3 + $0xc8] sm:$0xff]
      %v1941 = vld [vmem:[#allocation3 + $0xd0] sm:$0xff]
      %v1942 = vld [vmem:[#allocation3 + $0xd8] sm:$0xff]
      %v1943 = vld [vmem:[#allocation3 + $0xe0] sm:$0xff]
      %v1944 = vld [vmem:[#allocation3 + $0xe8] sm:$0xff]
      %v1945 = vld [vmem:[#allocation3 + $0xf0] sm:$0xff]
      %v1946 = vld [vmem:[#allocation3 + $0xf8] sm:$0xff]
      %v1947 = vadd.f32 %v1915, %v1789
      %v1948 = vadd.f32 %v1916, %v1792
      %v1949 = vadd.f32 %v1917, %v1797
      %v1950 = vadd.f32 %v1918, %v1800
      %v1951 = vadd.f32 %v1919, %v1805
      %v1952 = vadd.f32 %v1920, %v1808
      %v1953 = vadd.f32 %v1921, %v1813
      %v1954 = vadd.f32 %v1922, %v1816
      %v1955 = vadd.f32 %v1923, %v1821
      %v1956 = vadd.f32 %v1924, %v1824
      %v1957 = vadd.f32 %v1925, %v1829
      %v1958 = vadd.f32 %v1926, %v1832
      %v1959 = vadd.f32 %v1927, %v1837
      %v1960 = vadd.f32 %v1928, %v1840
      %v1961 = vadd.f32 %v1929, %v1845
      %v1962 = vadd.f32 %v1930, %v1848
      %v1963 = vadd.f32 %v1931, %v1853
      %v1964 = vadd.f32 %v1932, %v1856
      %v1965 = vadd.f32 %v1933, %v1861
      %v1966 = vadd.f32 %v1934, %v1864
      %v1967 = vadd.f32 %v1935, %v1869
      %v1968 = vadd.f32 %v1936, %v1872
      %v1969 = vadd.f32 %v1937, %v1877
      %v1970 = vadd.f32 %v1938, %v1880
      %v1971 = vadd.f32 %v1939, %v1885
      %v1972 = vadd.f32 %v1940, %v1888
      %v1973 = vadd.f32 %v1941, %v1893
      %v1974 = vadd.f32 %v1942, %v1896
      %v1975 = vadd.f32 %v1943, %v1901
      %v1976 = vadd.f32 %v1944, %v1904
      %v1977 = vadd.f32 %v1945, %v1909
      %v1978 = vadd.f32 %v1946, %v1912
      %1979 = vst.msk [vmem:[#allocation3] sm:$0xff] %vm972, %v1947
      %1980 = vst.msk [vmem:[#allocation3 + $0x8] sm:$0xff] %vm972, %v1948
      %1981 = vst.msk [vmem:[#allocation3 + $0x10] sm:$0xff] %vm972, %v1949
      %1982 = vst.msk [vmem:[#allocation3 + $0x18] sm:$0xff] %vm972, %v1950
      %1983 = vst.msk [vmem:[#allocation3 + $0x20] sm:$0xff] %vm972, %v1951
      %1984 = vst.msk [vmem:[#allocation3 + $0x28] sm:$0xff] %vm972, %v1952
      %1985 = vst.msk [vmem:[#allocation3 + $0x30] sm:$0xff] %vm972, %v1953
      %1986 = vst.msk [vmem:[#allocation3 + $0x38] sm:$0xff] %vm972, %v1954
      %1987 = vst.msk [vmem:[#allocation3 + $0x40] sm:$0xff] %vm972, %v1955
      %1988 = vst.msk [vmem:[#allocation3 + $0x48] sm:$0xff] %vm972, %v1956
      %1989 = vst.msk [vmem:[#allocation3 + $0x50] sm:$0xff] %vm972, %v1957
      %1990 = vst.msk [vmem:[#allocation3 + $0x58] sm:$0xff] %vm972, %v1958
      %1991 = vst.msk [vmem:[#allocation3 + $0x60] sm:$0xff] %vm972, %v1959
      %1992 = vst.msk [vmem:[#allocation3 + $0x68] sm:$0xff] %vm972, %v1960
      %1993 = vst.msk [vmem:[#allocation3 + $0x70] sm:$0xff] %vm972, %v1961
      %1994 = vst.msk [vmem:[#allocation3 + $0x78] sm:$0xff] %vm972, %v1962
      %1995 = vst.msk [vmem:[#allocation3 + $0x80] sm:$0xff] %vm972, %v1963
      %1996 = vst.msk [vmem:[#allocation3 + $0x88] sm:$0xff] %vm972, %v1964
      %1997 = vst.msk [vmem:[#allocation3 + $0x90] sm:$0xff] %vm972, %v1965
      %1998 = vst.msk [vmem:[#allocation3 + $0x98] sm:$0xff] %vm972, %v1966
      %1999 = vst.msk [vmem:[#allocation3 + $0xa0] sm:$0xff] %vm972, %v1967
      %2000 = vst.msk [vmem:[#allocation3 + $0xa8] sm:$0xff] %vm972, %v1968
      %2001 = vst.msk [vmem:[#allocation3 + $0xb0] sm:$0xff] %vm972, %v1969
      %2002 = vst.msk [vmem:[#allocation3 + $0xb8] sm:$0xff] %vm972, %v1970
      %2003 = vst.msk [vmem:[#allocation3 + $0xc0] sm:$0xff] %vm972, %v1971
      %2004 = vst.msk [vmem:[#allocation3 + $0xc8] sm:$0xff] %vm972, %v1972
      %2005 = vst.msk [vmem:[#allocation3 + $0xd0] sm:$0xff] %vm972, %v1973
      %2006 = vst.msk [vmem:[#allocation3 + $0xd8] sm:$0xff] %vm972, %v1974
      %2007 = vst.msk [vmem:[#allocation3 + $0xe0] sm:$0xff] %vm972, %v1975
      %2008 = vst.msk [vmem:[#allocation3 + $0xe8] sm:$0xff] %vm972, %v1976
      %2009 = vst.msk [vmem:[#allocation3 + $0xf0] sm:$0xff] %vm972, %v1977
      %2010 = vst.msk [vmem:[#allocation3 + $0xf8] sm:$0xff] %vm972, %v1978
      %v2011 = vld [vmem:[#allocation2] sm:$0xe]
      %v2012 = vld [vmem:[#allocation2 + $0x4] sm:$0xf]
      %v2013 = vld [vmem:[#allocation2 + $0x8] sm:$0x1]
      %v2014 = vld [vmem:[#allocation2 + $0xc] sm:$0xe]
      %v2015 = vld [vmem:[#allocation2 + $0x10] sm:$0xf]
      %v2016 = vld [vmem:[#allocation2 + $0x14] sm:$0x1]
      %v2017 = vld [vmem:[#allocation2 + $0x18] sm:$0xe]
      %v2018 = vld [vmem:[#allocation2 + $0x1c] sm:$0xf]
      %v2019 = vld [vmem:[#allocation2 + $0x20] sm:$0x1]
      %v2020 = vld [vmem:[#allocation2 + $0x24] sm:$0xe]
      %v2021 = vld [vmem:[#allocation2 + $0x28] sm:$0xf]
      %v2022 = vld [vmem:[#allocation2 + $0x2c] sm:$0x1]
      %v2023 = vld [vmem:[#allocation2 + $0x30] sm:$0xe]
      %v2024 = vld [vmem:[#allocation2 + $0x34] sm:$0xf]
      %v2025 = vld [vmem:[#allocation2 + $0x38] sm:$0x1]
      %v2026 = vld [vmem:[#allocation2 + $0x3c] sm:$0xe]
      %v2027 = vld [vmem:[#allocation2 + $0x40] sm:$0xf]
      %v2028 = vld [vmem:[#allocation2 + $0x44] sm:$0x1]
      %v2029 = vld [vmem:[#allocation2 + $0x48] sm:$0xe]
      %v2030 = vld [vmem:[#allocation2 + $0x4c] sm:$0xf]
      %v2031 = vld [vmem:[#allocation2 + $0x50] sm:$0x1]
      %v2032 = vld [vmem:[#allocation2 + $0x54] sm:$0xe]
      %v2033 = vld [vmem:[#allocation2 + $0x58] sm:$0xf]
      %v2034 = vld [vmem:[#allocation2 + $0x5c] sm:$0x1]
      %v2035 = vld [vmem:[#allocation2 + $0x60] sm:$0xe]
      %v2036 = vld [vmem:[#allocation2 + $0x64] sm:$0xf]
      %v2037 = vld [vmem:[#allocation2 + $0x68] sm:$0x1]
      %v2038 = vld [vmem:[#allocation2 + $0x6c] sm:$0xe]
      %v2039 = vld [vmem:[#allocation2 + $0x70] sm:$0xf]
      %v2040 = vld [vmem:[#allocation2 + $0x74] sm:$0x1]
      %v2041 = vld [vmem:[#allocation2 + $0x78] sm:$0xe]
      %v2042 = vld [vmem:[#allocation2 + $0x7c] sm:$0xf]
      %v2043 = vld [vmem:[#allocation2 + $0x80] sm:$0x1]
      %v2044 = vld [vmem:[#allocation2 + $0x84] sm:$0xe]
      %v2045 = vld [vmem:[#allocation2 + $0x88] sm:$0xf]
      %v2046 = vld [vmem:[#allocation2 + $0x8c] sm:$0x1]
      %v2047 = vld [vmem:[#allocation2 + $0x90] sm:$0xe]
      %v2048 = vld [vmem:[#allocation2 + $0x94] sm:$0xf]
      %v2049 = vld [vmem:[#allocation2 + $0x98] sm:$0x1]
      %v2050 = vld [vmem:[#allocation2 + $0x9c] sm:$0xe]
      %v2051 = vld [vmem:[#allocation2 + $0xa0] sm:$0xf]
      %v2052 = vld [vmem:[#allocation2 + $0xa4] sm:$0x1]
      %v2053 = vld [vmem:[#allocation2 + $0xa8] sm:$0xe]
      %v2054 = vld [vmem:[#allocation2 + $0xac] sm:$0xf]
      %v2055 = vld [vmem:[#allocation2 + $0xb0] sm:$0x1]
      %v2056 = vld [vmem:[#allocation2 + $0xb4] sm:$0xe]
      %v2057 = vld [vmem:[#allocation2 + $0xb8] sm:$0xf]
      %v2058 = vld [vmem:[#allocation2 + $0xbc] sm:$0x1]
      %vm2107 = vcmask 1042432
      %vm2108 = vcmask 1046532
      %vm2109 = vmor %vm2107, %vm2108
      %v2110 = vrot.slane %v2011, 5
      %v2111 = vrot.slane %v2110, 4
      %v2112 = vrot.slane %v2012, 5
      %v2113 = vsel %vm2109, %v2111, %v2112
      %v2114 = vrot.slane %v2112, 4
      %v2115 = vrot.slane %v2013, 5
      %v2116 = vsel %vm2109, %v2114, %v2115
      %v2117 = vrot.slane %v2014, 5
      %v2118 = vrot.slane %v2117, 4
      %v2119 = vrot.slane %v2015, 5
      %v2120 = vsel %vm2109, %v2118, %v2119
      %v2121 = vrot.slane %v2119, 4
      %v2122 = vrot.slane %v2016, 5
      %v2123 = vsel %vm2109, %v2121, %v2122
      %v2124 = vrot.slane %v2017, 5
      %v2125 = vrot.slane %v2124, 4
      %v2126 = vrot.slane %v2018, 5
      %v2127 = vsel %vm2109, %v2125, %v2126
      %v2128 = vrot.slane %v2126, 4
      %v2129 = vrot.slane %v2019, 5
      %v2130 = vsel %vm2109, %v2128, %v2129
      %v2131 = vrot.slane %v2020, 5
      %v2132 = vrot.slane %v2131, 4
      %v2133 = vrot.slane %v2021, 5
      %v2134 = vsel %vm2109, %v2132, %v2133
      %v2135 = vrot.slane %v2133, 4
      %v2136 = vrot.slane %v2022, 5
      %v2137 = vsel %vm2109, %v2135, %v2136
      %v2138 = vrot.slane %v2023, 5
      %v2139 = vrot.slane %v2138, 4
      %v2140 = vrot.slane %v2024, 5
      %v2141 = vsel %vm2109, %v2139, %v2140
      %v2142 = vrot.slane %v2140, 4
      %v2143 = vrot.slane %v2025, 5
      %v2144 = vsel %vm2109, %v2142, %v2143
      %v2145 = vrot.slane %v2026, 5
      %v2146 = vrot.slane %v2145, 4
      %v2147 = vrot.slane %v2027, 5
      %v2148 = vsel %vm2109, %v2146, %v2147
      %v2149 = vrot.slane %v2147, 4
      %v2150 = vrot.slane %v2028, 5
      %v2151 = vsel %vm2109, %v2149, %v2150
      %v2152 = vrot.slane %v2029, 5
      %v2153 = vrot.slane %v2152, 4
      %v2154 = vrot.slane %v2030, 5
      %v2155 = vsel %vm2109, %v2153, %v2154
      %v2156 = vrot.slane %v2154, 4
      %v2157 = vrot.slane %v2031, 5
      %v2158 = vsel %vm2109, %v2156, %v2157
      %v2159 = vrot.slane %v2032, 5
      %v2160 = vrot.slane %v2159, 4
      %v2161 = vrot.slane %v2033, 5
      %v2162 = vsel %vm2109, %v2160, %v2161
      %v2163 = vrot.slane %v2161, 4
      %v2164 = vrot.slane %v2034, 5
      %v2165 = vsel %vm2109, %v2163, %v2164
      %v2166 = vrot.slane %v2035, 5
      %v2167 = vrot.slane %v2166, 4
      %v2168 = vrot.slane %v2036, 5
      %v2169 = vsel %vm2109, %v2167, %v2168
      %v2170 = vrot.slane %v2168, 4
      %v2171 = vrot.slane %v2037, 5
      %v2172 = vsel %vm2109, %v2170, %v2171
      %v2173 = vrot.slane %v2038, 5
      %v2174 = vrot.slane %v2173, 4
      %v2175 = vrot.slane %v2039, 5
      %v2176 = vsel %vm2109, %v2174, %v2175
      %v2177 = vrot.slane %v2175, 4
      %v2178 = vrot.slane %v2040, 5
      %v2179 = vsel %vm2109, %v2177, %v2178
      %v2180 = vrot.slane %v2041, 5
      %v2181 = vrot.slane %v2180, 4
      %v2182 = vrot.slane %v2042, 5
      %v2183 = vsel %vm2109, %v2181, %v2182
      %v2184 = vrot.slane %v2182, 4
      %v2185 = vrot.slane %v2043, 5
      %v2186 = vsel %vm2109, %v2184, %v2185
      %v2187 = vrot.slane %v2044, 5
      %v2188 = vrot.slane %v2187, 4
      %v2189 = vrot.slane %v2045, 5
      %v2190 = vsel %vm2109, %v2188, %v2189
      %v2191 = vrot.slane %v2189, 4
      %v2192 = vrot.slane %v2046, 5
      %v2193 = vsel %vm2109, %v2191, %v2192
      %v2194 = vrot.slane %v2047, 5
      %v2195 = vrot.slane %v2194, 4
      %v2196 = vrot.slane %v2048, 5
      %v2197 = vsel %vm2109, %v2195, %v2196
      %v2198 = vrot.slane %v2196, 4
      %v2199 = vrot.slane %v2049, 5
      %v2200 = vsel %vm2109, %v2198, %v2199
      %v2201 = vrot.slane %v2050, 5
      %v2202 = vrot.slane %v2201, 4
      %v2203 = vrot.slane %v2051, 5
      %v2204 = vsel %vm2109, %v2202, %v2203
      %v2205 = vrot.slane %v2203, 4
      %v2206 = vrot.slane %v2052, 5
      %v2207 = vsel %vm2109, %v2205, %v2206
      %v2208 = vrot.slane %v2053, 5
      %v2209 = vrot.slane %v2208, 4
      %v2210 = vrot.slane %v2054, 5
      %v2211 = vsel %vm2109, %v2209, %v2210
      %v2212 = vrot.slane %v2210, 4
      %v2213 = vrot.slane %v2055, 5
      %v2214 = vsel %vm2109, %v2212, %v2213
      %v2215 = vrot.slane %v2056, 5
      %v2216 = vrot.slane %v2215, 4
      %v2217 = vrot.slane %v2057, 5
      %v2218 = vsel %vm2109, %v2216, %v2217
      %v2219 = vrot.slane %v2217, 4
      %v2220 = vrot.slane %v2058, 5
      %v2221 = vsel %vm2109, %v2219, %v2220
      %s2222 = scalar_lea.vmem %s1, 4
      %v2223 = vld [vmem:[%s2222] sm:$0x3]
      %v2224 = vunpack.c.l.b16 %v2113
      %v2225 = vunpack.c.l.b16 %v2116
      %v2226 = vunpack.c.l.b16 %v2120
      %v2227 = vunpack.c.l.b16 %v2123
      %v2228 = vunpack.c.l.b16 %v2127
      %v2229 = vunpack.c.l.b16 %v2130
      %v2230 = vunpack.c.l.b16 %v2134
      %v2231 = vunpack.c.l.b16 %v2137
      %v2232 = vunpack.c.l.b16 %v2141
      %v2233 = vunpack.c.l.b16 %v2144
      %v2234 = vunpack.c.l.b16 %v2148
      %v2235 = vunpack.c.l.b16 %v2151
      %v2236 = vunpack.c.l.b16 %v2155
      %v2237 = vunpack.c.l.b16 %v2158
      %v2238 = vunpack.c.l.b16 %v2162
      %v2239 = vunpack.c.l.b16 %v2165
      %v2240 = vunpack.c.l.b16 %v2169
      %v2241 = vunpack.c.l.b16 %v2172
      %v2242 = vunpack.c.l.b16 %v2176
      %v2243 = vunpack.c.l.b16 %v2179
      %v2244 = vunpack.c.l.b16 %v2183
      %v2245 = vunpack.c.l.b16 %v2186
      %v2246 = vunpack.c.l.b16 %v2190
      %v2247 = vunpack.c.l.b16 %v2193
      %v2248 = vunpack.c.l.b16 %v2197
      %v2249 = vunpack.c.l.b16 %v2200
      %v2250 = vunpack.c.l.b16 %v2204
      %v2251 = vunpack.c.l.b16 %v2207
      %v2252 = vunpack.c.l.b16 %v2211
      %v2253 = vunpack.c.l.b16 %v2214
      %v2254 = vunpack.c.l.b16 %v2218
      %v2255 = vunpack.c.l.b16 %v2221
      %v2256 = vpack.c.b16 %v2225, %v2224
      %v2257 = vpack.c.b16 %v2227, %v2226
      %v2258 = vpack.c.b16 %v2229, %v2228
      %v2259 = vpack.c.b16 %v2231, %v2230
      %v2260 = vpack.c.b16 %v2233, %v2232
      %v2261 = vpack.c.b16 %v2235, %v2234
      %v2262 = vpack.c.b16 %v2237, %v2236
      %v2263 = vpack.c.b16 %v2239, %v2238
      %v2264 = vpack.c.b16 %v2241, %v2240
      %v2265 = vpack.c.b16 %v2243, %v2242
      %v2266 = vpack.c.b16 %v2245, %v2244
      %v2267 = vpack.c.b16 %v2247, %v2246
      %v2268 = vpack.c.b16 %v2249, %v2248
      %v2269 = vpack.c.b16 %v2251, %v2250
      %v2270 = vpack.c.b16 %v2253, %v2252
      %v2271 = vpack.c.b16 %v2255, %v2254
      %v2273 = vsel %vm972, %v2256, 0
      %v2276 = vsel %vm972, %v2257, 0
      %v2279 = vsel %vm972, %v2258, 0
      %v2282 = vsel %vm972, %v2259, 0
      %v2285 = vsel %vm972, %v2260, 0
      %v2288 = vsel %vm972, %v2261, 0
      %v2291 = vsel %vm972, %v2262, 0
      %v2294 = vsel %vm972, %v2263, 0
      %v2297 = vsel %vm972, %v2264, 0
      %v2300 = vsel %vm972, %v2265, 0
      %v2303 = vsel %vm972, %v2266, 0
      %v2306 = vsel %vm972, %v2267, 0
      %v2309 = vsel %vm972, %v2268, 0
      %v2312 = vsel %vm972, %v2269, 0
      %v2315 = vsel %vm972, %v2270, 0
      %v2318 = vsel %vm972, %v2271, 0
      %v2321 = vsel %vm1021, %v2223, 0
      %2323 = vmatprep.subr.bf16.mxu0 0
      %2324 = vmatpush1.bf16.msra.mxu0 0
      %2325 = vmatprep.subr.bf16.mxu0 0
      %2326 = vmatpush1.bf16.msra.mxu0 0
      %2327 = vmatprep.subr.bf16.mxu0 0
      %2328 = vmatpush1.bf16.msra.mxu0 0
      %2329 = vmatprep.subr.bf16.mxu0 0
      %2330 = vmatpush1.bf16.msra.mxu0 0
      %2331 = vmatprep.subr.bf16.mxu0 0
      %2332 = vmatpush1.bf16.msra.mxu0 0
      %2333 = vmatprep.subr.bf16.mxu0 0
      %2334 = vmatpush1.bf16.msra.mxu0 0
      %2335 = vmatprep.subr.bf16.mxu0 0
      %2336 = vmatpush1.bf16.msra.mxu0 0
      %2337 = vmatprep.subr.bf16.mxu0 0
      %2338 = vmatpush1.bf16.msra.mxu0 %v2321
      %2339 = vmatprep.subr.bf16.mxu0 0
      %2340 = vmatpush2.bf16.msra.mxu0 0
      %2341 = vmatprep.subr.bf16.mxu0 0
      %2342 = vmatpush2.bf16.msra.mxu0 0
      %2343 = vmatprep.subr.bf16.mxu0 0
      %2344 = vmatpush2.bf16.msra.mxu0 0
      %2345 = vmatprep.subr.bf16.mxu0 0
      %2346 = vmatpush2.bf16.msra.mxu0 0
      %2347 = vmatprep.subr.bf16.mxu0 0
      %2348 = vmatpush2.bf16.msra.mxu0 0
      %2349 = vmatprep.subr.bf16.mxu0 0
      %2350 = vmatpush2.bf16.msra.mxu0 0
      %2351 = vmatprep.subr.bf16.mxu0 0
      %2352 = vmatpush2.bf16.msra.mxu0 0
      %2353 = vmatprep.subr.bf16.mxu0 0
      %2354 = vmatpush2.bf16.msra.mxu0 0
      %2355 = vmatprep.mubr.bf16.mxu0 0
      %2356 = vmatmul.mubr.bf16.gmra.mxu0 %v2273
      %v2357 = vpop.f32.mrf.mxu0
      %v2358 = vadd.f32 0.0, %v2357
      %v2359 = vpop.f32.mrf.mxu0
      %v2360 = vpop.f32.mrf.mxu0
      %v2361 = vadd.f32 0.0, %v2360
      %v2362 = vpop.f32.mrf.mxu0
      %2363 = vmatprep.mubr.bf16.mxu0 0
      %2364 = vmatmul.mubr.bf16.gmra.mxu0 %v2276
      %v2365 = vpop.f32.mrf.mxu0
      %v2366 = vadd.f32 0.0, %v2365
      %v2367 = vpop.f32.mrf.mxu0
      %v2368 = vpop.f32.mrf.mxu0
      %v2369 = vadd.f32 0.0, %v2368
      %v2370 = vpop.f32.mrf.mxu0
      %2371 = vmatprep.mubr.bf16.mxu0 0
      %2372 = vmatmul.mubr.bf16.gmra.mxu0 %v2279
      %v2373 = vpop.f32.mrf.mxu0
      %v2374 = vadd.f32 0.0, %v2373
      %v2375 = vpop.f32.mrf.mxu0
      %v2376 = vpop.f32.mrf.mxu0
      %v2377 = vadd.f32 0.0, %v2376
      %v2378 = vpop.f32.mrf.mxu0
      %2379 = vmatprep.mubr.bf16.mxu0 0
      %2380 = vmatmul.mubr.bf16.gmra.mxu0 %v2282
      %v2381 = vpop.f32.mrf.mxu0
      %v2382 = vadd.f32 0.0, %v2381
      %v2383 = vpop.f32.mrf.mxu0
      %v2384 = vpop.f32.mrf.mxu0
      %v2385 = vadd.f32 0.0, %v2384
      %v2386 = vpop.f32.mrf.mxu0
      %2387 = vmatprep.mubr.bf16.mxu0 0
      %2388 = vmatmul.mubr.bf16.gmra.mxu0 %v2285
      %v2389 = vpop.f32.mrf.mxu0
      %v2390 = vadd.f32 0.0, %v2389
      %v2391 = vpop.f32.mrf.mxu0
      %v2392 = vpop.f32.mrf.mxu0
      %v2393 = vadd.f32 0.0, %v2392
      %v2394 = vpop.f32.mrf.mxu0
      %2395 = vmatprep.mubr.bf16.mxu0 0
      %2396 = vmatmul.mubr.bf16.gmra.mxu0 %v2288
      %v2397 = vpop.f32.mrf.mxu0
      %v2398 = vadd.f32 0.0, %v2397
      %v2399 = vpop.f32.mrf.mxu0
      %v2400 = vpop.f32.mrf.mxu0
      %v2401 = vadd.f32 0.0, %v2400
      %v2402 = vpop.f32.mrf.mxu0
      %2403 = vmatprep.mubr.bf16.mxu0 0
      %2404 = vmatmul.mubr.bf16.gmra.mxu0 %v2291
      %v2405 = vpop.f32.mrf.mxu0
      %v2406 = vadd.f32 0.0, %v2405
      %v2407 = vpop.f32.mrf.mxu0
      %v2408 = vpop.f32.mrf.mxu0
      %v2409 = vadd.f32 0.0, %v2408
      %v2410 = vpop.f32.mrf.mxu0
      %2411 = vmatprep.mubr.bf16.mxu0 0
      %2412 = vmatmul.mubr.bf16.gmra.mxu0 %v2294
      %v2413 = vpop.f32.mrf.mxu0
      %v2414 = vadd.f32 0.0, %v2413
      %v2415 = vpop.f32.mrf.mxu0
      %v2416 = vpop.f32.mrf.mxu0
      %v2417 = vadd.f32 0.0, %v2416
      %v2418 = vpop.f32.mrf.mxu0
      %2419 = vmatprep.mubr.bf16.mxu0 0
      %2420 = vmatmul.mubr.bf16.gmra.mxu0 %v2297
      %v2421 = vpop.f32.mrf.mxu0
      %v2422 = vadd.f32 0.0, %v2421
      %v2423 = vpop.f32.mrf.mxu0
      %v2424 = vpop.f32.mrf.mxu0
      %v2425 = vadd.f32 0.0, %v2424
      %v2426 = vpop.f32.mrf.mxu0
      %2427 = vmatprep.mubr.bf16.mxu0 0
      %2428 = vmatmul.mubr.bf16.gmra.mxu0 %v2300
      %v2429 = vpop.f32.mrf.mxu0
      %v2430 = vadd.f32 0.0, %v2429
      %v2431 = vpop.f32.mrf.mxu0
      %v2432 = vpop.f32.mrf.mxu0
      %v2433 = vadd.f32 0.0, %v2432
      %v2434 = vpop.f32.mrf.mxu0
      %2435 = vmatprep.mubr.bf16.mxu0 0
      %2436 = vmatmul.mubr.bf16.gmra.mxu0 %v2303
      %v2437 = vpop.f32.mrf.mxu0
      %v2438 = vadd.f32 0.0, %v2437
      %v2439 = vpop.f32.mrf.mxu0
      %v2440 = vpop.f32.mrf.mxu0
      %v2441 = vadd.f32 0.0, %v2440
      %v2442 = vpop.f32.mrf.mxu0
      %2443 = vmatprep.mubr.bf16.mxu0 0
      %2444 = vmatmul.mubr.bf16.gmra.mxu0 %v2306
      %v2445 = vpop.f32.mrf.mxu0
      %v2446 = vadd.f32 0.0, %v2445
      %v2447 = vpop.f32.mrf.mxu0
      %v2448 = vpop.f32.mrf.mxu0
      %v2449 = vadd.f32 0.0, %v2448
      %v2450 = vpop.f32.mrf.mxu0
      %2451 = vmatprep.mubr.bf16.mxu0 0
      %2452 = vmatmul.mubr.bf16.gmra.mxu0 %v2309
      %v2453 = vpop.f32.mrf.mxu0
      %v2454 = vadd.f32 0.0, %v2453
      %v2455 = vpop.f32.mrf.mxu0
      %v2456 = vpop.f32.mrf.mxu0
      %v2457 = vadd.f32 0.0, %v2456
      %v2458 = vpop.f32.mrf.mxu0
      %2459 = vmatprep.mubr.bf16.mxu0 0
      %2460 = vmatmul.mubr.bf16.gmra.mxu0 %v2312
      %v2461 = vpop.f32.mrf.mxu0
      %v2462 = vadd.f32 0.0, %v2461
      %v2463 = vpop.f32.mrf.mxu0
      %v2464 = vpop.f32.mrf.mxu0
      %v2465 = vadd.f32 0.0, %v2464
      %v2466 = vpop.f32.mrf.mxu0
      %2467 = vmatprep.mubr.bf16.mxu0 0
      %2468 = vmatmul.mubr.bf16.gmra.mxu0 %v2315
      %v2469 = vpop.f32.mrf.mxu0
      %v2470 = vadd.f32 0.0, %v2469
      %v2471 = vpop.f32.mrf.mxu0
      %v2472 = vpop.f32.mrf.mxu0
      %v2473 = vadd.f32 0.0, %v2472
      %v2474 = vpop.f32.mrf.mxu0
      %2475 = vmatprep.mubr.bf16.mxu0 0
      %2476 = vmatmul.mubr.bf16.gmra.mxu0 %v2318
      %v2477 = vpop.f32.mrf.mxu0
      %v2478 = vadd.f32 0.0, %v2477
      %v2479 = vpop.f32.mrf.mxu0
      %v2480 = vpop.f32.mrf.mxu0
      %v2481 = vadd.f32 0.0, %v2480
      %v2482 = vpop.f32.mrf.mxu0
      %2483 = vdwg.mxu0
      %v2484 = vld [vmem:[#allocation3] sm:$0xff]
      %v2485 = vld [vmem:[#allocation3 + $0x8] sm:$0xff]
      %v2486 = vld [vmem:[#allocation3 + $0x10] sm:$0xff]
      %v2487 = vld [vmem:[#allocation3 + $0x18] sm:$0xff]
      %v2488 = vld [vmem:[#allocation3 + $0x20] sm:$0xff]
      %v2489 = vld [vmem:[#allocation3 + $0x28] sm:$0xff]
      %v2490 = vld [vmem:[#allocation3 + $0x30] sm:$0xff]
      %v2491 = vld [vmem:[#allocation3 + $0x38] sm:$0xff]
      %v2492 = vld [vmem:[#allocation3 + $0x40] sm:$0xff]
      %v2493 = vld [vmem:[#allocation3 + $0x48] sm:$0xff]
      %v2494 = vld [vmem:[#allocation3 + $0x50] sm:$0xff]
      %v2495 = vld [vmem:[#allocation3 + $0x58] sm:$0xff]
      %v2496 = vld [vmem:[#allocation3 + $0x60] sm:$0xff]
      %v2497 = vld [vmem:[#allocation3 + $0x68] sm:$0xff]
      %v2498 = vld [vmem:[#allocation3 + $0x70] sm:$0xff]
      %v2499 = vld [vmem:[#allocation3 + $0x78] sm:$0xff]
      %v2500 = vld [vmem:[#allocation3 + $0x80] sm:$0xff]
      %v2501 = vld [vmem:[#allocation3 + $0x88] sm:$0xff]
      %v2502 = vld [vmem:[#allocation3 + $0x90] sm:$0xff]
      %v2503 = vld [vmem:[#allocation3 + $0x98] sm:$0xff]
      %v2504 = vld [vmem:[#allocation3 + $0xa0] sm:$0xff]
      %v2505 = vld [vmem:[#allocation3 + $0xa8] sm:$0xff]
      %v2506 = vld [vmem:[#allocation3 + $0xb0] sm:$0xff]
      %v2507 = vld [vmem:[#allocation3 + $0xb8] sm:$0xff]
      %v2508 = vld [vmem:[#allocation3 + $0xc0] sm:$0xff]
      %v2509 = vld [vmem:[#allocation3 + $0xc8] sm:$0xff]
      %v2510 = vld [vmem:[#allocation3 + $0xd0] sm:$0xff]
      %v2511 = vld [vmem:[#allocation3 + $0xd8] sm:$0xff]
      %v2512 = vld [vmem:[#allocation3 + $0xe0] sm:$0xff]
      %v2513 = vld [vmem:[#allocation3 + $0xe8] sm:$0xff]
      %v2514 = vld [vmem:[#allocation3 + $0xf0] sm:$0xff]
      %v2515 = vld [vmem:[#allocation3 + $0xf8] sm:$0xff]
      %v2516 = vadd.f32 %v2484, %v2358
      %v2517 = vadd.f32 %v2485, %v2361
      %v2518 = vadd.f32 %v2486, %v2366
      %v2519 = vadd.f32 %v2487, %v2369
      %v2520 = vadd.f32 %v2488, %v2374
      %v2521 = vadd.f32 %v2489, %v2377
      %v2522 = vadd.f32 %v2490, %v2382
      %v2523 = vadd.f32 %v2491, %v2385
      %v2524 = vadd.f32 %v2492, %v2390
      %v2525 = vadd.f32 %v2493, %v2393
      %v2526 = vadd.f32 %v2494, %v2398
      %v2527 = vadd.f32 %v2495, %v2401
      %v2528 = vadd.f32 %v2496, %v2406
      %v2529 = vadd.f32 %v2497, %v2409
      %v2530 = vadd.f32 %v2498, %v2414
      %v2531 = vadd.f32 %v2499, %v2417
      %v2532 = vadd.f32 %v2500, %v2422
      %v2533 = vadd.f32 %v2501, %v2425
      %v2534 = vadd.f32 %v2502, %v2430
      %v2535 = vadd.f32 %v2503, %v2433
      %v2536 = vadd.f32 %v2504, %v2438
      %v2537 = vadd.f32 %v2505, %v2441
      %v2538 = vadd.f32 %v2506, %v2446
      %v2539 = vadd.f32 %v2507, %v2449
      %v2540 = vadd.f32 %v2508, %v2454
      %v2541 = vadd.f32 %v2509, %v2457
      %v2542 = vadd.f32 %v2510, %v2462
      %v2543 = vadd.f32 %v2511, %v2465
      %v2544 = vadd.f32 %v2512, %v2470
      %v2545 = vadd.f32 %v2513, %v2473
      %v2546 = vadd.f32 %v2514, %v2478
      %v2547 = vadd.f32 %v2515, %v2481
      %2548 = vst.msk [vmem:[#allocation3] sm:$0xff] %vm972, %v2516
      %2549 = vst.msk [vmem:[#allocation3 + $0x8] sm:$0xff] %vm972, %v2517
      %2550 = vst.msk [vmem:[#allocation3 + $0x10] sm:$0xff] %vm972, %v2518
      %2551 = vst.msk [vmem:[#allocation3 + $0x18] sm:$0xff] %vm972, %v2519
      %2552 = vst.msk [vmem:[#allocation3 + $0x20] sm:$0xff] %vm972, %v2520
      %2553 = vst.msk [vmem:[#allocation3 + $0x28] sm:$0xff] %vm972, %v2521
      %2554 = vst.msk [vmem:[#allocation3 + $0x30] sm:$0xff] %vm972, %v2522
      %2555 = vst.msk [vmem:[#allocation3 + $0x38] sm:$0xff] %vm972, %v2523
      %2556 = vst.msk [vmem:[#allocation3 + $0x40] sm:$0xff] %vm972, %v2524
      %2557 = vst.msk [vmem:[#allocation3 + $0x48] sm:$0xff] %vm972, %v2525
      %2558 = vst.msk [vmem:[#allocation3 + $0x50] sm:$0xff] %vm972, %v2526
      %2559 = vst.msk [vmem:[#allocation3 + $0x58] sm:$0xff] %vm972, %v2527
      %2560 = vst.msk [vmem:[#allocation3 + $0x60] sm:$0xff] %vm972, %v2528
      %2561 = vst.msk [vmem:[#allocation3 + $0x68] sm:$0xff] %vm972, %v2529
      %2562 = vst.msk [vmem:[#allocation3 + $0x70] sm:$0xff] %vm972, %v2530
      %2563 = vst.msk [vmem:[#allocation3 + $0x78] sm:$0xff] %vm972, %v2531
      %2564 = vst.msk [vmem:[#allocation3 + $0x80] sm:$0xff] %vm972, %v2532
      %2565 = vst.msk [vmem:[#allocation3 + $0x88] sm:$0xff] %vm972, %v2533
      %2566 = vst.msk [vmem:[#allocation3 + $0x90] sm:$0xff] %vm972, %v2534
      %2567 = vst.msk [vmem:[#allocation3 + $0x98] sm:$0xff] %vm972, %v2535
      %2568 = vst.msk [vmem:[#allocation3 + $0xa0] sm:$0xff] %vm972, %v2536
      %2569 = vst.msk [vmem:[#allocation3 + $0xa8] sm:$0xff] %vm972, %v2537
      %2570 = vst.msk [vmem:[#allocation3 + $0xb0] sm:$0xff] %vm972, %v2538
      %2571 = vst.msk [vmem:[#allocation3 + $0xb8] sm:$0xff] %vm972, %v2539
      %2572 = vst.msk [vmem:[#allocation3 + $0xc0] sm:$0xff] %vm972, %v2540
      %2573 = vst.msk [vmem:[#allocation3 + $0xc8] sm:$0xff] %vm972, %v2541
      %2574 = vst.msk [vmem:[#allocation3 + $0xd0] sm:$0xff] %vm972, %v2542
      %2575 = vst.msk [vmem:[#allocation3 + $0xd8] sm:$0xff] %vm972, %v2543
      %2576 = vst.msk [vmem:[#allocation3 + $0xe0] sm:$0xff] %vm972, %v2544
      %2577 = vst.msk [vmem:[#allocation3 + $0xe8] sm:$0xff] %vm972, %v2545
      %2578 = vst.msk [vmem:[#allocation3 + $0xf0] sm:$0xff] %vm972, %v2546
      %2579 = vst.msk [vmem:[#allocation3 + $0xf8] sm:$0xff] %vm972, %v2547
      %v2580 = vld [vmem:[%s289] sm:$0xf]
      %v2581 = vld [vmem:[%s289 + $0x4] sm:$0xf]
      %v2582 = vld [vmem:[%s289 + $0xc] sm:$0xf]
      %v2583 = vld [vmem:[%s289 + $0x10] sm:$0xf]
      %v2584 = vld [vmem:[%s289 + $0x18] sm:$0xf]
      %v2585 = vld [vmem:[%s289 + $0x1c] sm:$0xf]
      %v2586 = vld [vmem:[%s289 + $0x24] sm:$0xf]
      %v2587 = vld [vmem:[%s289 + $0x28] sm:$0xf]
      %v2588 = vld [vmem:[%s289 + $0x30] sm:$0xf]
      %v2589 = vld [vmem:[%s289 + $0x34] sm:$0xf]
      %v2590 = vld [vmem:[%s289 + $0x3c] sm:$0xf]
      %v2591 = vld [vmem:[%s289 + $0x40] sm:$0xf]
      %v2592 = vld [vmem:[%s289 + $0x48] sm:$0xf]
      %v2593 = vld [vmem:[%s289 + $0x4c] sm:$0xf]
      %v2594 = vld [vmem:[%s289 + $0x54] sm:$0xf]
      %v2595 = vld [vmem:[%s289 + $0x58] sm:$0xf]
      %v2596 = vld [vmem:[%s289 + $0x60] sm:$0xf]
      %v2597 = vld [vmem:[%s289 + $0x64] sm:$0xf]
      %v2598 = vld [vmem:[%s289 + $0x6c] sm:$0xf]
      %v2599 = vld [vmem:[%s289 + $0x70] sm:$0xf]
      %v2600 = vld [vmem:[%s289 + $0x78] sm:$0xf]
      %v2601 = vld [vmem:[%s289 + $0x7c] sm:$0xf]
      %v2602 = vld [vmem:[%s289 + $0x84] sm:$0xf]
      %v2603 = vld [vmem:[%s289 + $0x88] sm:$0xf]
      %v2604 = vld [vmem:[%s289 + $0x90] sm:$0xf]
      %v2605 = vld [vmem:[%s289 + $0x94] sm:$0xf]
      %v2606 = vld [vmem:[%s289 + $0x9c] sm:$0xf]
      %v2607 = vld [vmem:[%s289 + $0xa0] sm:$0xf]
      %v2608 = vld [vmem:[%s289 + $0xa8] sm:$0xf]
      %v2609 = vld [vmem:[%s289 + $0xac] sm:$0xf]
      %v2610 = vld [vmem:[%s289 + $0xb4] sm:$0xf]
      %v2611 = vld [vmem:[%s289 + $0xb8] sm:$0xf]
      %s2612 = scalar_lea.vmem %s1, 6
      %v2613 = vld [vmem:[%s2612] sm:$0x3]
      %v2646 = vunpack.c.l.b16 %v2580
      %v2647 = vunpack.c.l.b16 %v2581
      %v2648 = vunpack.c.l.b16 %v2582
      %v2649 = vunpack.c.l.b16 %v2583
      %v2650 = vunpack.c.l.b16 %v2584
      %v2651 = vunpack.c.l.b16 %v2585
      %v2652 = vunpack.c.l.b16 %v2586
      %v2653 = vunpack.c.l.b16 %v2587
      %v2654 = vunpack.c.l.b16 %v2588
      %v2655 = vunpack.c.l.b16 %v2589
      %v2656 = vunpack.c.l.b16 %v2590
      %v2657 = vunpack.c.l.b16 %v2591
      %v2658 = vunpack.c.l.b16 %v2592
      %v2659 = vunpack.c.l.b16 %v2593
      %v2660 = vunpack.c.l.b16 %v2594
      %v2661 = vunpack.c.l.b16 %v2595
      %v2662 = vunpack.c.l.b16 %v2596
      %v2663 = vunpack.c.l.b16 %v2597
      %v2664 = vunpack.c.l.b16 %v2598
      %v2665 = vunpack.c.l.b16 %v2599
      %v2666 = vunpack.c.l.b16 %v2600
      %v2667 = vunpack.c.l.b16 %v2601
      %v2668 = vunpack.c.l.b16 %v2602
      %v2669 = vunpack.c.l.b16 %v2603
      %v2670 = vunpack.c.l.b16 %v2604
      %v2671 = vunpack.c.l.b16 %v2605
      %v2672 = vunpack.c.l.b16 %v2606
      %v2673 = vunpack.c.l.b16 %v2607
      %v2674 = vunpack.c.l.b16 %v2608
      %v2675 = vunpack.c.l.b16 %v2609
      %v2676 = vunpack.c.l.b16 %v2610
      %v2677 = vunpack.c.l.b16 %v2611
      %v2678 = vpack.c.b16 %v2647, %v2646
      %v2679 = vpack.c.b16 %v2649, %v2648
      %v2680 = vpack.c.b16 %v2651, %v2650
      %v2681 = vpack.c.b16 %v2653, %v2652
      %v2682 = vpack.c.b16 %v2655, %v2654
      %v2683 = vpack.c.b16 %v2657, %v2656
      %v2684 = vpack.c.b16 %v2659, %v2658
      %v2685 = vpack.c.b16 %v2661, %v2660
      %v2686 = vpack.c.b16 %v2663, %v2662
      %v2687 = vpack.c.b16 %v2665, %v2664
      %v2688 = vpack.c.b16 %v2667, %v2666
      %v2689 = vpack.c.b16 %v2669, %v2668
      %v2690 = vpack.c.b16 %v2671, %v2670
      %v2691 = vpack.c.b16 %v2673, %v2672
      %v2692 = vpack.c.b16 %v2675, %v2674
      %v2693 = vpack.c.b16 %v2677, %v2676
      %v2695 = vsel %vm972, %v2678, 0
      %v2698 = vsel %vm972, %v2679, 0
      %v2701 = vsel %vm972, %v2680, 0
      %v2704 = vsel %vm972, %v2681, 0
      %v2707 = vsel %vm972, %v2682, 0
      %v2710 = vsel %vm972, %v2683, 0
      %v2713 = vsel %vm972, %v2684, 0
      %v2716 = vsel %vm972, %v2685, 0
      %v2719 = vsel %vm972, %v2686, 0
      %v2722 = vsel %vm972, %v2687, 0
      %v2725 = vsel %vm972, %v2688, 0
      %v2728 = vsel %vm972, %v2689, 0
      %v2731 = vsel %vm972, %v2690, 0
      %v2734 = vsel %vm972, %v2691, 0
      %v2737 = vsel %vm972, %v2692, 0
      %v2740 = vsel %vm972, %v2693, 0
      %v2743 = vsel %vm1021, %v2613, 0
      %2745 = vmatprep.subr.bf16.mxu0 0
      %2746 = vmatpush1.bf16.msra.mxu0 0
      %2747 = vmatprep.subr.bf16.mxu0 0
      %2748 = vmatpush1.bf16.msra.mxu0 0
      %2749 = vmatprep.subr.bf16.mxu0 0
      %2750 = vmatpush1.bf16.msra.mxu0 0
      %2751 = vmatprep.subr.bf16.mxu0 0
      %2752 = vmatpush1.bf16.msra.mxu0 0
      %2753 = vmatprep.subr.bf16.mxu0 0
      %2754 = vmatpush1.bf16.msra.mxu0 0
      %2755 = vmatprep.subr.bf16.mxu0 0
      %2756 = vmatpush1.bf16.msra.mxu0 0
      %2757 = vmatprep.subr.bf16.mxu0 0
      %2758 = vmatpush1.bf16.msra.mxu0 0
      %2759 = vmatprep.subr.bf16.mxu0 0
      %2760 = vmatpush1.bf16.msra.mxu0 %v2743
      %2761 = vmatprep.subr.bf16.mxu0 0
      %2762 = vmatpush2.bf16.msra.mxu0 0
      %2763 = vmatprep.subr.bf16.mxu0 0
      %2764 = vmatpush2.bf16.msra.mxu0 0
      %2765 = vmatprep.subr.bf16.mxu0 0
      %2766 = vmatpush2.bf16.msra.mxu0 0
      %2767 = vmatprep.subr.bf16.mxu0 0
      %2768 = vmatpush2.bf16.msra.mxu0 0
      %2769 = vmatprep.subr.bf16.mxu0 0
      %2770 = vmatpush2.bf16.msra.mxu0 0
      %2771 = vmatprep.subr.bf16.mxu0 0
      %2772 = vmatpush2.bf16.msra.mxu0 0
      %2773 = vmatprep.subr.bf16.mxu0 0
      %2774 = vmatpush2.bf16.msra.mxu0 0
      %2775 = vmatprep.subr.bf16.mxu0 0
      %2776 = vmatpush2.bf16.msra.mxu0 0
      %2777 = vmatprep.mubr.bf16.mxu0 0
      %2778 = vmatmul.mubr.bf16.gmra.mxu0 %v2695
      %v2779 = vpop.f32.mrf.mxu0
      %v2780 = vadd.f32 0.0, %v2779
      %v2781 = vpop.f32.mrf.mxu0
      %v2782 = vpop.f32.mrf.mxu0
      %v2783 = vadd.f32 0.0, %v2782
      %v2784 = vpop.f32.mrf.mxu0
      %2785 = vmatprep.mubr.bf16.mxu0 0
      %2786 = vmatmul.mubr.bf16.gmra.mxu0 %v2698
      %v2787 = vpop.f32.mrf.mxu0
      %v2788 = vadd.f32 0.0, %v2787
      %v2789 = vpop.f32.mrf.mxu0
      %v2790 = vpop.f32.mrf.mxu0
      %v2791 = vadd.f32 0.0, %v2790
      %v2792 = vpop.f32.mrf.mxu0
      %2793 = vmatprep.mubr.bf16.mxu0 0
      %2794 = vmatmul.mubr.bf16.gmra.mxu0 %v2701
      %v2795 = vpop.f32.mrf.mxu0
      %v2796 = vadd.f32 0.0, %v2795
      %v2797 = vpop.f32.mrf.mxu0
      %v2798 = vpop.f32.mrf.mxu0
      %v2799 = vadd.f32 0.0, %v2798
      %v2800 = vpop.f32.mrf.mxu0
      %2801 = vmatprep.mubr.bf16.mxu0 0
      %2802 = vmatmul.mubr.bf16.gmra.mxu0 %v2704
      %v2803 = vpop.f32.mrf.mxu0
      %v2804 = vadd.f32 0.0, %v2803
      %v2805 = vpop.f32.mrf.mxu0
      %v2806 = vpop.f32.mrf.mxu0
      %v2807 = vadd.f32 0.0, %v2806
      %v2808 = vpop.f32.mrf.mxu0
      %2809 = vmatprep.mubr.bf16.mxu0 0
      %2810 = vmatmul.mubr.bf16.gmra.mxu0 %v2707
      %v2811 = vpop.f32.mrf.mxu0
      %v2812 = vadd.f32 0.0, %v2811
      %v2813 = vpop.f32.mrf.mxu0
      %v2814 = vpop.f32.mrf.mxu0
      %v2815 = vadd.f32 0.0, %v2814
      %v2816 = vpop.f32.mrf.mxu0
      %2817 = vmatprep.mubr.bf16.mxu0 0
      %2818 = vmatmul.mubr.bf16.gmra.mxu0 %v2710
      %v2819 = vpop.f32.mrf.mxu0
      %v2820 = vadd.f32 0.0, %v2819
      %v2821 = vpop.f32.mrf.mxu0
      %v2822 = vpop.f32.mrf.mxu0
      %v2823 = vadd.f32 0.0, %v2822
      %v2824 = vpop.f32.mrf.mxu0
      %2825 = vmatprep.mubr.bf16.mxu0 0
      %2826 = vmatmul.mubr.bf16.gmra.mxu0 %v2713
      %v2827 = vpop.f32.mrf.mxu0
      %v2828 = vadd.f32 0.0, %v2827
      %v2829 = vpop.f32.mrf.mxu0
      %v2830 = vpop.f32.mrf.mxu0
      %v2831 = vadd.f32 0.0, %v2830
      %v2832 = vpop.f32.mrf.mxu0
      %2833 = vmatprep.mubr.bf16.mxu0 0
      %2834 = vmatmul.mubr.bf16.gmra.mxu0 %v2716
      %v2835 = vpop.f32.mrf.mxu0
      %v2836 = vadd.f32 0.0, %v2835
      %v2837 = vpop.f32.mrf.mxu0
      %v2838 = vpop.f32.mrf.mxu0
      %v2839 = vadd.f32 0.0, %v2838
      %v2840 = vpop.f32.mrf.mxu0
      %2841 = vmatprep.mubr.bf16.mxu0 0
      %2842 = vmatmul.mubr.bf16.gmra.mxu0 %v2719
      %v2843 = vpop.f32.mrf.mxu0
      %v2844 = vadd.f32 0.0, %v2843
      %v2845 = vpop.f32.mrf.mxu0
      %v2846 = vpop.f32.mrf.mxu0
      %v2847 = vadd.f32 0.0, %v2846
      %v2848 = vpop.f32.mrf.mxu0
      %2849 = vmatprep.mubr.bf16.mxu0 0
      %2850 = vmatmul.mubr.bf16.gmra.mxu0 %v2722
      %v2851 = vpop.f32.mrf.mxu0
      %v2852 = vadd.f32 0.0, %v2851
      %v2853 = vpop.f32.mrf.mxu0
      %v2854 = vpop.f32.mrf.mxu0
      %v2855 = vadd.f32 0.0, %v2854
      %v2856 = vpop.f32.mrf.mxu0
      %2857 = vmatprep.mubr.bf16.mxu0 0
      %2858 = vmatmul.mubr.bf16.gmra.mxu0 %v2725
      %v2859 = vpop.f32.mrf.mxu0
      %v2860 = vadd.f32 0.0, %v2859
      %v2861 = vpop.f32.mrf.mxu0
      %v2862 = vpop.f32.mrf.mxu0
      %v2863 = vadd.f32 0.0, %v2862
      %v2864 = vpop.f32.mrf.mxu0
      %2865 = vmatprep.mubr.bf16.mxu0 0
      %2866 = vmatmul.mubr.bf16.gmra.mxu0 %v2728
      %v2867 = vpop.f32.mrf.mxu0
      %v2868 = vadd.f32 0.0, %v2867
      %v2869 = vpop.f32.mrf.mxu0
      %v2870 = vpop.f32.mrf.mxu0
      %v2871 = vadd.f32 0.0, %v2870
      %v2872 = vpop.f32.mrf.mxu0
      %2873 = vmatprep.mubr.bf16.mxu0 0
      %2874 = vmatmul.mubr.bf16.gmra.mxu0 %v2731
      %v2875 = vpop.f32.mrf.mxu0
      %v2876 = vadd.f32 0.0, %v2875
      %v2877 = vpop.f32.mrf.mxu0
      %v2878 = vpop.f32.mrf.mxu0
      %v2879 = vadd.f32 0.0, %v2878
      %v2880 = vpop.f32.mrf.mxu0
      %2881 = vmatprep.mubr.bf16.mxu0 0
      %2882 = vmatmul.mubr.bf16.gmra.mxu0 %v2734
      %v2883 = vpop.f32.mrf.mxu0
      %v2884 = vadd.f32 0.0, %v2883
      %v2885 = vpop.f32.mrf.mxu0
      %v2886 = vpop.f32.mrf.mxu0
      %v2887 = vadd.f32 0.0, %v2886
      %v2888 = vpop.f32.mrf.mxu0
      %2889 = vmatprep.mubr.bf16.mxu0 0
      %2890 = vmatmul.mubr.bf16.gmra.mxu0 %v2737
      %v2891 = vpop.f32.mrf.mxu0
      %v2892 = vadd.f32 0.0, %v2891
      %v2893 = vpop.f32.mrf.mxu0
      %v2894 = vpop.f32.mrf.mxu0
      %v2895 = vadd.f32 0.0, %v2894
      %v2896 = vpop.f32.mrf.mxu0
      %2897 = vmatprep.mubr.bf16.mxu0 0
      %2898 = vmatmul.mubr.bf16.gmra.mxu0 %v2740
      %v2899 = vpop.f32.mrf.mxu0
      %v2900 = vadd.f32 0.0, %v2899
      %v2901 = vpop.f32.mrf.mxu0
      %v2902 = vpop.f32.mrf.mxu0
      %v2903 = vadd.f32 0.0, %v2902
      %v2904 = vpop.f32.mrf.mxu0
      %2905 = vdwg.mxu0
      %v2906 = vld [vmem:[#allocation3] sm:$0xff]
      %v2907 = vld [vmem:[#allocation3 + $0x8] sm:$0xff]
      %v2908 = vld [vmem:[#allocation3 + $0x10] sm:$0xff]
      %v2909 = vld [vmem:[#allocation3 + $0x18] sm:$0xff]
      %v2910 = vld [vmem:[#allocation3 + $0x20] sm:$0xff]
      %v2911 = vld [vmem:[#allocation3 + $0x28] sm:$0xff]
      %v2912 = vld [vmem:[#allocation3 + $0x30] sm:$0xff]
      %v2913 = vld [vmem:[#allocation3 + $0x38] sm:$0xff]
      %v2914 = vld [vmem:[#allocation3 + $0x40] sm:$0xff]
      %v2915 = vld [vmem:[#allocation3 + $0x48] sm:$0xff]
      %v2916 = vld [vmem:[#allocation3 + $0x50] sm:$0xff]
      %v2917 = vld [vmem:[#allocation3 + $0x58] sm:$0xff]
      %v2918 = vld [vmem:[#allocation3 + $0x60] sm:$0xff]
      %v2919 = vld [vmem:[#allocation3 + $0x68] sm:$0xff]
      %v2920 = vld [vmem:[#allocation3 + $0x70] sm:$0xff]
      %v2921 = vld [vmem:[#allocation3 + $0x78] sm:$0xff]
      %v2922 = vld [vmem:[#allocation3 + $0x80] sm:$0xff]
      %v2923 = vld [vmem:[#allocation3 + $0x88] sm:$0xff]
      %v2924 = vld [vmem:[#allocation3 + $0x90] sm:$0xff]
      %v2925 = vld [vmem:[#allocation3 + $0x98] sm:$0xff]
      %v2926 = vld [vmem:[#allocation3 + $0xa0] sm:$0xff]
      %v2927 = vld [vmem:[#allocation3 + $0xa8] sm:$0xff]
      %v2928 = vld [vmem:[#allocation3 + $0xb0] sm:$0xff]
      %v2929 = vld [vmem:[#allocation3 + $0xb8] sm:$0xff]
      %v2930 = vld [vmem:[#allocation3 + $0xc0] sm:$0xff]
      %v2931 = vld [vmem:[#allocation3 + $0xc8] sm:$0xff]
      %v2932 = vld [vmem:[#allocation3 + $0xd0] sm:$0xff]
      %v2933 = vld [vmem:[#allocation3 + $0xd8] sm:$0xff]
      %v2934 = vld [vmem:[#allocation3 + $0xe0] sm:$0xff]
      %v2935 = vld [vmem:[#allocation3 + $0xe8] sm:$0xff]
      %v2936 = vld [vmem:[#allocation3 + $0xf0] sm:$0xff]
      %v2937 = vld [vmem:[#allocation3 + $0xf8] sm:$0xff]
      %v2938 = vadd.f32 %v2906, %v2780
      %v2939 = vadd.f32 %v2907, %v2783
      %v2940 = vadd.f32 %v2908, %v2788
      %v2941 = vadd.f32 %v2909, %v2791
      %v2942 = vadd.f32 %v2910, %v2796
      %v2943 = vadd.f32 %v2911, %v2799
      %v2944 = vadd.f32 %v2912, %v2804
      %v2945 = vadd.f32 %v2913, %v2807
      %v2946 = vadd.f32 %v2914, %v2812
      %v2947 = vadd.f32 %v2915, %v2815
      %v2948 = vadd.f32 %v2916, %v2820
      %v2949 = vadd.f32 %v2917, %v2823
      %v2950 = vadd.f32 %v2918, %v2828
      %v2951 = vadd.f32 %v2919, %v2831
      %v2952 = vadd.f32 %v2920, %v2836
      %v2953 = vadd.f32 %v2921, %v2839
      %v2954 = vadd.f32 %v2922, %v2844
      %v2955 = vadd.f32 %v2923, %v2847
      %v2956 = vadd.f32 %v2924, %v2852
      %v2957 = vadd.f32 %v2925, %v2855
      %v2958 = vadd.f32 %v2926, %v2860
      %v2959 = vadd.f32 %v2927, %v2863
      %v2960 = vadd.f32 %v2928, %v2868
      %v2961 = vadd.f32 %v2929, %v2871
      %v2962 = vadd.f32 %v2930, %v2876
      %v2963 = vadd.f32 %v2931, %v2879
      %v2964 = vadd.f32 %v2932, %v2884
      %v2965 = vadd.f32 %v2933, %v2887
      %v2966 = vadd.f32 %v2934, %v2892
      %v2967 = vadd.f32 %v2935, %v2895
      %v2968 = vadd.f32 %v2936, %v2900
      %v2969 = vadd.f32 %v2937, %v2903
      %2970 = vst.msk [vmem:[#allocation3] sm:$0xff] %vm972, %v2938
      %2971 = vst.msk [vmem:[#allocation3 + $0x8] sm:$0xff] %vm972, %v2939
      %2972 = vst.msk [vmem:[#allocation3 + $0x10] sm:$0xff] %vm972, %v2940
      %2973 = vst.msk [vmem:[#allocation3 + $0x18] sm:$0xff] %vm972, %v2941
      %2974 = vst.msk [vmem:[#allocation3 + $0x20] sm:$0xff] %vm972, %v2942
      %2975 = vst.msk [vmem:[#allocation3 + $0x28] sm:$0xff] %vm972, %v2943
      %2976 = vst.msk [vmem:[#allocation3 + $0x30] sm:$0xff] %vm972, %v2944
      %2977 = vst.msk [vmem:[#allocation3 + $0x38] sm:$0xff] %vm972, %v2945
      %2978 = vst.msk [vmem:[#allocation3 + $0x40] sm:$0xff] %vm972, %v2946
      %2979 = vst.msk [vmem:[#allocation3 + $0x48] sm:$0xff] %vm972, %v2947
      %2980 = vst.msk [vmem:[#allocation3 + $0x50] sm:$0xff] %vm972, %v2948
      %2981 = vst.msk [vmem:[#allocation3 + $0x58] sm:$0xff] %vm972, %v2949
      %2982 = vst.msk [vmem:[#allocation3 + $0x60] sm:$0xff] %vm972, %v2950
      %2983 = vst.msk [vmem:[#allocation3 + $0x68] sm:$0xff] %vm972, %v2951
      %2984 = vst.msk [vmem:[#allocation3 + $0x70] sm:$0xff] %vm972, %v2952
      %2985 = vst.msk [vmem:[#allocation3 + $0x78] sm:$0xff] %vm972, %v2953
      %2986 = vst.msk [vmem:[#allocation3 + $0x80] sm:$0xff] %vm972, %v2954
      %2987 = vst.msk [vmem:[#allocation3 + $0x88] sm:$0xff] %vm972, %v2955
      %2988 = vst.msk [vmem:[#allocation3 + $0x90] sm:$0xff] %vm972, %v2956
      %2989 = vst.msk [vmem:[#allocation3 + $0x98] sm:$0xff] %vm972, %v2957
      %2990 = vst.msk [vmem:[#allocation3 + $0xa0] sm:$0xff] %vm972, %v2958
      %2991 = vst.msk [vmem:[#allocation3 + $0xa8] sm:$0xff] %vm972, %v2959
      %2992 = vst.msk [vmem:[#allocation3 + $0xb0] sm:$0xff] %vm972, %v2960
      %2993 = vst.msk [vmem:[#allocation3 + $0xb8] sm:$0xff] %vm972, %v2961
      %2994 = vst.msk [vmem:[#allocation3 + $0xc0] sm:$0xff] %vm972, %v2962
      %2995 = vst.msk [vmem:[#allocation3 + $0xc8] sm:$0xff] %vm972, %v2963
      %2996 = vst.msk [vmem:[#allocation3 + $0xd0] sm:$0xff] %vm972, %v2964
      %2997 = vst.msk [vmem:[#allocation3 + $0xd8] sm:$0xff] %vm972, %v2965
      %2998 = vst.msk [vmem:[#allocation3 + $0xe0] sm:$0xff] %vm972, %v2966
      %2999 = vst.msk [vmem:[#allocation3 + $0xe8] sm:$0xff] %vm972, %v2967
      %3000 = vst.msk [vmem:[#allocation3 + $0xf0] sm:$0xff] %vm972, %v2968
      %3001 = vst.msk [vmem:[#allocation3 + $0xf8] sm:$0xff] %vm972, %v2969
      %v3002 = vld [vmem:[%s289] sm:$0xf]
      %v3003 = vld [vmem:[%s289 + $0x4] sm:$0xf]
      %v3004 = vld [vmem:[%s289 + $0x8] sm:$0x1]
      %v3005 = vld [vmem:[%s289 + $0xc] sm:$0xf]
      %v3006 = vld [vmem:[%s289 + $0x10] sm:$0xf]
      %v3007 = vld [vmem:[%s289 + $0x14] sm:$0x1]
      %v3008 = vld [vmem:[%s289 + $0x18] sm:$0xf]
      %v3009 = vld [vmem:[%s289 + $0x1c] sm:$0xf]
      %v3010 = vld [vmem:[%s289 + $0x20] sm:$0x1]
      %v3011 = vld [vmem:[%s289 + $0x24] sm:$0xf]
      %v3012 = vld [vmem:[%s289 + $0x28] sm:$0xf]
      %v3013 = vld [vmem:[%s289 + $0x2c] sm:$0x1]
      %v3014 = vld [vmem:[%s289 + $0x30] sm:$0xf]
      %v3015 = vld [vmem:[%s289 + $0x34] sm:$0xf]
      %v3016 = vld [vmem:[%s289 + $0x38] sm:$0x1]
      %v3017 = vld [vmem:[%s289 + $0x3c] sm:$0xf]
      %v3018 = vld [vmem:[%s289 + $0x40] sm:$0xf]
      %v3019 = vld [vmem:[%s289 + $0x44] sm:$0x1]
      %v3020 = vld [vmem:[%s289 + $0x48] sm:$0xf]
      %v3021 = vld [vmem:[%s289 + $0x4c] sm:$0xf]
      %v3022 = vld [vmem:[%s289 + $0x50] sm:$0x1]
      %v3023 = vld [vmem:[%s289 + $0x54] sm:$0xf]
      %v3024 = vld [vmem:[%s289 + $0x58] sm:$0xf]
      %v3025 = vld [vmem:[%s289 + $0x5c] sm:$0x1]
      %v3026 = vld [vmem:[%s289 + $0x60] sm:$0xf]
      %v3027 = vld [vmem:[%s289 + $0x64] sm:$0xf]
      %v3028 = vld [vmem:[%s289 + $0x68] sm:$0x1]
      %v3029 = vld [vmem:[%s289 + $0x6c] sm:$0xf]
      %v3030 = vld [vmem:[%s289 + $0x70] sm:$0xf]
      %v3031 = vld [vmem:[%s289 + $0x74] sm:$0x1]
      %v3032 = vld [vmem:[%s289 + $0x78] sm:$0xf]
      %v3033 = vld [vmem:[%s289 + $0x7c] sm:$0xf]
      %v3034 = vld [vmem:[%s289 + $0x80] sm:$0x1]
      %v3035 = vld [vmem:[%s289 + $0x84] sm:$0xf]
      %v3036 = vld [vmem:[%s289 + $0x88] sm:$0xf]
      %v3037 = vld [vmem:[%s289 + $0x8c] sm:$0x1]
      %v3038 = vld [vmem:[%s289 + $0x90] sm:$0xf]
      %v3039 = vld [vmem:[%s289 + $0x94] sm:$0xf]
      %v3040 = vld [vmem:[%s289 + $0x98] sm:$0x1]
      %v3041 = vld [vmem:[%s289 + $0x9c] sm:$0xf]
      %v3042 = vld [vmem:[%s289 + $0xa0] sm:$0xf]
      %v3043 = vld [vmem:[%s289 + $0xa4] sm:$0x1]
      %v3044 = vld [vmem:[%s289 + $0xa8] sm:$0xf]
      %v3045 = vld [vmem:[%s289 + $0xac] sm:$0xf]
      %v3046 = vld [vmem:[%s289 + $0xb0] sm:$0x1]
      %v3047 = vld [vmem:[%s289 + $0xb4] sm:$0xf]
      %v3048 = vld [vmem:[%s289 + $0xb8] sm:$0xf]
      %v3049 = vld [vmem:[%s289 + $0xbc] sm:$0x1]
      %v3051 = vshrl.u32 %v3002, 16
      %v3053 = vrot.slane %v3051, 4
      %v3054 = vshll.u32 %v3002, 16
      %v3056 = vrot.slane %v3054, 5
      %v3057 = vor.u32 %v3053, %v3056
      %v3058 = vrot.slane %v3057, 4
      %v3060 = vshll.u32 %v3003, 16
      %v3062 = vrot.slane %v3060, 5
      %v3063 = vsel %vm1268, %v3058, %v3062
      %v3064 = vshrl.u32 %v3003, 16
      %v3066 = vrot.slane %v3064, 4
      %v3067 = vor.u32 %v3066, %v3062
      %v3068 = vrot.slane %v3067, 4
      %v3070 = vshll.u32 %v3004, 16
      %v3072 = vrot.slane %v3070, 5
      %v3073 = vsel %vm1268, %v3068, %v3072
      %v3075 = vshrl.u32 %v3005, 16
      %v3077 = vrot.slane %v3075, 4
      %v3078 = vshll.u32 %v3005, 16
      %v3080 = vrot.slane %v3078, 5
      %v3081 = vor.u32 %v3077, %v3080
      %v3082 = vrot.slane %v3081, 4
      %v3084 = vshll.u32 %v3006, 16
      %v3086 = vrot.slane %v3084, 5
      %v3087 = vsel %vm1268, %v3082, %v3086
      %v3088 = vshrl.u32 %v3006, 16
      %v3090 = vrot.slane %v3088, 4
      %v3091 = vor.u32 %v3090, %v3086
      %v3092 = vrot.slane %v3091, 4
      %v3094 = vshll.u32 %v3007, 16
      %v3096 = vrot.slane %v3094, 5
      %v3097 = vsel %vm1268, %v3092, %v3096
      %v3099 = vshrl.u32 %v3008, 16
      %v3101 = vrot.slane %v3099, 4
      %v3102 = vshll.u32 %v3008, 16
      %v3104 = vrot.slane %v3102, 5
      %v3105 = vor.u32 %v3101, %v3104
      %v3106 = vrot.slane %v3105, 4
      %v3108 = vshll.u32 %v3009, 16
      %v3110 = vrot.slane %v3108, 5
      %v3111 = vsel %vm1268, %v3106, %v3110
      %v3112 = vshrl.u32 %v3009, 16
      %v3114 = vrot.slane %v3112, 4
      %v3115 = vor.u32 %v3114, %v3110
      %v3116 = vrot.slane %v3115, 4
      %v3118 = vshll.u32 %v3010, 16
      %v3120 = vrot.slane %v3118, 5
      %v3121 = vsel %vm1268, %v3116, %v3120
      %v3123 = vshrl.u32 %v3011, 16
      %v3125 = vrot.slane %v3123, 4
      %v3126 = vshll.u32 %v3011, 16
      %v3128 = vrot.slane %v3126, 5
      %v3129 = vor.u32 %v3125, %v3128
      %v3130 = vrot.slane %v3129, 4
      %v3132 = vshll.u32 %v3012, 16
      %v3134 = vrot.slane %v3132, 5
      %v3135 = vsel %vm1268, %v3130, %v3134
      %v3136 = vshrl.u32 %v3012, 16
      %v3138 = vrot.slane %v3136, 4
      %v3139 = vor.u32 %v3138, %v3134
      %v3140 = vrot.slane %v3139, 4
      %v3142 = vshll.u32 %v3013, 16
      %v3144 = vrot.slane %v3142, 5
      %v3145 = vsel %vm1268, %v3140, %v3144
      %v3147 = vshrl.u32 %v3014, 16
      %v3149 = vrot.slane %v3147, 4
      %v3150 = vshll.u32 %v3014, 16
      %v3152 = vrot.slane %v3150, 5
      %v3153 = vor.u32 %v3149, %v3152
      %v3154 = vrot.slane %v3153, 4
      %v3156 = vshll.u32 %v3015, 16
      %v3158 = vrot.slane %v3156, 5
      %v3159 = vsel %vm1268, %v3154, %v3158
      %v3160 = vshrl.u32 %v3015, 16
      %v3162 = vrot.slane %v3160, 4
      %v3163 = vor.u32 %v3162, %v3158
      %v3164 = vrot.slane %v3163, 4
      %v3166 = vshll.u32 %v3016, 16
      %v3168 = vrot.slane %v3166, 5
      %v3169 = vsel %vm1268, %v3164, %v3168
      %v3171 = vshrl.u32 %v3017, 16
      %v3173 = vrot.slane %v3171, 4
      %v3174 = vshll.u32 %v3017, 16
      %v3176 = vrot.slane %v3174, 5
      %v3177 = vor.u32 %v3173, %v3176
      %v3178 = vrot.slane %v3177, 4
      %v3180 = vshll.u32 %v3018, 16
      %v3182 = vrot.slane %v3180, 5
      %v3183 = vsel %vm1268, %v3178, %v3182
      %v3184 = vshrl.u32 %v3018, 16
      %v3186 = vrot.slane %v3184, 4
      %v3187 = vor.u32 %v3186, %v3182
      %v3188 = vrot.slane %v3187, 4
      %v3190 = vshll.u32 %v3019, 16
      %v3192 = vrot.slane %v3190, 5
      %v3193 = vsel %vm1268, %v3188, %v3192
      %v3195 = vshrl.u32 %v3020, 16
      %v3197 = vrot.slane %v3195, 4
      %v3198 = vshll.u32 %v3020, 16
      %v3200 = vrot.slane %v3198, 5
      %v3201 = vor.u32 %v3197, %v3200
      %v3202 = vrot.slane %v3201, 4
      %v3204 = vshll.u32 %v3021, 16
      %v3206 = vrot.slane %v3204, 5
      %v3207 = vsel %vm1268, %v3202, %v3206
      %v3208 = vshrl.u32 %v3021, 16
      %v3210 = vrot.slane %v3208, 4
      %v3211 = vor.u32 %v3210, %v3206
      %v3212 = vrot.slane %v3211, 4
      %v3214 = vshll.u32 %v3022, 16
      %v3216 = vrot.slane %v3214, 5
      %v3217 = vsel %vm1268, %v3212, %v3216
      %v3219 = vshrl.u32 %v3023, 16
      %v3221 = vrot.slane %v3219, 4
      %v3222 = vshll.u32 %v3023, 16
      %v3224 = vrot.slane %v3222, 5
      %v3225 = vor.u32 %v3221, %v3224
      %v3226 = vrot.slane %v3225, 4
      %v3228 = vshll.u32 %v3024, 16
      %v3230 = vrot.slane %v3228, 5
      %v3231 = vsel %vm1268, %v3226, %v3230
      %v3232 = vshrl.u32 %v3024, 16
      %v3234 = vrot.slane %v3232, 4
      %v3235 = vor.u32 %v3234, %v3230
      %v3236 = vrot.slane %v3235, 4
      %v3238 = vshll.u32 %v3025, 16
      %v3240 = vrot.slane %v3238, 5
      %v3241 = vsel %vm1268, %v3236, %v3240
      %v3243 = vshrl.u32 %v3026, 16
      %v3245 = vrot.slane %v3243, 4
      %v3246 = vshll.u32 %v3026, 16
      %v3248 = vrot.slane %v3246, 5
      %v3249 = vor.u32 %v3245, %v3248
      %v3250 = vrot.slane %v3249, 4
      %v3252 = vshll.u32 %v3027, 16
      %v3254 = vrot.slane %v3252, 5
      %v3255 = vsel %vm1268, %v3250, %v3254
      %v3256 = vshrl.u32 %v3027, 16
      %v3258 = vrot.slane %v3256, 4
      %v3259 = vor.u32 %v3258, %v3254
      %v3260 = vrot.slane %v3259, 4
      %v3262 = vshll.u32 %v3028, 16
      %v3264 = vrot.slane %v3262, 5
      %v3265 = vsel %vm1268, %v3260, %v3264
      %v3267 = vshrl.u32 %v3029, 16
      %v3269 = vrot.slane %v3267, 4
      %v3270 = vshll.u32 %v3029, 16
      %v3272 = vrot.slane %v3270, 5
      %v3273 = vor.u32 %v3269, %v3272
      %v3274 = vrot.slane %v3273, 4
      %v3276 = vshll.u32 %v3030, 16
      %v3278 = vrot.slane %v3276, 5
      %v3279 = vsel %vm1268, %v3274, %v3278
      %v3280 = vshrl.u32 %v3030, 16
      %v3282 = vrot.slane %v3280, 4
      %v3283 = vor.u32 %v3282, %v3278
      %v3284 = vrot.slane %v3283, 4
      %v3286 = vshll.u32 %v3031, 16
      %v3288 = vrot.slane %v3286, 5
      %v3289 = vsel %vm1268, %v3284, %v3288
      %v3291 = vshrl.u32 %v3032, 16
      %v3293 = vrot.slane %v3291, 4
      %v3294 = vshll.u32 %v3032, 16
      %v3296 = vrot.slane %v3294, 5
      %v3297 = vor.u32 %v3293, %v3296
      %v3298 = vrot.slane %v3297, 4
      %v3300 = vshll.u32 %v3033, 16
      %v3302 = vrot.slane %v3300, 5
      %v3303 = vsel %vm1268, %v3298, %v3302
      %v3304 = vshrl.u32 %v3033, 16
      %v3306 = vrot.slane %v3304, 4
      %v3307 = vor.u32 %v3306, %v3302
      %v3308 = vrot.slane %v3307, 4
      %v3310 = vshll.u32 %v3034, 16
      %v3312 = vrot.slane %v3310, 5
      %v3313 = vsel %vm1268, %v3308, %v3312
      %v3315 = vshrl.u32 %v3035, 16
      %v3317 = vrot.slane %v3315, 4
      %v3318 = vshll.u32 %v3035, 16
      %v3320 = vrot.slane %v3318, 5
      %v3321 = vor.u32 %v3317, %v3320
      %v3322 = vrot.slane %v3321, 4
      %v3324 = vshll.u32 %v3036, 16
      %v3326 = vrot.slane %v3324, 5
      %v3327 = vsel %vm1268, %v3322, %v3326
      %v3328 = vshrl.u32 %v3036, 16
      %v3330 = vrot.slane %v3328, 4
      %v3331 = vor.u32 %v3330, %v3326
      %v3332 = vrot.slane %v3331, 4
      %v3334 = vshll.u32 %v3037, 16
      %v3336 = vrot.slane %v3334, 5
      %v3337 = vsel %vm1268, %v3332, %v3336
      %v3339 = vshrl.u32 %v3038, 16
      %v3341 = vrot.slane %v3339, 4
      %v3342 = vshll.u32 %v3038, 16
      %v3344 = vrot.slane %v3342, 5
      %v3345 = vor.u32 %v3341, %v3344
      %v3346 = vrot.slane %v3345, 4
      %v3348 = vshll.u32 %v3039, 16
      %v3350 = vrot.slane %v3348, 5
      %v3351 = vsel %vm1268, %v3346, %v3350
      %v3352 = vshrl.u32 %v3039, 16
      %v3354 = vrot.slane %v3352, 4
      %v3355 = vor.u32 %v3354, %v3350
      %v3356 = vrot.slane %v3355, 4
      %v3358 = vshll.u32 %v3040, 16
      %v3360 = vrot.slane %v3358, 5
      %v3361 = vsel %vm1268, %v3356, %v3360
      %v3363 = vshrl.u32 %v3041, 16
      %v3365 = vrot.slane %v3363, 4
      %v3366 = vshll.u32 %v3041, 16
      %v3368 = vrot.slane %v3366, 5
      %v3369 = vor.u32 %v3365, %v3368
      %v3370 = vrot.slane %v3369, 4
      %v3372 = vshll.u32 %v3042, 16
      %v3374 = vrot.slane %v3372, 5
      %v3375 = vsel %vm1268, %v3370, %v3374
      %v3376 = vshrl.u32 %v3042, 16
      %v3378 = vrot.slane %v3376, 4
      %v3379 = vor.u32 %v3378, %v3374
      %v3380 = vrot.slane %v3379, 4
      %v3382 = vshll.u32 %v3043, 16
      %v3384 = vrot.slane %v3382, 5
      %v3385 = vsel %vm1268, %v3380, %v3384
      %v3387 = vshrl.u32 %v3044, 16
      %v3389 = vrot.slane %v3387, 4
      %v3390 = vshll.u32 %v3044, 16
      %v3392 = vrot.slane %v3390, 5
      %v3393 = vor.u32 %v3389, %v3392
      %v3394 = vrot.slane %v3393, 4
      %v3396 = vshll.u32 %v3045, 16
      %v3398 = vrot.slane %v3396, 5
      %v3399 = vsel %vm1268, %v3394, %v3398
      %v3400 = vshrl.u32 %v3045, 16
      %v3402 = vrot.slane %v3400, 4
      %v3403 = vor.u32 %v3402, %v3398
      %v3404 = vrot.slane %v3403, 4
      %v3406 = vshll.u32 %v3046, 16
      %v3408 = vrot.slane %v3406, 5
      %v3409 = vsel %vm1268, %v3404, %v3408
      %v3411 = vshrl.u32 %v3047, 16
      %v3413 = vrot.slane %v3411, 4
      %v3414 = vshll.u32 %v3047, 16
      %v3416 = vrot.slane %v3414, 5
      %v3417 = vor.u32 %v3413, %v3416
      %v3418 = vrot.slane %v3417, 4
      %v3420 = vshll.u32 %v3048, 16
      %v3422 = vrot.slane %v3420, 5
      %v3423 = vsel %vm1268, %v3418, %v3422
      %v3424 = vshrl.u32 %v3048, 16
      %v3426 = vrot.slane %v3424, 4
      %v3427 = vor.u32 %v3426, %v3422
      %v3428 = vrot.slane %v3427, 4
      %v3430 = vshll.u32 %v3049, 16
      %v3432 = vrot.slane %v3430, 5
      %v3433 = vsel %vm1268, %v3428, %v3432
      %s3434 = scalar_lea.vmem %s1, 8
      %v3435 = vld [vmem:[%s3434] sm:$0x3]
      %v3436 = vunpack.c.l.b16 %v3063
      %v3437 = vunpack.c.l.b16 %v3073
      %v3438 = vunpack.c.l.b16 %v3087
      %v3439 = vunpack.c.l.b16 %v3097
      %v3440 = vunpack.c.l.b16 %v3111
      %v3441 = vunpack.c.l.b16 %v3121
      %v3442 = vunpack.c.l.b16 %v3135
      %v3443 = vunpack.c.l.b16 %v3145
      %v3444 = vunpack.c.l.b16 %v3159
      %v3445 = vunpack.c.l.b16 %v3169
      %v3446 = vunpack.c.l.b16 %v3183
      %v3447 = vunpack.c.l.b16 %v3193
      %v3448 = vunpack.c.l.b16 %v3207
      %v3449 = vunpack.c.l.b16 %v3217
      %v3450 = vunpack.c.l.b16 %v3231
      %v3451 = vunpack.c.l.b16 %v3241
      %v3452 = vunpack.c.l.b16 %v3255
      %v3453 = vunpack.c.l.b16 %v3265
      %v3454 = vunpack.c.l.b16 %v3279
      %v3455 = vunpack.c.l.b16 %v3289
      %v3456 = vunpack.c.l.b16 %v3303
      %v3457 = vunpack.c.l.b16 %v3313
      %v3458 = vunpack.c.l.b16 %v3327
      %v3459 = vunpack.c.l.b16 %v3337
      %v3460 = vunpack.c.l.b16 %v3351
      %v3461 = vunpack.c.l.b16 %v3361
      %v3462 = vunpack.c.l.b16 %v3375
      %v3463 = vunpack.c.l.b16 %v3385
      %v3464 = vunpack.c.l.b16 %v3399
      %v3465 = vunpack.c.l.b16 %v3409
      %v3466 = vunpack.c.l.b16 %v3423
      %v3467 = vunpack.c.l.b16 %v3433
      %v3468 = vpack.c.b16 %v3437, %v3436
      %v3469 = vpack.c.b16 %v3439, %v3438
      %v3470 = vpack.c.b16 %v3441, %v3440
      %v3471 = vpack.c.b16 %v3443, %v3442
      %v3472 = vpack.c.b16 %v3445, %v3444
      %v3473 = vpack.c.b16 %v3447, %v3446
      %v3474 = vpack.c.b16 %v3449, %v3448
      %v3475 = vpack.c.b16 %v3451, %v3450
      %v3476 = vpack.c.b16 %v3453, %v3452
      %v3477 = vpack.c.b16 %v3455, %v3454
      %v3478 = vpack.c.b16 %v3457, %v3456
      %v3479 = vpack.c.b16 %v3459, %v3458
      %v3480 = vpack.c.b16 %v3461, %v3460
      %v3481 = vpack.c.b16 %v3463, %v3462
      %v3482 = vpack.c.b16 %v3465, %v3464
      %v3483 = vpack.c.b16 %v3467, %v3466
      %v3485 = vsel %vm972, %v3468, 0
      %v3488 = vsel %vm972, %v3469, 0
      %v3491 = vsel %vm972, %v3470, 0
      %v3494 = vsel %vm972, %v3471, 0
      %v3497 = vsel %vm972, %v3472, 0
      %v3500 = vsel %vm972, %v3473, 0
      %v3503 = vsel %vm972, %v3474, 0
      %v3506 = vsel %vm972, %v3475, 0
      %v3509 = vsel %vm972, %v3476, 0
      %v3512 = vsel %vm972, %v3477, 0
      %v3515 = vsel %vm972, %v3478, 0
      %v3518 = vsel %vm972, %v3479, 0
      %v3521 = vsel %vm972, %v3480, 0
      %v3524 = vsel %vm972, %v3481, 0
      %v3527 = vsel %vm972, %v3482, 0
      %v3530 = vsel %vm972, %v3483, 0
      %v3533 = vsel %vm1021, %v3435, 0
      %3535 = vmatprep.subr.bf16.mxu0 0
      %3536 = vmatpush1.bf16.msra.mxu0 0
      %3537 = vmatprep.subr.bf16.mxu0 0
      %3538 = vmatpush1.bf16.msra.mxu0 0
      %3539 = vmatprep.subr.bf16.mxu0 0
      %3540 = vmatpush1.bf16.msra.mxu0 0
      %3541 = vmatprep.subr.bf16.mxu0 0
      %3542 = vmatpush1.bf16.msra.mxu0 0
      %3543 = vmatprep.subr.bf16.mxu0 0
      %3544 = vmatpush1.bf16.msra.mxu0 0
      %3545 = vmatprep.subr.bf16.mxu0 0
      %3546 = vmatpush1.bf16.msra.mxu0 0
      %3547 = vmatprep.subr.bf16.mxu0 0
      %3548 = vmatpush1.bf16.msra.mxu0 0
      %3549 = vmatprep.subr.bf16.mxu0 0
      %3550 = vmatpush1.bf16.msra.mxu0 %v3533
      %3551 = vmatprep.subr.bf16.mxu0 0
      %3552 = vmatpush2.bf16.msra.mxu0 0
      %3553 = vmatprep.subr.bf16.mxu0 0
      %3554 = vmatpush2.bf16.msra.mxu0 0
      %3555 = vmatprep.subr.bf16.mxu0 0
      %3556 = vmatpush2.bf16.msra.mxu0 0
      %3557 = vmatprep.subr.bf16.mxu0 0
      %3558 = vmatpush2.bf16.msra.mxu0 0
      %3559 = vmatprep.subr.bf16.mxu0 0
      %3560 = vmatpush2.bf16.msra.mxu0 0
      %3561 = vmatprep.subr.bf16.mxu0 0
      %3562 = vmatpush2.bf16.msra.mxu0 0
      %3563 = vmatprep.subr.bf16.mxu0 0
      %3564 = vmatpush2.bf16.msra.mxu0 0
      %3565 = vmatprep.subr.bf16.mxu0 0
      %3566 = vmatpush2.bf16.msra.mxu0 0
      %3567 = vmatprep.mubr.bf16.mxu0 0
      %3568 = vmatmul.mubr.bf16.gmra.mxu0 %v3485
      %v3569 = vpop.f32.mrf.mxu0
      %v3570 = vadd.f32 0.0, %v3569
      %v3571 = vpop.f32.mrf.mxu0
      %v3572 = vpop.f32.mrf.mxu0
      %v3573 = vadd.f32 0.0, %v3572
      %v3574 = vpop.f32.mrf.mxu0
      %3575 = vmatprep.mubr.bf16.mxu0 0
      %3576 = vmatmul.mubr.bf16.gmra.mxu0 %v3488
      %v3577 = vpop.f32.mrf.mxu0
      %v3578 = vadd.f32 0.0, %v3577
      %v3579 = vpop.f32.mrf.mxu0
      %v3580 = vpop.f32.mrf.mxu0
      %v3581 = vadd.f32 0.0, %v3580
      %v3582 = vpop.f32.mrf.mxu0
      %3583 = vmatprep.mubr.bf16.mxu0 0
      %3584 = vmatmul.mubr.bf16.gmra.mxu0 %v3491
      %v3585 = vpop.f32.mrf.mxu0
      %v3586 = vadd.f32 0.0, %v3585
      %v3587 = vpop.f32.mrf.mxu0
      %v3588 = vpop.f32.mrf.mxu0
      %v3589 = vadd.f32 0.0, %v3588
      %v3590 = vpop.f32.mrf.mxu0
      %3591 = vmatprep.mubr.bf16.mxu0 0
      %3592 = vmatmul.mubr.bf16.gmra.mxu0 %v3494
      %v3593 = vpop.f32.mrf.mxu0
      %v3594 = vadd.f32 0.0, %v3593
      %v3595 = vpop.f32.mrf.mxu0
      %v3596 = vpop.f32.mrf.mxu0
      %v3597 = vadd.f32 0.0, %v3596
      %v3598 = vpop.f32.mrf.mxu0
      %3599 = vmatprep.mubr.bf16.mxu0 0
      %3600 = vmatmul.mubr.bf16.gmra.mxu0 %v3497
      %v3601 = vpop.f32.mrf.mxu0
      %v3602 = vadd.f32 0.0, %v3601
      %v3603 = vpop.f32.mrf.mxu0
      %v3604 = vpop.f32.mrf.mxu0
      %v3605 = vadd.f32 0.0, %v3604
      %v3606 = vpop.f32.mrf.mxu0
      %3607 = vmatprep.mubr.bf16.mxu0 0
      %3608 = vmatmul.mubr.bf16.gmra.mxu0 %v3500
      %v3609 = vpop.f32.mrf.mxu0
      %v3610 = vadd.f32 0.0, %v3609
      %v3611 = vpop.f32.mrf.mxu0
      %v3612 = vpop.f32.mrf.mxu0
      %v3613 = vadd.f32 0.0, %v3612
      %v3614 = vpop.f32.mrf.mxu0
      %3615 = vmatprep.mubr.bf16.mxu0 0
      %3616 = vmatmul.mubr.bf16.gmra.mxu0 %v3503
      %v3617 = vpop.f32.mrf.mxu0
      %v3618 = vadd.f32 0.0, %v3617
      %v3619 = vpop.f32.mrf.mxu0
      %v3620 = vpop.f32.mrf.mxu0
      %v3621 = vadd.f32 0.0, %v3620
      %v3622 = vpop.f32.mrf.mxu0
      %3623 = vmatprep.mubr.bf16.mxu0 0
      %3624 = vmatmul.mubr.bf16.gmra.mxu0 %v3506
      %v3625 = vpop.f32.mrf.mxu0
      %v3626 = vadd.f32 0.0, %v3625
      %v3627 = vpop.f32.mrf.mxu0
      %v3628 = vpop.f32.mrf.mxu0
      %v3629 = vadd.f32 0.0, %v3628
      %v3630 = vpop.f32.mrf.mxu0
      %3631 = vmatprep.mubr.bf16.mxu0 0
      %3632 = vmatmul.mubr.bf16.gmra.mxu0 %v3509
      %v3633 = vpop.f32.mrf.mxu0
      %v3634 = vadd.f32 0.0, %v3633
      %v3635 = vpop.f32.mrf.mxu0
      %v3636 = vpop.f32.mrf.mxu0
      %v3637 = vadd.f32 0.0, %v3636
      %v3638 = vpop.f32.mrf.mxu0
      %3639 = vmatprep.mubr.bf16.mxu0 0
      %3640 = vmatmul.mubr.bf16.gmra.mxu0 %v3512
      %v3641 = vpop.f32.mrf.mxu0
      %v3642 = vadd.f32 0.0, %v3641
      %v3643 = vpop.f32.mrf.mxu0
      %v3644 = vpop.f32.mrf.mxu0
      %v3645 = vadd.f32 0.0, %v3644
      %v3646 = vpop.f32.mrf.mxu0
      %3647 = vmatprep.mubr.bf16.mxu0 0
      %3648 = vmatmul.mubr.bf16.gmra.mxu0 %v3515
      %v3649 = vpop.f32.mrf.mxu0
      %v3650 = vadd.f32 0.0, %v3649
      %v3651 = vpop.f32.mrf.mxu0
      %v3652 = vpop.f32.mrf.mxu0
      %v3653 = vadd.f32 0.0, %v3652
      %v3654 = vpop.f32.mrf.mxu0
      %3655 = vmatprep.mubr.bf16.mxu0 0
      %3656 = vmatmul.mubr.bf16.gmra.mxu0 %v3518
      %v3657 = vpop.f32.mrf.mxu0
      %v3658 = vadd.f32 0.0, %v3657
      %v3659 = vpop.f32.mrf.mxu0
      %v3660 = vpop.f32.mrf.mxu0
      %v3661 = vadd.f32 0.0, %v3660
      %v3662 = vpop.f32.mrf.mxu0
      %3663 = vmatprep.mubr.bf16.mxu0 0
      %3664 = vmatmul.mubr.bf16.gmra.mxu0 %v3521
      %v3665 = vpop.f32.mrf.mxu0
      %v3666 = vadd.f32 0.0, %v3665
      %v3667 = vpop.f32.mrf.mxu0
      %v3668 = vpop.f32.mrf.mxu0
      %v3669 = vadd.f32 0.0, %v3668
      %v3670 = vpop.f32.mrf.mxu0
      %3671 = vmatprep.mubr.bf16.mxu0 0
      %3672 = vmatmul.mubr.bf16.gmra.mxu0 %v3524
      %v3673 = vpop.f32.mrf.mxu0
      %v3674 = vadd.f32 0.0, %v3673
      %v3675 = vpop.f32.mrf.mxu0
      %v3676 = vpop.f32.mrf.mxu0
      %v3677 = vadd.f32 0.0, %v3676
      %v3678 = vpop.f32.mrf.mxu0
      %3679 = vmatprep.mubr.bf16.mxu0 0
      %3680 = vmatmul.mubr.bf16.gmra.mxu0 %v3527
      %v3681 = vpop.f32.mrf.mxu0
      %v3682 = vadd.f32 0.0, %v3681
      %v3683 = vpop.f32.mrf.mxu0
      %v3684 = vpop.f32.mrf.mxu0
      %v3685 = vadd.f32 0.0, %v3684
      %v3686 = vpop.f32.mrf.mxu0
      %3687 = vmatprep.mubr.bf16.mxu0 0
      %3688 = vmatmul.mubr.bf16.gmra.mxu0 %v3530
      %v3689 = vpop.f32.mrf.mxu0
      %v3690 = vadd.f32 0.0, %v3689
      %v3691 = vpop.f32.mrf.mxu0
      %v3692 = vpop.f32.mrf.mxu0
      %v3693 = vadd.f32 0.0, %v3692
      %v3694 = vpop.f32.mrf.mxu0
      %3695 = vdwg.mxu0
      %v3696 = vld [vmem:[#allocation3] sm:$0xff]
      %v3697 = vld [vmem:[#allocation3 + $0x8] sm:$0xff]
      %v3698 = vld [vmem:[#allocation3 + $0x10] sm:$0xff]
      %v3699 = vld [vmem:[#allocation3 + $0x18] sm:$0xff]
      %v3700 = vld [vmem:[#allocation3 + $0x20] sm:$0xff]
      %v3701 = vld [vmem:[#allocation3 + $0x28] sm:$0xff]
      %v3702 = vld [vmem:[#allocation3 + $0x30] sm:$0xff]
      %v3703 = vld [vmem:[#allocation3 + $0x38] sm:$0xff]
      %v3704 = vld [vmem:[#allocation3 + $0x40] sm:$0xff]
      %v3705 = vld [vmem:[#allocation3 + $0x48] sm:$0xff]
      %v3706 = vld [vmem:[#allocation3 + $0x50] sm:$0xff]
      %v3707 = vld [vmem:[#allocation3 + $0x58] sm:$0xff]
      %v3708 = vld [vmem:[#allocation3 + $0x60] sm:$0xff]
      %v3709 = vld [vmem:[#allocation3 + $0x68] sm:$0xff]
      %v3710 = vld [vmem:[#allocation3 + $0x70] sm:$0xff]
      %v3711 = vld [vmem:[#allocation3 + $0x78] sm:$0xff]
      %v3712 = vld [vmem:[#allocation3 + $0x80] sm:$0xff]
      %v3713 = vld [vmem:[#allocation3 + $0x88] sm:$0xff]
      %v3714 = vld [vmem:[#allocation3 + $0x90] sm:$0xff]
      %v3715 = vld [vmem:[#allocation3 + $0x98] sm:$0xff]
      %v3716 = vld [vmem:[#allocation3 + $0xa0] sm:$0xff]
      %v3717 = vld [vmem:[#allocation3 + $0xa8] sm:$0xff]
      %v3718 = vld [vmem:[#allocation3 + $0xb0] sm:$0xff]
      %v3719 = vld [vmem:[#allocation3 + $0xb8] sm:$0xff]
      %v3720 = vld [vmem:[#allocation3 + $0xc0] sm:$0xff]
      %v3721 = vld [vmem:[#allocation3 + $0xc8] sm:$0xff]
      %v3722 = vld [vmem:[#allocation3 + $0xd0] sm:$0xff]
      %v3723 = vld [vmem:[#allocation3 + $0xd8] sm:$0xff]
      %v3724 = vld [vmem:[#allocation3 + $0xe0] sm:$0xff]
      %v3725 = vld [vmem:[#allocation3 + $0xe8] sm:$0xff]
      %v3726 = vld [vmem:[#allocation3 + $0xf0] sm:$0xff]
      %v3727 = vld [vmem:[#allocation3 + $0xf8] sm:$0xff]
      %v3728 = vadd.f32 %v3696, %v3570
      %v3729 = vadd.f32 %v3697, %v3573
      %v3730 = vadd.f32 %v3698, %v3578
      %v3731 = vadd.f32 %v3699, %v3581
      %v3732 = vadd.f32 %v3700, %v3586
      %v3733 = vadd.f32 %v3701, %v3589
      %v3734 = vadd.f32 %v3702, %v3594
      %v3735 = vadd.f32 %v3703, %v3597
      %v3736 = vadd.f32 %v3704, %v3602
      %v3737 = vadd.f32 %v3705, %v3605
      %v3738 = vadd.f32 %v3706, %v3610
      %v3739 = vadd.f32 %v3707, %v3613
      %v3740 = vadd.f32 %v3708, %v3618
      %v3741 = vadd.f32 %v3709, %v3621
      %v3742 = vadd.f32 %v3710, %v3626
      %v3743 = vadd.f32 %v3711, %v3629
      %v3744 = vadd.f32 %v3712, %v3634
      %v3745 = vadd.f32 %v3713, %v3637
      %v3746 = vadd.f32 %v3714, %v3642
      %v3747 = vadd.f32 %v3715, %v3645
      %v3748 = vadd.f32 %v3716, %v3650
      %v3749 = vadd.f32 %v3717, %v3653
      %v3750 = vadd.f32 %v3718, %v3658
      %v3751 = vadd.f32 %v3719, %v3661
      %v3752 = vadd.f32 %v3720, %v3666
      %v3753 = vadd.f32 %v3721, %v3669
      %v3754 = vadd.f32 %v3722, %v3674
      %v3755 = vadd.f32 %v3723, %v3677
      %v3756 = vadd.f32 %v3724, %v3682
      %v3757 = vadd.f32 %v3725, %v3685
      %v3758 = vadd.f32 %v3726, %v3690
      %v3759 = vadd.f32 %v3727, %v3693
      %3760 = vst.msk [vmem:[#allocation3] sm:$0xff] %vm972, %v3728
      %3761 = vst.msk [vmem:[#allocation3 + $0x8] sm:$0xff] %vm972, %v3729
      %3762 = vst.msk [vmem:[#allocation3 + $0x10] sm:$0xff] %vm972, %v3730
      %3763 = vst.msk [vmem:[#allocation3 + $0x18] sm:$0xff] %vm972, %v3731
      %3764 = vst.msk [vmem:[#allocation3 + $0x20] sm:$0xff] %vm972, %v3732
      %3765 = vst.msk [vmem:[#allocation3 + $0x28] sm:$0xff] %vm972, %v3733
      %3766 = vst.msk [vmem:[#allocation3 + $0x30] sm:$0xff] %vm972, %v3734
      %3767 = vst.msk [vmem:[#allocation3 + $0x38] sm:$0xff] %vm972, %v3735
      %3768 = vst.msk [vmem:[#allocation3 + $0x40] sm:$0xff] %vm972, %v3736
      %3769 = vst.msk [vmem:[#allocation3 + $0x48] sm:$0xff] %vm972, %v3737
      %3770 = vst.msk [vmem:[#allocation3 + $0x50] sm:$0xff] %vm972, %v3738
      %3771 = vst.msk [vmem:[#allocation3 + $0x58] sm:$0xff] %vm972, %v3739
      %3772 = vst.msk [vmem:[#allocation3 + $0x60] sm:$0xff] %vm972, %v3740
      %3773 = vst.msk [vmem:[#allocation3 + $0x68] sm:$0xff] %vm972, %v3741
      %3774 = vst.msk [vmem:[#allocation3 + $0x70] sm:$0xff] %vm972, %v3742
      %3775 = vst.msk [vmem:[#allocation3 + $0x78] sm:$0xff] %vm972, %v3743
      %3776 = vst.msk [vmem:[#allocation3 + $0x80] sm:$0xff] %vm972, %v3744
      %3777 = vst.msk [vmem:[#allocation3 + $0x88] sm:$0xff] %vm972, %v3745
      %3778 = vst.msk [vmem:[#allocation3 + $0x90] sm:$0xff] %vm972, %v3746
      %3779 = vst.msk [vmem:[#allocation3 + $0x98] sm:$0xff] %vm972, %v3747
      %3780 = vst.msk [vmem:[#allocation3 + $0xa0] sm:$0xff] %vm972, %v3748
      %3781 = vst.msk [vmem:[#allocation3 + $0xa8] sm:$0xff] %vm972, %v3749
      %3782 = vst.msk [vmem:[#allocation3 + $0xb0] sm:$0xff] %vm972, %v3750
      %3783 = vst.msk [vmem:[#allocation3 + $0xb8] sm:$0xff] %vm972, %v3751
      %3784 = vst.msk [vmem:[#allocation3 + $0xc0] sm:$0xff] %vm972, %v3752
      %3785 = vst.msk [vmem:[#allocation3 + $0xc8] sm:$0xff] %vm972, %v3753
      %3786 = vst.msk [vmem:[#allocation3 + $0xd0] sm:$0xff] %vm972, %v3754
      %3787 = vst.msk [vmem:[#allocation3 + $0xd8] sm:$0xff] %vm972, %v3755
      %3788 = vst.msk [vmem:[#allocation3 + $0xe0] sm:$0xff] %vm972, %v3756
      %3789 = vst.msk [vmem:[#allocation3 + $0xe8] sm:$0xff] %vm972, %v3757
      %3790 = vst.msk [vmem:[#allocation3 + $0xf0] sm:$0xff] %vm972, %v3758
      %3791 = vst.msk [vmem:[#allocation3 + $0xf8] sm:$0xff] %vm972, %v3759
      %v3792 = vld [vmem:[%s289] sm:$0xe]
      %v3793 = vld [vmem:[%s289 + $0x4] sm:$0xf]
      %v3794 = vld [vmem:[%s289 + $0x8] sm:$0x1]
      %v3795 = vld [vmem:[%s289 + $0xc] sm:$0xe]
      %v3796 = vld [vmem:[%s289 + $0x10] sm:$0xf]
      %v3797 = vld [vmem:[%s289 + $0x14] sm:$0x1]
      %v3798 = vld [vmem:[%s289 + $0x18] sm:$0xe]
      %v3799 = vld [vmem:[%s289 + $0x1c] sm:$0xf]
      %v3800 = vld [vmem:[%s289 + $0x20] sm:$0x1]
      %v3801 = vld [vmem:[%s289 + $0x24] sm:$0xe]
      %v3802 = vld [vmem:[%s289 + $0x28] sm:$0xf]
      %v3803 = vld [vmem:[%s289 + $0x2c] sm:$0x1]
      %v3804 = vld [vmem:[%s289 + $0x30] sm:$0xe]
      %v3805 = vld [vmem:[%s289 + $0x34] sm:$0xf]
      %v3806 = vld [vmem:[%s289 + $0x38] sm:$0x1]
      %v3807 = vld [vmem:[%s289 + $0x3c] sm:$0xe]
      %v3808 = vld [vmem:[%s289 + $0x40] sm:$0xf]
      %v3809 = vld [vmem:[%s289 + $0x44] sm:$0x1]
      %v3810 = vld [vmem:[%s289 + $0x48] sm:$0xe]
      %v3811 = vld [vmem:[%s289 + $0x4c] sm:$0xf]
      %v3812 = vld [vmem:[%s289 + $0x50] sm:$0x1]
      %v3813 = vld [vmem:[%s289 + $0x54] sm:$0xe]
      %v3814 = vld [vmem:[%s289 + $0x58] sm:$0xf]
      %v3815 = vld [vmem:[%s289 + $0x5c] sm:$0x1]
      %v3816 = vld [vmem:[%s289 + $0x60] sm:$0xe]
      %v3817 = vld [vmem:[%s289 + $0x64] sm:$0xf]
      %v3818 = vld [vmem:[%s289 + $0x68] sm:$0x1]
      %v3819 = vld [vmem:[%s289 + $0x6c] sm:$0xe]
      %v3820 = vld [vmem:[%s289 + $0x70] sm:$0xf]
      %v3821 = vld [vmem:[%s289 + $0x74] sm:$0x1]
      %v3822 = vld [vmem:[%s289 + $0x78] sm:$0xe]
      %v3823 = vld [vmem:[%s289 + $0x7c] sm:$0xf]
      %v3824 = vld [vmem:[%s289 + $0x80] sm:$0x1]
      %v3825 = vld [vmem:[%s289 + $0x84] sm:$0xe]
      %v3826 = vld [vmem:[%s289 + $0x88] sm:$0xf]
      %v3827 = vld [vmem:[%s289 + $0x8c] sm:$0x1]
      %v3828 = vld [vmem:[%s289 + $0x90] sm:$0xe]
      %v3829 = vld [vmem:[%s289 + $0x94] sm:$0xf]
      %v3830 = vld [vmem:[%s289 + $0x98] sm:$0x1]
      %v3831 = vld [vmem:[%s289 + $0x9c] sm:$0xe]
      %v3832 = vld [vmem:[%s289 + $0xa0] sm:$0xf]
      %v3833 = vld [vmem:[%s289 + $0xa4] sm:$0x1]
      %v3834 = vld [vmem:[%s289 + $0xa8] sm:$0xe]
      %v3835 = vld [vmem:[%s289 + $0xac] sm:$0xf]
      %v3836 = vld [vmem:[%s289 + $0xb0] sm:$0x1]
      %v3837 = vld [vmem:[%s289 + $0xb4] sm:$0xe]
      %v3838 = vld [vmem:[%s289 + $0xb8] sm:$0xf]
      %v3839 = vld [vmem:[%s289 + $0xbc] sm:$0x1]
      %v3888 = vrot.slane %v3792, 5
      %v3889 = vrot.slane %v3888, 4
      %v3890 = vrot.slane %v3793, 5
      %v3891 = vsel %vm2109, %v3889, %v3890
      %v3892 = vrot.slane %v3890, 4
      %v3893 = vrot.slane %v3794, 5
      %v3894 = vsel %vm2109, %v3892, %v3893
      %v3895 = vrot.slane %v3795, 5
      %v3896 = vrot.slane %v3895, 4
      %v3897 = vrot.slane %v3796, 5
      %v3898 = vsel %vm2109, %v3896, %v3897
      %v3899 = vrot.slane %v3897, 4
      %v3900 = vrot.slane %v3797, 5
      %v3901 = vsel %vm2109, %v3899, %v3900
      %v3902 = vrot.slane %v3798, 5
      %v3903 = vrot.slane %v3902, 4
      %v3904 = vrot.slane %v3799, 5
      %v3905 = vsel %vm2109, %v3903, %v3904
      %v3906 = vrot.slane %v3904, 4
      %v3907 = vrot.slane %v3800, 5
      %v3908 = vsel %vm2109, %v3906, %v3907
      %v3909 = vrot.slane %v3801, 5
      %v3910 = vrot.slane %v3909, 4
      %v3911 = vrot.slane %v3802, 5
      %v3912 = vsel %vm2109, %v3910, %v3911
      %v3913 = vrot.slane %v3911, 4
      %v3914 = vrot.slane %v3803, 5
      %v3915 = vsel %vm2109, %v3913, %v3914
      %v3916 = vrot.slane %v3804, 5
      %v3917 = vrot.slane %v3916, 4
      %v3918 = vrot.slane %v3805, 5
      %v3919 = vsel %vm2109, %v3917, %v3918
      %v3920 = vrot.slane %v3918, 4
      %v3921 = vrot.slane %v3806, 5
      %v3922 = vsel %vm2109, %v3920, %v3921
      %v3923 = vrot.slane %v3807, 5
      %v3924 = vrot.slane %v3923, 4
      %v3925 = vrot.slane %v3808, 5
      %v3926 = vsel %vm2109, %v3924, %v3925
      %v3927 = vrot.slane %v3925, 4
      %v3928 = vrot.slane %v3809, 5
      %v3929 = vsel %vm2109, %v3927, %v3928
      %v3930 = vrot.slane %v3810, 5
      %v3931 = vrot.slane %v3930, 4
      %v3932 = vrot.slane %v3811, 5
      %v3933 = vsel %vm2109, %v3931, %v3932
      %v3934 = vrot.slane %v3932, 4
      %v3935 = vrot.slane %v3812, 5
      %v3936 = vsel %vm2109, %v3934, %v3935
      %v3937 = vrot.slane %v3813, 5
      %v3938 = vrot.slane %v3937, 4
      %v3939 = vrot.slane %v3814, 5
      %v3940 = vsel %vm2109, %v3938, %v3939
      %v3941 = vrot.slane %v3939, 4
      %v3942 = vrot.slane %v3815, 5
      %v3943 = vsel %vm2109, %v3941, %v3942
      %v3944 = vrot.slane %v3816, 5
      %v3945 = vrot.slane %v3944, 4
      %v3946 = vrot.slane %v3817, 5
      %v3947 = vsel %vm2109, %v3945, %v3946
      %v3948 = vrot.slane %v3946, 4
      %v3949 = vrot.slane %v3818, 5
      %v3950 = vsel %vm2109, %v3948, %v3949
      %v3951 = vrot.slane %v3819, 5
      %v3952 = vrot.slane %v3951, 4
      %v3953 = vrot.slane %v3820, 5
      %v3954 = vsel %vm2109, %v3952, %v3953
      %v3955 = vrot.slane %v3953, 4
      %v3956 = vrot.slane %v3821, 5
      %v3957 = vsel %vm2109, %v3955, %v3956
      %v3958 = vrot.slane %v3822, 5
      %v3959 = vrot.slane %v3958, 4
      %v3960 = vrot.slane %v3823, 5
      %v3961 = vsel %vm2109, %v3959, %v3960
      %v3962 = vrot.slane %v3960, 4
      %v3963 = vrot.slane %v3824, 5
      %v3964 = vsel %vm2109, %v3962, %v3963
      %v3965 = vrot.slane %v3825, 5
      %v3966 = vrot.slane %v3965, 4
      %v3967 = vrot.slane %v3826, 5
      %v3968 = vsel %vm2109, %v3966, %v3967
      %v3969 = vrot.slane %v3967, 4
      %v3970 = vrot.slane %v3827, 5
      %v3971 = vsel %vm2109, %v3969, %v3970
      %v3972 = vrot.slane %v3828, 5
      %v3973 = vrot.slane %v3972, 4
      %v3974 = vrot.slane %v3829, 5
      %v3975 = vsel %vm2109, %v3973, %v3974
      %v3976 = vrot.slane %v3974, 4
      %v3977 = vrot.slane %v3830, 5
      %v3978 = vsel %vm2109, %v3976, %v3977
      %v3979 = vrot.slane %v3831, 5
      %v3980 = vrot.slane %v3979, 4
      %v3981 = vrot.slane %v3832, 5
      %v3982 = vsel %vm2109, %v3980, %v3981
      %v3983 = vrot.slane %v3981, 4
      %v3984 = vrot.slane %v3833, 5
      %v3985 = vsel %vm2109, %v3983, %v3984
      %v3986 = vrot.slane %v3834, 5
      %v3987 = vrot.slane %v3986, 4
      %v3988 = vrot.slane %v3835, 5
      %v3989 = vsel %vm2109, %v3987, %v3988
      %v3990 = vrot.slane %v3988, 4
      %v3991 = vrot.slane %v3836, 5
      %v3992 = vsel %vm2109, %v3990, %v3991
      %v3993 = vrot.slane %v3837, 5
      %v3994 = vrot.slane %v3993, 4
      %v3995 = vrot.slane %v3838, 5
      %v3996 = vsel %vm2109, %v3994, %v3995
      %v3997 = vrot.slane %v3995, 4
      %v3998 = vrot.slane %v3839, 5
      %v3999 = vsel %vm2109, %v3997, %v3998
      %s4000 = scalar_lea.vmem %s1, 10
      %v4001 = vld [vmem:[%s4000] sm:$0x3]
      %v4002 = vunpack.c.l.b16 %v3891
      %v4003 = vunpack.c.l.b16 %v3894
      %v4004 = vunpack.c.l.b16 %v3898
      %v4005 = vunpack.c.l.b16 %v3901
      %v4006 = vunpack.c.l.b16 %v3905
      %v4007 = vunpack.c.l.b16 %v3908
      %v4008 = vunpack.c.l.b16 %v3912
      %v4009 = vunpack.c.l.b16 %v3915
      %v4010 = vunpack.c.l.b16 %v3919
      %v4011 = vunpack.c.l.b16 %v3922
      %v4012 = vunpack.c.l.b16 %v3926
      %v4013 = vunpack.c.l.b16 %v3929
      %v4014 = vunpack.c.l.b16 %v3933
      %v4015 = vunpack.c.l.b16 %v3936
      %v4016 = vunpack.c.l.b16 %v3940
      %v4017 = vunpack.c.l.b16 %v3943
      %v4018 = vunpack.c.l.b16 %v3947
      %v4019 = vunpack.c.l.b16 %v3950
      %v4020 = vunpack.c.l.b16 %v3954
      %v4021 = vunpack.c.l.b16 %v3957
      %v4022 = vunpack.c.l.b16 %v3961
      %v4023 = vunpack.c.l.b16 %v3964
      %v4024 = vunpack.c.l.b16 %v3968
      %v4025 = vunpack.c.l.b16 %v3971
      %v4026 = vunpack.c.l.b16 %v3975
      %v4027 = vunpack.c.l.b16 %v3978
      %v4028 = vunpack.c.l.b16 %v3982
      %v4029 = vunpack.c.l.b16 %v3985
      %v4030 = vunpack.c.l.b16 %v3989
      %v4031 = vunpack.c.l.b16 %v3992
      %v4032 = vunpack.c.l.b16 %v3996
      %v4033 = vunpack.c.l.b16 %v3999
      %v4034 = vpack.c.b16 %v4003, %v4002
      %v4035 = vpack.c.b16 %v4005, %v4004
      %v4036 = vpack.c.b16 %v4007, %v4006
      %v4037 = vpack.c.b16 %v4009, %v4008
      %v4038 = vpack.c.b16 %v4011, %v4010
      %v4039 = vpack.c.b16 %v4013, %v4012
      %v4040 = vpack.c.b16 %v4015, %v4014
      %v4041 = vpack.c.b16 %v4017, %v4016
      %v4042 = vpack.c.b16 %v4019, %v4018
      %v4043 = vpack.c.b16 %v4021, %v4020
      %v4044 = vpack.c.b16 %v4023, %v4022
      %v4045 = vpack.c.b16 %v4025, %v4024
      %v4046 = vpack.c.b16 %v4027, %v4026
      %v4047 = vpack.c.b16 %v4029, %v4028
      %v4048 = vpack.c.b16 %v4031, %v4030
      %v4049 = vpack.c.b16 %v4033, %v4032
      %v4051 = vsel %vm972, %v4034, 0
      %v4054 = vsel %vm972, %v4035, 0
      %v4057 = vsel %vm972, %v4036, 0
      %v4060 = vsel %vm972, %v4037, 0
      %v4063 = vsel %vm972, %v4038, 0
      %v4066 = vsel %vm972, %v4039, 0
      %v4069 = vsel %vm972, %v4040, 0
      %v4072 = vsel %vm972, %v4041, 0
      %v4075 = vsel %vm972, %v4042, 0
      %v4078 = vsel %vm972, %v4043, 0
      %v4081 = vsel %vm972, %v4044, 0
      %v4084 = vsel %vm972, %v4045, 0
      %v4087 = vsel %vm972, %v4046, 0
      %v4090 = vsel %vm972, %v4047, 0
      %v4093 = vsel %vm972, %v4048, 0
      %v4096 = vsel %vm972, %v4049, 0
      %v4099 = vsel %vm1021, %v4001, 0
      %4101 = vmatprep.subr.bf16.mxu0 0
      %4102 = vmatpush1.bf16.msra.mxu0 0
      %4103 = vmatprep.subr.bf16.mxu0 0
      %4104 = vmatpush1.bf16.msra.mxu0 0
      %4105 = vmatprep.subr.bf16.mxu0 0
      %4106 = vmatpush1.bf16.msra.mxu0 0
      %4107 = vmatprep.subr.bf16.mxu0 0
      %4108 = vmatpush1.bf16.msra.mxu0 0
      %4109 = vmatprep.subr.bf16.mxu0 0
      %4110 = vmatpush1.bf16.msra.mxu0 0
      %4111 = vmatprep.subr.bf16.mxu0 0
      %4112 = vmatpush1.bf16.msra.mxu0 0
      %4113 = vmatprep.subr.bf16.mxu0 0
      %4114 = vmatpush1.bf16.msra.mxu0 0
      %4115 = vmatprep.subr.bf16.mxu0 0
      %4116 = vmatpush1.bf16.msra.mxu0 %v4099
      %4117 = vmatprep.subr.bf16.mxu0 0
      %4118 = vmatpush2.bf16.msra.mxu0 0
      %4119 = vmatprep.subr.bf16.mxu0 0
      %4120 = vmatpush2.bf16.msra.mxu0 0
      %4121 = vmatprep.subr.bf16.mxu0 0
      %4122 = vmatpush2.bf16.msra.mxu0 0
      %4123 = vmatprep.subr.bf16.mxu0 0
      %4124 = vmatpush2.bf16.msra.mxu0 0
      %4125 = vmatprep.subr.bf16.mxu0 0
      %4126 = vmatpush2.bf16.msra.mxu0 0
      %4127 = vmatprep.subr.bf16.mxu0 0
      %4128 = vmatpush2.bf16.msra.mxu0 0
      %4129 = vmatprep.subr.bf16.mxu0 0
      %4130 = vmatpush2.bf16.msra.mxu0 0
      %4131 = vmatprep.subr.bf16.mxu0 0
      %4132 = vmatpush2.bf16.msra.mxu0 0
      %4133 = vmatprep.mubr.bf16.mxu0 0
      %4134 = vmatmul.mubr.bf16.gmra.mxu0 %v4051
      %v4135 = vpop.f32.mrf.mxu0
      %v4136 = vadd.f32 0.0, %v4135
      %v4137 = vpop.f32.mrf.mxu0
      %v4138 = vpop.f32.mrf.mxu0
      %v4139 = vadd.f32 0.0, %v4138
      %v4140 = vpop.f32.mrf.mxu0
      %4141 = vmatprep.mubr.bf16.mxu0 0
      %4142 = vmatmul.mubr.bf16.gmra.mxu0 %v4054
      %v4143 = vpop.f32.mrf.mxu0
      %v4144 = vadd.f32 0.0, %v4143
      %v4145 = vpop.f32.mrf.mxu0
      %v4146 = vpop.f32.mrf.mxu0
      %v4147 = vadd.f32 0.0, %v4146
      %v4148 = vpop.f32.mrf.mxu0
      %4149 = vmatprep.mubr.bf16.mxu0 0
      %4150 = vmatmul.mubr.bf16.gmra.mxu0 %v4057
      %v4151 = vpop.f32.mrf.mxu0
      %v4152 = vadd.f32 0.0, %v4151
      %v4153 = vpop.f32.mrf.mxu0
      %v4154 = vpop.f32.mrf.mxu0
      %v4155 = vadd.f32 0.0, %v4154
      %v4156 = vpop.f32.mrf.mxu0
      %4157 = vmatprep.mubr.bf16.mxu0 0
      %4158 = vmatmul.mubr.bf16.gmra.mxu0 %v4060
      %v4159 = vpop.f32.mrf.mxu0
      %v4160 = vadd.f32 0.0, %v4159
      %v4161 = vpop.f32.mrf.mxu0
      %v4162 = vpop.f32.mrf.mxu0
      %v4163 = vadd.f32 0.0, %v4162
      %v4164 = vpop.f32.mrf.mxu0
      %4165 = vmatprep.mubr.bf16.mxu0 0
      %4166 = vmatmul.mubr.bf16.gmra.mxu0 %v4063
      %v4167 = vpop.f32.mrf.mxu0
      %v4168 = vadd.f32 0.0, %v4167
      %v4169 = vpop.f32.mrf.mxu0
      %v4170 = vpop.f32.mrf.mxu0
      %v4171 = vadd.f32 0.0, %v4170
      %v4172 = vpop.f32.mrf.mxu0
      %4173 = vmatprep.mubr.bf16.mxu0 0
      %4174 = vmatmul.mubr.bf16.gmra.mxu0 %v4066
      %v4175 = vpop.f32.mrf.mxu0
      %v4176 = vadd.f32 0.0, %v4175
      %v4177 = vpop.f32.mrf.mxu0
      %v4178 = vpop.f32.mrf.mxu0
      %v4179 = vadd.f32 0.0, %v4178
      %v4180 = vpop.f32.mrf.mxu0
      %4181 = vmatprep.mubr.bf16.mxu0 0
      %4182 = vmatmul.mubr.bf16.gmra.mxu0 %v4069
      %v4183 = vpop.f32.mrf.mxu0
      %v4184 = vadd.f32 0.0, %v4183
      %v4185 = vpop.f32.mrf.mxu0
      %v4186 = vpop.f32.mrf.mxu0
      %v4187 = vadd.f32 0.0, %v4186
      %v4188 = vpop.f32.mrf.mxu0
      %4189 = vmatprep.mubr.bf16.mxu0 0
      %4190 = vmatmul.mubr.bf16.gmra.mxu0 %v4072
      %v4191 = vpop.f32.mrf.mxu0
      %v4192 = vadd.f32 0.0, %v4191
      %v4193 = vpop.f32.mrf.mxu0
      %v4194 = vpop.f32.mrf.mxu0
      %v4195 = vadd.f32 0.0, %v4194
      %v4196 = vpop.f32.mrf.mxu0
      %4197 = vmatprep.mubr.bf16.mxu0 0
      %4198 = vmatmul.mubr.bf16.gmra.mxu0 %v4075
      %v4199 = vpop.f32.mrf.mxu0
      %v4200 = vadd.f32 0.0, %v4199
      %v4201 = vpop.f32.mrf.mxu0
      %v4202 = vpop.f32.mrf.mxu0
      %v4203 = vadd.f32 0.0, %v4202
      %v4204 = vpop.f32.mrf.mxu0
      %4205 = vmatprep.mubr.bf16.mxu0 0
      %4206 = vmatmul.mubr.bf16.gmra.mxu0 %v4078
      %v4207 = vpop.f32.mrf.mxu0
      %v4208 = vadd.f32 0.0, %v4207
      %v4209 = vpop.f32.mrf.mxu0
      %v4210 = vpop.f32.mrf.mxu0
      %v4211 = vadd.f32 0.0, %v4210
      %v4212 = vpop.f32.mrf.mxu0
      %4213 = vmatprep.mubr.bf16.mxu0 0
      %4214 = vmatmul.mubr.bf16.gmra.mxu0 %v4081
      %v4215 = vpop.f32.mrf.mxu0
      %v4216 = vadd.f32 0.0, %v4215
      %v4217 = vpop.f32.mrf.mxu0
      %v4218 = vpop.f32.mrf.mxu0
      %v4219 = vadd.f32 0.0, %v4218
      %v4220 = vpop.f32.mrf.mxu0
      %4221 = vmatprep.mubr.bf16.mxu0 0
      %4222 = vmatmul.mubr.bf16.gmra.mxu0 %v4084
      %v4223 = vpop.f32.mrf.mxu0
      %v4224 = vadd.f32 0.0, %v4223
      %v4225 = vpop.f32.mrf.mxu0
      %v4226 = vpop.f32.mrf.mxu0
      %v4227 = vadd.f32 0.0, %v4226
      %v4228 = vpop.f32.mrf.mxu0
      %4229 = vmatprep.mubr.bf16.mxu0 0
      %4230 = vmatmul.mubr.bf16.gmra.mxu0 %v4087
      %v4231 = vpop.f32.mrf.mxu0
      %v4232 = vadd.f32 0.0, %v4231
      %v4233 = vpop.f32.mrf.mxu0
      %v4234 = vpop.f32.mrf.mxu0
      %v4235 = vadd.f32 0.0, %v4234
      %v4236 = vpop.f32.mrf.mxu0
      %4237 = vmatprep.mubr.bf16.mxu0 0
      %4238 = vmatmul.mubr.bf16.gmra.mxu0 %v4090
      %v4239 = vpop.f32.mrf.mxu0
      %v4240 = vadd.f32 0.0, %v4239
      %v4241 = vpop.f32.mrf.mxu0
      %v4242 = vpop.f32.mrf.mxu0
      %v4243 = vadd.f32 0.0, %v4242
      %v4244 = vpop.f32.mrf.mxu0
      %4245 = vmatprep.mubr.bf16.mxu0 0
      %4246 = vmatmul.mubr.bf16.gmra.mxu0 %v4093
      %v4247 = vpop.f32.mrf.mxu0
      %v4248 = vadd.f32 0.0, %v4247
      %v4249 = vpop.f32.mrf.mxu0
      %v4250 = vpop.f32.mrf.mxu0
      %v4251 = vadd.f32 0.0, %v4250
      %v4252 = vpop.f32.mrf.mxu0
      %4253 = vmatprep.mubr.bf16.mxu0 0
      %4254 = vmatmul.mubr.bf16.gmra.mxu0 %v4096
      %v4255 = vpop.f32.mrf.mxu0
      %v4256 = vadd.f32 0.0, %v4255
      %v4257 = vpop.f32.mrf.mxu0
      %v4258 = vpop.f32.mrf.mxu0
      %v4259 = vadd.f32 0.0, %v4258
      %v4260 = vpop.f32.mrf.mxu0
      %4261 = vdwg.mxu0
      %v4262 = vld [vmem:[#allocation3] sm:$0xff]
      %v4263 = vld [vmem:[#allocation3 + $0x8] sm:$0xff]
      %v4264 = vld [vmem:[#allocation3 + $0x10] sm:$0xff]
      %v4265 = vld [vmem:[#allocation3 + $0x18] sm:$0xff]
      %v4266 = vld [vmem:[#allocation3 + $0x20] sm:$0xff]
      %v4267 = vld [vmem:[#allocation3 + $0x28] sm:$0xff]
      %v4268 = vld [vmem:[#allocation3 + $0x30] sm:$0xff]
      %v4269 = vld [vmem:[#allocation3 + $0x38] sm:$0xff]
      %v4270 = vld [vmem:[#allocation3 + $0x40] sm:$0xff]
      %v4271 = vld [vmem:[#allocation3 + $0x48] sm:$0xff]
      %v4272 = vld [vmem:[#allocation3 + $0x50] sm:$0xff]
      %v4273 = vld [vmem:[#allocation3 + $0x58] sm:$0xff]
      %v4274 = vld [vmem:[#allocation3 + $0x60] sm:$0xff]
      %v4275 = vld [vmem:[#allocation3 + $0x68] sm:$0xff]
      %v4276 = vld [vmem:[#allocation3 + $0x70] sm:$0xff]
      %v4277 = vld [vmem:[#allocation3 + $0x78] sm:$0xff]
      %v4278 = vld [vmem:[#allocation3 + $0x80] sm:$0xff]
      %v4279 = vld [vmem:[#allocation3 + $0x88] sm:$0xff]
      %v4280 = vld [vmem:[#allocation3 + $0x90] sm:$0xff]
      %v4281 = vld [vmem:[#allocation3 + $0x98] sm:$0xff]
      %v4282 = vld [vmem:[#allocation3 + $0xa0] sm:$0xff]
      %v4283 = vld [vmem:[#allocation3 + $0xa8] sm:$0xff]
      %v4284 = vld [vmem:[#allocation3 + $0xb0] sm:$0xff]
      %v4285 = vld [vmem:[#allocation3 + $0xb8] sm:$0xff]
      %v4286 = vld [vmem:[#allocation3 + $0xc0] sm:$0xff]
      %v4287 = vld [vmem:[#allocation3 + $0xc8] sm:$0xff]
      %v4288 = vld [vmem:[#allocation3 + $0xd0] sm:$0xff]
      %v4289 = vld [vmem:[#allocation3 + $0xd8] sm:$0xff]
      %v4290 = vld [vmem:[#allocation3 + $0xe0] sm:$0xff]
      %v4291 = vld [vmem:[#allocation3 + $0xe8] sm:$0xff]
      %v4292 = vld [vmem:[#allocation3 + $0xf0] sm:$0xff]
      %v4293 = vld [vmem:[#allocation3 + $0xf8] sm:$0xff]
      %v4294 = vadd.f32 %v4262, %v4136
      %v4295 = vadd.f32 %v4263, %v4139
      %v4296 = vadd.f32 %v4264, %v4144
      %v4297 = vadd.f32 %v4265, %v4147
      %v4298 = vadd.f32 %v4266, %v4152
      %v4299 = vadd.f32 %v4267, %v4155
      %v4300 = vadd.f32 %v4268, %v4160
      %v4301 = vadd.f32 %v4269, %v4163
      %v4302 = vadd.f32 %v4270, %v4168
      %v4303 = vadd.f32 %v4271, %v4171
      %v4304 = vadd.f32 %v4272, %v4176
      %v4305 = vadd.f32 %v4273, %v4179
      %v4306 = vadd.f32 %v4274, %v4184
      %v4307 = vadd.f32 %v4275, %v4187
      %v4308 = vadd.f32 %v4276, %v4192
      %v4309 = vadd.f32 %v4277, %v4195
      %v4310 = vadd.f32 %v4278, %v4200
      %v4311 = vadd.f32 %v4279, %v4203
      %v4312 = vadd.f32 %v4280, %v4208
      %v4313 = vadd.f32 %v4281, %v4211
      %v4314 = vadd.f32 %v4282, %v4216
      %v4315 = vadd.f32 %v4283, %v4219
      %v4316 = vadd.f32 %v4284, %v4224
      %v4317 = vadd.f32 %v4285, %v4227
      %v4318 = vadd.f32 %v4286, %v4232
      %v4319 = vadd.f32 %v4287, %v4235
      %v4320 = vadd.f32 %v4288, %v4240
      %v4321 = vadd.f32 %v4289, %v4243
      %v4322 = vadd.f32 %v4290, %v4248
      %v4323 = vadd.f32 %v4291, %v4251
      %v4324 = vadd.f32 %v4292, %v4256
      %v4325 = vadd.f32 %v4293, %v4259
      %4326 = vst.msk [vmem:[#allocation3] sm:$0xff] %vm972, %v4294
      %4327 = vst.msk [vmem:[#allocation3 + $0x8] sm:$0xff] %vm972, %v4295
      %4328 = vst.msk [vmem:[#allocation3 + $0x10] sm:$0xff] %vm972, %v4296
      %4329 = vst.msk [vmem:[#allocation3 + $0x18] sm:$0xff] %vm972, %v4297
      %4330 = vst.msk [vmem:[#allocation3 + $0x20] sm:$0xff] %vm972, %v4298
      %4331 = vst.msk [vmem:[#allocation3 + $0x28] sm:$0xff] %vm972, %v4299
      %4332 = vst.msk [vmem:[#allocation3 + $0x30] sm:$0xff] %vm972, %v4300
      %4333 = vst.msk [vmem:[#allocation3 + $0x38] sm:$0xff] %vm972, %v4301
      %4334 = vst.msk [vmem:[#allocation3 + $0x40] sm:$0xff] %vm972, %v4302
      %4335 = vst.msk [vmem:[#allocation3 + $0x48] sm:$0xff] %vm972, %v4303
      %4336 = vst.msk [vmem:[#allocation3 + $0x50] sm:$0xff] %vm972, %v4304
      %4337 = vst.msk [vmem:[#allocation3 + $0x58] sm:$0xff] %vm972, %v4305
      %4338 = vst.msk [vmem:[#allocation3 + $0x60] sm:$0xff] %vm972, %v4306
      %4339 = vst.msk [vmem:[#allocation3 + $0x68] sm:$0xff] %vm972, %v4307
      %4340 = vst.msk [vmem:[#allocation3 + $0x70] sm:$0xff] %vm972, %v4308
      %4341 = vst.msk [vmem:[#allocation3 + $0x78] sm:$0xff] %vm972, %v4309
      %4342 = vst.msk [vmem:[#allocation3 + $0x80] sm:$0xff] %vm972, %v4310
      %4343 = vst.msk [vmem:[#allocation3 + $0x88] sm:$0xff] %vm972, %v4311
      %4344 = vst.msk [vmem:[#allocation3 + $0x90] sm:$0xff] %vm972, %v4312
      %4345 = vst.msk [vmem:[#allocation3 + $0x98] sm:$0xff] %vm972, %v4313
      %4346 = vst.msk [vmem:[#allocation3 + $0xa0] sm:$0xff] %vm972, %v4314
      %4347 = vst.msk [vmem:[#allocation3 + $0xa8] sm:$0xff] %vm972, %v4315
      %4348 = vst.msk [vmem:[#allocation3 + $0xb0] sm:$0xff] %vm972, %v4316
      %4349 = vst.msk [vmem:[#allocation3 + $0xb8] sm:$0xff] %vm972, %v4317
      %4350 = vst.msk [vmem:[#allocation3 + $0xc0] sm:$0xff] %vm972, %v4318
      %4351 = vst.msk [vmem:[#allocation3 + $0xc8] sm:$0xff] %vm972, %v4319
      %4352 = vst.msk [vmem:[#allocation3 + $0xd0] sm:$0xff] %vm972, %v4320
      %4353 = vst.msk [vmem:[#allocation3 + $0xd8] sm:$0xff] %vm972, %v4321
      %4354 = vst.msk [vmem:[#allocation3 + $0xe0] sm:$0xff] %vm972, %v4322
      %4355 = vst.msk [vmem:[#allocation3 + $0xe8] sm:$0xff] %vm972, %v4323
      %4356 = vst.msk [vmem:[#allocation3 + $0xf0] sm:$0xff] %vm972, %v4324
      %4357 = vst.msk [vmem:[#allocation3 + $0xf8] sm:$0xff] %vm972, %v4325
      %s4358 = scalar_lea.vmem [#allocation2], 24
      %v4359 = vld [vmem:[%s4358] sm:$0xf]
      %v4360 = vld [vmem:[%s4358 + $0x4] sm:$0xf]
      %v4361 = vld [vmem:[%s4358 + $0xc] sm:$0xf]
      %v4362 = vld [vmem:[%s4358 + $0x10] sm:$0xf]
      %v4363 = vld [vmem:[%s4358 + $0x18] sm:$0xf]
      %v4364 = vld [vmem:[%s4358 + $0x1c] sm:$0xf]
      %v4365 = vld [vmem:[%s4358 + $0x24] sm:$0xf]
      %v4366 = vld [vmem:[%s4358 + $0x28] sm:$0xf]
      %v4367 = vld [vmem:[%s4358 + $0x30] sm:$0xf]
      %v4368 = vld [vmem:[%s4358 + $0x34] sm:$0xf]
      %v4369 = vld [vmem:[%s4358 + $0x3c] sm:$0xf]
      %v4370 = vld [vmem:[%s4358 + $0x40] sm:$0xf]
      %v4371 = vld [vmem:[%s4358 + $0x48] sm:$0xf]
      %v4372 = vld [vmem:[%s4358 + $0x4c] sm:$0xf]
      %v4373 = vld [vmem:[%s4358 + $0x54] sm:$0xf]
      %v4374 = vld [vmem:[%s4358 + $0x58] sm:$0xf]
      %v4375 = vld [vmem:[%s4358 + $0x60] sm:$0xf]
      %v4376 = vld [vmem:[%s4358 + $0x64] sm:$0xf]
      %v4377 = vld [vmem:[%s4358 + $0x6c] sm:$0xf]
      %v4378 = vld [vmem:[%s4358 + $0x70] sm:$0xf]
      %v4379 = vld [vmem:[%s4358 + $0x78] sm:$0xf]
      %v4380 = vld [vmem:[%s4358 + $0x7c] sm:$0xf]
      %v4381 = vld [vmem:[%s4358 + $0x84] sm:$0xf]
      %v4382 = vld [vmem:[%s4358 + $0x88] sm:$0xf]
      %v4383 = vld [vmem:[%s4358 + $0x90] sm:$0xf]
      %v4384 = vld [vmem:[%s4358 + $0x94] sm:$0xf]
      %v4385 = vld [vmem:[%s4358 + $0x9c] sm:$0xf]
      %v4386 = vld [vmem:[%s4358 + $0xa0] sm:$0xf]
      %v4387 = vld [vmem:[%s4358 + $0xa8] sm:$0xf]
      %v4388 = vld [vmem:[%s4358 + $0xac] sm:$0xf]
      %v4389 = vld [vmem:[%s4358 + $0xb4] sm:$0xf]
      %v4390 = vld [vmem:[%s4358 + $0xb8] sm:$0xf]
      %s4391 = scalar_lea.vmem %s1, 12
      %v4392 = vld [vmem:[%s4391] sm:$0x3]
      %v4425 = vunpack.c.l.b16 %v4359
      %v4426 = vunpack.c.l.b16 %v4360
      %v4427 = vunpack.c.l.b16 %v4361
      %v4428 = vunpack.c.l.b16 %v4362
      %v4429 = vunpack.c.l.b16 %v4363
      %v4430 = vunpack.c.l.b16 %v4364
      %v4431 = vunpack.c.l.b16 %v4365
      %v4432 = vunpack.c.l.b16 %v4366
      %v4433 = vunpack.c.l.b16 %v4367
      %v4434 = vunpack.c.l.b16 %v4368
      %v4435 = vunpack.c.l.b16 %v4369
      %v4436 = vunpack.c.l.b16 %v4370
      %v4437 = vunpack.c.l.b16 %v4371
      %v4438 = vunpack.c.l.b16 %v4372
      %v4439 = vunpack.c.l.b16 %v4373
      %v4440 = vunpack.c.l.b16 %v4374
      %v4441 = vunpack.c.l.b16 %v4375
      %v4442 = vunpack.c.l.b16 %v4376
      %v4443 = vunpack.c.l.b16 %v4377
      %v4444 = vunpack.c.l.b16 %v4378
      %v4445 = vunpack.c.l.b16 %v4379
      %v4446 = vunpack.c.l.b16 %v4380
      %v4447 = vunpack.c.l.b16 %v4381
      %v4448 = vunpack.c.l.b16 %v4382
      %v4449 = vunpack.c.l.b16 %v4383
      %v4450 = vunpack.c.l.b16 %v4384
      %v4451 = vunpack.c.l.b16 %v4385
      %v4452 = vunpack.c.l.b16 %v4386
      %v4453 = vunpack.c.l.b16 %v4387
      %v4454 = vunpack.c.l.b16 %v4388
      %v4455 = vunpack.c.l.b16 %v4389
      %v4456 = vunpack.c.l.b16 %v4390
      %v4457 = vpack.c.b16 %v4426, %v4425
      %v4458 = vpack.c.b16 %v4428, %v4427
      %v4459 = vpack.c.b16 %v4430, %v4429
      %v4460 = vpack.c.b16 %v4432, %v4431
      %v4461 = vpack.c.b16 %v4434, %v4433
      %v4462 = vpack.c.b16 %v4436, %v4435
      %v4463 = vpack.c.b16 %v4438, %v4437
      %v4464 = vpack.c.b16 %v4440, %v4439
      %v4465 = vpack.c.b16 %v4442, %v4441
      %v4466 = vpack.c.b16 %v4444, %v4443
      %v4467 = vpack.c.b16 %v4446, %v4445
      %v4468 = vpack.c.b16 %v4448, %v4447
      %v4469 = vpack.c.b16 %v4450, %v4449
      %v4470 = vpack.c.b16 %v4452, %v4451
      %v4471 = vpack.c.b16 %v4454, %v4453
      %v4472 = vpack.c.b16 %v4456, %v4455
      %v4474 = vsel %vm972, %v4457, 0
      %v4477 = vsel %vm972, %v4458, 0
      %v4480 = vsel %vm972, %v4459, 0
      %v4483 = vsel %vm972, %v4460, 0
      %v4486 = vsel %vm972, %v4461, 0
      %v4489 = vsel %vm972, %v4462, 0
      %v4492 = vsel %vm972, %v4463, 0
      %v4495 = vsel %vm972, %v4464, 0
      %v4498 = vsel %vm972, %v4465, 0
      %v4501 = vsel %vm972, %v4466, 0
      %v4504 = vsel %vm972, %v4467, 0
      %v4507 = vsel %vm972, %v4468, 0
      %v4510 = vsel %vm972, %v4469, 0
      %v4513 = vsel %vm972, %v4470, 0
      %v4516 = vsel %vm972, %v4471, 0
      %v4519 = vsel %vm972, %v4472, 0
      %v4522 = vsel %vm1021, %v4392, 0
      %4524 = vmatprep.subr.bf16.mxu0 0
      %4525 = vmatpush1.bf16.msra.mxu0 0
      %4526 = vmatprep.subr.bf16.mxu0 0
      %4527 = vmatpush1.bf16.msra.mxu0 0
      %4528 = vmatprep.subr.bf16.mxu0 0
      %4529 = vmatpush1.bf16.msra.mxu0 0
      %4530 = vmatprep.subr.bf16.mxu0 0
      %4531 = vmatpush1.bf16.msra.mxu0 0
      %4532 = vmatprep.subr.bf16.mxu0 0
      %4533 = vmatpush1.bf16.msra.mxu0 0
      %4534 = vmatprep.subr.bf16.mxu0 0
      %4535 = vmatpush1.bf16.msra.mxu0 0
      %4536 = vmatprep.subr.bf16.mxu0 0
      %4537 = vmatpush1.bf16.msra.mxu0 0
      %4538 = vmatprep.subr.bf16.mxu0 0
      %4539 = vmatpush1.bf16.msra.mxu0 %v4522
      %4540 = vmatprep.subr.bf16.mxu0 0
      %4541 = vmatpush2.bf16.msra.mxu0 0
      %4542 = vmatprep.subr.bf16.mxu0 0
      %4543 = vmatpush2.bf16.msra.mxu0 0
      %4544 = vmatprep.subr.bf16.mxu0 0
      %4545 = vmatpush2.bf16.msra.mxu0 0
      %4546 = vmatprep.subr.bf16.mxu0 0
      %4547 = vmatpush2.bf16.msra.mxu0 0
      %4548 = vmatprep.subr.bf16.mxu0 0
      %4549 = vmatpush2.bf16.msra.mxu0 0
      %4550 = vmatprep.subr.bf16.mxu0 0
      %4551 = vmatpush2.bf16.msra.mxu0 0
      %4552 = vmatprep.subr.bf16.mxu0 0
      %4553 = vmatpush2.bf16.msra.mxu0 0
      %4554 = vmatprep.subr.bf16.mxu0 0
      %4555 = vmatpush2.bf16.msra.mxu0 0
      %4556 = vmatprep.mubr.bf16.mxu0 0
      %4557 = vmatmul.mubr.bf16.gmra.mxu0 %v4474
      %v4558 = vpop.f32.mrf.mxu0
      %v4559 = vadd.f32 0.0, %v4558
      %v4560 = vpop.f32.mrf.mxu0
      %v4561 = vpop.f32.mrf.mxu0
      %v4562 = vadd.f32 0.0, %v4561
      %v4563 = vpop.f32.mrf.mxu0
      %4564 = vmatprep.mubr.bf16.mxu0 0
      %4565 = vmatmul.mubr.bf16.gmra.mxu0 %v4477
      %v4566 = vpop.f32.mrf.mxu0
      %v4567 = vadd.f32 0.0, %v4566
      %v4568 = vpop.f32.mrf.mxu0
      %v4569 = vpop.f32.mrf.mxu0
      %v4570 = vadd.f32 0.0, %v4569
      %v4571 = vpop.f32.mrf.mxu0
      %4572 = vmatprep.mubr.bf16.mxu0 0
      %4573 = vmatmul.mubr.bf16.gmra.mxu0 %v4480
      %v4574 = vpop.f32.mrf.mxu0
      %v4575 = vadd.f32 0.0, %v4574
      %v4576 = vpop.f32.mrf.mxu0
      %v4577 = vpop.f32.mrf.mxu0
      %v4578 = vadd.f32 0.0, %v4577
      %v4579 = vpop.f32.mrf.mxu0
      %4580 = vmatprep.mubr.bf16.mxu0 0
      %4581 = vmatmul.mubr.bf16.gmra.mxu0 %v4483
      %v4582 = vpop.f32.mrf.mxu0
      %v4583 = vadd.f32 0.0, %v4582
      %v4584 = vpop.f32.mrf.mxu0
      %v4585 = vpop.f32.mrf.mxu0
      %v4586 = vadd.f32 0.0, %v4585
      %v4587 = vpop.f32.mrf.mxu0
      %4588 = vmatprep.mubr.bf16.mxu0 0
      %4589 = vmatmul.mubr.bf16.gmra.mxu0 %v4486
      %v4590 = vpop.f32.mrf.mxu0
      %v4591 = vadd.f32 0.0, %v4590
      %v4592 = vpop.f32.mrf.mxu0
      %v4593 = vpop.f32.mrf.mxu0
      %v4594 = vadd.f32 0.0, %v4593
      %v4595 = vpop.f32.mrf.mxu0
      %4596 = vmatprep.mubr.bf16.mxu0 0
      %4597 = vmatmul.mubr.bf16.gmra.mxu0 %v4489
      %v4598 = vpop.f32.mrf.mxu0
      %v4599 = vadd.f32 0.0, %v4598
      %v4600 = vpop.f32.mrf.mxu0
      %v4601 = vpop.f32.mrf.mxu0
      %v4602 = vadd.f32 0.0, %v4601
      %v4603 = vpop.f32.mrf.mxu0
      %4604 = vmatprep.mubr.bf16.mxu0 0
      %4605 = vmatmul.mubr.bf16.gmra.mxu0 %v4492
      %v4606 = vpop.f32.mrf.mxu0
      %v4607 = vadd.f32 0.0, %v4606
      %v4608 = vpop.f32.mrf.mxu0
      %v4609 = vpop.f32.mrf.mxu0
      %v4610 = vadd.f32 0.0, %v4609
      %v4611 = vpop.f32.mrf.mxu0
      %4612 = vmatprep.mubr.bf16.mxu0 0
      %4613 = vmatmul.mubr.bf16.gmra.mxu0 %v4495
      %v4614 = vpop.f32.mrf.mxu0
      %v4615 = vadd.f32 0.0, %v4614
      %v4616 = vpop.f32.mrf.mxu0
      %v4617 = vpop.f32.mrf.mxu0
      %v4618 = vadd.f32 0.0, %v4617
      %v4619 = vpop.f32.mrf.mxu0
      %4620 = vmatprep.mubr.bf16.mxu0 0
      %4621 = vmatmul.mubr.bf16.gmra.mxu0 %v4498
      %v4622 = vpop.f32.mrf.mxu0
      %v4623 = vadd.f32 0.0, %v4622
      %v4624 = vpop.f32.mrf.mxu0
      %v4625 = vpop.f32.mrf.mxu0
      %v4626 = vadd.f32 0.0, %v4625
      %v4627 = vpop.f32.mrf.mxu0
      %4628 = vmatprep.mubr.bf16.mxu0 0
      %4629 = vmatmul.mubr.bf16.gmra.mxu0 %v4501
      %v4630 = vpop.f32.mrf.mxu0
      %v4631 = vadd.f32 0.0, %v4630
      %v4632 = vpop.f32.mrf.mxu0
      %v4633 = vpop.f32.mrf.mxu0
      %v4634 = vadd.f32 0.0, %v4633
      %v4635 = vpop.f32.mrf.mxu0
      %4636 = vmatprep.mubr.bf16.mxu0 0
      %4637 = vmatmul.mubr.bf16.gmra.mxu0 %v4504
      %v4638 = vpop.f32.mrf.mxu0
      %v4639 = vadd.f32 0.0, %v4638
      %v4640 = vpop.f32.mrf.mxu0
      %v4641 = vpop.f32.mrf.mxu0
      %v4642 = vadd.f32 0.0, %v4641
      %v4643 = vpop.f32.mrf.mxu0
      %4644 = vmatprep.mubr.bf16.mxu0 0
      %4645 = vmatmul.mubr.bf16.gmra.mxu0 %v4507
      %v4646 = vpop.f32.mrf.mxu0
      %v4647 = vadd.f32 0.0, %v4646
      %v4648 = vpop.f32.mrf.mxu0
      %v4649 = vpop.f32.mrf.mxu0
      %v4650 = vadd.f32 0.0, %v4649
      %v4651 = vpop.f32.mrf.mxu0
      %4652 = vmatprep.mubr.bf16.mxu0 0
      %4653 = vmatmul.mubr.bf16.gmra.mxu0 %v4510
      %v4654 = vpop.f32.mrf.mxu0
      %v4655 = vadd.f32 0.0, %v4654
      %v4656 = vpop.f32.mrf.mxu0
      %v4657 = vpop.f32.mrf.mxu0
      %v4658 = vadd.f32 0.0, %v4657
      %v4659 = vpop.f32.mrf.mxu0
      %4660 = vmatprep.mubr.bf16.mxu0 0
      %4661 = vmatmul.mubr.bf16.gmra.mxu0 %v4513
      %v4662 = vpop.f32.mrf.mxu0
      %v4663 = vadd.f32 0.0, %v4662
      %v4664 = vpop.f32.mrf.mxu0
      %v4665 = vpop.f32.mrf.mxu0
      %v4666 = vadd.f32 0.0, %v4665
      %v4667 = vpop.f32.mrf.mxu0
      %4668 = vmatprep.mubr.bf16.mxu0 0
      %4669 = vmatmul.mubr.bf16.gmra.mxu0 %v4516
      %v4670 = vpop.f32.mrf.mxu0
      %v4671 = vadd.f32 0.0, %v4670
      %v4672 = vpop.f32.mrf.mxu0
      %v4673 = vpop.f32.mrf.mxu0
      %v4674 = vadd.f32 0.0, %v4673
      %v4675 = vpop.f32.mrf.mxu0
      %4676 = vmatprep.mubr.bf16.mxu0 0
      %4677 = vmatmul.mubr.bf16.gmra.mxu0 %v4519
      %v4678 = vpop.f32.mrf.mxu0
      %v4679 = vadd.f32 0.0, %v4678
      %v4680 = vpop.f32.mrf.mxu0
      %v4681 = vpop.f32.mrf.mxu0
      %v4682 = vadd.f32 0.0, %v4681
      %v4683 = vpop.f32.mrf.mxu0
      %4684 = vdwg.mxu0
      %v4685 = vld [vmem:[#allocation3] sm:$0xff]
      %v4686 = vld [vmem:[#allocation3 + $0x8] sm:$0xff]
      %v4687 = vld [vmem:[#allocation3 + $0x10] sm:$0xff]
      %v4688 = vld [vmem:[#allocation3 + $0x18] sm:$0xff]
      %v4689 = vld [vmem:[#allocation3 + $0x20] sm:$0xff]
      %v4690 = vld [vmem:[#allocation3 + $0x28] sm:$0xff]
      %v4691 = vld [vmem:[#allocation3 + $0x30] sm:$0xff]
      %v4692 = vld [vmem:[#allocation3 + $0x38] sm:$0xff]
      %v4693 = vld [vmem:[#allocation3 + $0x40] sm:$0xff]
      %v4694 = vld [vmem:[#allocation3 + $0x48] sm:$0xff]
      %v4695 = vld [vmem:[#allocation3 + $0x50] sm:$0xff]
      %v4696 = vld [vmem:[#allocation3 + $0x58] sm:$0xff]
      %v4697 = vld [vmem:[#allocation3 + $0x60] sm:$0xff]
      %v4698 = vld [vmem:[#allocation3 + $0x68] sm:$0xff]
      %v4699 = vld [vmem:[#allocation3 + $0x70] sm:$0xff]
      %v4700 = vld [vmem:[#allocation3 + $0x78] sm:$0xff]
      %v4701 = vld [vmem:[#allocation3 + $0x80] sm:$0xff]
      %v4702 = vld [vmem:[#allocation3 + $0x88] sm:$0xff]
      %v4703 = vld [vmem:[#allocation3 + $0x90] sm:$0xff]
      %v4704 = vld [vmem:[#allocation3 + $0x98] sm:$0xff]
      %v4705 = vld [vmem:[#allocation3 + $0xa0] sm:$0xff]
      %v4706 = vld [vmem:[#allocation3 + $0xa8] sm:$0xff]
      %v4707 = vld [vmem:[#allocation3 + $0xb0] sm:$0xff]
      %v4708 = vld [vmem:[#allocation3 + $0xb8] sm:$0xff]
      %v4709 = vld [vmem:[#allocation3 + $0xc0] sm:$0xff]
      %v4710 = vld [vmem:[#allocation3 + $0xc8] sm:$0xff]
      %v4711 = vld [vmem:[#allocation3 + $0xd0] sm:$0xff]
      %v4712 = vld [vmem:[#allocation3 + $0xd8] sm:$0xff]
      %v4713 = vld [vmem:[#allocation3 + $0xe0] sm:$0xff]
      %v4714 = vld [vmem:[#allocation3 + $0xe8] sm:$0xff]
      %v4715 = vld [vmem:[#allocation3 + $0xf0] sm:$0xff]
      %v4716 = vld [vmem:[#allocation3 + $0xf8] sm:$0xff]
      %v4717 = vadd.f32 %v4685, %v4559
      %v4718 = vadd.f32 %v4686, %v4562
      %v4719 = vadd.f32 %v4687, %v4567
      %v4720 = vadd.f32 %v4688, %v4570
      %v4721 = vadd.f32 %v4689, %v4575
      %v4722 = vadd.f32 %v4690, %v4578
      %v4723 = vadd.f32 %v4691, %v4583
      %v4724 = vadd.f32 %v4692, %v4586
      %v4725 = vadd.f32 %v4693, %v4591
      %v4726 = vadd.f32 %v4694, %v4594
      %v4727 = vadd.f32 %v4695, %v4599
      %v4728 = vadd.f32 %v4696, %v4602
      %v4729 = vadd.f32 %v4697, %v4607
      %v4730 = vadd.f32 %v4698, %v4610
      %v4731 = vadd.f32 %v4699, %v4615
      %v4732 = vadd.f32 %v4700, %v4618
      %v4733 = vadd.f32 %v4701, %v4623
      %v4734 = vadd.f32 %v4702, %v4626
      %v4735 = vadd.f32 %v4703, %v4631
      %v4736 = vadd.f32 %v4704, %v4634
      %v4737 = vadd.f32 %v4705, %v4639
      %v4738 = vadd.f32 %v4706, %v4642
      %v4739 = vadd.f32 %v4707, %v4647
      %v4740 = vadd.f32 %v4708, %v4650
      %v4741 = vadd.f32 %v4709, %v4655
      %v4742 = vadd.f32 %v4710, %v4658
      %v4743 = vadd.f32 %v4711, %v4663
      %v4744 = vadd.f32 %v4712, %v4666
      %v4745 = vadd.f32 %v4713, %v4671
      %v4746 = vadd.f32 %v4714, %v4674
      %v4747 = vadd.f32 %v4715, %v4679
      %v4748 = vadd.f32 %v4716, %v4682
      %4749 = vst.msk [vmem:[#allocation3] sm:$0xff] %vm972, %v4717
      %4750 = vst.msk [vmem:[#allocation3 + $0x8] sm:$0xff] %vm972, %v4718
      %4751 = vst.msk [vmem:[#allocation3 + $0x10] sm:$0xff] %vm972, %v4719
      %4752 = vst.msk [vmem:[#allocation3 + $0x18] sm:$0xff] %vm972, %v4720
      %4753 = vst.msk [vmem:[#allocation3 + $0x20] sm:$0xff] %vm972, %v4721
      %4754 = vst.msk [vmem:[#allocation3 + $0x28] sm:$0xff] %vm972, %v4722
      %4755 = vst.msk [vmem:[#allocation3 + $0x30] sm:$0xff] %vm972, %v4723
      %4756 = vst.msk [vmem:[#allocation3 + $0x38] sm:$0xff] %vm972, %v4724
      %4757 = vst.msk [vmem:[#allocation3 + $0x40] sm:$0xff] %vm972, %v4725
      %4758 = vst.msk [vmem:[#allocation3 + $0x48] sm:$0xff] %vm972, %v4726
      %4759 = vst.msk [vmem:[#allocation3 + $0x50] sm:$0xff] %vm972, %v4727
      %4760 = vst.msk [vmem:[#allocation3 + $0x58] sm:$0xff] %vm972, %v4728
      %4761 = vst.msk [vmem:[#allocation3 + $0x60] sm:$0xff] %vm972, %v4729
      %4762 = vst.msk [vmem:[#allocation3 + $0x68] sm:$0xff] %vm972, %v4730
      %4763 = vst.msk [vmem:[#allocation3 + $0x70] sm:$0xff] %vm972, %v4731
      %4764 = vst.msk [vmem:[#allocation3 + $0x78] sm:$0xff] %vm972, %v4732
      %4765 = vst.msk [vmem:[#allocation3 + $0x80] sm:$0xff] %vm972, %v4733
      %4766 = vst.msk [vmem:[#allocation3 + $0x88] sm:$0xff] %vm972, %v4734
      %4767 = vst.msk [vmem:[#allocation3 + $0x90] sm:$0xff] %vm972, %v4735
      %4768 = vst.msk [vmem:[#allocation3 + $0x98] sm:$0xff] %vm972, %v4736
      %4769 = vst.msk [vmem:[#allocation3 + $0xa0] sm:$0xff] %vm972, %v4737
      %4770 = vst.msk [vmem:[#allocation3 + $0xa8] sm:$0xff] %vm972, %v4738
      %4771 = vst.msk [vmem:[#allocation3 + $0xb0] sm:$0xff] %vm972, %v4739
      %4772 = vst.msk [vmem:[#allocation3 + $0xb8] sm:$0xff] %vm972, %v4740
      %4773 = vst.msk [vmem:[#allocation3 + $0xc0] sm:$0xff] %vm972, %v4741
      %4774 = vst.msk [vmem:[#allocation3 + $0xc8] sm:$0xff] %vm972, %v4742
      %4775 = vst.msk [vmem:[#allocation3 + $0xd0] sm:$0xff] %vm972, %v4743
      %4776 = vst.msk [vmem:[#allocation3 + $0xd8] sm:$0xff] %vm972, %v4744
      %4777 = vst.msk [vmem:[#allocation3 + $0xe0] sm:$0xff] %vm972, %v4745
      %4778 = vst.msk [vmem:[#allocation3 + $0xe8] sm:$0xff] %vm972, %v4746
      %4779 = vst.msk [vmem:[#allocation3 + $0xf0] sm:$0xff] %vm972, %v4747
      %4780 = vst.msk [vmem:[#allocation3 + $0xf8] sm:$0xff] %vm972, %v4748
      %v4781 = vld [vmem:[%s4358] sm:$0xf]
      %v4782 = vld [vmem:[%s4358 + $0x4] sm:$0xf]
      %v4783 = vld [vmem:[%s4358 + $0x8] sm:$0x1]
      %v4784 = vld [vmem:[%s4358 + $0xc] sm:$0xf]
      %v4785 = vld [vmem:[%s4358 + $0x10] sm:$0xf]
      %v4786 = vld [vmem:[%s4358 + $0x14] sm:$0x1]
      %v4787 = vld [vmem:[%s4358 + $0x18] sm:$0xf]
      %v4788 = vld [vmem:[%s4358 + $0x1c] sm:$0xf]
      %v4789 = vld [vmem:[%s4358 + $0x20] sm:$0x1]
      %v4790 = vld [vmem:[%s4358 + $0x24] sm:$0xf]
      %v4791 = vld [vmem:[%s4358 + $0x28] sm:$0xf]
      %v4792 = vld [vmem:[%s4358 + $0x2c] sm:$0x1]
      %v4793 = vld [vmem:[%s4358 + $0x30] sm:$0xf]
      %v4794 = vld [vmem:[%s4358 + $0x34] sm:$0xf]
      %v4795 = vld [vmem:[%s4358 + $0x38] sm:$0x1]
      %v4796 = vld [vmem:[%s4358 + $0x3c] sm:$0xf]
      %v4797 = vld [vmem:[%s4358 + $0x40] sm:$0xf]
      %v4798 = vld [vmem:[%s4358 + $0x44] sm:$0x1]
      %v4799 = vld [vmem:[%s4358 + $0x48] sm:$0xf]
      %v4800 = vld [vmem:[%s4358 + $0x4c] sm:$0xf]
      %v4801 = vld [vmem:[%s4358 + $0x50] sm:$0x1]
      %v4802 = vld [vmem:[%s4358 + $0x54] sm:$0xf]
      %v4803 = vld [vmem:[%s4358 + $0x58] sm:$0xf]
      %v4804 = vld [vmem:[%s4358 + $0x5c] sm:$0x1]
      %v4805 = vld [vmem:[%s4358 + $0x60] sm:$0xf]
      %v4806 = vld [vmem:[%s4358 + $0x64] sm:$0xf]
      %v4807 = vld [vmem:[%s4358 + $0x68] sm:$0x1]
      %v4808 = vld [vmem:[%s4358 + $0x6c] sm:$0xf]
      %v4809 = vld [vmem:[%s4358 + $0x70] sm:$0xf]
      %v4810 = vld [vmem:[%s4358 + $0x74] sm:$0x1]
      %v4811 = vld [vmem:[%s4358 + $0x78] sm:$0xf]
      %v4812 = vld [vmem:[%s4358 + $0x7c] sm:$0xf]
      %v4813 = vld [vmem:[%s4358 + $0x80] sm:$0x1]
      %v4814 = vld [vmem:[%s4358 + $0x84] sm:$0xf]
      %v4815 = vld [vmem:[%s4358 + $0x88] sm:$0xf]
      %v4816 = vld [vmem:[%s4358 + $0x8c] sm:$0x1]
      %v4817 = vld [vmem:[%s4358 + $0x90] sm:$0xf]
      %v4818 = vld [vmem:[%s4358 + $0x94] sm:$0xf]
      %v4819 = vld [vmem:[%s4358 + $0x98] sm:$0x1]
      %v4820 = vld [vmem:[%s4358 + $0x9c] sm:$0xf]
      %v4821 = vld [vmem:[%s4358 + $0xa0] sm:$0xf]
      %v4822 = vld [vmem:[%s4358 + $0xa4] sm:$0x1]
      %v4823 = vld [vmem:[%s4358 + $0xa8] sm:$0xf]
      %v4824 = vld [vmem:[%s4358 + $0xac] sm:$0xf]
      %v4825 = vld [vmem:[%s4358 + $0xb0] sm:$0x1]
      %v4826 = vld [vmem:[%s4358 + $0xb4] sm:$0xf]
      %v4827 = vld [vmem:[%s4358 + $0xb8] sm:$0xf]
      %v4828 = vld [vmem:[%s4358 + $0xbc] sm:$0x1]
      %v4830 = vshrl.u32 %v4781, 16
      %v4832 = vrot.slane %v4830, 4
      %v4833 = vshll.u32 %v4781, 16
      %v4835 = vrot.slane %v4833, 5
      %v4836 = vor.u32 %v4832, %v4835
      %v4837 = vrot.slane %v4836, 4
      %v4839 = vshll.u32 %v4782, 16
      %v4841 = vrot.slane %v4839, 5
      %v4842 = vsel %vm1268, %v4837, %v4841
      %v4843 = vshrl.u32 %v4782, 16
      %v4845 = vrot.slane %v4843, 4
      %v4846 = vor.u32 %v4845, %v4841
      %v4847 = vrot.slane %v4846, 4
      %v4849 = vshll.u32 %v4783, 16
      %v4851 = vrot.slane %v4849, 5
      %v4852 = vsel %vm1268, %v4847, %v4851
      %v4854 = vshrl.u32 %v4784, 16
      %v4856 = vrot.slane %v4854, 4
      %v4857 = vshll.u32 %v4784, 16
      %v4859 = vrot.slane %v4857, 5
      %v4860 = vor.u32 %v4856, %v4859
      %v4861 = vrot.slane %v4860, 4
      %v4863 = vshll.u32 %v4785, 16
      %v4865 = vrot.slane %v4863, 5
      %v4866 = vsel %vm1268, %v4861, %v4865
      %v4867 = vshrl.u32 %v4785, 16
      %v4869 = vrot.slane %v4867, 4
      %v4870 = vor.u32 %v4869, %v4865
      %v4871 = vrot.slane %v4870, 4
      %v4873 = vshll.u32 %v4786, 16
      %v4875 = vrot.slane %v4873, 5
      %v4876 = vsel %vm1268, %v4871, %v4875
      %v4878 = vshrl.u32 %v4787, 16
      %v4880 = vrot.slane %v4878, 4
      %v4881 = vshll.u32 %v4787, 16
      %v4883 = vrot.slane %v4881, 5
      %v4884 = vor.u32 %v4880, %v4883
      %v4885 = vrot.slane %v4884, 4
      %v4887 = vshll.u32 %v4788, 16
      %v4889 = vrot.slane %v4887, 5
      %v4890 = vsel %vm1268, %v4885, %v4889
      %v4891 = vshrl.u32 %v4788, 16
      %v4893 = vrot.slane %v4891, 4
      %v4894 = vor.u32 %v4893, %v4889
      %v4895 = vrot.slane %v4894, 4
      %v4897 = vshll.u32 %v4789, 16
      %v4899 = vrot.slane %v4897, 5
      %v4900 = vsel %vm1268, %v4895, %v4899
      %v4902 = vshrl.u32 %v4790, 16
      %v4904 = vrot.slane %v4902, 4
      %v4905 = vshll.u32 %v4790, 16
      %v4907 = vrot.slane %v4905, 5
      %v4908 = vor.u32 %v4904, %v4907
      %v4909 = vrot.slane %v4908, 4
      %v4911 = vshll.u32 %v4791, 16
      %v4913 = vrot.slane %v4911, 5
      %v4914 = vsel %vm1268, %v4909, %v4913
      %v4915 = vshrl.u32 %v4791, 16
      %v4917 = vrot.slane %v4915, 4
      %v4918 = vor.u32 %v4917, %v4913
      %v4919 = vrot.slane %v4918, 4
      %v4921 = vshll.u32 %v4792, 16
      %v4923 = vrot.slane %v4921, 5
      %v4924 = vsel %vm1268, %v4919, %v4923
      %v4926 = vshrl.u32 %v4793, 16
      %v4928 = vrot.slane %v4926, 4
      %v4929 = vshll.u32 %v4793, 16
      %v4931 = vrot.slane %v4929, 5
      %v4932 = vor.u32 %v4928, %v4931
      %v4933 = vrot.slane %v4932, 4
      %v4935 = vshll.u32 %v4794, 16
      %v4937 = vrot.slane %v4935, 5
      %v4938 = vsel %vm1268, %v4933, %v4937
      %v4939 = vshrl.u32 %v4794, 16
      %v4941 = vrot.slane %v4939, 4
      %v4942 = vor.u32 %v4941, %v4937
      %v4943 = vrot.slane %v4942, 4
      %v4945 = vshll.u32 %v4795, 16
      %v4947 = vrot.slane %v4945, 5
      %v4948 = vsel %vm1268, %v4943, %v4947
      %v4950 = vshrl.u32 %v4796, 16
      %v4952 = vrot.slane %v4950, 4
      %v4953 = vshll.u32 %v4796, 16
      %v4955 = vrot.slane %v4953, 5
      %v4956 = vor.u32 %v4952, %v4955
      %v4957 = vrot.slane %v4956, 4
      %v4959 = vshll.u32 %v4797, 16
      %v4961 = vrot.slane %v4959, 5
      %v4962 = vsel %vm1268, %v4957, %v4961
      %v4963 = vshrl.u32 %v4797, 16
      %v4965 = vrot.slane %v4963, 4
      %v4966 = vor.u32 %v4965, %v4961
      %v4967 = vrot.slane %v4966, 4
      %v4969 = vshll.u32 %v4798, 16
      %v4971 = vrot.slane %v4969, 5
      %v4972 = vsel %vm1268, %v4967, %v4971
      %v4974 = vshrl.u32 %v4799, 16
      %v4976 = vrot.slane %v4974, 4
      %v4977 = vshll.u32 %v4799, 16
      %v4979 = vrot.slane %v4977, 5
      %v4980 = vor.u32 %v4976, %v4979
      %v4981 = vrot.slane %v4980, 4
      %v4983 = vshll.u32 %v4800, 16
      %v4985 = vrot.slane %v4983, 5
      %v4986 = vsel %vm1268, %v4981, %v4985
      %v4987 = vshrl.u32 %v4800, 16
      %v4989 = vrot.slane %v4987, 4
      %v4990 = vor.u32 %v4989, %v4985
      %v4991 = vrot.slane %v4990, 4
      %v4993 = vshll.u32 %v4801, 16
      %v4995 = vrot.slane %v4993, 5
      %v4996 = vsel %vm1268, %v4991, %v4995
      %v4998 = vshrl.u32 %v4802, 16
      %v5000 = vrot.slane %v4998, 4
      %v5001 = vshll.u32 %v4802, 16
      %v5003 = vrot.slane %v5001, 5
      %v5004 = vor.u32 %v5000, %v5003
      %v5005 = vrot.slane %v5004, 4
      %v5007 = vshll.u32 %v4803, 16
      %v5009 = vrot.slane %v5007, 5
      %v5010 = vsel %vm1268, %v5005, %v5009
      %v5011 = vshrl.u32 %v4803, 16
      %v5013 = vrot.slane %v5011, 4
      %v5014 = vor.u32 %v5013, %v5009
      %v5015 = vrot.slane %v5014, 4
      %v5017 = vshll.u32 %v4804, 16
      %v5019 = vrot.slane %v5017, 5
      %v5020 = vsel %vm1268, %v5015, %v5019
      %v5022 = vshrl.u32 %v4805, 16
      %v5024 = vrot.slane %v5022, 4
      %v5025 = vshll.u32 %v4805, 16
      %v5027 = vrot.slane %v5025, 5
      %v5028 = vor.u32 %v5024, %v5027
      %v5029 = vrot.slane %v5028, 4
      %v5031 = vshll.u32 %v4806, 16
      %v5033 = vrot.slane %v5031, 5
      %v5034 = vsel %vm1268, %v5029, %v5033
      %v5035 = vshrl.u32 %v4806, 16
      %v5037 = vrot.slane %v5035, 4
      %v5038 = vor.u32 %v5037, %v5033
      %v5039 = vrot.slane %v5038, 4
      %v5041 = vshll.u32 %v4807, 16
      %v5043 = vrot.slane %v5041, 5
      %v5044 = vsel %vm1268, %v5039, %v5043
      %v5046 = vshrl.u32 %v4808, 16
      %v5048 = vrot.slane %v5046, 4
      %v5049 = vshll.u32 %v4808, 16
      %v5051 = vrot.slane %v5049, 5
      %v5052 = vor.u32 %v5048, %v5051
      %v5053 = vrot.slane %v5052, 4
      %v5055 = vshll.u32 %v4809, 16
      %v5057 = vrot.slane %v5055, 5
      %v5058 = vsel %vm1268, %v5053, %v5057
      %v5059 = vshrl.u32 %v4809, 16
      %v5061 = vrot.slane %v5059, 4
      %v5062 = vor.u32 %v5061, %v5057
      %v5063 = vrot.slane %v5062, 4
      %v5065 = vshll.u32 %v4810, 16
      %v5067 = vrot.slane %v5065, 5
      %v5068 = vsel %vm1268, %v5063, %v5067
      %v5070 = vshrl.u32 %v4811, 16
      %v5072 = vrot.slane %v5070, 4
      %v5073 = vshll.u32 %v4811, 16
      %v5075 = vrot.slane %v5073, 5
      %v5076 = vor.u32 %v5072, %v5075
      %v5077 = vrot.slane %v5076, 4
      %v5079 = vshll.u32 %v4812, 16
      %v5081 = vrot.slane %v5079, 5
      %v5082 = vsel %vm1268, %v5077, %v5081
      %v5083 = vshrl.u32 %v4812, 16
      %v5085 = vrot.slane %v5083, 4
      %v5086 = vor.u32 %v5085, %v5081
      %v5087 = vrot.slane %v5086, 4
      %v5089 = vshll.u32 %v4813, 16
      %v5091 = vrot.slane %v5089, 5
      %v5092 = vsel %vm1268, %v5087, %v5091
      %v5094 = vshrl.u32 %v4814, 16
      %v5096 = vrot.slane %v5094, 4
      %v5097 = vshll.u32 %v4814, 16
      %v5099 = vrot.slane %v5097, 5
      %v5100 = vor.u32 %v5096, %v5099
      %v5101 = vrot.slane %v5100, 4
      %v5103 = vshll.u32 %v4815, 16
      %v5105 = vrot.slane %v5103, 5
      %v5106 = vsel %vm1268, %v5101, %v5105
      %v5107 = vshrl.u32 %v4815, 16
      %v5109 = vrot.slane %v5107, 4
      %v5110 = vor.u32 %v5109, %v5105
      %v5111 = vrot.slane %v5110, 4
      %v5113 = vshll.u32 %v4816, 16
      %v5115 = vrot.slane %v5113, 5
      %v5116 = vsel %vm1268, %v5111, %v5115
      %v5118 = vshrl.u32 %v4817, 16
      %v5120 = vrot.slane %v5118, 4
      %v5121 = vshll.u32 %v4817, 16
      %v5123 = vrot.slane %v5121, 5
      %v5124 = vor.u32 %v5120, %v5123
      %v5125 = vrot.slane %v5124, 4
      %v5127 = vshll.u32 %v4818, 16
      %v5129 = vrot.slane %v5127, 5
      %v5130 = vsel %vm1268, %v5125, %v5129
      %v5131 = vshrl.u32 %v4818, 16
      %v5133 = vrot.slane %v5131, 4
      %v5134 = vor.u32 %v5133, %v5129
      %v5135 = vrot.slane %v5134, 4
      %v5137 = vshll.u32 %v4819, 16
      %v5139 = vrot.slane %v5137, 5
      %v5140 = vsel %vm1268, %v5135, %v5139
      %v5142 = vshrl.u32 %v4820, 16
      %v5144 = vrot.slane %v5142, 4
      %v5145 = vshll.u32 %v4820, 16
      %v5147 = vrot.slane %v5145, 5
      %v5148 = vor.u32 %v5144, %v5147
      %v5149 = vrot.slane %v5148, 4
      %v5151 = vshll.u32 %v4821, 16
      %v5153 = vrot.slane %v5151, 5
      %v5154 = vsel %vm1268, %v5149, %v5153
      %v5155 = vshrl.u32 %v4821, 16
      %v5157 = vrot.slane %v5155, 4
      %v5158 = vor.u32 %v5157, %v5153
      %v5159 = vrot.slane %v5158, 4
      %v5161 = vshll.u32 %v4822, 16
      %v5163 = vrot.slane %v5161, 5
      %v5164 = vsel %vm1268, %v5159, %v5163
      %v5166 = vshrl.u32 %v4823, 16
      %v5168 = vrot.slane %v5166, 4
      %v5169 = vshll.u32 %v4823, 16
      %v5171 = vrot.slane %v5169, 5
      %v5172 = vor.u32 %v5168, %v5171
      %v5173 = vrot.slane %v5172, 4
      %v5175 = vshll.u32 %v4824, 16
      %v5177 = vrot.slane %v5175, 5
      %v5178 = vsel %vm1268, %v5173, %v5177
      %v5179 = vshrl.u32 %v4824, 16
      %v5181 = vrot.slane %v5179, 4
      %v5182 = vor.u32 %v5181, %v5177
      %v5183 = vrot.slane %v5182, 4
      %v5185 = vshll.u32 %v4825, 16
      %v5187 = vrot.slane %v5185, 5
      %v5188 = vsel %vm1268, %v5183, %v5187
      %v5190 = vshrl.u32 %v4826, 16
      %v5192 = vrot.slane %v5190, 4
      %v5193 = vshll.u32 %v4826, 16
      %v5195 = vrot.slane %v5193, 5
      %v5196 = vor.u32 %v5192, %v5195
      %v5197 = vrot.slane %v5196, 4
      %v5199 = vshll.u32 %v4827, 16
      %v5201 = vrot.slane %v5199, 5
      %v5202 = vsel %vm1268, %v5197, %v5201
      %v5203 = vshrl.u32 %v4827, 16
      %v5205 = vrot.slane %v5203, 4
      %v5206 = vor.u32 %v5205, %v5201
      %v5207 = vrot.slane %v5206, 4
      %v5209 = vshll.u32 %v4828, 16
      %v5211 = vrot.slane %v5209, 5
      %v5212 = vsel %vm1268, %v5207, %v5211
      %s5213 = scalar_lea.vmem %s1, 14
      %v5214 = vld [vmem:[%s5213] sm:$0x3]
      %v5215 = vunpack.c.l.b16 %v4842
      %v5216 = vunpack.c.l.b16 %v4852
      %v5217 = vunpack.c.l.b16 %v4866
      %v5218 = vunpack.c.l.b16 %v4876
      %v5219 = vunpack.c.l.b16 %v4890
      %v5220 = vunpack.c.l.b16 %v4900
      %v5221 = vunpack.c.l.b16 %v4914
      %v5222 = vunpack.c.l.b16 %v4924
      %v5223 = vunpack.c.l.b16 %v4938
      %v5224 = vunpack.c.l.b16 %v4948
      %v5225 = vunpack.c.l.b16 %v4962
      %v5226 = vunpack.c.l.b16 %v4972
      %v5227 = vunpack.c.l.b16 %v4986
      %v5228 = vunpack.c.l.b16 %v4996
      %v5229 = vunpack.c.l.b16 %v5010
      %v5230 = vunpack.c.l.b16 %v5020
      %v5231 = vunpack.c.l.b16 %v5034
      %v5232 = vunpack.c.l.b16 %v5044
      %v5233 = vunpack.c.l.b16 %v5058
      %v5234 = vunpack.c.l.b16 %v5068
      %v5235 = vunpack.c.l.b16 %v5082
      %v5236 = vunpack.c.l.b16 %v5092
      %v5237 = vunpack.c.l.b16 %v5106
      %v5238 = vunpack.c.l.b16 %v5116
      %v5239 = vunpack.c.l.b16 %v5130
      %v5240 = vunpack.c.l.b16 %v5140
      %v5241 = vunpack.c.l.b16 %v5154
      %v5242 = vunpack.c.l.b16 %v5164
      %v5243 = vunpack.c.l.b16 %v5178
      %v5244 = vunpack.c.l.b16 %v5188
      %v5245 = vunpack.c.l.b16 %v5202
      %v5246 = vunpack.c.l.b16 %v5212
      %v5247 = vpack.c.b16 %v5216, %v5215
      %v5248 = vpack.c.b16 %v5218, %v5217
      %v5249 = vpack.c.b16 %v5220, %v5219
      %v5250 = vpack.c.b16 %v5222, %v5221
      %v5251 = vpack.c.b16 %v5224, %v5223
      %v5252 = vpack.c.b16 %v5226, %v5225
      %v5253 = vpack.c.b16 %v5228, %v5227
      %v5254 = vpack.c.b16 %v5230, %v5229
      %v5255 = vpack.c.b16 %v5232, %v5231
      %v5256 = vpack.c.b16 %v5234, %v5233
      %v5257 = vpack.c.b16 %v5236, %v5235
      %v5258 = vpack.c.b16 %v5238, %v5237
      %v5259 = vpack.c.b16 %v5240, %v5239
      %v5260 = vpack.c.b16 %v5242, %v5241
      %v5261 = vpack.c.b16 %v5244, %v5243
      %v5262 = vpack.c.b16 %v5246, %v5245
      %v5264 = vsel %vm972, %v5247, 0
      %v5267 = vsel %vm972, %v5248, 0
      %v5270 = vsel %vm972, %v5249, 0
      %v5273 = vsel %vm972, %v5250, 0
      %v5276 = vsel %vm972, %v5251, 0
      %v5279 = vsel %vm972, %v5252, 0
      %v5282 = vsel %vm972, %v5253, 0
      %v5285 = vsel %vm972, %v5254, 0
      %v5288 = vsel %vm972, %v5255, 0
      %v5291 = vsel %vm972, %v5256, 0
      %v5294 = vsel %vm972, %v5257, 0
      %v5297 = vsel %vm972, %v5258, 0
      %v5300 = vsel %vm972, %v5259, 0
      %v5303 = vsel %vm972, %v5260, 0
      %v5306 = vsel %vm972, %v5261, 0
      %v5309 = vsel %vm972, %v5262, 0
      %v5312 = vsel %vm1021, %v5214, 0
      %5314 = vmatprep.subr.bf16.mxu0 0
      %5315 = vmatpush1.bf16.msra.mxu0 0
      %5316 = vmatprep.subr.bf16.mxu0 0
      %5317 = vmatpush1.bf16.msra.mxu0 0
      %5318 = vmatprep.subr.bf16.mxu0 0
      %5319 = vmatpush1.bf16.msra.mxu0 0
      %5320 = vmatprep.subr.bf16.mxu0 0
      %5321 = vmatpush1.bf16.msra.mxu0 0
      %5322 = vmatprep.subr.bf16.mxu0 0
      %5323 = vmatpush1.bf16.msra.mxu0 0
      %5324 = vmatprep.subr.bf16.mxu0 0
      %5325 = vmatpush1.bf16.msra.mxu0 0
      %5326 = vmatprep.subr.bf16.mxu0 0
      %5327 = vmatpush1.bf16.msra.mxu0 0
      %5328 = vmatprep.subr.bf16.mxu0 0
      %5329 = vmatpush1.bf16.msra.mxu0 %v5312
      %5330 = vmatprep.subr.bf16.mxu0 0
      %5331 = vmatpush2.bf16.msra.mxu0 0
      %5332 = vmatprep.subr.bf16.mxu0 0
      %5333 = vmatpush2.bf16.msra.mxu0 0
      %5334 = vmatprep.subr.bf16.mxu0 0
      %5335 = vmatpush2.bf16.msra.mxu0 0
      %5336 = vmatprep.subr.bf16.mxu0 0
      %5337 = vmatpush2.bf16.msra.mxu0 0
      %5338 = vmatprep.subr.bf16.mxu0 0
      %5339 = vmatpush2.bf16.msra.mxu0 0
      %5340 = vmatprep.subr.bf16.mxu0 0
      %5341 = vmatpush2.bf16.msra.mxu0 0
      %5342 = vmatprep.subr.bf16.mxu0 0
      %5343 = vmatpush2.bf16.msra.mxu0 0
      %5344 = vmatprep.subr.bf16.mxu0 0
      %5345 = vmatpush2.bf16.msra.mxu0 0
      %5346 = vmatprep.mubr.bf16.mxu0 0
      %5347 = vmatmul.mubr.bf16.gmra.mxu0 %v5264
      %v5348 = vpop.f32.mrf.mxu0
      %v5349 = vadd.f32 0.0, %v5348
      %v5350 = vpop.f32.mrf.mxu0
      %v5351 = vpop.f32.mrf.mxu0
      %v5352 = vadd.f32 0.0, %v5351
      %v5353 = vpop.f32.mrf.mxu0
      %5354 = vmatprep.mubr.bf16.mxu0 0
      %5355 = vmatmul.mubr.bf16.gmra.mxu0 %v5267
      %v5356 = vpop.f32.mrf.mxu0
      %v5357 = vadd.f32 0.0, %v5356
      %v5358 = vpop.f32.mrf.mxu0
      %v5359 = vpop.f32.mrf.mxu0
      %v5360 = vadd.f32 0.0, %v5359
      %v5361 = vpop.f32.mrf.mxu0
      %5362 = vmatprep.mubr.bf16.mxu0 0
      %5363 = vmatmul.mubr.bf16.gmra.mxu0 %v5270
      %v5364 = vpop.f32.mrf.mxu0
      %v5365 = vadd.f32 0.0, %v5364
      %v5366 = vpop.f32.mrf.mxu0
      %v5367 = vpop.f32.mrf.mxu0
      %v5368 = vadd.f32 0.0, %v5367
      %v5369 = vpop.f32.mrf.mxu0
      %5370 = vmatprep.mubr.bf16.mxu0 0
      %5371 = vmatmul.mubr.bf16.gmra.mxu0 %v5273
      %v5372 = vpop.f32.mrf.mxu0
      %v5373 = vadd.f32 0.0, %v5372
      %v5374 = vpop.f32.mrf.mxu0
      %v5375 = vpop.f32.mrf.mxu0
      %v5376 = vadd.f32 0.0, %v5375
      %v5377 = vpop.f32.mrf.mxu0
      %5378 = vmatprep.mubr.bf16.mxu0 0
      %5379 = vmatmul.mubr.bf16.gmra.mxu0 %v5276
      %v5380 = vpop.f32.mrf.mxu0
      %v5381 = vadd.f32 0.0, %v5380
      %v5382 = vpop.f32.mrf.mxu0
      %v5383 = vpop.f32.mrf.mxu0
      %v5384 = vadd.f32 0.0, %v5383
      %v5385 = vpop.f32.mrf.mxu0
      %5386 = vmatprep.mubr.bf16.mxu0 0
      %5387 = vmatmul.mubr.bf16.gmra.mxu0 %v5279
      %v5388 = vpop.f32.mrf.mxu0
      %v5389 = vadd.f32 0.0, %v5388
      %v5390 = vpop.f32.mrf.mxu0
      %v5391 = vpop.f32.mrf.mxu0
      %v5392 = vadd.f32 0.0, %v5391
      %v5393 = vpop.f32.mrf.mxu0
      %5394 = vmatprep.mubr.bf16.mxu0 0
      %5395 = vmatmul.mubr.bf16.gmra.mxu0 %v5282
      %v5396 = vpop.f32.mrf.mxu0
      %v5397 = vadd.f32 0.0, %v5396
      %v5398 = vpop.f32.mrf.mxu0
      %v5399 = vpop.f32.mrf.mxu0
      %v5400 = vadd.f32 0.0, %v5399
      %v5401 = vpop.f32.mrf.mxu0
      %5402 = vmatprep.mubr.bf16.mxu0 0
      %5403 = vmatmul.mubr.bf16.gmra.mxu0 %v5285
      %v5404 = vpop.f32.mrf.mxu0
      %v5405 = vadd.f32 0.0, %v5404
      %v5406 = vpop.f32.mrf.mxu0
      %v5407 = vpop.f32.mrf.mxu0
      %v5408 = vadd.f32 0.0, %v5407
      %v5409 = vpop.f32.mrf.mxu0
      %5410 = vmatprep.mubr.bf16.mxu0 0
      %5411 = vmatmul.mubr.bf16.gmra.mxu0 %v5288
      %v5412 = vpop.f32.mrf.mxu0
      %v5413 = vadd.f32 0.0, %v5412
      %v5414 = vpop.f32.mrf.mxu0
      %v5415 = vpop.f32.mrf.mxu0
      %v5416 = vadd.f32 0.0, %v5415
      %v5417 = vpop.f32.mrf.mxu0
      %5418 = vmatprep.mubr.bf16.mxu0 0
      %5419 = vmatmul.mubr.bf16.gmra.mxu0 %v5291
      %v5420 = vpop.f32.mrf.mxu0
      %v5421 = vadd.f32 0.0, %v5420
      %v5422 = vpop.f32.mrf.mxu0
      %v5423 = vpop.f32.mrf.mxu0
      %v5424 = vadd.f32 0.0, %v5423
      %v5425 = vpop.f32.mrf.mxu0
      %5426 = vmatprep.mubr.bf16.mxu0 0
      %5427 = vmatmul.mubr.bf16.gmra.mxu0 %v5294
      %v5428 = vpop.f32.mrf.mxu0
      %v5429 = vadd.f32 0.0, %v5428
      %v5430 = vpop.f32.mrf.mxu0
      %v5431 = vpop.f32.mrf.mxu0
      %v5432 = vadd.f32 0.0, %v5431
      %v5433 = vpop.f32.mrf.mxu0
      %5434 = vmatprep.mubr.bf16.mxu0 0
      %5435 = vmatmul.mubr.bf16.gmra.mxu0 %v5297
      %v5436 = vpop.f32.mrf.mxu0
      %v5437 = vadd.f32 0.0, %v5436
      %v5438 = vpop.f32.mrf.mxu0
      %v5439 = vpop.f32.mrf.mxu0
      %v5440 = vadd.f32 0.0, %v5439
      %v5441 = vpop.f32.mrf.mxu0
      %5442 = vmatprep.mubr.bf16.mxu0 0
      %5443 = vmatmul.mubr.bf16.gmra.mxu0 %v5300
      %v5444 = vpop.f32.mrf.mxu0
      %v5445 = vadd.f32 0.0, %v5444
      %v5446 = vpop.f32.mrf.mxu0
      %v5447 = vpop.f32.mrf.mxu0
      %v5448 = vadd.f32 0.0, %v5447
      %v5449 = vpop.f32.mrf.mxu0
      %5450 = vmatprep.mubr.bf16.mxu0 0
      %5451 = vmatmul.mubr.bf16.gmra.mxu0 %v5303
      %v5452 = vpop.f32.mrf.mxu0
      %v5453 = vadd.f32 0.0, %v5452
      %v5454 = vpop.f32.mrf.mxu0
      %v5455 = vpop.f32.mrf.mxu0
      %v5456 = vadd.f32 0.0, %v5455
      %v5457 = vpop.f32.mrf.mxu0
      %5458 = vmatprep.mubr.bf16.mxu0 0
      %5459 = vmatmul.mubr.bf16.gmra.mxu0 %v5306
      %v5460 = vpop.f32.mrf.mxu0
      %v5461 = vadd.f32 0.0, %v5460
      %v5462 = vpop.f32.mrf.mxu0
      %v5463 = vpop.f32.mrf.mxu0
      %v5464 = vadd.f32 0.0, %v5463
      %v5465 = vpop.f32.mrf.mxu0
      %5466 = vmatprep.mubr.bf16.mxu0 0
      %5467 = vmatmul.mubr.bf16.gmra.mxu0 %v5309
      %v5468 = vpop.f32.mrf.mxu0
      %v5469 = vadd.f32 0.0, %v5468
      %v5470 = vpop.f32.mrf.mxu0
      %v5471 = vpop.f32.mrf.mxu0
      %v5472 = vadd.f32 0.0, %v5471
      %v5473 = vpop.f32.mrf.mxu0
      %5474 = vdwg.mxu0
      %v5475 = vld [vmem:[#allocation3] sm:$0xff]
      %v5476 = vld [vmem:[#allocation3 + $0x8] sm:$0xff]
      %v5477 = vld [vmem:[#allocation3 + $0x10] sm:$0xff]
      %v5478 = vld [vmem:[#allocation3 + $0x18] sm:$0xff]
      %v5479 = vld [vmem:[#allocation3 + $0x20] sm:$0xff]
      %v5480 = vld [vmem:[#allocation3 + $0x28] sm:$0xff]
      %v5481 = vld [vmem:[#allocation3 + $0x30] sm:$0xff]
      %v5482 = vld [vmem:[#allocation3 + $0x38] sm:$0xff]
      %v5483 = vld [vmem:[#allocation3 + $0x40] sm:$0xff]
      %v5484 = vld [vmem:[#allocation3 + $0x48] sm:$0xff]
      %v5485 = vld [vmem:[#allocation3 + $0x50] sm:$0xff]
      %v5486 = vld [vmem:[#allocation3 + $0x58] sm:$0xff]
      %v5487 = vld [vmem:[#allocation3 + $0x60] sm:$0xff]
      %v5488 = vld [vmem:[#allocation3 + $0x68] sm:$0xff]
      %v5489 = vld [vmem:[#allocation3 + $0x70] sm:$0xff]
      %v5490 = vld [vmem:[#allocation3 + $0x78] sm:$0xff]
      %v5491 = vld [vmem:[#allocation3 + $0x80] sm:$0xff]
      %v5492 = vld [vmem:[#allocation3 + $0x88] sm:$0xff]
      %v5493 = vld [vmem:[#allocation3 + $0x90] sm:$0xff]
      %v5494 = vld [vmem:[#allocation3 + $0x98] sm:$0xff]
      %v5495 = vld [vmem:[#allocation3 + $0xa0] sm:$0xff]
      %v5496 = vld [vmem:[#allocation3 + $0xa8] sm:$0xff]
      %v5497 = vld [vmem:[#allocation3 + $0xb0] sm:$0xff]
      %v5498 = vld [vmem:[#allocation3 + $0xb8] sm:$0xff]
      %v5499 = vld [vmem:[#allocation3 + $0xc0] sm:$0xff]
      %v5500 = vld [vmem:[#allocation3 + $0xc8] sm:$0xff]
      %v5501 = vld [vmem:[#allocation3 + $0xd0] sm:$0xff]
      %v5502 = vld [vmem:[#allocation3 + $0xd8] sm:$0xff]
      %v5503 = vld [vmem:[#allocation3 + $0xe0] sm:$0xff]
      %v5504 = vld [vmem:[#allocation3 + $0xe8] sm:$0xff]
      %v5505 = vld [vmem:[#allocation3 + $0xf0] sm:$0xff]
      %v5506 = vld [vmem:[#allocation3 + $0xf8] sm:$0xff]
      %v5507 = vadd.f32 %v5475, %v5349
      %v5508 = vadd.f32 %v5476, %v5352
      %v5509 = vadd.f32 %v5477, %v5357
      %v5510 = vadd.f32 %v5478, %v5360
      %v5511 = vadd.f32 %v5479, %v5365
      %v5512 = vadd.f32 %v5480, %v5368
      %v5513 = vadd.f32 %v5481, %v5373
      %v5514 = vadd.f32 %v5482, %v5376
      %v5515 = vadd.f32 %v5483, %v5381
      %v5516 = vadd.f32 %v5484, %v5384
      %v5517 = vadd.f32 %v5485, %v5389
      %v5518 = vadd.f32 %v5486, %v5392
      %v5519 = vadd.f32 %v5487, %v5397
      %v5520 = vadd.f32 %v5488, %v5400
      %v5521 = vadd.f32 %v5489, %v5405
      %v5522 = vadd.f32 %v5490, %v5408
      %v5523 = vadd.f32 %v5491, %v5413
      %v5524 = vadd.f32 %v5492, %v5416
      %v5525 = vadd.f32 %v5493, %v5421
      %v5526 = vadd.f32 %v5494, %v5424
      %v5527 = vadd.f32 %v5495, %v5429
      %v5528 = vadd.f32 %v5496, %v5432
      %v5529 = vadd.f32 %v5497, %v5437
      %v5530 = vadd.f32 %v5498, %v5440
      %v5531 = vadd.f32 %v5499, %v5445
      %v5532 = vadd.f32 %v5500, %v5448
      %v5533 = vadd.f32 %v5501, %v5453
      %v5534 = vadd.f32 %v5502, %v5456
      %v5535 = vadd.f32 %v5503, %v5461
      %v5536 = vadd.f32 %v5504, %v5464
      %v5537 = vadd.f32 %v5505, %v5469
      %v5538 = vadd.f32 %v5506, %v5472
      %5539 = vst.msk [vmem:[#allocation3] sm:$0xff] %vm972, %v5507
      %5540 = vst.msk [vmem:[#allocation3 + $0x8] sm:$0xff] %vm972, %v5508
      %5541 = vst.msk [vmem:[#allocation3 + $0x10] sm:$0xff] %vm972, %v5509
      %5542 = vst.msk [vmem:[#allocation3 + $0x18] sm:$0xff] %vm972, %v5510
      %5543 = vst.msk [vmem:[#allocation3 + $0x20] sm:$0xff] %vm972, %v5511
      %5544 = vst.msk [vmem:[#allocation3 + $0x28] sm:$0xff] %vm972, %v5512
      %5545 = vst.msk [vmem:[#allocation3 + $0x30] sm:$0xff] %vm972, %v5513
      %5546 = vst.msk [vmem:[#allocation3 + $0x38] sm:$0xff] %vm972, %v5514
      %5547 = vst.msk [vmem:[#allocation3 + $0x40] sm:$0xff] %vm972, %v5515
      %5548 = vst.msk [vmem:[#allocation3 + $0x48] sm:$0xff] %vm972, %v5516
      %5549 = vst.msk [vmem:[#allocation3 + $0x50] sm:$0xff] %vm972, %v5517
      %5550 = vst.msk [vmem:[#allocation3 + $0x58] sm:$0xff] %vm972, %v5518
      %5551 = vst.msk [vmem:[#allocation3 + $0x60] sm:$0xff] %vm972, %v5519
      %5552 = vst.msk [vmem:[#allocation3 + $0x68] sm:$0xff] %vm972, %v5520
      %5553 = vst.msk [vmem:[#allocation3 + $0x70] sm:$0xff] %vm972, %v5521
      %5554 = vst.msk [vmem:[#allocation3 + $0x78] sm:$0xff] %vm972, %v5522
      %5555 = vst.msk [vmem:[#allocation3 + $0x80] sm:$0xff] %vm972, %v5523
      %5556 = vst.msk [vmem:[#allocation3 + $0x88] sm:$0xff] %vm972, %v5524
      %5557 = vst.msk [vmem:[#allocation3 + $0x90] sm:$0xff] %vm972, %v5525
      %5558 = vst.msk [vmem:[#allocation3 + $0x98] sm:$0xff] %vm972, %v5526
      %5559 = vst.msk [vmem:[#allocation3 + $0xa0] sm:$0xff] %vm972, %v5527
      %5560 = vst.msk [vmem:[#allocation3 + $0xa8] sm:$0xff] %vm972, %v5528
      %5561 = vst.msk [vmem:[#allocation3 + $0xb0] sm:$0xff] %vm972, %v5529
      %5562 = vst.msk [vmem:[#allocation3 + $0xb8] sm:$0xff] %vm972, %v5530
      %5563 = vst.msk [vmem:[#allocation3 + $0xc0] sm:$0xff] %vm972, %v5531
      %5564 = vst.msk [vmem:[#allocation3 + $0xc8] sm:$0xff] %vm972, %v5532
      %5565 = vst.msk [vmem:[#allocation3 + $0xd0] sm:$0xff] %vm972, %v5533
      %5566 = vst.msk [vmem:[#allocation3 + $0xd8] sm:$0xff] %vm972, %v5534
      %5567 = vst.msk [vmem:[#allocation3 + $0xe0] sm:$0xff] %vm972, %v5535
      %5568 = vst.msk [vmem:[#allocation3 + $0xe8] sm:$0xff] %vm972, %v5536
      %5569 = vst.msk [vmem:[#allocation3 + $0xf0] sm:$0xff] %vm972, %v5537
      %5570 = vst.msk [vmem:[#allocation3 + $0xf8] sm:$0xff] %vm972, %v5538
      %v5571 = vld [vmem:[%s4358] sm:$0xe]
      %v5572 = vld [vmem:[%s4358 + $0x4] sm:$0xf]
      %v5573 = vld [vmem:[%s4358 + $0x8] sm:$0x1]
      %v5574 = vld [vmem:[%s4358 + $0xc] sm:$0xe]
      %v5575 = vld [vmem:[%s4358 + $0x10] sm:$0xf]
      %v5576 = vld [vmem:[%s4358 + $0x14] sm:$0x1]
      %v5577 = vld [vmem:[%s4358 + $0x18] sm:$0xe]
      %v5578 = vld [vmem:[%s4358 + $0x1c] sm:$0xf]
      %v5579 = vld [vmem:[%s4358 + $0x20] sm:$0x1]
      %v5580 = vld [vmem:[%s4358 + $0x24] sm:$0xe]
      %v5581 = vld [vmem:[%s4358 + $0x28] sm:$0xf]
      %v5582 = vld [vmem:[%s4358 + $0x2c] sm:$0x1]
      %v5583 = vld [vmem:[%s4358 + $0x30] sm:$0xe]
      %v5584 = vld [vmem:[%s4358 + $0x34] sm:$0xf]
      %v5585 = vld [vmem:[%s4358 + $0x38] sm:$0x1]
      %v5586 = vld [vmem:[%s4358 + $0x3c] sm:$0xe]
      %v5587 = vld [vmem:[%s4358 + $0x40] sm:$0xf]
      %v5588 = vld [vmem:[%s4358 + $0x44] sm:$0x1]
      %v5589 = vld [vmem:[%s4358 + $0x48] sm:$0xe]
      %v5590 = vld [vmem:[%s4358 + $0x4c] sm:$0xf]
      %v5591 = vld [vmem:[%s4358 + $0x50] sm:$0x1]
      %v5592 = vld [vmem:[%s4358 + $0x54] sm:$0xe]
      %v5593 = vld [vmem:[%s4358 + $0x58] sm:$0xf]
      %v5594 = vld [vmem:[%s4358 + $0x5c] sm:$0x1]
      %v5595 = vld [vmem:[%s4358 + $0x60] sm:$0xe]
      %v5596 = vld [vmem:[%s4358 + $0x64] sm:$0xf]
      %v5597 = vld [vmem:[%s4358 + $0x68] sm:$0x1]
      %v5598 = vld [vmem:[%s4358 + $0x6c] sm:$0xe]
      %v5599 = vld [vmem:[%s4358 + $0x70] sm:$0xf]
      %v5600 = vld [vmem:[%s4358 + $0x74] sm:$0x1]
      %v5601 = vld [vmem:[%s4358 + $0x78] sm:$0xe]
      %v5602 = vld [vmem:[%s4358 + $0x7c] sm:$0xf]
      %v5603 = vld [vmem:[%s4358 + $0x80] sm:$0x1]
      %v5604 = vld [vmem:[%s4358 + $0x84] sm:$0xe]
      %v5605 = vld [vmem:[%s4358 + $0x88] sm:$0xf]
      %v5606 = vld [vmem:[%s4358 + $0x8c] sm:$0x1]
      %v5607 = vld [vmem:[%s4358 + $0x90] sm:$0xe]
      %v5608 = vld [vmem:[%s4358 + $0x94] sm:$0xf]
      %v5609 = vld [vmem:[%s4358 + $0x98] sm:$0x1]
      %v5610 = vld [vmem:[%s4358 + $0x9c] sm:$0xe]
      %v5611 = vld [vmem:[%s4358 + $0xa0] sm:$0xf]
      %v5612 = vld [vmem:[%s4358 + $0xa4] sm:$0x1]
      %v5613 = vld [vmem:[%s4358 + $0xa8] sm:$0xe]
      %v5614 = vld [vmem:[%s4358 + $0xac] sm:$0xf]
      %v5615 = vld [vmem:[%s4358 + $0xb0] sm:$0x1]
      %v5616 = vld [vmem:[%s4358 + $0xb4] sm:$0xe]
      %v5617 = vld [vmem:[%s4358 + $0xb8] sm:$0xf]
      %v5618 = vld [vmem:[%s4358 + $0xbc] sm:$0x1]
      %v5667 = vrot.slane %v5571, 5
      %v5668 = vrot.slane %v5667, 4
      %v5669 = vrot.slane %v5572, 5
      %v5670 = vsel %vm2109, %v5668, %v5669
      %v5671 = vrot.slane %v5669, 4
      %v5672 = vrot.slane %v5573, 5
      %v5673 = vsel %vm2109, %v5671, %v5672
      %v5674 = vrot.slane %v5574, 5
      %v5675 = vrot.slane %v5674, 4
      %v5676 = vrot.slane %v5575, 5
      %v5677 = vsel %vm2109, %v5675, %v5676
      %v5678 = vrot.slane %v5676, 4
      %v5679 = vrot.slane %v5576, 5
      %v5680 = vsel %vm2109, %v5678, %v5679
      %v5681 = vrot.slane %v5577, 5
      %v5682 = vrot.slane %v5681, 4
      %v5683 = vrot.slane %v5578, 5
      %v5684 = vsel %vm2109, %v5682, %v5683
      %v5685 = vrot.slane %v5683, 4
      %v5686 = vrot.slane %v5579, 5
      %v5687 = vsel %vm2109, %v5685, %v5686
      %v5688 = vrot.slane %v5580, 5
      %v5689 = vrot.slane %v5688, 4
      %v5690 = vrot.slane %v5581, 5
      %v5691 = vsel %vm2109, %v5689, %v5690
      %v5692 = vrot.slane %v5690, 4
      %v5693 = vrot.slane %v5582, 5
      %v5694 = vsel %vm2109, %v5692, %v5693
      %v5695 = vrot.slane %v5583, 5
      %v5696 = vrot.slane %v5695, 4
      %v5697 = vrot.slane %v5584, 5
      %v5698 = vsel %vm2109, %v5696, %v5697
      %v5699 = vrot.slane %v5697, 4
      %v5700 = vrot.slane %v5585, 5
      %v5701 = vsel %vm2109, %v5699, %v5700
      %v5702 = vrot.slane %v5586, 5
      %v5703 = vrot.slane %v5702, 4
      %v5704 = vrot.slane %v5587, 5
      %v5705 = vsel %vm2109, %v5703, %v5704
      %v5706 = vrot.slane %v5704, 4
      %v5707 = vrot.slane %v5588, 5
      %v5708 = vsel %vm2109, %v5706, %v5707
      %v5709 = vrot.slane %v5589, 5
      %v5710 = vrot.slane %v5709, 4
      %v5711 = vrot.slane %v5590, 5
      %v5712 = vsel %vm2109, %v5710, %v5711
      %v5713 = vrot.slane %v5711, 4
      %v5714 = vrot.slane %v5591, 5
      %v5715 = vsel %vm2109, %v5713, %v5714
      %v5716 = vrot.slane %v5592, 5
      %v5717 = vrot.slane %v5716, 4
      %v5718 = vrot.slane %v5593, 5
      %v5719 = vsel %vm2109, %v5717, %v5718
      %v5720 = vrot.slane %v5718, 4
      %v5721 = vrot.slane %v5594, 5
      %v5722 = vsel %vm2109, %v5720, %v5721
      %v5723 = vrot.slane %v5595, 5
      %v5724 = vrot.slane %v5723, 4
      %v5725 = vrot.slane %v5596, 5
      %v5726 = vsel %vm2109, %v5724, %v5725
      %v5727 = vrot.slane %v5725, 4
      %v5728 = vrot.slane %v5597, 5
      %v5729 = vsel %vm2109, %v5727, %v5728
      %v5730 = vrot.slane %v5598, 5
      %v5731 = vrot.slane %v5730, 4
      %v5732 = vrot.slane %v5599, 5
      %v5733 = vsel %vm2109, %v5731, %v5732
      %v5734 = vrot.slane %v5732, 4
      %v5735 = vrot.slane %v5600, 5
      %v5736 = vsel %vm2109, %v5734, %v5735
      %v5737 = vrot.slane %v5601, 5
      %v5738 = vrot.slane %v5737, 4
      %v5739 = vrot.slane %v5602, 5
      %v5740 = vsel %vm2109, %v5738, %v5739
      %v5741 = vrot.slane %v5739, 4
      %v5742 = vrot.slane %v5603, 5
      %v5743 = vsel %vm2109, %v5741, %v5742
      %v5744 = vrot.slane %v5604, 5
      %v5745 = vrot.slane %v5744, 4
      %v5746 = vrot.slane %v5605, 5
      %v5747 = vsel %vm2109, %v5745, %v5746
      %v5748 = vrot.slane %v5746, 4
      %v5749 = vrot.slane %v5606, 5
      %v5750 = vsel %vm2109, %v5748, %v5749
      %v5751 = vrot.slane %v5607, 5
      %v5752 = vrot.slane %v5751, 4
      %v5753 = vrot.slane %v5608, 5
      %v5754 = vsel %vm2109, %v5752, %v5753
      %v5755 = vrot.slane %v5753, 4
      %v5756 = vrot.slane %v5609, 5
      %v5757 = vsel %vm2109, %v5755, %v5756
      %v5758 = vrot.slane %v5610, 5
      %v5759 = vrot.slane %v5758, 4
      %v5760 = vrot.slane %v5611, 5
      %v5761 = vsel %vm2109, %v5759, %v5760
      %v5762 = vrot.slane %v5760, 4
      %v5763 = vrot.slane %v5612, 5
      %v5764 = vsel %vm2109, %v5762, %v5763
      %v5765 = vrot.slane %v5613, 5
      %v5766 = vrot.slane %v5765, 4
      %v5767 = vrot.slane %v5614, 5
      %v5768 = vsel %vm2109, %v5766, %v5767
      %v5769 = vrot.slane %v5767, 4
      %v5770 = vrot.slane %v5615, 5
      %v5771 = vsel %vm2109, %v5769, %v5770
      %v5772 = vrot.slane %v5616, 5
      %v5773 = vrot.slane %v5772, 4
      %v5774 = vrot.slane %v5617, 5
      %v5775 = vsel %vm2109, %v5773, %v5774
      %v5776 = vrot.slane %v5774, 4
      %v5777 = vrot.slane %v5618, 5
      %v5778 = vsel %vm2109, %v5776, %v5777
      %s5779 = scalar_lea.vmem %s1, 16
      %v5780 = vld [vmem:[%s5779] sm:$0x3]
      %v5781 = vunpack.c.l.b16 %v5670
      %v5782 = vunpack.c.l.b16 %v5673
      %v5783 = vunpack.c.l.b16 %v5677
      %v5784 = vunpack.c.l.b16 %v5680
      %v5785 = vunpack.c.l.b16 %v5684
      %v5786 = vunpack.c.l.b16 %v5687
      %v5787 = vunpack.c.l.b16 %v5691
      %v5788 = vunpack.c.l.b16 %v5694
      %v5789 = vunpack.c.l.b16 %v5698
      %v5790 = vunpack.c.l.b16 %v5701
      %v5791 = vunpack.c.l.b16 %v5705
      %v5792 = vunpack.c.l.b16 %v5708
      %v5793 = vunpack.c.l.b16 %v5712
      %v5794 = vunpack.c.l.b16 %v5715
      %v5795 = vunpack.c.l.b16 %v5719
      %v5796 = vunpack.c.l.b16 %v5722
      %v5797 = vunpack.c.l.b16 %v5726
      %v5798 = vunpack.c.l.b16 %v5729
      %v5799 = vunpack.c.l.b16 %v5733
      %v5800 = vunpack.c.l.b16 %v5736
      %v5801 = vunpack.c.l.b16 %v5740
      %v5802 = vunpack.c.l.b16 %v5743
      %v5803 = vunpack.c.l.b16 %v5747
      %v5804 = vunpack.c.l.b16 %v5750
      %v5805 = vunpack.c.l.b16 %v5754
      %v5806 = vunpack.c.l.b16 %v5757
      %v5807 = vunpack.c.l.b16 %v5761
      %v5808 = vunpack.c.l.b16 %v5764
      %v5809 = vunpack.c.l.b16 %v5768
      %v5810 = vunpack.c.l.b16 %v5771
      %v5811 = vunpack.c.l.b16 %v5775
      %v5812 = vunpack.c.l.b16 %v5778
      %v5813 = vpack.c.b16 %v5782, %v5781
      %v5814 = vpack.c.b16 %v5784, %v5783
      %v5815 = vpack.c.b16 %v5786, %v5785
      %v5816 = vpack.c.b16 %v5788, %v5787
      %v5817 = vpack.c.b16 %v5790, %v5789
      %v5818 = vpack.c.b16 %v5792, %v5791
      %v5819 = vpack.c.b16 %v5794, %v5793
      %v5820 = vpack.c.b16 %v5796, %v5795
      %v5821 = vpack.c.b16 %v5798, %v5797
      %v5822 = vpack.c.b16 %v5800, %v5799
      %v5823 = vpack.c.b16 %v5802, %v5801
      %v5824 = vpack.c.b16 %v5804, %v5803
      %v5825 = vpack.c.b16 %v5806, %v5805
      %v5826 = vpack.c.b16 %v5808, %v5807
      %v5827 = vpack.c.b16 %v5810, %v5809
      %v5828 = vpack.c.b16 %v5812, %v5811
      %v5830 = vsel %vm972, %v5813, 0
      %v5833 = vsel %vm972, %v5814, 0
      %v5836 = vsel %vm972, %v5815, 0
      %v5839 = vsel %vm972, %v5816, 0
      %v5842 = vsel %vm972, %v5817, 0
      %v5845 = vsel %vm972, %v5818, 0
      %v5848 = vsel %vm972, %v5819, 0
      %v5851 = vsel %vm972, %v5820, 0
      %v5854 = vsel %vm972, %v5821, 0
      %v5857 = vsel %vm972, %v5822, 0
      %v5860 = vsel %vm972, %v5823, 0
      %v5863 = vsel %vm972, %v5824, 0
      %v5866 = vsel %vm972, %v5825, 0
      %v5869 = vsel %vm972, %v5826, 0
      %v5872 = vsel %vm972, %v5827, 0
      %v5875 = vsel %vm972, %v5828, 0
      %v5878 = vsel %vm1021, %v5780, 0
      %5880 = vmatprep.subr.bf16.mxu0 0
      %5881 = vmatpush1.bf16.msra.mxu0 0
      %5882 = vmatprep.subr.bf16.mxu0 0
      %5883 = vmatpush1.bf16.msra.mxu0 0
      %5884 = vmatprep.subr.bf16.mxu0 0
      %5885 = vmatpush1.bf16.msra.mxu0 0
      %5886 = vmatprep.subr.bf16.mxu0 0
      %5887 = vmatpush1.bf16.msra.mxu0 0
      %5888 = vmatprep.subr.bf16.mxu0 0
      %5889 = vmatpush1.bf16.msra.mxu0 0
      %5890 = vmatprep.subr.bf16.mxu0 0
      %5891 = vmatpush1.bf16.msra.mxu0 0
      %5892 = vmatprep.subr.bf16.mxu0 0
      %5893 = vmatpush1.bf16.msra.mxu0 0
      %5894 = vmatprep.subr.bf16.mxu0 0
      %5895 = vmatpush1.bf16.msra.mxu0 %v5878
      %5896 = vmatprep.subr.bf16.mxu0 0
      %5897 = vmatpush2.bf16.msra.mxu0 0
      %5898 = vmatprep.subr.bf16.mxu0 0
      %5899 = vmatpush2.bf16.msra.mxu0 0
      %5900 = vmatprep.subr.bf16.mxu0 0
      %5901 = vmatpush2.bf16.msra.mxu0 0
      %5902 = vmatprep.subr.bf16.mxu0 0
      %5903 = vmatpush2.bf16.msra.mxu0 0
      %5904 = vmatprep.subr.bf16.mxu0 0
      %5905 = vmatpush2.bf16.msra.mxu0 0
      %5906 = vmatprep.subr.bf16.mxu0 0
      %5907 = vmatpush2.bf16.msra.mxu0 0
      %5908 = vmatprep.subr.bf16.mxu0 0
      %5909 = vmatpush2.bf16.msra.mxu0 0
      %5910 = vmatprep.subr.bf16.mxu0 0
      %5911 = vmatpush2.bf16.msra.mxu0 0
      %5912 = vmatprep.mubr.bf16.mxu0 0
      %5913 = vmatmul.mubr.bf16.gmra.mxu0 %v5830
      %v5914 = vpop.f32.mrf.mxu0
      %v5915 = vadd.f32 0.0, %v5914
      %v5916 = vpop.f32.mrf.mxu0
      %v5917 = vpop.f32.mrf.mxu0
      %v5918 = vadd.f32 0.0, %v5917
      %v5919 = vpop.f32.mrf.mxu0
      %5920 = vmatprep.mubr.bf16.mxu0 0
      %5921 = vmatmul.mubr.bf16.gmra.mxu0 %v5833
      %v5922 = vpop.f32.mrf.mxu0
      %v5923 = vadd.f32 0.0, %v5922
      %v5924 = vpop.f32.mrf.mxu0
      %v5925 = vpop.f32.mrf.mxu0
      %v5926 = vadd.f32 0.0, %v5925
      %v5927 = vpop.f32.mrf.mxu0
      %5928 = vmatprep.mubr.bf16.mxu0 0
      %5929 = vmatmul.mubr.bf16.gmra.mxu0 %v5836
      %v5930 = vpop.f32.mrf.mxu0
      %v5931 = vadd.f32 0.0, %v5930
      %v5932 = vpop.f32.mrf.mxu0
      %v5933 = vpop.f32.mrf.mxu0
      %v5934 = vadd.f32 0.0, %v5933
      %v5935 = vpop.f32.mrf.mxu0
      %5936 = vmatprep.mubr.bf16.mxu0 0
      %5937 = vmatmul.mubr.bf16.gmra.mxu0 %v5839
      %v5938 = vpop.f32.mrf.mxu0
      %v5939 = vadd.f32 0.0, %v5938
      %v5940 = vpop.f32.mrf.mxu0
      %v5941 = vpop.f32.mrf.mxu0
      %v5942 = vadd.f32 0.0, %v5941
      %v5943 = vpop.f32.mrf.mxu0
      %5944 = vmatprep.mubr.bf16.mxu0 0
      %5945 = vmatmul.mubr.bf16.gmra.mxu0 %v5842
      %v5946 = vpop.f32.mrf.mxu0
      %v5947 = vadd.f32 0.0, %v5946
      %v5948 = vpop.f32.mrf.mxu0
      %v5949 = vpop.f32.mrf.mxu0
      %v5950 = vadd.f32 0.0, %v5949
      %v5951 = vpop.f32.mrf.mxu0
      %5952 = vmatprep.mubr.bf16.mxu0 0
      %5953 = vmatmul.mubr.bf16.gmra.mxu0 %v5845
      %v5954 = vpop.f32.mrf.mxu0
      %v5955 = vadd.f32 0.0, %v5954
      %v5956 = vpop.f32.mrf.mxu0
      %v5957 = vpop.f32.mrf.mxu0
      %v5958 = vadd.f32 0.0, %v5957
      %v5959 = vpop.f32.mrf.mxu0
      %5960 = vmatprep.mubr.bf16.mxu0 0
      %5961 = vmatmul.mubr.bf16.gmra.mxu0 %v5848
      %v5962 = vpop.f32.mrf.mxu0
      %v5963 = vadd.f32 0.0, %v5962
      %v5964 = vpop.f32.mrf.mxu0
      %v5965 = vpop.f32.mrf.mxu0
      %v5966 = vadd.f32 0.0, %v5965
      %v5967 = vpop.f32.mrf.mxu0
      %5968 = vmatprep.mubr.bf16.mxu0 0
      %5969 = vmatmul.mubr.bf16.gmra.mxu0 %v5851
      %v5970 = vpop.f32.mrf.mxu0
      %v5971 = vadd.f32 0.0, %v5970
      %v5972 = vpop.f32.mrf.mxu0
      %v5973 = vpop.f32.mrf.mxu0
      %v5974 = vadd.f32 0.0, %v5973
      %v5975 = vpop.f32.mrf.mxu0
      %5976 = vmatprep.mubr.bf16.mxu0 0
      %5977 = vmatmul.mubr.bf16.gmra.mxu0 %v5854
      %v5978 = vpop.f32.mrf.mxu0
      %v5979 = vadd.f32 0.0, %v5978
      %v5980 = vpop.f32.mrf.mxu0
      %v5981 = vpop.f32.mrf.mxu0
      %v5982 = vadd.f32 0.0, %v5981
      %v5983 = vpop.f32.mrf.mxu0
      %5984 = vmatprep.mubr.bf16.mxu0 0
      %5985 = vmatmul.mubr.bf16.gmra.mxu0 %v5857
      %v5986 = vpop.f32.mrf.mxu0
      %v5987 = vadd.f32 0.0, %v5986
      %v5988 = vpop.f32.mrf.mxu0
      %v5989 = vpop.f32.mrf.mxu0
      %v5990 = vadd.f32 0.0, %v5989
      %v5991 = vpop.f32.mrf.mxu0
      %5992 = vmatprep.mubr.bf16.mxu0 0
      %5993 = vmatmul.mubr.bf16.gmra.mxu0 %v5860
      %v5994 = vpop.f32.mrf.mxu0
      %v5995 = vadd.f32 0.0, %v5994
      %v5996 = vpop.f32.mrf.mxu0
      %v5997 = vpop.f32.mrf.mxu0
      %v5998 = vadd.f32 0.0, %v5997
      %v5999 = vpop.f32.mrf.mxu0
      %6000 = vmatprep.mubr.bf16.mxu0 0
      %6001 = vmatmul.mubr.bf16.gmra.mxu0 %v5863
      %v6002 = vpop.f32.mrf.mxu0
      %v6003 = vadd.f32 0.0, %v6002
      %v6004 = vpop.f32.mrf.mxu0
      %v6005 = vpop.f32.mrf.mxu0
      %v6006 = vadd.f32 0.0, %v6005
      %v6007 = vpop.f32.mrf.mxu0
      %6008 = vmatprep.mubr.bf16.mxu0 0
      %6009 = vmatmul.mubr.bf16.gmra.mxu0 %v5866
      %v6010 = vpop.f32.mrf.mxu0
      %v6011 = vadd.f32 0.0, %v6010
      %v6012 = vpop.f32.mrf.mxu0
      %v6013 = vpop.f32.mrf.mxu0
      %v6014 = vadd.f32 0.0, %v6013
      %v6015 = vpop.f32.mrf.mxu0
      %6016 = vmatprep.mubr.bf16.mxu0 0
      %6017 = vmatmul.mubr.bf16.gmra.mxu0 %v5869
      %v6018 = vpop.f32.mrf.mxu0
      %v6019 = vadd.f32 0.0, %v6018
      %v6020 = vpop.f32.mrf.mxu0
      %v6021 = vpop.f32.mrf.mxu0
      %v6022 = vadd.f32 0.0, %v6021
      %v6023 = vpop.f32.mrf.mxu0
      %6024 = vmatprep.mubr.bf16.mxu0 0
      %6025 = vmatmul.mubr.bf16.gmra.mxu0 %v5872
      %v6026 = vpop.f32.mrf.mxu0
      %v6027 = vadd.f32 0.0, %v6026
      %v6028 = vpop.f32.mrf.mxu0
      %v6029 = vpop.f32.mrf.mxu0
      %v6030 = vadd.f32 0.0, %v6029
      %v6031 = vpop.f32.mrf.mxu0
      %6032 = vmatprep.mubr.bf16.mxu0 0
      %6033 = vmatmul.mubr.bf16.gmra.mxu0 %v5875
      %v6034 = vpop.f32.mrf.mxu0
      %v6035 = vadd.f32 0.0, %v6034
      %v6036 = vpop.f32.mrf.mxu0
      %v6037 = vpop.f32.mrf.mxu0
      %v6038 = vadd.f32 0.0, %v6037
      %v6039 = vpop.f32.mrf.mxu0
      %6040 = vdwg.mxu0
      %v6041 = vld [vmem:[#allocation3] sm:$0xff]
      %v6042 = vld [vmem:[#allocation3 + $0x8] sm:$0xff]
      %v6043 = vld [vmem:[#allocation3 + $0x10] sm:$0xff]
      %v6044 = vld [vmem:[#allocation3 + $0x18] sm:$0xff]
      %v6045 = vld [vmem:[#allocation3 + $0x20] sm:$0xff]
      %v6046 = vld [vmem:[#allocation3 + $0x28] sm:$0xff]
      %v6047 = vld [vmem:[#allocation3 + $0x30] sm:$0xff]
      %v6048 = vld [vmem:[#allocation3 + $0x38] sm:$0xff]
      %v6049 = vld [vmem:[#allocation3 + $0x40] sm:$0xff]
      %v6050 = vld [vmem:[#allocation3 + $0x48] sm:$0xff]
      %v6051 = vld [vmem:[#allocation3 + $0x50] sm:$0xff]
      %v6052 = vld [vmem:[#allocation3 + $0x58] sm:$0xff]
      %v6053 = vld [vmem:[#allocation3 + $0x60] sm:$0xff]
      %v6054 = vld [vmem:[#allocation3 + $0x68] sm:$0xff]
      %v6055 = vld [vmem:[#allocation3 + $0x70] sm:$0xff]
      %v6056 = vld [vmem:[#allocation3 + $0x78] sm:$0xff]
      %v6057 = vld [vmem:[#allocation3 + $0x80] sm:$0xff]
      %v6058 = vld [vmem:[#allocation3 + $0x88] sm:$0xff]
      %v6059 = vld [vmem:[#allocation3 + $0x90] sm:$0xff]
      %v6060 = vld [vmem:[#allocation3 + $0x98] sm:$0xff]
      %v6061 = vld [vmem:[#allocation3 + $0xa0] sm:$0xff]
      %v6062 = vld [vmem:[#allocation3 + $0xa8] sm:$0xff]
      %v6063 = vld [vmem:[#allocation3 + $0xb0] sm:$0xff]
      %v6064 = vld [vmem:[#allocation3 + $0xb8] sm:$0xff]
      %v6065 = vld [vmem:[#allocation3 + $0xc0] sm:$0xff]
      %v6066 = vld [vmem:[#allocation3 + $0xc8] sm:$0xff]
      %v6067 = vld [vmem:[#allocation3 + $0xd0] sm:$0xff]
      %v6068 = vld [vmem:[#allocation3 + $0xd8] sm:$0xff]
      %v6069 = vld [vmem:[#allocation3 + $0xe0] sm:$0xff]
      %v6070 = vld [vmem:[#allocation3 + $0xe8] sm:$0xff]
      %v6071 = vld [vmem:[#allocation3 + $0xf0] sm:$0xff]
      %v6072 = vld [vmem:[#allocation3 + $0xf8] sm:$0xff]
      %v6073 = vadd.f32 %v6041, %v5915
      %v6074 = vadd.f32 %v6042, %v5918
      %v6075 = vadd.f32 %v6043, %v5923
      %v6076 = vadd.f32 %v6044, %v5926
      %v6077 = vadd.f32 %v6045, %v5931
      %v6078 = vadd.f32 %v6046, %v5934
      %v6079 = vadd.f32 %v6047, %v5939
      %v6080 = vadd.f32 %v6048, %v5942
      %v6081 = vadd.f32 %v6049, %v5947
      %v6082 = vadd.f32 %v6050, %v5950
      %v6083 = vadd.f32 %v6051, %v5955
      %v6084 = vadd.f32 %v6052, %v5958
      %v6085 = vadd.f32 %v6053, %v5963
      %v6086 = vadd.f32 %v6054, %v5966
      %v6087 = vadd.f32 %v6055, %v5971
      %v6088 = vadd.f32 %v6056, %v5974
      %v6089 = vadd.f32 %v6057, %v5979
      %v6090 = vadd.f32 %v6058, %v5982
      %v6091 = vadd.f32 %v6059, %v5987
      %v6092 = vadd.f32 %v6060, %v5990
      %v6093 = vadd.f32 %v6061, %v5995
      %v6094 = vadd.f32 %v6062, %v5998
      %v6095 = vadd.f32 %v6063, %v6003
      %v6096 = vadd.f32 %v6064, %v6006
      %v6097 = vadd.f32 %v6065, %v6011
      %v6098 = vadd.f32 %v6066, %v6014
      %v6099 = vadd.f32 %v6067, %v6019
      %v6100 = vadd.f32 %v6068, %v6022
      %v6101 = vadd.f32 %v6069, %v6027
      %v6102 = vadd.f32 %v6070, %v6030
      %v6103 = vadd.f32 %v6071, %v6035
      %v6104 = vadd.f32 %v6072, %v6038
      %6105 = vst.msk [vmem:[#allocation3] sm:$0xff] %vm972, %v6073
      %6106 = vst.msk [vmem:[#allocation3 + $0x8] sm:$0xff] %vm972, %v6074
      %6107 = vst.msk [vmem:[#allocation3 + $0x10] sm:$0xff] %vm972, %v6075
      %6108 = vst.msk [vmem:[#allocation3 + $0x18] sm:$0xff] %vm972, %v6076
      %6109 = vst.msk [vmem:[#allocation3 + $0x20] sm:$0xff] %vm972, %v6077
      %6110 = vst.msk [vmem:[#allocation3 + $0x28] sm:$0xff] %vm972, %v6078
      %6111 = vst.msk [vmem:[#allocation3 + $0x30] sm:$0xff] %vm972, %v6079
      %6112 = vst.msk [vmem:[#allocation3 + $0x38] sm:$0xff] %vm972, %v6080
      %6113 = vst.msk [vmem:[#allocation3 + $0x40] sm:$0xff] %vm972, %v6081
      %6114 = vst.msk [vmem:[#allocation3 + $0x48] sm:$0xff] %vm972, %v6082
      %6115 = vst.msk [vmem:[#allocation3 + $0x50] sm:$0xff] %vm972, %v6083
      %6116 = vst.msk [vmem:[#allocation3 + $0x58] sm:$0xff] %vm972, %v6084
      %6117 = vst.msk [vmem:[#allocation3 + $0x60] sm:$0xff] %vm972, %v6085
      %6118 = vst.msk [vmem:[#allocation3 + $0x68] sm:$0xff] %vm972, %v6086
      %6119 = vst.msk [vmem:[#allocation3 + $0x70] sm:$0xff] %vm972, %v6087
      %6120 = vst.msk [vmem:[#allocation3 + $0x78] sm:$0xff] %vm972, %v6088
      %6121 = vst.msk [vmem:[#allocation3 + $0x80] sm:$0xff] %vm972, %v6089
      %6122 = vst.msk [vmem:[#allocation3 + $0x88] sm:$0xff] %vm972, %v6090
      %6123 = vst.msk [vmem:[#allocation3 + $0x90] sm:$0xff] %vm972, %v6091
      %6124 = vst.msk [vmem:[#allocation3 + $0x98] sm:$0xff] %vm972, %v6092
      %6125 = vst.msk [vmem:[#allocation3 + $0xa0] sm:$0xff] %vm972, %v6093
      %6126 = vst.msk [vmem:[#allocation3 + $0xa8] sm:$0xff] %vm972, %v6094
      %6127 = vst.msk [vmem:[#allocation3 + $0xb0] sm:$0xff] %vm972, %v6095
      %6128 = vst.msk [vmem:[#allocation3 + $0xb8] sm:$0xff] %vm972, %v6096
      %6129 = vst.msk [vmem:[#allocation3 + $0xc0] sm:$0xff] %vm972, %v6097
      %6130 = vst.msk [vmem:[#allocation3 + $0xc8] sm:$0xff] %vm972, %v6098
      %6131 = vst.msk [vmem:[#allocation3 + $0xd0] sm:$0xff] %vm972, %v6099
      %6132 = vst.msk [vmem:[#allocation3 + $0xd8] sm:$0xff] %vm972, %v6100
      %6133 = vst.msk [vmem:[#allocation3 + $0xe0] sm:$0xff] %vm972, %v6101
      %6134 = vst.msk [vmem:[#allocation3 + $0xe8] sm:$0xff] %vm972, %v6102
      %6135 = vst.msk [vmem:[#allocation3 + $0xf0] sm:$0xff] %vm972, %v6103
      %6136 = vst.msk [vmem:[#allocation3 + $0xf8] sm:$0xff] %vm972, %v6104
      %v6137 = vld [vmem:[#allocation3] sm:$0xff]
      %v6138 = vld [vmem:[#allocation3 + $0x8] sm:$0xff]
      %v6139 = vld [vmem:[#allocation3 + $0x10] sm:$0xff]
      %v6140 = vld [vmem:[#allocation3 + $0x18] sm:$0xff]
      %v6141 = vld [vmem:[#allocation3 + $0x20] sm:$0xff]
      %v6142 = vld [vmem:[#allocation3 + $0x28] sm:$0xff]
      %v6143 = vld [vmem:[#allocation3 + $0x30] sm:$0xff]
      %v6144 = vld [vmem:[#allocation3 + $0x38] sm:$0xff]
      %v6145 = vld [vmem:[#allocation3 + $0x40] sm:$0xff]
      %v6146 = vld [vmem:[#allocation3 + $0x48] sm:$0xff]
      %v6147 = vld [vmem:[#allocation3 + $0x50] sm:$0xff]
      %v6148 = vld [vmem:[#allocation3 + $0x58] sm:$0xff]
      %v6149 = vld [vmem:[#allocation3 + $0x60] sm:$0xff]
      %v6150 = vld [vmem:[#allocation3 + $0x68] sm:$0xff]
      %v6151 = vld [vmem:[#allocation3 + $0x70] sm:$0xff]
      %v6152 = vld [vmem:[#allocation3 + $0x78] sm:$0xff]
      %v6153 = vld [vmem:[#allocation3 + $0x80] sm:$0xff]
      %v6154 = vld [vmem:[#allocation3 + $0x88] sm:$0xff]
      %v6155 = vld [vmem:[#allocation3 + $0x90] sm:$0xff]
      %v6156 = vld [vmem:[#allocation3 + $0x98] sm:$0xff]
      %v6157 = vld [vmem:[#allocation3 + $0xa0] sm:$0xff]
      %v6158 = vld [vmem:[#allocation3 + $0xa8] sm:$0xff]
      %v6159 = vld [vmem:[#allocation3 + $0xb0] sm:$0xff]
      %v6160 = vld [vmem:[#allocation3 + $0xb8] sm:$0xff]
      %v6161 = vld [vmem:[#allocation3 + $0xc0] sm:$0xff]
      %v6162 = vld [vmem:[#allocation3 + $0xc8] sm:$0xff]
      %v6163 = vld [vmem:[#allocation3 + $0xd0] sm:$0xff]
      %v6164 = vld [vmem:[#allocation3 + $0xd8] sm:$0xff]
      %v6165 = vld [vmem:[#allocation3 + $0xe0] sm:$0xff]
      %v6166 = vld [vmem:[#allocation3 + $0xe8] sm:$0xff]
      %v6167 = vld [vmem:[#allocation3 + $0xf0] sm:$0xff]
      %v6168 = vld [vmem:[#allocation3 + $0xf8] sm:$0xff]
      %v6169 = vld [vmem:[%s3] sm:$0x1]
      %v6171 = vlaneseq
      %v6172 = vshrl.u32 %v6171, 7
      %v6173 = vsub.s32 0, %v6172
      %v6174 = vrot.slane %v6169, %v6173
      %v6176 = vmul.f32 %v6137, %v6174
      %v6177 = vmul.f32 %v6138, %v6174
      %v6178 = vmul.f32 %v6139, %v6174
      %v6179 = vmul.f32 %v6140, %v6174
      %v6180 = vmul.f32 %v6141, %v6174
      %v6181 = vmul.f32 %v6142, %v6174
      %v6182 = vmul.f32 %v6143, %v6174
      %v6183 = vmul.f32 %v6144, %v6174
      %v6184 = vmul.f32 %v6145, %v6174
      %v6185 = vmul.f32 %v6146, %v6174
      %v6186 = vmul.f32 %v6147, %v6174
      %v6187 = vmul.f32 %v6148, %v6174
      %v6188 = vmul.f32 %v6149, %v6174
      %v6189 = vmul.f32 %v6150, %v6174
      %v6190 = vmul.f32 %v6151, %v6174
      %v6191 = vmul.f32 %v6152, %v6174
      %v6192 = vmul.f32 %v6153, %v6174
      %v6193 = vmul.f32 %v6154, %v6174
      %v6194 = vmul.f32 %v6155, %v6174
      %v6195 = vmul.f32 %v6156, %v6174
      %v6196 = vmul.f32 %v6157, %v6174
      %v6197 = vmul.f32 %v6158, %v6174
      %v6198 = vmul.f32 %v6159, %v6174
      %v6199 = vmul.f32 %v6160, %v6174
      %v6200 = vmul.f32 %v6161, %v6174
      %v6201 = vmul.f32 %v6162, %v6174
      %v6202 = vmul.f32 %v6163, %v6174
      %v6203 = vmul.f32 %v6164, %v6174
      %v6204 = vmul.f32 %v6165, %v6174
      %v6205 = vmul.f32 %v6166, %v6174
      %v6206 = vmul.f32 %v6167, %v6174
      %v6207 = vmul.f32 %v6168, %v6174
      %v6208 = vld [vmem:[%s4] sm:$0x1]
      %v6210 = vlaneseq
      %v6211 = vshrl.u32 %v6210, 7
      %v6212 = vsub.s32 0, %v6211
      %v6213 = vrot.slane %v6208, %v6212
      %v6215 = vadd.f32 %v6176, %v6213
      %v6216 = vadd.f32 %v6177, %v6213
      %v6217 = vadd.f32 %v6178, %v6213
      %v6218 = vadd.f32 %v6179, %v6213
      %v6219 = vadd.f32 %v6180, %v6213
      %v6220 = vadd.f32 %v6181, %v6213
      %v6221 = vadd.f32 %v6182, %v6213
      %v6222 = vadd.f32 %v6183, %v6213
      %v6223 = vadd.f32 %v6184, %v6213
      %v6224 = vadd.f32 %v6185, %v6213
      %v6225 = vadd.f32 %v6186, %v6213
      %v6226 = vadd.f32 %v6187, %v6213
      %v6227 = vadd.f32 %v6188, %v6213
      %v6228 = vadd.f32 %v6189, %v6213
      %v6229 = vadd.f32 %v6190, %v6213
      %v6230 = vadd.f32 %v6191, %v6213
      %v6231 = vadd.f32 %v6192, %v6213
      %v6232 = vadd.f32 %v6193, %v6213
      %v6233 = vadd.f32 %v6194, %v6213
      %v6234 = vadd.f32 %v6195, %v6213
      %v6235 = vadd.f32 %v6196, %v6213
      %v6236 = vadd.f32 %v6197, %v6213
      %v6237 = vadd.f32 %v6198, %v6213
      %v6238 = vadd.f32 %v6199, %v6213
      %v6239 = vadd.f32 %v6200, %v6213
      %v6240 = vadd.f32 %v6201, %v6213
      %v6241 = vadd.f32 %v6202, %v6213
      %v6242 = vadd.f32 %v6203, %v6213
      %v6243 = vadd.f32 %v6204, %v6213
      %v6244 = vadd.f32 %v6205, %v6213
      %v6245 = vadd.f32 %v6206, %v6213
      %v6246 = vadd.f32 %v6207, %v6213
      %v6247 = vmax.f32 %v6215, 0.0
      %v6248 = vmax.f32 %v6216, 0.0
      %v6249 = vmax.f32 %v6217, 0.0
      %v6250 = vmax.f32 %v6218, 0.0
      %v6251 = vmax.f32 %v6219, 0.0
      %v6252 = vmax.f32 %v6220, 0.0
      %v6253 = vmax.f32 %v6221, 0.0
      %v6254 = vmax.f32 %v6222, 0.0
      %v6255 = vmax.f32 %v6223, 0.0
      %v6256 = vmax.f32 %v6224, 0.0
      %v6257 = vmax.f32 %v6225, 0.0
      %v6258 = vmax.f32 %v6226, 0.0
      %v6259 = vmax.f32 %v6227, 0.0
      %v6260 = vmax.f32 %v6228, 0.0
      %v6261 = vmax.f32 %v6229, 0.0
      %v6262 = vmax.f32 %v6230, 0.0
      %v6263 = vmax.f32 %v6231, 0.0
      %v6264 = vmax.f32 %v6232, 0.0
      %v6265 = vmax.f32 %v6233, 0.0
      %v6266 = vmax.f32 %v6234, 0.0
      %v6267 = vmax.f32 %v6235, 0.0
      %v6268 = vmax.f32 %v6236, 0.0
      %v6269 = vmax.f32 %v6237, 0.0
      %v6270 = vmax.f32 %v6238, 0.0
      %v6271 = vmax.f32 %v6239, 0.0
      %v6272 = vmax.f32 %v6240, 0.0
      %v6273 = vmax.f32 %v6241, 0.0
      %v6274 = vmax.f32 %v6242, 0.0
      %v6275 = vmax.f32 %v6243, 0.0
      %v6276 = vmax.f32 %v6244, 0.0
      %v6277 = vmax.f32 %v6245, 0.0
      %v6278 = vmax.f32 %v6246, 0.0
      %v6279 = vpack.c.bf16 %v6248, %v6247
      %v6280 = vpack.c.bf16 %v6250, %v6249
      %v6281 = vpack.c.bf16 %v6252, %v6251
      %v6282 = vpack.c.bf16 %v6254, %v6253
      %v6283 = vpack.c.bf16 %v6256, %v6255
      %v6284 = vpack.c.bf16 %v6258, %v6257
      %v6285 = vpack.c.bf16 %v6260, %v6259
      %v6286 = vpack.c.bf16 %v6262, %v6261
      %v6287 = vpack.c.bf16 %v6264, %v6263
      %v6288 = vpack.c.bf16 %v6266, %v6265
      %v6289 = vpack.c.bf16 %v6268, %v6267
      %v6290 = vpack.c.bf16 %v6270, %v6269
      %v6291 = vpack.c.bf16 %v6272, %v6271
      %v6292 = vpack.c.bf16 %v6274, %v6273
      %v6293 = vpack.c.bf16 %v6276, %v6275
      %v6294 = vpack.c.bf16 %v6278, %v6277
      %v6311 = vunpack.c.l.b16 %v6279
      %v6312 = vunpack.c.h.b16 %v6279
      %v6313 = vunpack.c.l.b16 %v6280
      %v6314 = vunpack.c.h.b16 %v6280
      %v6315 = vunpack.c.l.b16 %v6281
      %v6316 = vunpack.c.h.b16 %v6281
      %v6317 = vunpack.c.l.b16 %v6282
      %v6318 = vunpack.c.h.b16 %v6282
      %v6319 = vunpack.c.l.b16 %v6283
      %v6320 = vunpack.c.h.b16 %v6283
      %v6321 = vunpack.c.l.b16 %v6284
      %v6322 = vunpack.c.h.b16 %v6284
      %v6323 = vunpack.c.l.b16 %v6285
      %v6324 = vunpack.c.h.b16 %v6285
      %v6325 = vunpack.c.l.b16 %v6286
      %v6326 = vunpack.c.h.b16 %v6286
      %v6327 = vunpack.c.l.b16 %v6287
      %v6328 = vunpack.c.h.b16 %v6287
      %v6329 = vunpack.c.l.b16 %v6288
      %v6330 = vunpack.c.h.b16 %v6288
      %v6331 = vunpack.c.l.b16 %v6289
      %v6332 = vunpack.c.h.b16 %v6289
      %v6333 = vunpack.c.l.b16 %v6290
      %v6334 = vunpack.c.h.b16 %v6290
      %v6335 = vunpack.c.l.b16 %v6291
      %v6336 = vunpack.c.h.b16 %v6291
      %v6337 = vunpack.c.l.b16 %v6292
      %v6338 = vunpack.c.h.b16 %v6292
      %v6339 = vunpack.c.l.b16 %v6293
      %v6340 = vunpack.c.h.b16 %v6293
      %v6341 = vunpack.c.l.b16 %v6294
      %v6342 = vunpack.c.h.b16 %v6294
      %v6343 = vpack.c.b16 %v6311, %v6311
      %v6344 = vpack.c.b16 %v6312, %v6312
      %v6345 = vpack.c.b16 %v6313, %v6313
      %v6346 = vpack.c.b16 %v6314, %v6314
      %v6347 = vpack.c.b16 %v6315, %v6315
      %v6348 = vpack.c.b16 %v6316, %v6316
      %v6349 = vpack.c.b16 %v6317, %v6317
      %v6350 = vpack.c.b16 %v6318, %v6318
      %v6351 = vpack.c.b16 %v6319, %v6319
      %v6352 = vpack.c.b16 %v6320, %v6320
      %v6353 = vpack.c.b16 %v6321, %v6321
      %v6354 = vpack.c.b16 %v6322, %v6322
      %v6355 = vpack.c.b16 %v6323, %v6323
      %v6356 = vpack.c.b16 %v6324, %v6324
      %v6357 = vpack.c.b16 %v6325, %v6325
      %v6358 = vpack.c.b16 %v6326, %v6326
      %v6359 = vpack.c.b16 %v6327, %v6327
      %v6360 = vpack.c.b16 %v6328, %v6328
      %v6361 = vpack.c.b16 %v6329, %v6329
      %v6362 = vpack.c.b16 %v6330, %v6330
      %v6363 = vpack.c.b16 %v6331, %v6331
      %v6364 = vpack.c.b16 %v6332, %v6332
      %v6365 = vpack.c.b16 %v6333, %v6333
      %v6366 = vpack.c.b16 %v6334, %v6334
      %v6367 = vpack.c.b16 %v6335, %v6335
      %v6368 = vpack.c.b16 %v6336, %v6336
      %v6369 = vpack.c.b16 %v6337, %v6337
      %v6370 = vpack.c.b16 %v6338, %v6338
      %v6371 = vpack.c.b16 %v6339, %v6339
      %v6372 = vpack.c.b16 %v6340, %v6340
      %v6373 = vpack.c.b16 %v6341, %v6341
      %v6374 = vpack.c.b16 %v6342, %v6342
      %v6376 = vshrl.u32 %v6343, 16
      %v6378 = vrot.slane %v6376, 7
      %v6379 = vshll.u32 %v6343, 16
      %v6381 = vor.u32 %v6378, %v6379
      %v6382 = vrot.slane %v6378, 4
      %v6384 = vshrl.u32 %v6344, 16
      %v6386 = vrot.slane %v6384, 7
      %v6387 = vshll.u32 %v6344, 16
      %v6389 = vor.u32 %v6386, %v6387
      %v6390 = vsel %vm424, %v6382, %v6389
      %v6391 = vrot.slane %v6386, 4
      %v6393 = vshrl.u32 %v6345, 16
      %v6395 = vrot.slane %v6393, 7
      %v6396 = vshll.u32 %v6345, 16
      %v6398 = vor.u32 %v6395, %v6396
      %v6399 = vrot.slane %v6395, 4
      %v6401 = vshrl.u32 %v6346, 16
      %v6403 = vrot.slane %v6401, 7
      %v6404 = vshll.u32 %v6346, 16
      %v6406 = vor.u32 %v6403, %v6404
      %v6407 = vsel %vm424, %v6399, %v6406
      %v6408 = vrot.slane %v6403, 4
      %v6410 = vshrl.u32 %v6347, 16
      %v6412 = vrot.slane %v6410, 7
      %v6413 = vshll.u32 %v6347, 16
      %v6415 = vor.u32 %v6412, %v6413
      %v6416 = vrot.slane %v6412, 4
      %v6418 = vshrl.u32 %v6348, 16
      %v6420 = vrot.slane %v6418, 7
      %v6421 = vshll.u32 %v6348, 16
      %v6423 = vor.u32 %v6420, %v6421
      %v6424 = vsel %vm424, %v6416, %v6423
      %v6425 = vrot.slane %v6420, 4
      %v6427 = vshrl.u32 %v6349, 16
      %v6429 = vrot.slane %v6427, 7
      %v6430 = vshll.u32 %v6349, 16
      %v6432 = vor.u32 %v6429, %v6430
      %v6433 = vrot.slane %v6429, 4
      %v6435 = vshrl.u32 %v6350, 16
      %v6437 = vrot.slane %v6435, 7
      %v6438 = vshll.u32 %v6350, 16
      %v6440 = vor.u32 %v6437, %v6438
      %v6441 = vsel %vm424, %v6433, %v6440
      %v6442 = vrot.slane %v6437, 4
      %v6444 = vshrl.u32 %v6351, 16
      %v6446 = vrot.slane %v6444, 7
      %v6447 = vshll.u32 %v6351, 16
      %v6449 = vor.u32 %v6446, %v6447
      %v6450 = vrot.slane %v6446, 4
      %v6452 = vshrl.u32 %v6352, 16
      %v6454 = vrot.slane %v6452, 7
      %v6455 = vshll.u32 %v6352, 16
      %v6457 = vor.u32 %v6454, %v6455
      %v6458 = vsel %vm424, %v6450, %v6457
      %v6459 = vrot.slane %v6454, 4
      %v6461 = vshrl.u32 %v6353, 16
      %v6463 = vrot.slane %v6461, 7
      %v6464 = vshll.u32 %v6353, 16
      %v6466 = vor.u32 %v6463, %v6464
      %v6467 = vrot.slane %v6463, 4
      %v6469 = vshrl.u32 %v6354, 16
      %v6471 = vrot.slane %v6469, 7
      %v6472 = vshll.u32 %v6354, 16
      %v6474 = vor.u32 %v6471, %v6472
      %v6475 = vsel %vm424, %v6467, %v6474
      %v6476 = vrot.slane %v6471, 4
      %v6478 = vshrl.u32 %v6355, 16
      %v6480 = vrot.slane %v6478, 7
      %v6481 = vshll.u32 %v6355, 16
      %v6483 = vor.u32 %v6480, %v6481
      %v6484 = vrot.slane %v6480, 4
      %v6486 = vshrl.u32 %v6356, 16
      %v6488 = vrot.slane %v6486, 7
      %v6489 = vshll.u32 %v6356, 16
      %v6491 = vor.u32 %v6488, %v6489
      %v6492 = vsel %vm424, %v6484, %v6491
      %v6493 = vrot.slane %v6488, 4
      %v6495 = vshrl.u32 %v6357, 16
      %v6497 = vrot.slane %v6495, 7
      %v6498 = vshll.u32 %v6357, 16
      %v6500 = vor.u32 %v6497, %v6498
      %v6501 = vrot.slane %v6497, 4
      %v6503 = vshrl.u32 %v6358, 16
      %v6505 = vrot.slane %v6503, 7
      %v6506 = vshll.u32 %v6358, 16
      %v6508 = vor.u32 %v6505, %v6506
      %v6509 = vsel %vm424, %v6501, %v6508
      %v6510 = vrot.slane %v6505, 4
      %v6512 = vshrl.u32 %v6359, 16
      %v6514 = vrot.slane %v6512, 7
      %v6515 = vshll.u32 %v6359, 16
      %v6517 = vor.u32 %v6514, %v6515
      %v6518 = vrot.slane %v6514, 4
      %v6520 = vshrl.u32 %v6360, 16
      %v6522 = vrot.slane %v6520, 7
      %v6523 = vshll.u32 %v6360, 16
      %v6525 = vor.u32 %v6522, %v6523
      %v6526 = vsel %vm424, %v6518, %v6525
      %v6527 = vrot.slane %v6522, 4
      %v6529 = vshrl.u32 %v6361, 16
      %v6531 = vrot.slane %v6529, 7
      %v6532 = vshll.u32 %v6361, 16
      %v6534 = vor.u32 %v6531, %v6532
      %v6535 = vrot.slane %v6531, 4
      %v6537 = vshrl.u32 %v6362, 16
      %v6539 = vrot.slane %v6537, 7
      %v6540 = vshll.u32 %v6362, 16
      %v6542 = vor.u32 %v6539, %v6540
      %v6543 = vsel %vm424, %v6535, %v6542
      %v6544 = vrot.slane %v6539, 4
      %v6546 = vshrl.u32 %v6363, 16
      %v6548 = vrot.slane %v6546, 7
      %v6549 = vshll.u32 %v6363, 16
      %v6551 = vor.u32 %v6548, %v6549
      %v6552 = vrot.slane %v6548, 4
      %v6554 = vshrl.u32 %v6364, 16
      %v6556 = vrot.slane %v6554, 7
      %v6557 = vshll.u32 %v6364, 16
      %v6559 = vor.u32 %v6556, %v6557
      %v6560 = vsel %vm424, %v6552, %v6559
      %v6561 = vrot.slane %v6556, 4
      %v6563 = vshrl.u32 %v6365, 16
      %v6565 = vrot.slane %v6563, 7
      %v6566 = vshll.u32 %v6365, 16
      %v6568 = vor.u32 %v6565, %v6566
      %v6569 = vrot.slane %v6565, 4
      %v6571 = vshrl.u32 %v6366, 16
      %v6573 = vrot.slane %v6571, 7
      %v6574 = vshll.u32 %v6366, 16
      %v6576 = vor.u32 %v6573, %v6574
      %v6577 = vsel %vm424, %v6569, %v6576
      %v6578 = vrot.slane %v6573, 4
      %v6580 = vshrl.u32 %v6367, 16
      %v6582 = vrot.slane %v6580, 7
      %v6583 = vshll.u32 %v6367, 16
      %v6585 = vor.u32 %v6582, %v6583
      %v6586 = vrot.slane %v6582, 4
      %v6588 = vshrl.u32 %v6368, 16
      %v6590 = vrot.slane %v6588, 7
      %v6591 = vshll.u32 %v6368, 16
      %v6593 = vor.u32 %v6590, %v6591
      %v6594 = vsel %vm424, %v6586, %v6593
      %v6595 = vrot.slane %v6590, 4
      %v6597 = vshrl.u32 %v6369, 16
      %v6599 = vrot.slane %v6597, 7
      %v6600 = vshll.u32 %v6369, 16
      %v6602 = vor.u32 %v6599, %v6600
      %v6603 = vrot.slane %v6599, 4
      %v6605 = vshrl.u32 %v6370, 16
      %v6607 = vrot.slane %v6605, 7
      %v6608 = vshll.u32 %v6370, 16
      %v6610 = vor.u32 %v6607, %v6608
      %v6611 = vsel %vm424, %v6603, %v6610
      %v6612 = vrot.slane %v6607, 4
      %v6614 = vshrl.u32 %v6371, 16
      %v6616 = vrot.slane %v6614, 7
      %v6617 = vshll.u32 %v6371, 16
      %v6619 = vor.u32 %v6616, %v6617
      %v6620 = vrot.slane %v6616, 4
      %v6622 = vshrl.u32 %v6372, 16
      %v6624 = vrot.slane %v6622, 7
      %v6625 = vshll.u32 %v6372, 16
      %v6627 = vor.u32 %v6624, %v6625
      %v6628 = vsel %vm424, %v6620, %v6627
      %v6629 = vrot.slane %v6624, 4
      %v6631 = vshrl.u32 %v6373, 16
      %v6633 = vrot.slane %v6631, 7
      %v6634 = vshll.u32 %v6373, 16
      %v6636 = vor.u32 %v6633, %v6634
      %v6637 = vrot.slane %v6633, 4
      %v6639 = vshrl.u32 %v6374, 16
      %v6641 = vrot.slane %v6639, 7
      %v6642 = vshll.u32 %v6374, 16
      %v6644 = vor.u32 %v6641, %v6642
      %v6645 = vsel %vm424, %v6637, %v6644
      %v6646 = vrot.slane %v6641, 4
      %v6695 = vld [vmem:[%s289] sm:$0xf]
      %v6696 = vsel %vm746, %v6381, %v6695
      %6697 = vst [vmem:[%s289] sm:$0xf] %v6696
      %6698 = vst.msk [vmem:[%s289 + $0x4] sm:$0xf] %vm280, %v6390
      %v6699 = vld [vmem:[%s289 + $0x8] sm:$0x1]
      %v6700 = vsel %vm292, %v6391, %v6699
      %6701 = vst [vmem:[%s289 + $0x8] sm:$0x1] %v6700
      %v6702 = vld [vmem:[%s289 + $0xc] sm:$0xf]
      %v6703 = vsel %vm746, %v6398, %v6702
      %6704 = vst [vmem:[%s289 + $0xc] sm:$0xf] %v6703
      %6705 = vst.msk [vmem:[%s289 + $0x10] sm:$0xf] %vm280, %v6407
      %v6706 = vld [vmem:[%s289 + $0x14] sm:$0x1]
      %v6707 = vsel %vm292, %v6408, %v6706
      %6708 = vst [vmem:[%s289 + $0x14] sm:$0x1] %v6707
      %v6709 = vld [vmem:[%s289 + $0x18] sm:$0xf]
      %v6710 = vsel %vm746, %v6415, %v6709
      %6711 = vst [vmem:[%s289 + $0x18] sm:$0xf] %v6710
      %6712 = vst.msk [vmem:[%s289 + $0x1c] sm:$0xf] %vm280, %v6424
      %v6713 = vld [vmem:[%s289 + $0x20] sm:$0x1]
      %v6714 = vsel %vm292, %v6425, %v6713
      %6715 = vst [vmem:[%s289 + $0x20] sm:$0x1] %v6714
      %v6716 = vld [vmem:[%s289 + $0x24] sm:$0xf]
      %v6717 = vsel %vm746, %v6432, %v6716
      %6718 = vst [vmem:[%s289 + $0x24] sm:$0xf] %v6717
      %6719 = vst.msk [vmem:[%s289 + $0x28] sm:$0xf] %vm280, %v6441
      %v6720 = vld [vmem:[%s289 + $0x2c] sm:$0x1]
      %v6721 = vsel %vm292, %v6442, %v6720
      %6722 = vst [vmem:[%s289 + $0x2c] sm:$0x1] %v6721
      %v6723 = vld [vmem:[%s289 + $0x30] sm:$0xf]
      %v6724 = vsel %vm746, %v6449, %v6723
      %6725 = vst [vmem:[%s289 + $0x30] sm:$0xf] %v6724
      %6726 = vst.msk [vmem:[%s289 + $0x34] sm:$0xf] %vm280, %v6458
      %v6727 = vld [vmem:[%s289 + $0x38] sm:$0x1]
      %v6728 = vsel %vm292, %v6459, %v6727
      %6729 = vst [vmem:[%s289 + $0x38] sm:$0x1] %v6728
      %v6730 = vld [vmem:[%s289 + $0x3c] sm:$0xf]
      %v6731 = vsel %vm746, %v6466, %v6730
      %6732 = vst [vmem:[%s289 + $0x3c] sm:$0xf] %v6731
      %6733 = vst.msk [vmem:[%s289 + $0x40] sm:$0xf] %vm280, %v6475
      %v6734 = vld [vmem:[%s289 + $0x44] sm:$0x1]
      %v6735 = vsel %vm292, %v6476, %v6734
      %6736 = vst [vmem:[%s289 + $0x44] sm:$0x1] %v6735
      %v6737 = vld [vmem:[%s289 + $0x48] sm:$0xf]
      %v6738 = vsel %vm746, %v6483, %v6737
      %6739 = vst [vmem:[%s289 + $0x48] sm:$0xf] %v6738
      %6740 = vst.msk [vmem:[%s289 + $0x4c] sm:$0xf] %vm280, %v6492
      %v6741 = vld [vmem:[%s289 + $0x50] sm:$0x1]
      %v6742 = vsel %vm292, %v6493, %v6741
      %6743 = vst [vmem:[%s289 + $0x50] sm:$0x1] %v6742
      %v6744 = vld [vmem:[%s289 + $0x54] sm:$0xf]
      %v6745 = vsel %vm746, %v6500, %v6744
      %6746 = vst [vmem:[%s289 + $0x54] sm:$0xf] %v6745
      %6747 = vst.msk [vmem:[%s289 + $0x58] sm:$0xf] %vm280, %v6509
      %v6748 = vld [vmem:[%s289 + $0x5c] sm:$0x1]
      %v6749 = vsel %vm292, %v6510, %v6748
      %6750 = vst [vmem:[%s289 + $0x5c] sm:$0x1] %v6749
      %v6751 = vld [vmem:[%s289 + $0x60] sm:$0xf]
      %v6752 = vsel %vm746, %v6517, %v6751
      %6753 = vst [vmem:[%s289 + $0x60] sm:$0xf] %v6752
      %6754 = vst.msk [vmem:[%s289 + $0x64] sm:$0xf] %vm280, %v6526
      %v6755 = vld [vmem:[%s289 + $0x68] sm:$0x1]
      %v6756 = vsel %vm292, %v6527, %v6755
      %6757 = vst [vmem:[%s289 + $0x68] sm:$0x1] %v6756
      %v6758 = vld [vmem:[%s289 + $0x6c] sm:$0xf]
      %v6759 = vsel %vm746, %v6534, %v6758
      %6760 = vst [vmem:[%s289 + $0x6c] sm:$0xf] %v6759
      %6761 = vst.msk [vmem:[%s289 + $0x70] sm:$0xf] %vm280, %v6543
      %v6762 = vld [vmem:[%s289 + $0x74] sm:$0x1]
      %v6763 = vsel %vm292, %v6544, %v6762
      %6764 = vst [vmem:[%s289 + $0x74] sm:$0x1] %v6763
      %v6765 = vld [vmem:[%s289 + $0x78] sm:$0xf]
      %v6766 = vsel %vm746, %v6551, %v6765
      %6767 = vst [vmem:[%s289 + $0x78] sm:$0xf] %v6766
      %6768 = vst.msk [vmem:[%s289 + $0x7c] sm:$0xf] %vm280, %v6560
      %v6769 = vld [vmem:[%s289 + $0x80] sm:$0x1]
      %v6770 = vsel %vm292, %v6561, %v6769
      %6771 = vst [vmem:[%s289 + $0x80] sm:$0x1] %v6770
      %v6772 = vld [vmem:[%s289 + $0x84] sm:$0xf]
      %v6773 = vsel %vm746, %v6568, %v6772
      %6774 = vst [vmem:[%s289 + $0x84] sm:$0xf] %v6773
      %6775 = vst.msk [vmem:[%s289 + $0x88] sm:$0xf] %vm280, %v6577
      %v6776 = vld [vmem:[%s289 + $0x8c] sm:$0x1]
      %v6777 = vsel %vm292, %v6578, %v6776
      %6778 = vst [vmem:[%s289 + $0x8c] sm:$0x1] %v6777
      %v6779 = vld [vmem:[%s289 + $0x90] sm:$0xf]
      %v6780 = vsel %vm746, %v6585, %v6779
      %6781 = vst [vmem:[%s289 + $0x90] sm:$0xf] %v6780
      %6782 = vst.msk [vmem:[%s289 + $0x94] sm:$0xf] %vm280, %v6594
      %v6783 = vld [vmem:[%s289 + $0x98] sm:$0x1]
      %v6784 = vsel %vm292, %v6595, %v6783
      %6785 = vst [vmem:[%s289 + $0x98] sm:$0x1] %v6784
      %v6786 = vld [vmem:[%s289 + $0x9c] sm:$0xf]
      %v6787 = vsel %vm746, %v6602, %v6786
      %6788 = vst [vmem:[%s289 + $0x9c] sm:$0xf] %v6787
      %6789 = vst.msk [vmem:[%s289 + $0xa0] sm:$0xf] %vm280, %v6611
      %v6790 = vld [vmem:[%s289 + $0xa4] sm:$0x1]
      %v6791 = vsel %vm292, %v6612, %v6790
      %6792 = vst [vmem:[%s289 + $0xa4] sm:$0x1] %v6791
      %v6793 = vld [vmem:[%s289 + $0xa8] sm:$0xf]
      %v6794 = vsel %vm746, %v6619, %v6793
      %6795 = vst [vmem:[%s289 + $0xa8] sm:$0xf] %v6794
      %6796 = vst.msk [vmem:[%s289 + $0xac] sm:$0xf] %vm280, %v6628
      %v6797 = vld [vmem:[%s289 + $0xb0] sm:$0x1]
      %v6798 = vsel %vm292, %v6629, %v6797
      %6799 = vst [vmem:[%s289 + $0xb0] sm:$0x1] %v6798
      %v6800 = vld [vmem:[%s289 + $0xb4] sm:$0xf]
      %v6801 = vsel %vm746, %v6636, %v6800
      %6802 = vst [vmem:[%s289 + $0xb4] sm:$0xf] %v6801
      %6803 = vst.msk [vmem:[%s289 + $0xb8] sm:$0xf] %vm280, %v6645
      %v6804 = vld [vmem:[%s289 + $0xbc] sm:$0x1]
      %v6805 = vsel %vm292, %v6646, %v6804
      %6806 = vst [vmem:[%s289 + $0xbc] sm:$0x1] %v6805
      %v6807 = vld [vmem:[#allocation2] sm:$0xf]
      %v6808 = vld [vmem:[#allocation2 + $0x4] sm:$0xf]
      %v6809 = vld [vmem:[#allocation2 + $0xc] sm:$0xf]
      %v6810 = vld [vmem:[#allocation2 + $0x10] sm:$0xf]
      %v6811 = vld [vmem:[#allocation2 + $0x18] sm:$0xf]
      %v6812 = vld [vmem:[#allocation2 + $0x1c] sm:$0xf]
      %v6813 = vld [vmem:[#allocation2 + $0x24] sm:$0xf]
      %v6814 = vld [vmem:[#allocation2 + $0x28] sm:$0xf]
      %v6815 = vld [vmem:[#allocation2 + $0x30] sm:$0xf]
      %v6816 = vld [vmem:[#allocation2 + $0x34] sm:$0xf]
      %v6817 = vld [vmem:[#allocation2 + $0x3c] sm:$0xf]
      %v6818 = vld [vmem:[#allocation2 + $0x40] sm:$0xf]
      %v6819 = vld [vmem:[#allocation2 + $0x48] sm:$0xf]
      %v6820 = vld [vmem:[#allocation2 + $0x4c] sm:$0xf]
      %v6821 = vld [vmem:[#allocation2 + $0x54] sm:$0xf]
      %v6822 = vld [vmem:[#allocation2 + $0x58] sm:$0xf]
      %v6823 = vld [vmem:[#allocation2 + $0x60] sm:$0xf]
      %v6824 = vld [vmem:[#allocation2 + $0x64] sm:$0xf]
      %v6825 = vld [vmem:[#allocation2 + $0x6c] sm:$0xf]
      %v6826 = vld [vmem:[#allocation2 + $0x70] sm:$0xf]
      %v6827 = vld [vmem:[#allocation2 + $0x78] sm:$0xf]
      %v6828 = vld [vmem:[#allocation2 + $0x7c] sm:$0xf]
      %v6829 = vld [vmem:[#allocation2 + $0x84] sm:$0xf]
      %v6830 = vld [vmem:[#allocation2 + $0x88] sm:$0xf]
      %v6831 = vld [vmem:[#allocation2 + $0x90] sm:$0xf]
      %v6832 = vld [vmem:[#allocation2 + $0x94] sm:$0xf]
      %v6833 = vld [vmem:[#allocation2 + $0x9c] sm:$0xf]
      %v6834 = vld [vmem:[#allocation2 + $0xa0] sm:$0xf]
      %v6835 = vld [vmem:[#allocation2 + $0xa8] sm:$0xf]
      %v6836 = vld [vmem:[#allocation2 + $0xac] sm:$0xf]
      %v6837 = vld [vmem:[#allocation2 + $0xb4] sm:$0xf]
      %v6838 = vld [vmem:[#allocation2 + $0xb8] sm:$0xf]
      %v6839 = vld [vmem:[%s2] sm:$0x3]
      %v6872 = vunpack.c.l.b16 %v6807
      %v6873 = vunpack.c.l.b16 %v6808
      %v6874 = vunpack.c.l.b16 %v6809
      %v6875 = vunpack.c.l.b16 %v6810
      %v6876 = vunpack.c.l.b16 %v6811
      %v6877 = vunpack.c.l.b16 %v6812
      %v6878 = vunpack.c.l.b16 %v6813
      %v6879 = vunpack.c.l.b16 %v6814
      %v6880 = vunpack.c.l.b16 %v6815
      %v6881 = vunpack.c.l.b16 %v6816
      %v6882 = vunpack.c.l.b16 %v6817
      %v6883 = vunpack.c.l.b16 %v6818
      %v6884 = vunpack.c.l.b16 %v6819
      %v6885 = vunpack.c.l.b16 %v6820
      %v6886 = vunpack.c.l.b16 %v6821
      %v6887 = vunpack.c.l.b16 %v6822
      %v6888 = vunpack.c.l.b16 %v6823
      %v6889 = vunpack.c.l.b16 %v6824
      %v6890 = vunpack.c.l.b16 %v6825
      %v6891 = vunpack.c.l.b16 %v6826
      %v6892 = vunpack.c.l.b16 %v6827
      %v6893 = vunpack.c.l.b16 %v6828
      %v6894 = vunpack.c.l.b16 %v6829
      %v6895 = vunpack.c.l.b16 %v6830
      %v6896 = vunpack.c.l.b16 %v6831
      %v6897 = vunpack.c.l.b16 %v6832
      %v6898 = vunpack.c.l.b16 %v6833
      %v6899 = vunpack.c.l.b16 %v6834
      %v6900 = vunpack.c.l.b16 %v6835
      %v6901 = vunpack.c.l.b16 %v6836
      %v6902 = vunpack.c.l.b16 %v6837
      %v6903 = vunpack.c.l.b16 %v6838
      %v6904 = vpack.c.b16 %v6873, %v6872
      %v6905 = vpack.c.b16 %v6875, %v6874
      %v6906 = vpack.c.b16 %v6877, %v6876
      %v6907 = vpack.c.b16 %v6879, %v6878
      %v6908 = vpack.c.b16 %v6881, %v6880
      %v6909 = vpack.c.b16 %v6883, %v6882
      %v6910 = vpack.c.b16 %v6885, %v6884
      %v6911 = vpack.c.b16 %v6887, %v6886
      %v6912 = vpack.c.b16 %v6889, %v6888
      %v6913 = vpack.c.b16 %v6891, %v6890
      %v6914 = vpack.c.b16 %v6893, %v6892
      %v6915 = vpack.c.b16 %v6895, %v6894
      %v6916 = vpack.c.b16 %v6897, %v6896
      %v6917 = vpack.c.b16 %v6899, %v6898
      %v6918 = vpack.c.b16 %v6901, %v6900
      %v6919 = vpack.c.b16 %v6903, %v6902
      %v6921 = vsel %vm972, %v6904, 0
      %v6924 = vsel %vm972, %v6905, 0
      %v6927 = vsel %vm972, %v6906, 0
      %v6930 = vsel %vm972, %v6907, 0
      %v6933 = vsel %vm972, %v6908, 0
      %v6936 = vsel %vm972, %v6909, 0
      %v6939 = vsel %vm972, %v6910, 0
      %v6942 = vsel %vm972, %v6911, 0
      %v6945 = vsel %vm972, %v6912, 0
      %v6948 = vsel %vm972, %v6913, 0
      %v6951 = vsel %vm972, %v6914, 0
      %v6954 = vsel %vm972, %v6915, 0
      %v6957 = vsel %vm972, %v6916, 0
      %v6960 = vsel %vm972, %v6917, 0
      %v6963 = vsel %vm972, %v6918, 0
      %v6966 = vsel %vm972, %v6919, 0
      %v6969 = vsel %vm1021, %v6839, 0
      %6971 = vmatprep.subr.bf16.mxu0 0
      %6972 = vmatpush1.bf16.msra.mxu0 0
      %6973 = vmatprep.subr.bf16.mxu0 0
      %6974 = vmatpush1.bf16.msra.mxu0 0
      %6975 = vmatprep.subr.bf16.mxu0 0
      %6976 = vmatpush1.bf16.msra.mxu0 0
      %6977 = vmatprep.subr.bf16.mxu0 0
      %6978 = vmatpush1.bf16.msra.mxu0 0
      %6979 = vmatprep.subr.bf16.mxu0 0
      %6980 = vmatpush1.bf16.msra.mxu0 0
      %6981 = vmatprep.subr.bf16.mxu0 0
      %6982 = vmatpush1.bf16.msra.mxu0 0
      %6983 = vmatprep.subr.bf16.mxu0 0
      %6984 = vmatpush1.bf16.msra.mxu0 0
      %6985 = vmatprep.subr.bf16.mxu0 0
      %6986 = vmatpush1.bf16.msra.mxu0 %v6969
      %6987 = vmatprep.subr.bf16.mxu0 0
      %6988 = vmatpush2.bf16.msra.mxu0 0
      %6989 = vmatprep.subr.bf16.mxu0 0
      %6990 = vmatpush2.bf16.msra.mxu0 0
      %6991 = vmatprep.subr.bf16.mxu0 0
      %6992 = vmatpush2.bf16.msra.mxu0 0
      %6993 = vmatprep.subr.bf16.mxu0 0
      %6994 = vmatpush2.bf16.msra.mxu0 0
      %6995 = vmatprep.subr.bf16.mxu0 0
      %6996 = vmatpush2.bf16.msra.mxu0 0
      %6997 = vmatprep.subr.bf16.mxu0 0
      %6998 = vmatpush2.bf16.msra.mxu0 0
      %6999 = vmatprep.subr.bf16.mxu0 0
      %7000 = vmatpush2.bf16.msra.mxu0 0
      %7001 = vmatprep.subr.bf16.mxu0 0
      %7002 = vmatpush2.bf16.msra.mxu0 0
      %7003 = vmatprep.mubr.bf16.mxu0 0
      %7004 = vmatmul.mubr.bf16.gmra.mxu0 %v6921
      %v7005 = vpop.f32.mrf.mxu0
      %v7006 = vadd.f32 0.0, %v7005
      %v7007 = vpop.f32.mrf.mxu0
      %v7008 = vpop.f32.mrf.mxu0
      %v7009 = vadd.f32 0.0, %v7008
      %v7010 = vpop.f32.mrf.mxu0
      %7011 = vmatprep.mubr.bf16.mxu0 0
      %7012 = vmatmul.mubr.bf16.gmra.mxu0 %v6924
      %v7013 = vpop.f32.mrf.mxu0
      %v7014 = vadd.f32 0.0, %v7013
      %v7015 = vpop.f32.mrf.mxu0
      %v7016 = vpop.f32.mrf.mxu0
      %v7017 = vadd.f32 0.0, %v7016
      %v7018 = vpop.f32.mrf.mxu0
      %7019 = vmatprep.mubr.bf16.mxu0 0
      %7020 = vmatmul.mubr.bf16.gmra.mxu0 %v6927
      %v7021 = vpop.f32.mrf.mxu0
      %v7022 = vadd.f32 0.0, %v7021
      %v7023 = vpop.f32.mrf.mxu0
      %v7024 = vpop.f32.mrf.mxu0
      %v7025 = vadd.f32 0.0, %v7024
      %v7026 = vpop.f32.mrf.mxu0
      %7027 = vmatprep.mubr.bf16.mxu0 0
      %7028 = vmatmul.mubr.bf16.gmra.mxu0 %v6930
      %v7029 = vpop.f32.mrf.mxu0
      %v7030 = vadd.f32 0.0, %v7029
      %v7031 = vpop.f32.mrf.mxu0
      %v7032 = vpop.f32.mrf.mxu0
      %v7033 = vadd.f32 0.0, %v7032
      %v7034 = vpop.f32.mrf.mxu0
      %7035 = vmatprep.mubr.bf16.mxu0 0
      %7036 = vmatmul.mubr.bf16.gmra.mxu0 %v6933
      %v7037 = vpop.f32.mrf.mxu0
      %v7038 = vadd.f32 0.0, %v7037
      %v7039 = vpop.f32.mrf.mxu0
      %v7040 = vpop.f32.mrf.mxu0
      %v7041 = vadd.f32 0.0, %v7040
      %v7042 = vpop.f32.mrf.mxu0
      %7043 = vmatprep.mubr.bf16.mxu0 0
      %7044 = vmatmul.mubr.bf16.gmra.mxu0 %v6936
      %v7045 = vpop.f32.mrf.mxu0
      %v7046 = vadd.f32 0.0, %v7045
      %v7047 = vpop.f32.mrf.mxu0
      %v7048 = vpop.f32.mrf.mxu0
      %v7049 = vadd.f32 0.0, %v7048
      %v7050 = vpop.f32.mrf.mxu0
      %7051 = vmatprep.mubr.bf16.mxu0 0
      %7052 = vmatmul.mubr.bf16.gmra.mxu0 %v6939
      %v7053 = vpop.f32.mrf.mxu0
      %v7054 = vadd.f32 0.0, %v7053
      %v7055 = vpop.f32.mrf.mxu0
      %v7056 = vpop.f32.mrf.mxu0
      %v7057 = vadd.f32 0.0, %v7056
      %v7058 = vpop.f32.mrf.mxu0
      %7059 = vmatprep.mubr.bf16.mxu0 0
      %7060 = vmatmul.mubr.bf16.gmra.mxu0 %v6942
      %v7061 = vpop.f32.mrf.mxu0
      %v7062 = vadd.f32 0.0, %v7061
      %v7063 = vpop.f32.mrf.mxu0
      %v7064 = vpop.f32.mrf.mxu0
      %v7065 = vadd.f32 0.0, %v7064
      %v7066 = vpop.f32.mrf.mxu0
      %7067 = vmatprep.mubr.bf16.mxu0 0
      %7068 = vmatmul.mubr.bf16.gmra.mxu0 %v6945
      %v7069 = vpop.f32.mrf.mxu0
      %v7070 = vadd.f32 0.0, %v7069
      %v7071 = vpop.f32.mrf.mxu0
      %v7072 = vpop.f32.mrf.mxu0
      %v7073 = vadd.f32 0.0, %v7072
      %v7074 = vpop.f32.mrf.mxu0
      %7075 = vmatprep.mubr.bf16.mxu0 0
      %7076 = vmatmul.mubr.bf16.gmra.mxu0 %v6948
      %v7077 = vpop.f32.mrf.mxu0
      %v7078 = vadd.f32 0.0, %v7077
      %v7079 = vpop.f32.mrf.mxu0
      %v7080 = vpop.f32.mrf.mxu0
      %v7081 = vadd.f32 0.0, %v7080
      %v7082 = vpop.f32.mrf.mxu0
      %7083 = vmatprep.mubr.bf16.mxu0 0
      %7084 = vmatmul.mubr.bf16.gmra.mxu0 %v6951
      %v7085 = vpop.f32.mrf.mxu0
      %v7086 = vadd.f32 0.0, %v7085
      %v7087 = vpop.f32.mrf.mxu0
      %v7088 = vpop.f32.mrf.mxu0
      %v7089 = vadd.f32 0.0, %v7088
      %v7090 = vpop.f32.mrf.mxu0
      %7091 = vmatprep.mubr.bf16.mxu0 0
      %7092 = vmatmul.mubr.bf16.gmra.mxu0 %v6954
      %v7093 = vpop.f32.mrf.mxu0
      %v7094 = vadd.f32 0.0, %v7093
      %v7095 = vpop.f32.mrf.mxu0
      %v7096 = vpop.f32.mrf.mxu0
      %v7097 = vadd.f32 0.0, %v7096
      %v7098 = vpop.f32.mrf.mxu0
      %7099 = vmatprep.mubr.bf16.mxu0 0
      %7100 = vmatmul.mubr.bf16.gmra.mxu0 %v6957
      %v7101 = vpop.f32.mrf.mxu0
      %v7102 = vadd.f32 0.0, %v7101
      %v7103 = vpop.f32.mrf.mxu0
      %v7104 = vpop.f32.mrf.mxu0
      %v7105 = vadd.f32 0.0, %v7104
      %v7106 = vpop.f32.mrf.mxu0
      %7107 = vmatprep.mubr.bf16.mxu0 0
      %7108 = vmatmul.mubr.bf16.gmra.mxu0 %v6960
      %v7109 = vpop.f32.mrf.mxu0
      %v7110 = vadd.f32 0.0, %v7109
      %v7111 = vpop.f32.mrf.mxu0
      %v7112 = vpop.f32.mrf.mxu0
      %v7113 = vadd.f32 0.0, %v7112
      %v7114 = vpop.f32.mrf.mxu0
      %7115 = vmatprep.mubr.bf16.mxu0 0
      %7116 = vmatmul.mubr.bf16.gmra.mxu0 %v6963
      %v7117 = vpop.f32.mrf.mxu0
      %v7118 = vadd.f32 0.0, %v7117
      %v7119 = vpop.f32.mrf.mxu0
      %v7120 = vpop.f32.mrf.mxu0
      %v7121 = vadd.f32 0.0, %v7120
      %v7122 = vpop.f32.mrf.mxu0
      %7123 = vmatprep.mubr.bf16.mxu0 0
      %7124 = vmatmul.mubr.bf16.gmra.mxu0 %v6966
      %v7125 = vpop.f32.mrf.mxu0
      %v7126 = vadd.f32 0.0, %v7125
      %v7127 = vpop.f32.mrf.mxu0
      %v7128 = vpop.f32.mrf.mxu0
      %v7129 = vadd.f32 0.0, %v7128
      %v7130 = vpop.f32.mrf.mxu0
      %7131 = vdwg.mxu0
      %7132 = vst.msk [vmem:[#allocation3] sm:$0xff] %vm972, %v7006
      %7133 = vst.msk [vmem:[#allocation3 + $0x8] sm:$0xff] %vm972, %v7009
      %7134 = vst.msk [vmem:[#allocation3 + $0x10] sm:$0xff] %vm972, %v7014
      %7135 = vst.msk [vmem:[#allocation3 + $0x18] sm:$0xff] %vm972, %v7017
      %7136 = vst.msk [vmem:[#allocation3 + $0x20] sm:$0xff] %vm972, %v7022
      %7137 = vst.msk [vmem:[#allocation3 + $0x28] sm:$0xff] %vm972, %v7025
      %7138 = vst.msk [vmem:[#allocation3 + $0x30] sm:$0xff] %vm972, %v7030
      %7139 = vst.msk [vmem:[#allocation3 + $0x38] sm:$0xff] %vm972, %v7033
      %7140 = vst.msk [vmem:[#allocation3 + $0x40] sm:$0xff] %vm972, %v7038
      %7141 = vst.msk [vmem:[#allocation3 + $0x48] sm:$0xff] %vm972, %v7041
      %7142 = vst.msk [vmem:[#allocation3 + $0x50] sm:$0xff] %vm972, %v7046
      %7143 = vst.msk [vmem:[#allocation3 + $0x58] sm:$0xff] %vm972, %v7049
      %7144 = vst.msk [vmem:[#allocation3 + $0x60] sm:$0xff] %vm972, %v7054
      %7145 = vst.msk [vmem:[#allocation3 + $0x68] sm:$0xff] %vm972, %v7057
      %7146 = vst.msk [vmem:[#allocation3 + $0x70] sm:$0xff] %vm972, %v7062
      %7147 = vst.msk [vmem:[#allocation3 + $0x78] sm:$0xff] %vm972, %v7065
      %7148 = vst.msk [vmem:[#allocation3 + $0x80] sm:$0xff] %vm972, %v7070
      %7149 = vst.msk [vmem:[#allocation3 + $0x88] sm:$0xff] %vm972, %v7073
      %7150 = vst.msk [vmem:[#allocation3 + $0x90] sm:$0xff] %vm972, %v7078
      %7151 = vst.msk [vmem:[#allocation3 + $0x98] sm:$0xff] %vm972, %v7081
      %7152 = vst.msk [vmem:[#allocation3 + $0xa0] sm:$0xff] %vm972, %v7086
      %7153 = vst.msk [vmem:[#allocation3 + $0xa8] sm:$0xff] %vm972, %v7089
      %7154 = vst.msk [vmem:[#allocation3 + $0xb0] sm:$0xff] %vm972, %v7094
      %7155 = vst.msk [vmem:[#allocation3 + $0xb8] sm:$0xff] %vm972, %v7097
      %7156 = vst.msk [vmem:[#allocation3 + $0xc0] sm:$0xff] %vm972, %v7102
      %7157 = vst.msk [vmem:[#allocation3 + $0xc8] sm:$0xff] %vm972, %v7105
      %7158 = vst.msk [vmem:[#allocation3 + $0xd0] sm:$0xff] %vm972, %v7110
      %7159 = vst.msk [vmem:[#allocation3 + $0xd8] sm:$0xff] %vm972, %v7113
      %7160 = vst.msk [vmem:[#allocation3 + $0xe0] sm:$0xff] %vm972, %v7118
      %7161 = vst.msk [vmem:[#allocation3 + $0xe8] sm:$0xff] %vm972, %v7121
      %7162 = vst.msk [vmem:[#allocation3 + $0xf0] sm:$0xff] %vm972, %v7126
      %7163 = vst.msk [vmem:[#allocation3 + $0xf8] sm:$0xff] %vm972, %v7129
      %v7164 = vld [vmem:[#allocation2] sm:$0xf]
      %v7165 = vld [vmem:[#allocation2 + $0x4] sm:$0xf]
      %v7166 = vld [vmem:[#allocation2 + $0x8] sm:$0x1]
      %v7167 = vld [vmem:[#allocation2 + $0xc] sm:$0xf]
      %v7168 = vld [vmem:[#allocation2 + $0x10] sm:$0xf]
      %v7169 = vld [vmem:[#allocation2 + $0x14] sm:$0x1]
      %v7170 = vld [vmem:[#allocation2 + $0x18] sm:$0xf]
      %v7171 = vld [vmem:[#allocation2 + $0x1c] sm:$0xf]
      %v7172 = vld [vmem:[#allocation2 + $0x20] sm:$0x1]
      %v7173 = vld [vmem:[#allocation2 + $0x24] sm:$0xf]
      %v7174 = vld [vmem:[#allocation2 + $0x28] sm:$0xf]
      %v7175 = vld [vmem:[#allocation2 + $0x2c] sm:$0x1]
      %v7176 = vld [vmem:[#allocation2 + $0x30] sm:$0xf]
      %v7177 = vld [vmem:[#allocation2 + $0x34] sm:$0xf]
      %v7178 = vld [vmem:[#allocation2 + $0x38] sm:$0x1]
      %v7179 = vld [vmem:[#allocation2 + $0x3c] sm:$0xf]
      %v7180 = vld [vmem:[#allocation2 + $0x40] sm:$0xf]
      %v7181 = vld [vmem:[#allocation2 + $0x44] sm:$0x1]
      %v7182 = vld [vmem:[#allocation2 + $0x48] sm:$0xf]
      %v7183 = vld [vmem:[#allocation2 + $0x4c] sm:$0xf]
      %v7184 = vld [vmem:[#allocation2 + $0x50] sm:$0x1]
      %v7185 = vld [vmem:[#allocation2 + $0x54] sm:$0xf]
      %v7186 = vld [vmem:[#allocation2 + $0x58] sm:$0xf]
      %v7187 = vld [vmem:[#allocation2 + $0x5c] sm:$0x1]
      %v7188 = vld [vmem:[#allocation2 + $0x60] sm:$0xf]
      %v7189 = vld [vmem:[#allocation2 + $0x64] sm:$0xf]
      %v7190 = vld [vmem:[#allocation2 + $0x68] sm:$0x1]
      %v7191 = vld [vmem:[#allocation2 + $0x6c] sm:$0xf]
      %v7192 = vld [vmem:[#allocation2 + $0x70] sm:$0xf]
      %v7193 = vld [vmem:[#allocation2 + $0x74] sm:$0x1]
      %v7194 = vld [vmem:[#allocation2 + $0x78] sm:$0xf]
      %v7195 = vld [vmem:[#allocation2 + $0x7c] sm:$0xf]
      %v7196 = vld [vmem:[#allocation2 + $0x80] sm:$0x1]
      %v7197 = vld [vmem:[#allocation2 + $0x84] sm:$0xf]
      %v7198 = vld [vmem:[#allocation2 + $0x88] sm:$0xf]
      %v7199 = vld [vmem:[#allocation2 + $0x8c] sm:$0x1]
      %v7200 = vld [vmem:[#allocation2 + $0x90] sm:$0xf]
      %v7201 = vld [vmem:[#allocation2 + $0x94] sm:$0xf]
      %v7202 = vld [vmem:[#allocation2 + $0x98] sm:$0x1]
      %v7203 = vld [vmem:[#allocation2 + $0x9c] sm:$0xf]
      %v7204 = vld [vmem:[#allocation2 + $0xa0] sm:$0xf]
      %v7205 = vld [vmem:[#allocation2 + $0xa4] sm:$0x1]
      %v7206 = vld [vmem:[#allocation2 + $0xa8] sm:$0xf]
      %v7207 = vld [vmem:[#allocation2 + $0xac] sm:$0xf]
      %v7208 = vld [vmem:[#allocation2 + $0xb0] sm:$0x1]
      %v7209 = vld [vmem:[#allocation2 + $0xb4] sm:$0xf]
      %v7210 = vld [vmem:[#allocation2 + $0xb8] sm:$0xf]
      %v7211 = vld [vmem:[#allocation2 + $0xbc] sm:$0x1]
      %v7213 = vshrl.u32 %v7164, 16
      %v7215 = vrot.slane %v7213, 4
      %v7216 = vshll.u32 %v7164, 16
      %v7218 = vrot.slane %v7216, 5
      %v7219 = vor.u32 %v7215, %v7218
      %v7220 = vrot.slane %v7219, 4
      %v7222 = vshll.u32 %v7165, 16
      %v7224 = vrot.slane %v7222, 5
      %v7225 = vsel %vm1268, %v7220, %v7224
      %v7226 = vshrl.u32 %v7165, 16
      %v7228 = vrot.slane %v7226, 4
      %v7229 = vor.u32 %v7228, %v7224
      %v7230 = vrot.slane %v7229, 4
      %v7232 = vshll.u32 %v7166, 16
      %v7234 = vrot.slane %v7232, 5
      %v7235 = vsel %vm1268, %v7230, %v7234
      %v7237 = vshrl.u32 %v7167, 16
      %v7239 = vrot.slane %v7237, 4
      %v7240 = vshll.u32 %v7167, 16
      %v7242 = vrot.slane %v7240, 5
      %v7243 = vor.u32 %v7239, %v7242
      %v7244 = vrot.slane %v7243, 4
      %v7246 = vshll.u32 %v7168, 16
      %v7248 = vrot.slane %v7246, 5
      %v7249 = vsel %vm1268, %v7244, %v7248
      %v7250 = vshrl.u32 %v7168, 16
      %v7252 = vrot.slane %v7250, 4
      %v7253 = vor.u32 %v7252, %v7248
      %v7254 = vrot.slane %v7253, 4
      %v7256 = vshll.u32 %v7169, 16
      %v7258 = vrot.slane %v7256, 5
      %v7259 = vsel %vm1268, %v7254, %v7258
      %v7261 = vshrl.u32 %v7170, 16
      %v7263 = vrot.slane %v7261, 4
      %v7264 = vshll.u32 %v7170, 16
      %v7266 = vrot.slane %v7264, 5
      %v7267 = vor.u32 %v7263, %v7266
      %v7268 = vrot.slane %v7267, 4
      %v7270 = vshll.u32 %v7171, 16
      %v7272 = vrot.slane %v7270, 5
      %v7273 = vsel %vm1268, %v7268, %v7272
      %v7274 = vshrl.u32 %v7171, 16
      %v7276 = vrot.slane %v7274, 4
      %v7277 = vor.u32 %v7276, %v7272
      %v7278 = vrot.slane %v7277, 4
      %v7280 = vshll.u32 %v7172, 16
      %v7282 = vrot.slane %v7280, 5
      %v7283 = vsel %vm1268, %v7278, %v7282
      %v7285 = vshrl.u32 %v7173, 16
      %v7287 = vrot.slane %v7285, 4
      %v7288 = vshll.u32 %v7173, 16
      %v7290 = vrot.slane %v7288, 5
      %v7291 = vor.u32 %v7287, %v7290
      %v7292 = vrot.slane %v7291, 4
      %v7294 = vshll.u32 %v7174, 16
      %v7296 = vrot.slane %v7294, 5
      %v7297 = vsel %vm1268, %v7292, %v7296
      %v7298 = vshrl.u32 %v7174, 16
      %v7300 = vrot.slane %v7298, 4
      %v7301 = vor.u32 %v7300, %v7296
      %v7302 = vrot.slane %v7301, 4
      %v7304 = vshll.u32 %v7175, 16
      %v7306 = vrot.slane %v7304, 5
      %v7307 = vsel %vm1268, %v7302, %v7306
      %v7309 = vshrl.u32 %v7176, 16
      %v7311 = vrot.slane %v7309, 4
      %v7312 = vshll.u32 %v7176, 16
      %v7314 = vrot.slane %v7312, 5
      %v7315 = vor.u32 %v7311, %v7314
      %v7316 = vrot.slane %v7315, 4
      %v7318 = vshll.u32 %v7177, 16
      %v7320 = vrot.slane %v7318, 5
      %v7321 = vsel %vm1268, %v7316, %v7320
      %v7322 = vshrl.u32 %v7177, 16
      %v7324 = vrot.slane %v7322, 4
      %v7325 = vor.u32 %v7324, %v7320
      %v7326 = vrot.slane %v7325, 4
      %v7328 = vshll.u32 %v7178, 16
      %v7330 = vrot.slane %v7328, 5
      %v7331 = vsel %vm1268, %v7326, %v7330
      %v7333 = vshrl.u32 %v7179, 16
      %v7335 = vrot.slane %v7333, 4
      %v7336 = vshll.u32 %v7179, 16
      %v7338 = vrot.slane %v7336, 5
      %v7339 = vor.u32 %v7335, %v7338
      %v7340 = vrot.slane %v7339, 4
      %v7342 = vshll.u32 %v7180, 16
      %v7344 = vrot.slane %v7342, 5
      %v7345 = vsel %vm1268, %v7340, %v7344
      %v7346 = vshrl.u32 %v7180, 16
      %v7348 = vrot.slane %v7346, 4
      %v7349 = vor.u32 %v7348, %v7344
      %v7350 = vrot.slane %v7349, 4
      %v7352 = vshll.u32 %v7181, 16
      %v7354 = vrot.slane %v7352, 5
      %v7355 = vsel %vm1268, %v7350, %v7354
      %v7357 = vshrl.u32 %v7182, 16
      %v7359 = vrot.slane %v7357, 4
      %v7360 = vshll.u32 %v7182, 16
      %v7362 = vrot.slane %v7360, 5
      %v7363 = vor.u32 %v7359, %v7362
      %v7364 = vrot.slane %v7363, 4
      %v7366 = vshll.u32 %v7183, 16
      %v7368 = vrot.slane %v7366, 5
      %v7369 = vsel %vm1268, %v7364, %v7368
      %v7370 = vshrl.u32 %v7183, 16
      %v7372 = vrot.slane %v7370, 4
      %v7373 = vor.u32 %v7372, %v7368
      %v7374 = vrot.slane %v7373, 4
      %v7376 = vshll.u32 %v7184, 16
      %v7378 = vrot.slane %v7376, 5
      %v7379 = vsel %vm1268, %v7374, %v7378
      %v7381 = vshrl.u32 %v7185, 16
      %v7383 = vrot.slane %v7381, 4
      %v7384 = vshll.u32 %v7185, 16
      %v7386 = vrot.slane %v7384, 5
      %v7387 = vor.u32 %v7383, %v7386
      %v7388 = vrot.slane %v7387, 4
      %v7390 = vshll.u32 %v7186, 16
      %v7392 = vrot.slane %v7390, 5
      %v7393 = vsel %vm1268, %v7388, %v7392
      %v7394 = vshrl.u32 %v7186, 16
      %v7396 = vrot.slane %v7394, 4
      %v7397 = vor.u32 %v7396, %v7392
      %v7398 = vrot.slane %v7397, 4
      %v7400 = vshll.u32 %v7187, 16
      %v7402 = vrot.slane %v7400, 5
      %v7403 = vsel %vm1268, %v7398, %v7402
      %v7405 = vshrl.u32 %v7188, 16
      %v7407 = vrot.slane %v7405, 4
      %v7408 = vshll.u32 %v7188, 16
      %v7410 = vrot.slane %v7408, 5
      %v7411 = vor.u32 %v7407, %v7410
      %v7412 = vrot.slane %v7411, 4
      %v7414 = vshll.u32 %v7189, 16
      %v7416 = vrot.slane %v7414, 5
      %v7417 = vsel %vm1268, %v7412, %v7416
      %v7418 = vshrl.u32 %v7189, 16
      %v7420 = vrot.slane %v7418, 4
      %v7421 = vor.u32 %v7420, %v7416
      %v7422 = vrot.slane %v7421, 4
      %v7424 = vshll.u32 %v7190, 16
      %v7426 = vrot.slane %v7424, 5
      %v7427 = vsel %vm1268, %v7422, %v7426
      %v7429 = vshrl.u32 %v7191, 16
      %v7431 = vrot.slane %v7429, 4
      %v7432 = vshll.u32 %v7191, 16
      %v7434 = vrot.slane %v7432, 5
      %v7435 = vor.u32 %v7431, %v7434
      %v7436 = vrot.slane %v7435, 4
      %v7438 = vshll.u32 %v7192, 16
      %v7440 = vrot.slane %v7438, 5
      %v7441 = vsel %vm1268, %v7436, %v7440
      %v7442 = vshrl.u32 %v7192, 16
      %v7444 = vrot.slane %v7442, 4
      %v7445 = vor.u32 %v7444, %v7440
      %v7446 = vrot.slane %v7445, 4
      %v7448 = vshll.u32 %v7193, 16
      %v7450 = vrot.slane %v7448, 5
      %v7451 = vsel %vm1268, %v7446, %v7450
      %v7453 = vshrl.u32 %v7194, 16
      %v7455 = vrot.slane %v7453, 4
      %v7456 = vshll.u32 %v7194, 16
      %v7458 = vrot.slane %v7456, 5
      %v7459 = vor.u32 %v7455, %v7458
      %v7460 = vrot.slane %v7459, 4
      %v7462 = vshll.u32 %v7195, 16
      %v7464 = vrot.slane %v7462, 5
      %v7465 = vsel %vm1268, %v7460, %v7464
      %v7466 = vshrl.u32 %v7195, 16
      %v7468 = vrot.slane %v7466, 4
      %v7469 = vor.u32 %v7468, %v7464
      %v7470 = vrot.slane %v7469, 4
      %v7472 = vshll.u32 %v7196, 16
      %v7474 = vrot.slane %v7472, 5
      %v7475 = vsel %vm1268, %v7470, %v7474
      %v7477 = vshrl.u32 %v7197, 16
      %v7479 = vrot.slane %v7477, 4
      %v7480 = vshll.u32 %v7197, 16
      %v7482 = vrot.slane %v7480, 5
      %v7483 = vor.u32 %v7479, %v7482
      %v7484 = vrot.slane %v7483, 4
      %v7486 = vshll.u32 %v7198, 16
      %v7488 = vrot.slane %v7486, 5
      %v7489 = vsel %vm1268, %v7484, %v7488
      %v7490 = vshrl.u32 %v7198, 16
      %v7492 = vrot.slane %v7490, 4
      %v7493 = vor.u32 %v7492, %v7488
      %v7494 = vrot.slane %v7493, 4
      %v7496 = vshll.u32 %v7199, 16
      %v7498 = vrot.slane %v7496, 5
      %v7499 = vsel %vm1268, %v7494, %v7498
      %v7501 = vshrl.u32 %v7200, 16
      %v7503 = vrot.slane %v7501, 4
      %v7504 = vshll.u32 %v7200, 16
      %v7506 = vrot.slane %v7504, 5
      %v7507 = vor.u32 %v7503, %v7506
      %v7508 = vrot.slane %v7507, 4
      %v7510 = vshll.u32 %v7201, 16
      %v7512 = vrot.slane %v7510, 5
      %v7513 = vsel %vm1268, %v7508, %v7512
      %v7514 = vshrl.u32 %v7201, 16
      %v7516 = vrot.slane %v7514, 4
      %v7517 = vor.u32 %v7516, %v7512
      %v7518 = vrot.slane %v7517, 4
      %v7520 = vshll.u32 %v7202, 16
      %v7522 = vrot.slane %v7520, 5
      %v7523 = vsel %vm1268, %v7518, %v7522
      %v7525 = vshrl.u32 %v7203, 16
      %v7527 = vrot.slane %v7525, 4
      %v7528 = vshll.u32 %v7203, 16
      %v7530 = vrot.slane %v7528, 5
      %v7531 = vor.u32 %v7527, %v7530
      %v7532 = vrot.slane %v7531, 4
      %v7534 = vshll.u32 %v7204, 16
      %v7536 = vrot.slane %v7534, 5
      %v7537 = vsel %vm1268, %v7532, %v7536
      %v7538 = vshrl.u32 %v7204, 16
      %v7540 = vrot.slane %v7538, 4
      %v7541 = vor.u32 %v7540, %v7536
      %v7542 = vrot.slane %v7541, 4
      %v7544 = vshll.u32 %v7205, 16
      %v7546 = vrot.slane %v7544, 5
      %v7547 = vsel %vm1268, %v7542, %v7546
      %v7549 = vshrl.u32 %v7206, 16
      %v7551 = vrot.slane %v7549, 4
      %v7552 = vshll.u32 %v7206, 16
      %v7554 = vrot.slane %v7552, 5
      %v7555 = vor.u32 %v7551, %v7554
      %v7556 = vrot.slane %v7555, 4
      %v7558 = vshll.u32 %v7207, 16
      %v7560 = vrot.slane %v7558, 5
      %v7561 = vsel %vm1268, %v7556, %v7560
      %v7562 = vshrl.u32 %v7207, 16
      %v7564 = vrot.slane %v7562, 4
      %v7565 = vor.u32 %v7564, %v7560
      %v7566 = vrot.slane %v7565, 4
      %v7568 = vshll.u32 %v7208, 16
      %v7570 = vrot.slane %v7568, 5
      %v7571 = vsel %vm1268, %v7566, %v7570
      %v7573 = vshrl.u32 %v7209, 16
      %v7575 = vrot.slane %v7573, 4
      %v7576 = vshll.u32 %v7209, 16
      %v7578 = vrot.slane %v7576, 5
      %v7579 = vor.u32 %v7575, %v7578
      %v7580 = vrot.slane %v7579, 4
      %v7582 = vshll.u32 %v7210, 16
      %v7584 = vrot.slane %v7582, 5
      %v7585 = vsel %vm1268, %v7580, %v7584
      %v7586 = vshrl.u32 %v7210, 16
      %v7588 = vrot.slane %v7586, 4
      %v7589 = vor.u32 %v7588, %v7584
      %v7590 = vrot.slane %v7589, 4
      %v7592 = vshll.u32 %v7211, 16
      %v7594 = vrot.slane %v7592, 5
      %v7595 = vsel %vm1268, %v7590, %v7594
      %s7596 = scalar_lea.vmem %s2, 2
      %v7597 = vld [vmem:[%s7596] sm:$0x3]
      %v7598 = vunpack.c.l.b16 %v7225
      %v7599 = vunpack.c.l.b16 %v7235
      %v7600 = vunpack.c.l.b16 %v7249
      %v7601 = vunpack.c.l.b16 %v7259
      %v7602 = vunpack.c.l.b16 %v7273
      %v7603 = vunpack.c.l.b16 %v7283
      %v7604 = vunpack.c.l.b16 %v7297
      %v7605 = vunpack.c.l.b16 %v7307
      %v7606 = vunpack.c.l.b16 %v7321
      %v7607 = vunpack.c.l.b16 %v7331
      %v7608 = vunpack.c.l.b16 %v7345
      %v7609 = vunpack.c.l.b16 %v7355
      %v7610 = vunpack.c.l.b16 %v7369
      %v7611 = vunpack.c.l.b16 %v7379
      %v7612 = vunpack.c.l.b16 %v7393
      %v7613 = vunpack.c.l.b16 %v7403
      %v7614 = vunpack.c.l.b16 %v7417
      %v7615 = vunpack.c.l.b16 %v7427
      %v7616 = vunpack.c.l.b16 %v7441
      %v7617 = vunpack.c.l.b16 %v7451
      %v7618 = vunpack.c.l.b16 %v7465
      %v7619 = vunpack.c.l.b16 %v7475
      %v7620 = vunpack.c.l.b16 %v7489
      %v7621 = vunpack.c.l.b16 %v7499
      %v7622 = vunpack.c.l.b16 %v7513
      %v7623 = vunpack.c.l.b16 %v7523
      %v7624 = vunpack.c.l.b16 %v7537
      %v7625 = vunpack.c.l.b16 %v7547
      %v7626 = vunpack.c.l.b16 %v7561
      %v7627 = vunpack.c.l.b16 %v7571
      %v7628 = vunpack.c.l.b16 %v7585
      %v7629 = vunpack.c.l.b16 %v7595
      %v7630 = vpack.c.b16 %v7599, %v7598
      %v7631 = vpack.c.b16 %v7601, %v7600
      %v7632 = vpack.c.b16 %v7603, %v7602
      %v7633 = vpack.c.b16 %v7605, %v7604
      %v7634 = vpack.c.b16 %v7607, %v7606
      %v7635 = vpack.c.b16 %v7609, %v7608
      %v7636 = vpack.c.b16 %v7611, %v7610
      %v7637 = vpack.c.b16 %v7613, %v7612
      %v7638 = vpack.c.b16 %v7615, %v7614
      %v7639 = vpack.c.b16 %v7617, %v7616
      %v7640 = vpack.c.b16 %v7619, %v7618
      %v7641 = vpack.c.b16 %v7621, %v7620
      %v7642 = vpack.c.b16 %v7623, %v7622
      %v7643 = vpack.c.b16 %v7625, %v7624
      %v7644 = vpack.c.b16 %v7627, %v7626
      %v7645 = vpack.c.b16 %v7629, %v7628
      %v7647 = vsel %vm972, %v7630, 0
      %v7650 = vsel %vm972, %v7631, 0
      %v7653 = vsel %vm972, %v7632, 0
      %v7656 = vsel %vm972, %v7633, 0
      %v7659 = vsel %vm972, %v7634, 0
      %v7662 = vsel %vm972, %v7635, 0
      %v7665 = vsel %vm972, %v7636, 0
      %v7668 = vsel %vm972, %v7637, 0
      %v7671 = vsel %vm972, %v7638, 0
      %v7674 = vsel %vm972, %v7639, 0
      %v7677 = vsel %vm972, %v7640, 0
      %v7680 = vsel %vm972, %v7641, 0
      %v7683 = vsel %vm972, %v7642, 0
      %v7686 = vsel %vm972, %v7643, 0
      %v7689 = vsel %vm972, %v7644, 0
      %v7692 = vsel %vm972, %v7645, 0
      %v7695 = vsel %vm1021, %v7597, 0
      %7697 = vmatprep.subr.bf16.mxu0 0
      %7698 = vmatpush1.bf16.msra.mxu0 0
      %7699 = vmatprep.subr.bf16.mxu0 0
      %7700 = vmatpush1.bf16.msra.mxu0 0
      %7701 = vmatprep.subr.bf16.mxu0 0
      %7702 = vmatpush1.bf16.msra.mxu0 0
      %7703 = vmatprep.subr.bf16.mxu0 0
      %7704 = vmatpush1.bf16.msra.mxu0 0
      %7705 = vmatprep.subr.bf16.mxu0 0
      %7706 = vmatpush1.bf16.msra.mxu0 0
      %7707 = vmatprep.subr.bf16.mxu0 0
      %7708 = vmatpush1.bf16.msra.mxu0 0
      %7709 = vmatprep.subr.bf16.mxu0 0
      %7710 = vmatpush1.bf16.msra.mxu0 0
      %7711 = vmatprep.subr.bf16.mxu0 0
      %7712 = vmatpush1.bf16.msra.mxu0 %v7695
      %7713 = vmatprep.subr.bf16.mxu0 0
      %7714 = vmatpush2.bf16.msra.mxu0 0
      %7715 = vmatprep.subr.bf16.mxu0 0
      %7716 = vmatpush2.bf16.msra.mxu0 0
      %7717 = vmatprep.subr.bf16.mxu0 0
      %7718 = vmatpush2.bf16.msra.mxu0 0
      %7719 = vmatprep.subr.bf16.mxu0 0
      %7720 = vmatpush2.bf16.msra.mxu0 0
      %7721 = vmatprep.subr.bf16.mxu0 0
      %7722 = vmatpush2.bf16.msra.mxu0 0
      %7723 = vmatprep.subr.bf16.mxu0 0
      %7724 = vmatpush2.bf16.msra.mxu0 0
      %7725 = vmatprep.subr.bf16.mxu0 0
      %7726 = vmatpush2.bf16.msra.mxu0 0
      %7727 = vmatprep.subr.bf16.mxu0 0
      %7728 = vmatpush2.bf16.msra.mxu0 0
      %7729 = vmatprep.mubr.bf16.mxu0 0
      %7730 = vmatmul.mubr.bf16.gmra.mxu0 %v7647
      %v7731 = vpop.f32.mrf.mxu0
      %v7732 = vadd.f32 0.0, %v7731
      %v7733 = vpop.f32.mrf.mxu0
      %v7734 = vpop.f32.mrf.mxu0
      %v7735 = vadd.f32 0.0, %v7734
      %v7736 = vpop.f32.mrf.mxu0
      %7737 = vmatprep.mubr.bf16.mxu0 0
      %7738 = vmatmul.mubr.bf16.gmra.mxu0 %v7650
      %v7739 = vpop.f32.mrf.mxu0
      %v7740 = vadd.f32 0.0, %v7739
      %v7741 = vpop.f32.mrf.mxu0
      %v7742 = vpop.f32.mrf.mxu0
      %v7743 = vadd.f32 0.0, %v7742
      %v7744 = vpop.f32.mrf.mxu0
      %7745 = vmatprep.mubr.bf16.mxu0 0
      %7746 = vmatmul.mubr.bf16.gmra.mxu0 %v7653
      %v7747 = vpop.f32.mrf.mxu0
      %v7748 = vadd.f32 0.0, %v7747
      %v7749 = vpop.f32.mrf.mxu0
      %v7750 = vpop.f32.mrf.mxu0
      %v7751 = vadd.f32 0.0, %v7750
      %v7752 = vpop.f32.mrf.mxu0
      %7753 = vmatprep.mubr.bf16.mxu0 0
      %7754 = vmatmul.mubr.bf16.gmra.mxu0 %v7656
      %v7755 = vpop.f32.mrf.mxu0
      %v7756 = vadd.f32 0.0, %v7755
      %v7757 = vpop.f32.mrf.mxu0
      %v7758 = vpop.f32.mrf.mxu0
      %v7759 = vadd.f32 0.0, %v7758
      %v7760 = vpop.f32.mrf.mxu0
      %7761 = vmatprep.mubr.bf16.mxu0 0
      %7762 = vmatmul.mubr.bf16.gmra.mxu0 %v7659
      %v7763 = vpop.f32.mrf.mxu0
      %v7764 = vadd.f32 0.0, %v7763
      %v7765 = vpop.f32.mrf.mxu0
      %v7766 = vpop.f32.mrf.mxu0
      %v7767 = vadd.f32 0.0, %v7766
      %v7768 = vpop.f32.mrf.mxu0
      %7769 = vmatprep.mubr.bf16.mxu0 0
      %7770 = vmatmul.mubr.bf16.gmra.mxu0 %v7662
      %v7771 = vpop.f32.mrf.mxu0
      %v7772 = vadd.f32 0.0, %v7771
      %v7773 = vpop.f32.mrf.mxu0
      %v7774 = vpop.f32.mrf.mxu0
      %v7775 = vadd.f32 0.0, %v7774
      %v7776 = vpop.f32.mrf.mxu0
      %7777 = vmatprep.mubr.bf16.mxu0 0
      %7778 = vmatmul.mubr.bf16.gmra.mxu0 %v7665
      %v7779 = vpop.f32.mrf.mxu0
      %v7780 = vadd.f32 0.0, %v7779
      %v7781 = vpop.f32.mrf.mxu0
      %v7782 = vpop.f32.mrf.mxu0
      %v7783 = vadd.f32 0.0, %v7782
      %v7784 = vpop.f32.mrf.mxu0
      %7785 = vmatprep.mubr.bf16.mxu0 0
      %7786 = vmatmul.mubr.bf16.gmra.mxu0 %v7668
      %v7787 = vpop.f32.mrf.mxu0
      %v7788 = vadd.f32 0.0, %v7787
      %v7789 = vpop.f32.mrf.mxu0
      %v7790 = vpop.f32.mrf.mxu0
      %v7791 = vadd.f32 0.0, %v7790
      %v7792 = vpop.f32.mrf.mxu0
      %7793 = vmatprep.mubr.bf16.mxu0 0
      %7794 = vmatmul.mubr.bf16.gmra.mxu0 %v7671
      %v7795 = vpop.f32.mrf.mxu0
      %v7796 = vadd.f32 0.0, %v7795
      %v7797 = vpop.f32.mrf.mxu0
      %v7798 = vpop.f32.mrf.mxu0
      %v7799 = vadd.f32 0.0, %v7798
      %v7800 = vpop.f32.mrf.mxu0
      %7801 = vmatprep.mubr.bf16.mxu0 0
      %7802 = vmatmul.mubr.bf16.gmra.mxu0 %v7674
      %v7803 = vpop.f32.mrf.mxu0
      %v7804 = vadd.f32 0.0, %v7803
      %v7805 = vpop.f32.mrf.mxu0
      %v7806 = vpop.f32.mrf.mxu0
      %v7807 = vadd.f32 0.0, %v7806
      %v7808 = vpop.f32.mrf.mxu0
      %7809 = vmatprep.mubr.bf16.mxu0 0
      %7810 = vmatmul.mubr.bf16.gmra.mxu0 %v7677
      %v7811 = vpop.f32.mrf.mxu0
      %v7812 = vadd.f32 0.0, %v7811
      %v7813 = vpop.f32.mrf.mxu0
      %v7814 = vpop.f32.mrf.mxu0
      %v7815 = vadd.f32 0.0, %v7814
      %v7816 = vpop.f32.mrf.mxu0
      %7817 = vmatprep.mubr.bf16.mxu0 0
      %7818 = vmatmul.mubr.bf16.gmra.mxu0 %v7680
      %v7819 = vpop.f32.mrf.mxu0
      %v7820 = vadd.f32 0.0, %v7819
      %v7821 = vpop.f32.mrf.mxu0
      %v7822 = vpop.f32.mrf.mxu0
      %v7823 = vadd.f32 0.0, %v7822
      %v7824 = vpop.f32.mrf.mxu0
      %7825 = vmatprep.mubr.bf16.mxu0 0
      %7826 = vmatmul.mubr.bf16.gmra.mxu0 %v7683
      %v7827 = vpop.f32.mrf.mxu0
      %v7828 = vadd.f32 0.0, %v7827
      %v7829 = vpop.f32.mrf.mxu0
      %v7830 = vpop.f32.mrf.mxu0
      %v7831 = vadd.f32 0.0, %v7830
      %v7832 = vpop.f32.mrf.mxu0
      %7833 = vmatprep.mubr.bf16.mxu0 0
      %7834 = vmatmul.mubr.bf16.gmra.mxu0 %v7686
      %v7835 = vpop.f32.mrf.mxu0
      %v7836 = vadd.f32 0.0, %v7835
      %v7837 = vpop.f32.mrf.mxu0
      %v7838 = vpop.f32.mrf.mxu0
      %v7839 = vadd.f32 0.0, %v7838
      %v7840 = vpop.f32.mrf.mxu0
      %7841 = vmatprep.mubr.bf16.mxu0 0
      %7842 = vmatmul.mubr.bf16.gmra.mxu0 %v7689
      %v7843 = vpop.f32.mrf.mxu0
      %v7844 = vadd.f32 0.0, %v7843
      %v7845 = vpop.f32.mrf.mxu0
      %v7846 = vpop.f32.mrf.mxu0
      %v7847 = vadd.f32 0.0, %v7846
      %v7848 = vpop.f32.mrf.mxu0
      %7849 = vmatprep.mubr.bf16.mxu0 0
      %7850 = vmatmul.mubr.bf16.gmra.mxu0 %v7692
      %v7851 = vpop.f32.mrf.mxu0
      %v7852 = vadd.f32 0.0, %v7851
      %v7853 = vpop.f32.mrf.mxu0
      %v7854 = vpop.f32.mrf.mxu0
      %v7855 = vadd.f32 0.0, %v7854
      %v7856 = vpop.f32.mrf.mxu0
      %7857 = vdwg.mxu0
      %v7858 = vld [vmem:[#allocation3] sm:$0xff]
      %v7859 = vld [vmem:[#allocation3 + $0x8] sm:$0xff]
      %v7860 = vld [vmem:[#allocation3 + $0x10] sm:$0xff]
      %v7861 = vld [vmem:[#allocation3 + $0x18] sm:$0xff]
      %v7862 = vld [vmem:[#allocation3 + $0x20] sm:$0xff]
      %v7863 = vld [vmem:[#allocation3 + $0x28] sm:$0xff]
      %v7864 = vld [vmem:[#allocation3 + $0x30] sm:$0xff]
      %v7865 = vld [vmem:[#allocation3 + $0x38] sm:$0xff]
      %v7866 = vld [vmem:[#allocation3 + $0x40] sm:$0xff]
      %v7867 = vld [vmem:[#allocation3 + $0x48] sm:$0xff]
      %v7868 = vld [vmem:[#allocation3 + $0x50] sm:$0xff]
      %v7869 = vld [vmem:[#allocation3 + $0x58] sm:$0xff]
      %v7870 = vld [vmem:[#allocation3 + $0x60] sm:$0xff]
      %v7871 = vld [vmem:[#allocation3 + $0x68] sm:$0xff]
      %v7872 = vld [vmem:[#allocation3 + $0x70] sm:$0xff]
      %v7873 = vld [vmem:[#allocation3 + $0x78] sm:$0xff]
      %v7874 = vld [vmem:[#allocation3 + $0x80] sm:$0xff]
      %v7875 = vld [vmem:[#allocation3 + $0x88] sm:$0xff]
      %v7876 = vld [vmem:[#allocation3 + $0x90] sm:$0xff]
      %v7877 = vld [vmem:[#allocation3 + $0x98] sm:$0xff]
      %v7878 = vld [vmem:[#allocation3 + $0xa0] sm:$0xff]
      %v7879 = vld [vmem:[#allocation3 + $0xa8] sm:$0xff]
      %v7880 = vld [vmem:[#allocation3 + $0xb0] sm:$0xff]
      %v7881 = vld [vmem:[#allocation3 + $0xb8] sm:$0xff]
      %v7882 = vld [vmem:[#allocation3 + $0xc0] sm:$0xff]
      %v7883 = vld [vmem:[#allocation3 + $0xc8] sm:$0xff]
      %v7884 = vld [vmem:[#allocation3 + $0xd0] sm:$0xff]
      %v7885 = vld [vmem:[#allocation3 + $0xd8] sm:$0xff]
      %v7886 = vld [vmem:[#allocation3 + $0xe0] sm:$0xff]
      %v7887 = vld [vmem:[#allocation3 + $0xe8] sm:$0xff]
      %v7888 = vld [vmem:[#allocation3 + $0xf0] sm:$0xff]
      %v7889 = vld [vmem:[#allocation3 + $0xf8] sm:$0xff]
      %v7890 = vadd.f32 %v7858, %v7732
      %v7891 = vadd.f32 %v7859, %v7735
      %v7892 = vadd.f32 %v7860, %v7740
      %v7893 = vadd.f32 %v7861, %v7743
      %v7894 = vadd.f32 %v7862, %v7748
      %v7895 = vadd.f32 %v7863, %v7751
      %v7896 = vadd.f32 %v7864, %v7756
      %v7897 = vadd.f32 %v7865, %v7759
      %v7898 = vadd.f32 %v7866, %v7764
      %v7899 = vadd.f32 %v7867, %v7767
      %v7900 = vadd.f32 %v7868, %v7772
      %v7901 = vadd.f32 %v7869, %v7775
      %v7902 = vadd.f32 %v7870, %v7780
      %v7903 = vadd.f32 %v7871, %v7783
      %v7904 = vadd.f32 %v7872, %v7788
      %v7905 = vadd.f32 %v7873, %v7791
      %v7906 = vadd.f32 %v7874, %v7796
      %v7907 = vadd.f32 %v7875, %v7799
      %v7908 = vadd.f32 %v7876, %v7804
      %v7909 = vadd.f32 %v7877, %v7807
      %v7910 = vadd.f32 %v7878, %v7812
      %v7911 = vadd.f32 %v7879, %v7815
      %v7912 = vadd.f32 %v7880, %v7820
      %v7913 = vadd.f32 %v7881, %v7823
      %v7914 = vadd.f32 %v7882, %v7828
      %v7915 = vadd.f32 %v7883, %v7831
      %v7916 = vadd.f32 %v7884, %v7836
      %v7917 = vadd.f32 %v7885, %v7839
      %v7918 = vadd.f32 %v7886, %v7844
      %v7919 = vadd.f32 %v7887, %v7847
      %v7920 = vadd.f32 %v7888, %v7852
      %v7921 = vadd.f32 %v7889, %v7855
      %7922 = vst.msk [vmem:[#allocation3] sm:$0xff] %vm972, %v7890
      %7923 = vst.msk [vmem:[#allocation3 + $0x8] sm:$0xff] %vm972, %v7891
      %7924 = vst.msk [vmem:[#allocation3 + $0x10] sm:$0xff] %vm972, %v7892
      %7925 = vst.msk [vmem:[#allocation3 + $0x18] sm:$0xff] %vm972, %v7893
      %7926 = vst.msk [vmem:[#allocation3 + $0x20] sm:$0xff] %vm972, %v7894
      %7927 = vst.msk [vmem:[#allocation3 + $0x28] sm:$0xff] %vm972, %v7895
      %7928 = vst.msk [vmem:[#allocation3 + $0x30] sm:$0xff] %vm972, %v7896
      %7929 = vst.msk [vmem:[#allocation3 + $0x38] sm:$0xff] %vm972, %v7897
      %7930 = vst.msk [vmem:[#allocation3 + $0x40] sm:$0xff] %vm972, %v7898
      %7931 = vst.msk [vmem:[#allocation3 + $0x48] sm:$0xff] %vm972, %v7899
      %7932 = vst.msk [vmem:[#allocation3 + $0x50] sm:$0xff] %vm972, %v7900
      %7933 = vst.msk [vmem:[#allocation3 + $0x58] sm:$0xff] %vm972, %v7901
      %7934 = vst.msk [vmem:[#allocation3 + $0x60] sm:$0xff] %vm972, %v7902
      %7935 = vst.msk [vmem:[#allocation3 + $0x68] sm:$0xff] %vm972, %v7903
      %7936 = vst.msk [vmem:[#allocation3 + $0x70] sm:$0xff] %vm972, %v7904
      %7937 = vst.msk [vmem:[#allocation3 + $0x78] sm:$0xff] %vm972, %v7905
      %7938 = vst.msk [vmem:[#allocation3 + $0x80] sm:$0xff] %vm972, %v7906
      %7939 = vst.msk [vmem:[#allocation3 + $0x88] sm:$0xff] %vm972, %v7907
      %7940 = vst.msk [vmem:[#allocation3 + $0x90] sm:$0xff] %vm972, %v7908
      %7941 = vst.msk [vmem:[#allocation3 + $0x98] sm:$0xff] %vm972, %v7909
      %7942 = vst.msk [vmem:[#allocation3 + $0xa0] sm:$0xff] %vm972, %v7910
      %7943 = vst.msk [vmem:[#allocation3 + $0xa8] sm:$0xff] %vm972, %v7911
      %7944 = vst.msk [vmem:[#allocation3 + $0xb0] sm:$0xff] %vm972, %v7912
      %7945 = vst.msk [vmem:[#allocation3 + $0xb8] sm:$0xff] %vm972, %v7913
      %7946 = vst.msk [vmem:[#allocation3 + $0xc0] sm:$0xff] %vm972, %v7914
      %7947 = vst.msk [vmem:[#allocation3 + $0xc8] sm:$0xff] %vm972, %v7915
      %7948 = vst.msk [vmem:[#allocation3 + $0xd0] sm:$0xff] %vm972, %v7916
      %7949 = vst.msk [vmem:[#allocation3 + $0xd8] sm:$0xff] %vm972, %v7917
      %7950 = vst.msk [vmem:[#allocation3 + $0xe0] sm:$0xff] %vm972, %v7918
      %7951 = vst.msk [vmem:[#allocation3 + $0xe8] sm:$0xff] %vm972, %v7919
      %7952 = vst.msk [vmem:[#allocation3 + $0xf0] sm:$0xff] %vm972, %v7920
      %7953 = vst.msk [vmem:[#allocation3 + $0xf8] sm:$0xff] %vm972, %v7921
      %v7954 = vld [vmem:[#allocation2] sm:$0xe]
      %v7955 = vld [vmem:[#allocation2 + $0x4] sm:$0xf]
      %v7956 = vld [vmem:[#allocation2 + $0x8] sm:$0x1]
      %v7957 = vld [vmem:[#allocation2 + $0xc] sm:$0xe]
      %v7958 = vld [vmem:[#allocation2 + $0x10] sm:$0xf]
      %v7959 = vld [vmem:[#allocation2 + $0x14] sm:$0x1]
      %v7960 = vld [vmem:[#allocation2 + $0x18] sm:$0xe]
      %v7961 = vld [vmem:[#allocation2 + $0x1c] sm:$0xf]
      %v7962 = vld [vmem:[#allocation2 + $0x20] sm:$0x1]
      %v7963 = vld [vmem:[#allocation2 + $0x24] sm:$0xe]
      %v7964 = vld [vmem:[#allocation2 + $0x28] sm:$0xf]
      %v7965 = vld [vmem:[#allocation2 + $0x2c] sm:$0x1]
      %v7966 = vld [vmem:[#allocation2 + $0x30] sm:$0xe]
      %v7967 = vld [vmem:[#allocation2 + $0x34] sm:$0xf]
      %v7968 = vld [vmem:[#allocation2 + $0x38] sm:$0x1]
      %v7969 = vld [vmem:[#allocation2 + $0x3c] sm:$0xe]
      %v7970 = vld [vmem:[#allocation2 + $0x40] sm:$0xf]
      %v7971 = vld [vmem:[#allocation2 + $0x44] sm:$0x1]
      %v7972 = vld [vmem:[#allocation2 + $0x48] sm:$0xe]
      %v7973 = vld [vmem:[#allocation2 + $0x4c] sm:$0xf]
      %v7974 = vld [vmem:[#allocation2 + $0x50] sm:$0x1]
      %v7975 = vld [vmem:[#allocation2 + $0x54] sm:$0xe]
      %v7976 = vld [vmem:[#allocation2 + $0x58] sm:$0xf]
      %v7977 = vld [vmem:[#allocation2 + $0x5c] sm:$0x1]
      %v7978 = vld [vmem:[#allocation2 + $0x60] sm:$0xe]
      %v7979 = vld [vmem:[#allocation2 + $0x64] sm:$0xf]
      %v7980 = vld [vmem:[#allocation2 + $0x68] sm:$0x1]
      %v7981 = vld [vmem:[#allocation2 + $0x6c] sm:$0xe]
      %v7982 = vld [vmem:[#allocation2 + $0x70] sm:$0xf]
      %v7983 = vld [vmem:[#allocation2 + $0x74] sm:$0x1]
      %v7984 = vld [vmem:[#allocation2 + $0x78] sm:$0xe]
      %v7985 = vld [vmem:[#allocation2 + $0x7c] sm:$0xf]
      %v7986 = vld [vmem:[#allocation2 + $0x80] sm:$0x1]
      %v7987 = vld [vmem:[#allocation2 + $0x84] sm:$0xe]
      %v7988 = vld [vmem:[#allocation2 + $0x88] sm:$0xf]
      %v7989 = vld [vmem:[#allocation2 + $0x8c] sm:$0x1]
      %v7990 = vld [vmem:[#allocation2 + $0x90] sm:$0xe]
      %v7991 = vld [vmem:[#allocation2 + $0x94] sm:$0xf]
      %v7992 = vld [vmem:[#allocation2 + $0x98] sm:$0x1]
      %v7993 = vld [vmem:[#allocation2 + $0x9c] sm:$0xe]
      %v7994 = vld [vmem:[#allocation2 + $0xa0] sm:$0xf]
      %v7995 = vld [vmem:[#allocation2 + $0xa4] sm:$0x1]
      %v7996 = vld [vmem:[#allocation2 + $0xa8] sm:$0xe]
      %v7997 = vld [vmem:[#allocation2 + $0xac] sm:$0xf]
      %v7998 = vld [vmem:[#allocation2 + $0xb0] sm:$0x1]
      %v7999 = vld [vmem:[#allocation2 + $0xb4] sm:$0xe]
      %v8000 = vld [vmem:[#allocation2 + $0xb8] sm:$0xf]
      %v8001 = vld [vmem:[#allocation2 + $0xbc] sm:$0x1]
      %v8050 = vrot.slane %v7954, 5
      %v8051 = vrot.slane %v8050, 4
      %v8052 = vrot.slane %v7955, 5
      %v8053 = vsel %vm2109, %v8051, %v8052
      %v8054 = vrot.slane %v8052, 4
      %v8055 = vrot.slane %v7956, 5
      %v8056 = vsel %vm2109, %v8054, %v8055
      %v8057 = vrot.slane %v7957, 5
      %v8058 = vrot.slane %v8057, 4
      %v8059 = vrot.slane %v7958, 5
      %v8060 = vsel %vm2109, %v8058, %v8059
      %v8061 = vrot.slane %v8059, 4
      %v8062 = vrot.slane %v7959, 5
      %v8063 = vsel %vm2109, %v8061, %v8062
      %v8064 = vrot.slane %v7960, 5
      %v8065 = vrot.slane %v8064, 4
      %v8066 = vrot.slane %v7961, 5
      %v8067 = vsel %vm2109, %v8065, %v8066
      %v8068 = vrot.slane %v8066, 4
      %v8069 = vrot.slane %v7962, 5
      %v8070 = vsel %vm2109, %v8068, %v8069
      %v8071 = vrot.slane %v7963, 5
      %v8072 = vrot.slane %v8071, 4
      %v8073 = vrot.slane %v7964, 5
      %v8074 = vsel %vm2109, %v8072, %v8073
      %v8075 = vrot.slane %v8073, 4
      %v8076 = vrot.slane %v7965, 5
      %v8077 = vsel %vm2109, %v8075, %v8076
      %v8078 = vrot.slane %v7966, 5
      %v8079 = vrot.slane %v8078, 4
      %v8080 = vrot.slane %v7967, 5
      %v8081 = vsel %vm2109, %v8079, %v8080
      %v8082 = vrot.slane %v8080, 4
      %v8083 = vrot.slane %v7968, 5
      %v8084 = vsel %vm2109, %v8082, %v8083
      %v8085 = vrot.slane %v7969, 5
      %v8086 = vrot.slane %v8085, 4
      %v8087 = vrot.slane %v7970, 5
      %v8088 = vsel %vm2109, %v8086, %v8087
      %v8089 = vrot.slane %v8087, 4
      %v8090 = vrot.slane %v7971, 5
      %v8091 = vsel %vm2109, %v8089, %v8090
      %v8092 = vrot.slane %v7972, 5
      %v8093 = vrot.slane %v8092, 4
      %v8094 = vrot.slane %v7973, 5
      %v8095 = vsel %vm2109, %v8093, %v8094
      %v8096 = vrot.slane %v8094, 4
      %v8097 = vrot.slane %v7974, 5
      %v8098 = vsel %vm2109, %v8096, %v8097
      %v8099 = vrot.slane %v7975, 5
      %v8100 = vrot.slane %v8099, 4
      %v8101 = vrot.slane %v7976, 5
      %v8102 = vsel %vm2109, %v8100, %v8101
      %v8103 = vrot.slane %v8101, 4
      %v8104 = vrot.slane %v7977, 5
      %v8105 = vsel %vm2109, %v8103, %v8104
      %v8106 = vrot.slane %v7978, 5
      %v8107 = vrot.slane %v8106, 4
      %v8108 = vrot.slane %v7979, 5
      %v8109 = vsel %vm2109, %v8107, %v8108
      %v8110 = vrot.slane %v8108, 4
      %v8111 = vrot.slane %v7980, 5
      %v8112 = vsel %vm2109, %v8110, %v8111
      %v8113 = vrot.slane %v7981, 5
      %v8114 = vrot.slane %v8113, 4
      %v8115 = vrot.slane %v7982, 5
      %v8116 = vsel %vm2109, %v8114, %v8115
      %v8117 = vrot.slane %v8115, 4
      %v8118 = vrot.slane %v7983, 5
      %v8119 = vsel %vm2109, %v8117, %v8118
      %v8120 = vrot.slane %v7984, 5
      %v8121 = vrot.slane %v8120, 4
      %v8122 = vrot.slane %v7985, 5
      %v8123 = vsel %vm2109, %v8121, %v8122
      %v8124 = vrot.slane %v8122, 4
      %v8125 = vrot.slane %v7986, 5
      %v8126 = vsel %vm2109, %v8124, %v8125
      %v8127 = vrot.slane %v7987, 5
      %v8128 = vrot.slane %v8127, 4
      %v8129 = vrot.slane %v7988, 5
      %v8130 = vsel %vm2109, %v8128, %v8129
      %v8131 = vrot.slane %v8129, 4
      %v8132 = vrot.slane %v7989, 5
      %v8133 = vsel %vm2109, %v8131, %v8132
      %v8134 = vrot.slane %v7990, 5
      %v8135 = vrot.slane %v8134, 4
      %v8136 = vrot.slane %v7991, 5
      %v8137 = vsel %vm2109, %v8135, %v8136
      %v8138 = vrot.slane %v8136, 4
      %v8139 = vrot.slane %v7992, 5
      %v8140 = vsel %vm2109, %v8138, %v8139
      %v8141 = vrot.slane %v7993, 5
      %v8142 = vrot.slane %v8141, 4
      %v8143 = vrot.slane %v7994, 5
      %v8144 = vsel %vm2109, %v8142, %v8143
      %v8145 = vrot.slane %v8143, 4
      %v8146 = vrot.slane %v7995, 5
      %v8147 = vsel %vm2109, %v8145, %v8146
      %v8148 = vrot.slane %v7996, 5
      %v8149 = vrot.slane %v8148, 4
      %v8150 = vrot.slane %v7997, 5
      %v8151 = vsel %vm2109, %v8149, %v8150
      %v8152 = vrot.slane %v8150, 4
      %v8153 = vrot.slane %v7998, 5
      %v8154 = vsel %vm2109, %v8152, %v8153
      %v8155 = vrot.slane %v7999, 5
      %v8156 = vrot.slane %v8155, 4
      %v8157 = vrot.slane %v8000, 5
      %v8158 = vsel %vm2109, %v8156, %v8157
      %v8159 = vrot.slane %v8157, 4
      %v8160 = vrot.slane %v8001, 5
      %v8161 = vsel %vm2109, %v8159, %v8160
      %s8162 = scalar_lea.vmem %s2, 4
      %v8163 = vld [vmem:[%s8162] sm:$0x3]
      %v8164 = vunpack.c.l.b16 %v8053
      %v8165 = vunpack.c.l.b16 %v8056
      %v8166 = vunpack.c.l.b16 %v8060
      %v8167 = vunpack.c.l.b16 %v8063
      %v8168 = vunpack.c.l.b16 %v8067
      %v8169 = vunpack.c.l.b16 %v8070
      %v8170 = vunpack.c.l.b16 %v8074
      %v8171 = vunpack.c.l.b16 %v8077
      %v8172 = vunpack.c.l.b16 %v8081
      %v8173 = vunpack.c.l.b16 %v8084
      %v8174 = vunpack.c.l.b16 %v8088
      %v8175 = vunpack.c.l.b16 %v8091
      %v8176 = vunpack.c.l.b16 %v8095
      %v8177 = vunpack.c.l.b16 %v8098
      %v8178 = vunpack.c.l.b16 %v8102
      %v8179 = vunpack.c.l.b16 %v8105
      %v8180 = vunpack.c.l.b16 %v8109
      %v8181 = vunpack.c.l.b16 %v8112
      %v8182 = vunpack.c.l.b16 %v8116
      %v8183 = vunpack.c.l.b16 %v8119
      %v8184 = vunpack.c.l.b16 %v8123
      %v8185 = vunpack.c.l.b16 %v8126
      %v8186 = vunpack.c.l.b16 %v8130
      %v8187 = vunpack.c.l.b16 %v8133
      %v8188 = vunpack.c.l.b16 %v8137
      %v8189 = vunpack.c.l.b16 %v8140
      %v8190 = vunpack.c.l.b16 %v8144
      %v8191 = vunpack.c.l.b16 %v8147
      %v8192 = vunpack.c.l.b16 %v8151
      %v8193 = vunpack.c.l.b16 %v8154
      %v8194 = vunpack.c.l.b16 %v8158
      %v8195 = vunpack.c.l.b16 %v8161
      %v8196 = vpack.c.b16 %v8165, %v8164
      %v8197 = vpack.c.b16 %v8167, %v8166
      %v8198 = vpack.c.b16 %v8169, %v8168
      %v8199 = vpack.c.b16 %v8171, %v8170
      %v8200 = vpack.c.b16 %v8173, %v8172
      %v8201 = vpack.c.b16 %v8175, %v8174
      %v8202 = vpack.c.b16 %v8177, %v8176
      %v8203 = vpack.c.b16 %v8179, %v8178
      %v8204 = vpack.c.b16 %v8181, %v8180
      %v8205 = vpack.c.b16 %v8183, %v8182
      %v8206 = vpack.c.b16 %v8185, %v8184
      %v8207 = vpack.c.b16 %v8187, %v8186
      %v8208 = vpack.c.b16 %v8189, %v8188
      %v8209 = vpack.c.b16 %v8191, %v8190
      %v8210 = vpack.c.b16 %v8193, %v8192
      %v8211 = vpack.c.b16 %v8195, %v8194
      %v8213 = vsel %vm972, %v8196, 0
      %v8216 = vsel %vm972, %v8197, 0
      %v8219 = vsel %vm972, %v8198, 0
      %v8222 = vsel %vm972, %v8199, 0
      %v8225 = vsel %vm972, %v8200, 0
      %v8228 = vsel %vm972, %v8201, 0
      %v8231 = vsel %vm972, %v8202, 0
      %v8234 = vsel %vm972, %v8203, 0
      %v8237 = vsel %vm972, %v8204, 0
      %v8240 = vsel %vm972, %v8205, 0
      %v8243 = vsel %vm972, %v8206, 0
      %v8246 = vsel %vm972, %v8207, 0
      %v8249 = vsel %vm972, %v8208, 0
      %v8252 = vsel %vm972, %v8209, 0
      %v8255 = vsel %vm972, %v8210, 0
      %v8258 = vsel %vm972, %v8211, 0
      %v8261 = vsel %vm1021, %v8163, 0
      %8263 = vmatprep.subr.bf16.mxu0 0
      %8264 = vmatpush1.bf16.msra.mxu0 0
      %8265 = vmatprep.subr.bf16.mxu0 0
      %8266 = vmatpush1.bf16.msra.mxu0 0
      %8267 = vmatprep.subr.bf16.mxu0 0
      %8268 = vmatpush1.bf16.msra.mxu0 0
      %8269 = vmatprep.subr.bf16.mxu0 0
      %8270 = vmatpush1.bf16.msra.mxu0 0
      %8271 = vmatprep.subr.bf16.mxu0 0
      %8272 = vmatpush1.bf16.msra.mxu0 0
      %8273 = vmatprep.subr.bf16.mxu0 0
      %8274 = vmatpush1.bf16.msra.mxu0 0
      %8275 = vmatprep.subr.bf16.mxu0 0
      %8276 = vmatpush1.bf16.msra.mxu0 0
      %8277 = vmatprep.subr.bf16.mxu0 0
      %8278 = vmatpush1.bf16.msra.mxu0 %v8261
      %8279 = vmatprep.subr.bf16.mxu0 0
      %8280 = vmatpush2.bf16.msra.mxu0 0
      %8281 = vmatprep.subr.bf16.mxu0 0
      %8282 = vmatpush2.bf16.msra.mxu0 0
      %8283 = vmatprep.subr.bf16.mxu0 0
      %8284 = vmatpush2.bf16.msra.mxu0 0
      %8285 = vmatprep.subr.bf16.mxu0 0
      %8286 = vmatpush2.bf16.msra.mxu0 0
      %8287 = vmatprep.subr.bf16.mxu0 0
      %8288 = vmatpush2.bf16.msra.mxu0 0
      %8289 = vmatprep.subr.bf16.mxu0 0
      %8290 = vmatpush2.bf16.msra.mxu0 0
      %8291 = vmatprep.subr.bf16.mxu0 0
      %8292 = vmatpush2.bf16.msra.mxu0 0
      %8293 = vmatprep.subr.bf16.mxu0 0
      %8294 = vmatpush2.bf16.msra.mxu0 0
      %8295 = vmatprep.mubr.bf16.mxu0 0
      %8296 = vmatmul.mubr.bf16.gmra.mxu0 %v8213
      %v8297 = vpop.f32.mrf.mxu0
      %v8298 = vadd.f32 0.0, %v8297
      %v8299 = vpop.f32.mrf.mxu0
      %v8300 = vpop.f32.mrf.mxu0
      %v8301 = vadd.f32 0.0, %v8300
      %v8302 = vpop.f32.mrf.mxu0
      %8303 = vmatprep.mubr.bf16.mxu0 0
      %8304 = vmatmul.mubr.bf16.gmra.mxu0 %v8216
      %v8305 = vpop.f32.mrf.mxu0
      %v8306 = vadd.f32 0.0, %v8305
      %v8307 = vpop.f32.mrf.mxu0
      %v8308 = vpop.f32.mrf.mxu0
      %v8309 = vadd.f32 0.0, %v8308
      %v8310 = vpop.f32.mrf.mxu0
      %8311 = vmatprep.mubr.bf16.mxu0 0
      %8312 = vmatmul.mubr.bf16.gmra.mxu0 %v8219
      %v8313 = vpop.f32.mrf.mxu0
      %v8314 = vadd.f32 0.0, %v8313
      %v8315 = vpop.f32.mrf.mxu0
      %v8316 = vpop.f32.mrf.mxu0
      %v8317 = vadd.f32 0.0, %v8316
      %v8318 = vpop.f32.mrf.mxu0
      %8319 = vmatprep.mubr.bf16.mxu0 0
      %8320 = vmatmul.mubr.bf16.gmra.mxu0 %v8222
      %v8321 = vpop.f32.mrf.mxu0
      %v8322 = vadd.f32 0.0, %v8321
      %v8323 = vpop.f32.mrf.mxu0
      %v8324 = vpop.f32.mrf.mxu0
      %v8325 = vadd.f32 0.0, %v8324
      %v8326 = vpop.f32.mrf.mxu0
      %8327 = vmatprep.mubr.bf16.mxu0 0
      %8328 = vmatmul.mubr.bf16.gmra.mxu0 %v8225
      %v8329 = vpop.f32.mrf.mxu0
      %v8330 = vadd.f32 0.0, %v8329
      %v8331 = vpop.f32.mrf.mxu0
      %v8332 = vpop.f32.mrf.mxu0
      %v8333 = vadd.f32 0.0, %v8332
      %v8334 = vpop.f32.mrf.mxu0
      %8335 = vmatprep.mubr.bf16.mxu0 0
      %8336 = vmatmul.mubr.bf16.gmra.mxu0 %v8228
      %v8337 = vpop.f32.mrf.mxu0
      %v8338 = vadd.f32 0.0, %v8337
      %v8339 = vpop.f32.mrf.mxu0
      %v8340 = vpop.f32.mrf.mxu0
      %v8341 = vadd.f32 0.0, %v8340
      %v8342 = vpop.f32.mrf.mxu0
      %8343 = vmatprep.mubr.bf16.mxu0 0
      %8344 = vmatmul.mubr.bf16.gmra.mxu0 %v8231
      %v8345 = vpop.f32.mrf.mxu0
      %v8346 = vadd.f32 0.0, %v8345
      %v8347 = vpop.f32.mrf.mxu0
      %v8348 = vpop.f32.mrf.mxu0
      %v8349 = vadd.f32 0.0, %v8348
      %v8350 = vpop.f32.mrf.mxu0
      %8351 = vmatprep.mubr.bf16.mxu0 0
      %8352 = vmatmul.mubr.bf16.gmra.mxu0 %v8234
      %v8353 = vpop.f32.mrf.mxu0
      %v8354 = vadd.f32 0.0, %v8353
      %v8355 = vpop.f32.mrf.mxu0
      %v8356 = vpop.f32.mrf.mxu0
      %v8357 = vadd.f32 0.0, %v8356
      %v8358 = vpop.f32.mrf.mxu0
      %8359 = vmatprep.mubr.bf16.mxu0 0
      %8360 = vmatmul.mubr.bf16.gmra.mxu0 %v8237
      %v8361 = vpop.f32.mrf.mxu0
      %v8362 = vadd.f32 0.0, %v8361
      %v8363 = vpop.f32.mrf.mxu0
      %v8364 = vpop.f32.mrf.mxu0
      %v8365 = vadd.f32 0.0, %v8364
      %v8366 = vpop.f32.mrf.mxu0
      %8367 = vmatprep.mubr.bf16.mxu0 0
      %8368 = vmatmul.mubr.bf16.gmra.mxu0 %v8240
      %v8369 = vpop.f32.mrf.mxu0
      %v8370 = vadd.f32 0.0, %v8369
      %v8371 = vpop.f32.mrf.mxu0
      %v8372 = vpop.f32.mrf.mxu0
      %v8373 = vadd.f32 0.0, %v8372
      %v8374 = vpop.f32.mrf.mxu0
      %8375 = vmatprep.mubr.bf16.mxu0 0
      %8376 = vmatmul.mubr.bf16.gmra.mxu0 %v8243
      %v8377 = vpop.f32.mrf.mxu0
      %v8378 = vadd.f32 0.0, %v8377
      %v8379 = vpop.f32.mrf.mxu0
      %v8380 = vpop.f32.mrf.mxu0
      %v8381 = vadd.f32 0.0, %v8380
      %v8382 = vpop.f32.mrf.mxu0
      %8383 = vmatprep.mubr.bf16.mxu0 0
      %8384 = vmatmul.mubr.bf16.gmra.mxu0 %v8246
      %v8385 = vpop.f32.mrf.mxu0
      %v8386 = vadd.f32 0.0, %v8385
      %v8387 = vpop.f32.mrf.mxu0
      %v8388 = vpop.f32.mrf.mxu0
      %v8389 = vadd.f32 0.0, %v8388
      %v8390 = vpop.f32.mrf.mxu0
      %8391 = vmatprep.mubr.bf16.mxu0 0
      %8392 = vmatmul.mubr.bf16.gmra.mxu0 %v8249
      %v8393 = vpop.f32.mrf.mxu0
      %v8394 = vadd.f32 0.0, %v8393
      %v8395 = vpop.f32.mrf.mxu0
      %v8396 = vpop.f32.mrf.mxu0
      %v8397 = vadd.f32 0.0, %v8396
      %v8398 = vpop.f32.mrf.mxu0
      %8399 = vmatprep.mubr.bf16.mxu0 0
      %8400 = vmatmul.mubr.bf16.gmra.mxu0 %v8252
      %v8401 = vpop.f32.mrf.mxu0
      %v8402 = vadd.f32 0.0, %v8401
      %v8403 = vpop.f32.mrf.mxu0
      %v8404 = vpop.f32.mrf.mxu0
      %v8405 = vadd.f32 0.0, %v8404
      %v8406 = vpop.f32.mrf.mxu0
      %8407 = vmatprep.mubr.bf16.mxu0 0
      %8408 = vmatmul.mubr.bf16.gmra.mxu0 %v8255
      %v8409 = vpop.f32.mrf.mxu0
      %v8410 = vadd.f32 0.0, %v8409
      %v8411 = vpop.f32.mrf.mxu0
      %v8412 = vpop.f32.mrf.mxu0
      %v8413 = vadd.f32 0.0, %v8412
      %v8414 = vpop.f32.mrf.mxu0
      %8415 = vmatprep.mubr.bf16.mxu0 0
      %8416 = vmatmul.mubr.bf16.gmra.mxu0 %v8258
      %v8417 = vpop.f32.mrf.mxu0
      %v8418 = vadd.f32 0.0, %v8417
      %v8419 = vpop.f32.mrf.mxu0
      %v8420 = vpop.f32.mrf.mxu0
      %v8421 = vadd.f32 0.0, %v8420
      %v8422 = vpop.f32.mrf.mxu0
      %8423 = vdwg.mxu0
      %v8424 = vld [vmem:[#allocation3] sm:$0xff]
      %v8425 = vld [vmem:[#allocation3 + $0x8] sm:$0xff]
      %v8426 = vld [vmem:[#allocation3 + $0x10] sm:$0xff]
      %v8427 = vld [vmem:[#allocation3 + $0x18] sm:$0xff]
      %v8428 = vld [vmem:[#allocation3 + $0x20] sm:$0xff]
      %v8429 = vld [vmem:[#allocation3 + $0x28] sm:$0xff]
      %v8430 = vld [vmem:[#allocation3 + $0x30] sm:$0xff]
      %v8431 = vld [vmem:[#allocation3 + $0x38] sm:$0xff]
      %v8432 = vld [vmem:[#allocation3 + $0x40] sm:$0xff]
      %v8433 = vld [vmem:[#allocation3 + $0x48] sm:$0xff]
      %v8434 = vld [vmem:[#allocation3 + $0x50] sm:$0xff]
      %v8435 = vld [vmem:[#allocation3 + $0x58] sm:$0xff]
      %v8436 = vld [vmem:[#allocation3 + $0x60] sm:$0xff]
      %v8437 = vld [vmem:[#allocation3 + $0x68] sm:$0xff]
      %v8438 = vld [vmem:[#allocation3 + $0x70] sm:$0xff]
      %v8439 = vld [vmem:[#allocation3 + $0x78] sm:$0xff]
      %v8440 = vld [vmem:[#allocation3 + $0x80] sm:$0xff]
      %v8441 = vld [vmem:[#allocation3 + $0x88] sm:$0xff]
      %v8442 = vld [vmem:[#allocation3 + $0x90] sm:$0xff]
      %v8443 = vld [vmem:[#allocation3 + $0x98] sm:$0xff]
      %v8444 = vld [vmem:[#allocation3 + $0xa0] sm:$0xff]
      %v8445 = vld [vmem:[#allocation3 + $0xa8] sm:$0xff]
      %v8446 = vld [vmem:[#allocation3 + $0xb0] sm:$0xff]
      %v8447 = vld [vmem:[#allocation3 + $0xb8] sm:$0xff]
      %v8448 = vld [vmem:[#allocation3 + $0xc0] sm:$0xff]
      %v8449 = vld [vmem:[#allocation3 + $0xc8] sm:$0xff]
      %v8450 = vld [vmem:[#allocation3 + $0xd0] sm:$0xff]
      %v8451 = vld [vmem:[#allocation3 + $0xd8] sm:$0xff]
      %v8452 = vld [vmem:[#allocation3 + $0xe0] sm:$0xff]
      %v8453 = vld [vmem:[#allocation3 + $0xe8] sm:$0xff]
      %v8454 = vld [vmem:[#allocation3 + $0xf0] sm:$0xff]
      %v8455 = vld [vmem:[#allocation3 + $0xf8] sm:$0xff]
      %v8456 = vadd.f32 %v8424, %v8298
      %v8457 = vadd.f32 %v8425, %v8301
      %v8458 = vadd.f32 %v8426, %v8306
      %v8459 = vadd.f32 %v8427, %v8309
      %v8460 = vadd.f32 %v8428, %v8314
      %v8461 = vadd.f32 %v8429, %v8317
      %v8462 = vadd.f32 %v8430, %v8322
      %v8463 = vadd.f32 %v8431, %v8325
      %v8464 = vadd.f32 %v8432, %v8330
      %v8465 = vadd.f32 %v8433, %v8333
      %v8466 = vadd.f32 %v8434, %v8338
      %v8467 = vadd.f32 %v8435, %v8341
      %v8468 = vadd.f32 %v8436, %v8346
      %v8469 = vadd.f32 %v8437, %v8349
      %v8470 = vadd.f32 %v8438, %v8354
      %v8471 = vadd.f32 %v8439, %v8357
      %v8472 = vadd.f32 %v8440, %v8362
      %v8473 = vadd.f32 %v8441, %v8365
      %v8474 = vadd.f32 %v8442, %v8370
      %v8475 = vadd.f32 %v8443, %v8373
      %v8476 = vadd.f32 %v8444, %v8378
      %v8477 = vadd.f32 %v8445, %v8381
      %v8478 = vadd.f32 %v8446, %v8386
      %v8479 = vadd.f32 %v8447, %v8389
      %v8480 = vadd.f32 %v8448, %v8394
      %v8481 = vadd.f32 %v8449, %v8397
      %v8482 = vadd.f32 %v8450, %v8402
      %v8483 = vadd.f32 %v8451, %v8405
      %v8484 = vadd.f32 %v8452, %v8410
      %v8485 = vadd.f32 %v8453, %v8413
      %v8486 = vadd.f32 %v8454, %v8418
      %v8487 = vadd.f32 %v8455, %v8421
      %8488 = vst.msk [vmem:[#allocation3] sm:$0xff] %vm972, %v8456
      %8489 = vst.msk [vmem:[#allocation3 + $0x8] sm:$0xff] %vm972, %v8457
      %8490 = vst.msk [vmem:[#allocation3 + $0x10] sm:$0xff] %vm972, %v8458
      %8491 = vst.msk [vmem:[#allocation3 + $0x18] sm:$0xff] %vm972, %v8459
      %8492 = vst.msk [vmem:[#allocation3 + $0x20] sm:$0xff] %vm972, %v8460
      %8493 = vst.msk [vmem:[#allocation3 + $0x28] sm:$0xff] %vm972, %v8461
      %8494 = vst.msk [vmem:[#allocation3 + $0x30] sm:$0xff] %vm972, %v8462
      %8495 = vst.msk [vmem:[#allocation3 + $0x38] sm:$0xff] %vm972, %v8463
      %8496 = vst.msk [vmem:[#allocation3 + $0x40] sm:$0xff] %vm972, %v8464
      %8497 = vst.msk [vmem:[#allocation3 + $0x48] sm:$0xff] %vm972, %v8465
      %8498 = vst.msk [vmem:[#allocation3 + $0x50] sm:$0xff] %vm972, %v8466
      %8499 = vst.msk [vmem:[#allocation3 + $0x58] sm:$0xff] %vm972, %v8467
      %8500 = vst.msk [vmem:[#allocation3 + $0x60] sm:$0xff] %vm972, %v8468
      %8501 = vst.msk [vmem:[#allocation3 + $0x68] sm:$0xff] %vm972, %v8469
      %8502 = vst.msk [vmem:[#allocation3 + $0x70] sm:$0xff] %vm972, %v8470
      %8503 = vst.msk [vmem:[#allocation3 + $0x78] sm:$0xff] %vm972, %v8471
      %8504 = vst.msk [vmem:[#allocation3 + $0x80] sm:$0xff] %vm972, %v8472
      %8505 = vst.msk [vmem:[#allocation3 + $0x88] sm:$0xff] %vm972, %v8473
      %8506 = vst.msk [vmem:[#allocation3 + $0x90] sm:$0xff] %vm972, %v8474
      %8507 = vst.msk [vmem:[#allocation3 + $0x98] sm:$0xff] %vm972, %v8475
      %8508 = vst.msk [vmem:[#allocation3 + $0xa0] sm:$0xff] %vm972, %v8476
      %8509 = vst.msk [vmem:[#allocation3 + $0xa8] sm:$0xff] %vm972, %v8477
      %8510 = vst.msk [vmem:[#allocation3 + $0xb0] sm:$0xff] %vm972, %v8478
      %8511 = vst.msk [vmem:[#allocation3 + $0xb8] sm:$0xff] %vm972, %v8479
      %8512 = vst.msk [vmem:[#allocation3 + $0xc0] sm:$0xff] %vm972, %v8480
      %8513 = vst.msk [vmem:[#allocation3 + $0xc8] sm:$0xff] %vm972, %v8481
      %8514 = vst.msk [vmem:[#allocation3 + $0xd0] sm:$0xff] %vm972, %v8482
      %8515 = vst.msk [vmem:[#allocation3 + $0xd8] sm:$0xff] %vm972, %v8483
      %8516 = vst.msk [vmem:[#allocation3 + $0xe0] sm:$0xff] %vm972, %v8484
      %8517 = vst.msk [vmem:[#allocation3 + $0xe8] sm:$0xff] %vm972, %v8485
      %8518 = vst.msk [vmem:[#allocation3 + $0xf0] sm:$0xff] %vm972, %v8486
      %8519 = vst.msk [vmem:[#allocation3 + $0xf8] sm:$0xff] %vm972, %v8487
      %v8520 = vld [vmem:[%s289] sm:$0xf]
      %v8521 = vld [vmem:[%s289 + $0x4] sm:$0xf]
      %v8522 = vld [vmem:[%s289 + $0xc] sm:$0xf]
      %v8523 = vld [vmem:[%s289 + $0x10] sm:$0xf]
      %v8524 = vld [vmem:[%s289 + $0x18] sm:$0xf]
      %v8525 = vld [vmem:[%s289 + $0x1c] sm:$0xf]
      %v8526 = vld [vmem:[%s289 + $0x24] sm:$0xf]
      %v8527 = vld [vmem:[%s289 + $0x28] sm:$0xf]
      %v8528 = vld [vmem:[%s289 + $0x30] sm:$0xf]
      %v8529 = vld [vmem:[%s289 + $0x34] sm:$0xf]
      %v8530 = vld [vmem:[%s289 + $0x3c] sm:$0xf]
      %v8531 = vld [vmem:[%s289 + $0x40] sm:$0xf]
      %v8532 = vld [vmem:[%s289 + $0x48] sm:$0xf]
      %v8533 = vld [vmem:[%s289 + $0x4c] sm:$0xf]
      %v8534 = vld [vmem:[%s289 + $0x54] sm:$0xf]
      %v8535 = vld [vmem:[%s289 + $0x58] sm:$0xf]
      %v8536 = vld [vmem:[%s289 + $0x60] sm:$0xf]
      %v8537 = vld [vmem:[%s289 + $0x64] sm:$0xf]
      %v8538 = vld [vmem:[%s289 + $0x6c] sm:$0xf]
      %v8539 = vld [vmem:[%s289 + $0x70] sm:$0xf]
      %v8540 = vld [vmem:[%s289 + $0x78] sm:$0xf]
      %v8541 = vld [vmem:[%s289 + $0x7c] sm:$0xf]
      %v8542 = vld [vmem:[%s289 + $0x84] sm:$0xf]
      %v8543 = vld [vmem:[%s289 + $0x88] sm:$0xf]
      %v8544 = vld [vmem:[%s289 + $0x90] sm:$0xf]
      %v8545 = vld [vmem:[%s289 + $0x94] sm:$0xf]
      %v8546 = vld [vmem:[%s289 + $0x9c] sm:$0xf]
      %v8547 = vld [vmem:[%s289 + $0xa0] sm:$0xf]
      %v8548 = vld [vmem:[%s289 + $0xa8] sm:$0xf]
      %v8549 = vld [vmem:[%s289 + $0xac] sm:$0xf]
      %v8550 = vld [vmem:[%s289 + $0xb4] sm:$0xf]
      %v8551 = vld [vmem:[%s289 + $0xb8] sm:$0xf]
      %s8552 = scalar_lea.vmem %s2, 6
      %v8553 = vld [vmem:[%s8552] sm:$0x3]
      %v8586 = vunpack.c.l.b16 %v8520
      %v8587 = vunpack.c.l.b16 %v8521
      %v8588 = vunpack.c.l.b16 %v8522
      %v8589 = vunpack.c.l.b16 %v8523
      %v8590 = vunpack.c.l.b16 %v8524
      %v8591 = vunpack.c.l.b16 %v8525
      %v8592 = vunpack.c.l.b16 %v8526
      %v8593 = vunpack.c.l.b16 %v8527
      %v8594 = vunpack.c.l.b16 %v8528
      %v8595 = vunpack.c.l.b16 %v8529
      %v8596 = vunpack.c.l.b16 %v8530
      %v8597 = vunpack.c.l.b16 %v8531
      %v8598 = vunpack.c.l.b16 %v8532
      %v8599 = vunpack.c.l.b16 %v8533
      %v8600 = vunpack.c.l.b16 %v8534
      %v8601 = vunpack.c.l.b16 %v8535
      %v8602 = vunpack.c.l.b16 %v8536
      %v8603 = vunpack.c.l.b16 %v8537
      %v8604 = vunpack.c.l.b16 %v8538
      %v8605 = vunpack.c.l.b16 %v8539
      %v8606 = vunpack.c.l.b16 %v8540
      %v8607 = vunpack.c.l.b16 %v8541
      %v8608 = vunpack.c.l.b16 %v8542
      %v8609 = vunpack.c.l.b16 %v8543
      %v8610 = vunpack.c.l.b16 %v8544
      %v8611 = vunpack.c.l.b16 %v8545
      %v8612 = vunpack.c.l.b16 %v8546
      %v8613 = vunpack.c.l.b16 %v8547
      %v8614 = vunpack.c.l.b16 %v8548
      %v8615 = vunpack.c.l.b16 %v8549
      %v8616 = vunpack.c.l.b16 %v8550
      %v8617 = vunpack.c.l.b16 %v8551
      %v8618 = vpack.c.b16 %v8587, %v8586
      %v8619 = vpack.c.b16 %v8589, %v8588
      %v8620 = vpack.c.b16 %v8591, %v8590
      %v8621 = vpack.c.b16 %v8593, %v8592
      %v8622 = vpack.c.b16 %v8595, %v8594
      %v8623 = vpack.c.b16 %v8597, %v8596
      %v8624 = vpack.c.b16 %v8599, %v8598
      %v8625 = vpack.c.b16 %v8601, %v8600
      %v8626 = vpack.c.b16 %v8603, %v8602
      %v8627 = vpack.c.b16 %v8605, %v8604
      %v8628 = vpack.c.b16 %v8607, %v8606
      %v8629 = vpack.c.b16 %v8609, %v8608
      %v8630 = vpack.c.b16 %v8611, %v8610
      %v8631 = vpack.c.b16 %v8613, %v8612
      %v8632 = vpack.c.b16 %v8615, %v8614
      %v8633 = vpack.c.b16 %v8617, %v8616
      %v8635 = vsel %vm972, %v8618, 0
      %v8638 = vsel %vm972, %v8619, 0
      %v8641 = vsel %vm972, %v8620, 0
      %v8644 = vsel %vm972, %v8621, 0
      %v8647 = vsel %vm972, %v8622, 0
      %v8650 = vsel %vm972, %v8623, 0
      %v8653 = vsel %vm972, %v8624, 0
      %v8656 = vsel %vm972, %v8625, 0
      %v8659 = vsel %vm972, %v8626, 0
      %v8662 = vsel %vm972, %v8627, 0
      %v8665 = vsel %vm972, %v8628, 0
      %v8668 = vsel %vm972, %v8629, 0
      %v8671 = vsel %vm972, %v8630, 0
      %v8674 = vsel %vm972, %v8631, 0
      %v8677 = vsel %vm972, %v8632, 0
      %v8680 = vsel %vm972, %v8633, 0
      %v8683 = vsel %vm1021, %v8553, 0
      %8685 = vmatprep.subr.bf16.mxu0 0
      %8686 = vmatpush1.bf16.msra.mxu0 0
      %8687 = vmatprep.subr.bf16.mxu0 0
      %8688 = vmatpush1.bf16.msra.mxu0 0
      %8689 = vmatprep.subr.bf16.mxu0 0
      %8690 = vmatpush1.bf16.msra.mxu0 0
      %8691 = vmatprep.subr.bf16.mxu0 0
      %8692 = vmatpush1.bf16.msra.mxu0 0
      %8693 = vmatprep.subr.bf16.mxu0 0
      %8694 = vmatpush1.bf16.msra.mxu0 0
      %8695 = vmatprep.subr.bf16.mxu0 0
      %8696 = vmatpush1.bf16.msra.mxu0 0
      %8697 = vmatprep.subr.bf16.mxu0 0
      %8698 = vmatpush1.bf16.msra.mxu0 0
      %8699 = vmatprep.subr.bf16.mxu0 0
      %8700 = vmatpush1.bf16.msra.mxu0 %v8683
      %8701 = vmatprep.subr.bf16.mxu0 0
      %8702 = vmatpush2.bf16.msra.mxu0 0
      %8703 = vmatprep.subr.bf16.mxu0 0
      %8704 = vmatpush2.bf16.msra.mxu0 0
      %8705 = vmatprep.subr.bf16.mxu0 0
      %8706 = vmatpush2.bf16.msra.mxu0 0
      %8707 = vmatprep.subr.bf16.mxu0 0
      %8708 = vmatpush2.bf16.msra.mxu0 0
      %8709 = vmatprep.subr.bf16.mxu0 0
      %8710 = vmatpush2.bf16.msra.mxu0 0
      %8711 = vmatprep.subr.bf16.mxu0 0
      %8712 = vmatpush2.bf16.msra.mxu0 0
      %8713 = vmatprep.subr.bf16.mxu0 0
      %8714 = vmatpush2.bf16.msra.mxu0 0
      %8715 = vmatprep.subr.bf16.mxu0 0
      %8716 = vmatpush2.bf16.msra.mxu0 0
      %8717 = vmatprep.mubr.bf16.mxu0 0
      %8718 = vmatmul.mubr.bf16.gmra.mxu0 %v8635
      %v8719 = vpop.f32.mrf.mxu0
      %v8720 = vadd.f32 0.0, %v8719
      %v8721 = vpop.f32.mrf.mxu0
      %v8722 = vpop.f32.mrf.mxu0
      %v8723 = vadd.f32 0.0, %v8722
      %v8724 = vpop.f32.mrf.mxu0
      %8725 = vmatprep.mubr.bf16.mxu0 0
      %8726 = vmatmul.mubr.bf16.gmra.mxu0 %v8638
      %v8727 = vpop.f32.mrf.mxu0
      %v8728 = vadd.f32 0.0, %v8727
      %v8729 = vpop.f32.mrf.mxu0
      %v8730 = vpop.f32.mrf.mxu0
      %v8731 = vadd.f32 0.0, %v8730
      %v8732 = vpop.f32.mrf.mxu0
      %8733 = vmatprep.mubr.bf16.mxu0 0
      %8734 = vmatmul.mubr.bf16.gmra.mxu0 %v8641
      %v8735 = vpop.f32.mrf.mxu0
      %v8736 = vadd.f32 0.0, %v8735
      %v8737 = vpop.f32.mrf.mxu0
      %v8738 = vpop.f32.mrf.mxu0
      %v8739 = vadd.f32 0.0, %v8738
      %v8740 = vpop.f32.mrf.mxu0
      %8741 = vmatprep.mubr.bf16.mxu0 0
      %8742 = vmatmul.mubr.bf16.gmra.mxu0 %v8644
      %v8743 = vpop.f32.mrf.mxu0
      %v8744 = vadd.f32 0.0, %v8743
      %v8745 = vpop.f32.mrf.mxu0
      %v8746 = vpop.f32.mrf.mxu0
      %v8747 = vadd.f32 0.0, %v8746
      %v8748 = vpop.f32.mrf.mxu0
      %8749 = vmatprep.mubr.bf16.mxu0 0
      %8750 = vmatmul.mubr.bf16.gmra.mxu0 %v8647
      %v8751 = vpop.f32.mrf.mxu0
      %v8752 = vadd.f32 0.0, %v8751
      %v8753 = vpop.f32.mrf.mxu0
      %v8754 = vpop.f32.mrf.mxu0
      %v8755 = vadd.f32 0.0, %v8754
      %v8756 = vpop.f32.mrf.mxu0
      %8757 = vmatprep.mubr.bf16.mxu0 0
      %8758 = vmatmul.mubr.bf16.gmra.mxu0 %v8650
      %v8759 = vpop.f32.mrf.mxu0
      %v8760 = vadd.f32 0.0, %v8759
      %v8761 = vpop.f32.mrf.mxu0
      %v8762 = vpop.f32.mrf.mxu0
      %v8763 = vadd.f32 0.0, %v8762
      %v8764 = vpop.f32.mrf.mxu0
      %8765 = vmatprep.mubr.bf16.mxu0 0
      %8766 = vmatmul.mubr.bf16.gmra.mxu0 %v8653
      %v8767 = vpop.f32.mrf.mxu0
      %v8768 = vadd.f32 0.0, %v8767
      %v8769 = vpop.f32.mrf.mxu0
      %v8770 = vpop.f32.mrf.mxu0
      %v8771 = vadd.f32 0.0, %v8770
      %v8772 = vpop.f32.mrf.mxu0
      %8773 = vmatprep.mubr.bf16.mxu0 0
      %8774 = vmatmul.mubr.bf16.gmra.mxu0 %v8656
      %v8775 = vpop.f32.mrf.mxu0
      %v8776 = vadd.f32 0.0, %v8775
      %v8777 = vpop.f32.mrf.mxu0
      %v8778 = vpop.f32.mrf.mxu0
      %v8779 = vadd.f32 0.0, %v8778
      %v8780 = vpop.f32.mrf.mxu0
      %8781 = vmatprep.mubr.bf16.mxu0 0
      %8782 = vmatmul.mubr.bf16.gmra.mxu0 %v8659
      %v8783 = vpop.f32.mrf.mxu0
      %v8784 = vadd.f32 0.0, %v8783
      %v8785 = vpop.f32.mrf.mxu0
      %v8786 = vpop.f32.mrf.mxu0
      %v8787 = vadd.f32 0.0, %v8786
      %v8788 = vpop.f32.mrf.mxu0
      %8789 = vmatprep.mubr.bf16.mxu0 0
      %8790 = vmatmul.mubr.bf16.gmra.mxu0 %v8662
      %v8791 = vpop.f32.mrf.mxu0
      %v8792 = vadd.f32 0.0, %v8791
      %v8793 = vpop.f32.mrf.mxu0
      %v8794 = vpop.f32.mrf.mxu0
      %v8795 = vadd.f32 0.0, %v8794
      %v8796 = vpop.f32.mrf.mxu0
      %8797 = vmatprep.mubr.bf16.mxu0 0
      %8798 = vmatmul.mubr.bf16.gmra.mxu0 %v8665
      %v8799 = vpop.f32.mrf.mxu0
      %v8800 = vadd.f32 0.0, %v8799
      %v8801 = vpop.f32.mrf.mxu0
      %v8802 = vpop.f32.mrf.mxu0
      %v8803 = vadd.f32 0.0, %v8802
      %v8804 = vpop.f32.mrf.mxu0
      %8805 = vmatprep.mubr.bf16.mxu0 0
      %8806 = vmatmul.mubr.bf16.gmra.mxu0 %v8668
      %v8807 = vpop.f32.mrf.mxu0
      %v8808 = vadd.f32 0.0, %v8807
      %v8809 = vpop.f32.mrf.mxu0
      %v8810 = vpop.f32.mrf.mxu0
      %v8811 = vadd.f32 0.0, %v8810
      %v8812 = vpop.f32.mrf.mxu0
      %8813 = vmatprep.mubr.bf16.mxu0 0
      %8814 = vmatmul.mubr.bf16.gmra.mxu0 %v8671
      %v8815 = vpop.f32.mrf.mxu0
      %v8816 = vadd.f32 0.0, %v8815
      %v8817 = vpop.f32.mrf.mxu0
      %v8818 = vpop.f32.mrf.mxu0
      %v8819 = vadd.f32 0.0, %v8818
      %v8820 = vpop.f32.mrf.mxu0
      %8821 = vmatprep.mubr.bf16.mxu0 0
      %8822 = vmatmul.mubr.bf16.gmra.mxu0 %v8674
      %v8823 = vpop.f32.mrf.mxu0
      %v8824 = vadd.f32 0.0, %v8823
      %v8825 = vpop.f32.mrf.mxu0
      %v8826 = vpop.f32.mrf.mxu0
      %v8827 = vadd.f32 0.0, %v8826
      %v8828 = vpop.f32.mrf.mxu0
      %8829 = vmatprep.mubr.bf16.mxu0 0
      %8830 = vmatmul.mubr.bf16.gmra.mxu0 %v8677
      %v8831 = vpop.f32.mrf.mxu0
      %v8832 = vadd.f32 0.0, %v8831
      %v8833 = vpop.f32.mrf.mxu0
      %v8834 = vpop.f32.mrf.mxu0
      %v8835 = vadd.f32 0.0, %v8834
      %v8836 = vpop.f32.mrf.mxu0
      %8837 = vmatprep.mubr.bf16.mxu0 0
      %8838 = vmatmul.mubr.bf16.gmra.mxu0 %v8680
      %v8839 = vpop.f32.mrf.mxu0
      %v8840 = vadd.f32 0.0, %v8839
      %v8841 = vpop.f32.mrf.mxu0
      %v8842 = vpop.f32.mrf.mxu0
      %v8843 = vadd.f32 0.0, %v8842
      %v8844 = vpop.f32.mrf.mxu0
      %8845 = vdwg.mxu0
      %v8846 = vld [vmem:[#allocation3] sm:$0xff]
      %v8847 = vld [vmem:[#allocation3 + $0x8] sm:$0xff]
      %v8848 = vld [vmem:[#allocation3 + $0x10] sm:$0xff]
      %v8849 = vld [vmem:[#allocation3 + $0x18] sm:$0xff]
      %v8850 = vld [vmem:[#allocation3 + $0x20] sm:$0xff]
      %v8851 = vld [vmem:[#allocation3 + $0x28] sm:$0xff]
      %v8852 = vld [vmem:[#allocation3 + $0x30] sm:$0xff]
      %v8853 = vld [vmem:[#allocation3 + $0x38] sm:$0xff]
      %v8854 = vld [vmem:[#allocation3 + $0x40] sm:$0xff]
      %v8855 = vld [vmem:[#allocation3 + $0x48] sm:$0xff]
      %v8856 = vld [vmem:[#allocation3 + $0x50] sm:$0xff]
      %v8857 = vld [vmem:[#allocation3 + $0x58] sm:$0xff]
      %v8858 = vld [vmem:[#allocation3 + $0x60] sm:$0xff]
      %v8859 = vld [vmem:[#allocation3 + $0x68] sm:$0xff]
      %v8860 = vld [vmem:[#allocation3 + $0x70] sm:$0xff]
      %v8861 = vld [vmem:[#allocation3 + $0x78] sm:$0xff]
      %v8862 = vld [vmem:[#allocation3 + $0x80] sm:$0xff]
      %v8863 = vld [vmem:[#allocation3 + $0x88] sm:$0xff]
      %v8864 = vld [vmem:[#allocation3 + $0x90] sm:$0xff]
      %v8865 = vld [vmem:[#allocation3 + $0x98] sm:$0xff]
      %v8866 = vld [vmem:[#allocation3 + $0xa0] sm:$0xff]
      %v8867 = vld [vmem:[#allocation3 + $0xa8] sm:$0xff]
      %v8868 = vld [vmem:[#allocation3 + $0xb0] sm:$0xff]
      %v8869 = vld [vmem:[#allocation3 + $0xb8] sm:$0xff]
      %v8870 = vld [vmem:[#allocation3 + $0xc0] sm:$0xff]
      %v8871 = vld [vmem:[#allocation3 + $0xc8] sm:$0xff]
      %v8872 = vld [vmem:[#allocation3 + $0xd0] sm:$0xff]
      %v8873 = vld [vmem:[#allocation3 + $0xd8] sm:$0xff]
      %v8874 = vld [vmem:[#allocation3 + $0xe0] sm:$0xff]
      %v8875 = vld [vmem:[#allocation3 + $0xe8] sm:$0xff]
      %v8876 = vld [vmem:[#allocation3 + $0xf0] sm:$0xff]
      %v8877 = vld [vmem:[#allocation3 + $0xf8] sm:$0xff]
      %v8878 = vadd.f32 %v8846, %v8720
      %v8879 = vadd.f32 %v8847, %v8723
      %v8880 = vadd.f32 %v8848, %v8728
      %v8881 = vadd.f32 %v8849, %v8731
      %v8882 = vadd.f32 %v8850, %v8736
      %v8883 = vadd.f32 %v8851, %v8739
      %v8884 = vadd.f32 %v8852, %v8744
      %v8885 = vadd.f32 %v8853, %v8747
      %v8886 = vadd.f32 %v8854, %v8752
      %v8887 = vadd.f32 %v8855, %v8755
      %v8888 = vadd.f32 %v8856, %v8760
      %v8889 = vadd.f32 %v8857, %v8763
      %v8890 = vadd.f32 %v8858, %v8768
      %v8891 = vadd.f32 %v8859, %v8771
      %v8892 = vadd.f32 %v8860, %v8776
      %v8893 = vadd.f32 %v8861, %v8779
      %v8894 = vadd.f32 %v8862, %v8784
      %v8895 = vadd.f32 %v8863, %v8787
      %v8896 = vadd.f32 %v8864, %v8792
      %v8897 = vadd.f32 %v8865, %v8795
      %v8898 = vadd.f32 %v8866, %v8800
      %v8899 = vadd.f32 %v8867, %v8803
      %v8900 = vadd.f32 %v8868, %v8808
      %v8901 = vadd.f32 %v8869, %v8811
      %v8902 = vadd.f32 %v8870, %v8816
      %v8903 = vadd.f32 %v8871, %v8819
      %v8904 = vadd.f32 %v8872, %v8824
      %v8905 = vadd.f32 %v8873, %v8827
      %v8906 = vadd.f32 %v8874, %v8832
      %v8907 = vadd.f32 %v8875, %v8835
      %v8908 = vadd.f32 %v8876, %v8840
      %v8909 = vadd.f32 %v8877, %v8843
      %8910 = vst.msk [vmem:[#allocation3] sm:$0xff] %vm972, %v8878
      %8911 = vst.msk [vmem:[#allocation3 + $0x8] sm:$0xff] %vm972, %v8879
      %8912 = vst.msk [vmem:[#allocation3 + $0x10] sm:$0xff] %vm972, %v8880
      %8913 = vst.msk [vmem:[#allocation3 + $0x18] sm:$0xff] %vm972, %v8881
      %8914 = vst.msk [vmem:[#allocation3 + $0x20] sm:$0xff] %vm972, %v8882
      %8915 = vst.msk [vmem:[#allocation3 + $0x28] sm:$0xff] %vm972, %v8883
      %8916 = vst.msk [vmem:[#allocation3 + $0x30] sm:$0xff] %vm972, %v8884
      %8917 = vst.msk [vmem:[#allocation3 + $0x38] sm:$0xff] %vm972, %v8885
      %8918 = vst.msk [vmem:[#allocation3 + $0x40] sm:$0xff] %vm972, %v8886
      %8919 = vst.msk [vmem:[#allocation3 + $0x48] sm:$0xff] %vm972, %v8887
      %8920 = vst.msk [vmem:[#allocation3 + $0x50] sm:$0xff] %vm972, %v8888
      %8921 = vst.msk [vmem:[#allocation3 + $0x58] sm:$0xff] %vm972, %v8889
      %8922 = vst.msk [vmem:[#allocation3 + $0x60] sm:$0xff] %vm972, %v8890
      %8923 = vst.msk [vmem:[#allocation3 + $0x68] sm:$0xff] %vm972, %v8891
      %8924 = vst.msk [vmem:[#allocation3 + $0x70] sm:$0xff] %vm972, %v8892
      %8925 = vst.msk [vmem:[#allocation3 + $0x78] sm:$0xff] %vm972, %v8893
      %8926 = vst.msk [vmem:[#allocation3 + $0x80] sm:$0xff] %vm972, %v8894
      %8927 = vst.msk [vmem:[#allocation3 + $0x88] sm:$0xff] %vm972, %v8895
      %8928 = vst.msk [vmem:[#allocation3 + $0x90] sm:$0xff] %vm972, %v8896
      %8929 = vst.msk [vmem:[#allocation3 + $0x98] sm:$0xff] %vm972, %v8897
      %8930 = vst.msk [vmem:[#allocation3 + $0xa0] sm:$0xff] %vm972, %v8898
      %8931 = vst.msk [vmem:[#allocation3 + $0xa8] sm:$0xff] %vm972, %v8899
      %8932 = vst.msk [vmem:[#allocation3 + $0xb0] sm:$0xff] %vm972, %v8900
      %8933 = vst.msk [vmem:[#allocation3 + $0xb8] sm:$0xff] %vm972, %v8901
      %8934 = vst.msk [vmem:[#allocation3 + $0xc0] sm:$0xff] %vm972, %v8902
      %8935 = vst.msk [vmem:[#allocation3 + $0xc8] sm:$0xff] %vm972, %v8903
      %8936 = vst.msk [vmem:[#allocation3 + $0xd0] sm:$0xff] %vm972, %v8904
      %8937 = vst.msk [vmem:[#allocation3 + $0xd8] sm:$0xff] %vm972, %v8905
      %8938 = vst.msk [vmem:[#allocation3 + $0xe0] sm:$0xff] %vm972, %v8906
      %8939 = vst.msk [vmem:[#allocation3 + $0xe8] sm:$0xff] %vm972, %v8907
      %8940 = vst.msk [vmem:[#allocation3 + $0xf0] sm:$0xff] %vm972, %v8908
      %8941 = vst.msk [vmem:[#allocation3 + $0xf8] sm:$0xff] %vm972, %v8909
      %v8942 = vld [vmem:[%s289] sm:$0xf]
      %v8943 = vld [vmem:[%s289 + $0x4] sm:$0xf]
      %v8944 = vld [vmem:[%s289 + $0x8] sm:$0x1]
      %v8945 = vld [vmem:[%s289 + $0xc] sm:$0xf]
      %v8946 = vld [vmem:[%s289 + $0x10] sm:$0xf]
      %v8947 = vld [vmem:[%s289 + $0x14] sm:$0x1]
      %v8948 = vld [vmem:[%s289 + $0x18] sm:$0xf]
      %v8949 = vld [vmem:[%s289 + $0x1c] sm:$0xf]
      %v8950 = vld [vmem:[%s289 + $0x20] sm:$0x1]
      %v8951 = vld [vmem:[%s289 + $0x24] sm:$0xf]
      %v8952 = vld [vmem:[%s289 + $0x28] sm:$0xf]
      %v8953 = vld [vmem:[%s289 + $0x2c] sm:$0x1]
      %v8954 = vld [vmem:[%s289 + $0x30] sm:$0xf]
      %v8955 = vld [vmem:[%s289 + $0x34] sm:$0xf]
      %v8956 = vld [vmem:[%s289 + $0x38] sm:$0x1]
      %v8957 = vld [vmem:[%s289 + $0x3c] sm:$0xf]
      %v8958 = vld [vmem:[%s289 + $0x40] sm:$0xf]
      %v8959 = vld [vmem:[%s289 + $0x44] sm:$0x1]
      %v8960 = vld [vmem:[%s289 + $0x48] sm:$0xf]
      %v8961 = vld [vmem:[%s289 + $0x4c] sm:$0xf]
      %v8962 = vld [vmem:[%s289 + $0x50] sm:$0x1]
      %v8963 = vld [vmem:[%s289 + $0x54] sm:$0xf]
      %v8964 = vld [vmem:[%s289 + $0x58] sm:$0xf]
      %v8965 = vld [vmem:[%s289 + $0x5c] sm:$0x1]
      %v8966 = vld [vmem:[%s289 + $0x60] sm:$0xf]
      %v8967 = vld [vmem:[%s289 + $0x64] sm:$0xf]
      %v8968 = vld [vmem:[%s289 + $0x68] sm:$0x1]
      %v8969 = vld [vmem:[%s289 + $0x6c] sm:$0xf]
      %v8970 = vld [vmem:[%s289 + $0x70] sm:$0xf]
      %v8971 = vld [vmem:[%s289 + $0x74] sm:$0x1]
      %v8972 = vld [vmem:[%s289 + $0x78] sm:$0xf]
      %v8973 = vld [vmem:[%s289 + $0x7c] sm:$0xf]
      %v8974 = vld [vmem:[%s289 + $0x80] sm:$0x1]
      %v8975 = vld [vmem:[%s289 + $0x84] sm:$0xf]
      %v8976 = vld [vmem:[%s289 + $0x88] sm:$0xf]
      %v8977 = vld [vmem:[%s289 + $0x8c] sm:$0x1]
      %v8978 = vld [vmem:[%s289 + $0x90] sm:$0xf]
      %v8979 = vld [vmem:[%s289 + $0x94] sm:$0xf]
      %v8980 = vld [vmem:[%s289 + $0x98] sm:$0x1]
      %v8981 = vld [vmem:[%s289 + $0x9c] sm:$0xf]
      %v8982 = vld [vmem:[%s289 + $0xa0] sm:$0xf]
      %v8983 = vld [vmem:[%s289 + $0xa4] sm:$0x1]
      %v8984 = vld [vmem:[%s289 + $0xa8] sm:$0xf]
      %v8985 = vld [vmem:[%s289 + $0xac] sm:$0xf]
      %v8986 = vld [vmem:[%s289 + $0xb0] sm:$0x1]
      %v8987 = vld [vmem:[%s289 + $0xb4] sm:$0xf]
      %v8988 = vld [vmem:[%s289 + $0xb8] sm:$0xf]
      %v8989 = vld [vmem:[%s289 + $0xbc] sm:$0x1]
      %v8991 = vshrl.u32 %v8942, 16
      %v8993 = vrot.slane %v8991, 4
      %v8994 = vshll.u32 %v8942, 16
      %v8996 = vrot.slane %v8994, 5
      %v8997 = vor.u32 %v8993, %v8996
      %v8998 = vrot.slane %v8997, 4
      %v9000 = vshll.u32 %v8943, 16
      %v9002 = vrot.slane %v9000, 5
      %v9003 = vsel %vm1268, %v8998, %v9002
      %v9004 = vshrl.u32 %v8943, 16
      %v9006 = vrot.slane %v9004, 4
      %v9007 = vor.u32 %v9006, %v9002
      %v9008 = vrot.slane %v9007, 4
      %v9010 = vshll.u32 %v8944, 16
      %v9012 = vrot.slane %v9010, 5
      %v9013 = vsel %vm1268, %v9008, %v9012
      %v9015 = vshrl.u32 %v8945, 16
      %v9017 = vrot.slane %v9015, 4
      %v9018 = vshll.u32 %v8945, 16
      %v9020 = vrot.slane %v9018, 5
      %v9021 = vor.u32 %v9017, %v9020
      %v9022 = vrot.slane %v9021, 4
      %v9024 = vshll.u32 %v8946, 16
      %v9026 = vrot.slane %v9024, 5
      %v9027 = vsel %vm1268, %v9022, %v9026
      %v9028 = vshrl.u32 %v8946, 16
      %v9030 = vrot.slane %v9028, 4
      %v9031 = vor.u32 %v9030, %v9026
      %v9032 = vrot.slane %v9031, 4
      %v9034 = vshll.u32 %v8947, 16
      %v9036 = vrot.slane %v9034, 5
      %v9037 = vsel %vm1268, %v9032, %v9036
      %v9039 = vshrl.u32 %v8948, 16
      %v9041 = vrot.slane %v9039, 4
      %v9042 = vshll.u32 %v8948, 16
      %v9044 = vrot.slane %v9042, 5
      %v9045 = vor.u32 %v9041, %v9044
      %v9046 = vrot.slane %v9045, 4
      %v9048 = vshll.u32 %v8949, 16
      %v9050 = vrot.slane %v9048, 5
      %v9051 = vsel %vm1268, %v9046, %v9050
      %v9052 = vshrl.u32 %v8949, 16
      %v9054 = vrot.slane %v9052, 4
      %v9055 = vor.u32 %v9054, %v9050
      %v9056 = vrot.slane %v9055, 4
      %v9058 = vshll.u32 %v8950, 16
      %v9060 = vrot.slane %v9058, 5
      %v9061 = vsel %vm1268, %v9056, %v9060
      %v9063 = vshrl.u32 %v8951, 16
      %v9065 = vrot.slane %v9063, 4
      %v9066 = vshll.u32 %v8951, 16
      %v9068 = vrot.slane %v9066, 5
      %v9069 = vor.u32 %v9065, %v9068
      %v9070 = vrot.slane %v9069, 4
      %v9072 = vshll.u32 %v8952, 16
      %v9074 = vrot.slane %v9072, 5
      %v9075 = vsel %vm1268, %v9070, %v9074
      %v9076 = vshrl.u32 %v8952, 16
      %v9078 = vrot.slane %v9076, 4
      %v9079 = vor.u32 %v9078, %v9074
      %v9080 = vrot.slane %v9079, 4
      %v9082 = vshll.u32 %v8953, 16
      %v9084 = vrot.slane %v9082, 5
      %v9085 = vsel %vm1268, %v9080, %v9084
      %v9087 = vshrl.u32 %v8954, 16
      %v9089 = vrot.slane %v9087, 4
      %v9090 = vshll.u32 %v8954, 16
      %v9092 = vrot.slane %v9090, 5
      %v9093 = vor.u32 %v9089, %v9092
      %v9094 = vrot.slane %v9093, 4
      %v9096 = vshll.u32 %v8955, 16
      %v9098 = vrot.slane %v9096, 5
      %v9099 = vsel %vm1268, %v9094, %v9098
      %v9100 = vshrl.u32 %v8955, 16
      %v9102 = vrot.slane %v9100, 4
      %v9103 = vor.u32 %v9102, %v9098
      %v9104 = vrot.slane %v9103, 4
      %v9106 = vshll.u32 %v8956, 16
      %v9108 = vrot.slane %v9106, 5
      %v9109 = vsel %vm1268, %v9104, %v9108
      %v9111 = vshrl.u32 %v8957, 16
      %v9113 = vrot.slane %v9111, 4
      %v9114 = vshll.u32 %v8957, 16
      %v9116 = vrot.slane %v9114, 5
      %v9117 = vor.u32 %v9113, %v9116
      %v9118 = vrot.slane %v9117, 4
      %v9120 = vshll.u32 %v8958, 16
      %v9122 = vrot.slane %v9120, 5
      %v9123 = vsel %vm1268, %v9118, %v9122
      %v9124 = vshrl.u32 %v8958, 16
      %v9126 = vrot.slane %v9124, 4
      %v9127 = vor.u32 %v9126, %v9122
      %v9128 = vrot.slane %v9127, 4
      %v9130 = vshll.u32 %v8959, 16
      %v9132 = vrot.slane %v9130, 5
      %v9133 = vsel %vm1268, %v9128, %v9132
      %v9135 = vshrl.u32 %v8960, 16
      %v9137 = vrot.slane %v9135, 4
      %v9138 = vshll.u32 %v8960, 16
      %v9140 = vrot.slane %v9138, 5
      %v9141 = vor.u32 %v9137, %v9140
      %v9142 = vrot.slane %v9141, 4
      %v9144 = vshll.u32 %v8961, 16
      %v9146 = vrot.slane %v9144, 5
      %v9147 = vsel %vm1268, %v9142, %v9146
      %v9148 = vshrl.u32 %v8961, 16
      %v9150 = vrot.slane %v9148, 4
      %v9151 = vor.u32 %v9150, %v9146
      %v9152 = vrot.slane %v9151, 4
      %v9154 = vshll.u32 %v8962, 16
      %v9156 = vrot.slane %v9154, 5
      %v9157 = vsel %vm1268, %v9152, %v9156
      %v9159 = vshrl.u32 %v8963, 16
      %v9161 = vrot.slane %v9159, 4
      %v9162 = vshll.u32 %v8963, 16
      %v9164 = vrot.slane %v9162, 5
      %v9165 = vor.u32 %v9161, %v9164
      %v9166 = vrot.slane %v9165, 4
      %v9168 = vshll.u32 %v8964, 16
      %v9170 = vrot.slane %v9168, 5
      %v9171 = vsel %vm1268, %v9166, %v9170
      %v9172 = vshrl.u32 %v8964, 16
      %v9174 = vrot.slane %v9172, 4
      %v9175 = vor.u32 %v9174, %v9170
      %v9176 = vrot.slane %v9175, 4
      %v9178 = vshll.u32 %v8965, 16
      %v9180 = vrot.slane %v9178, 5
      %v9181 = vsel %vm1268, %v9176, %v9180
      %v9183 = vshrl.u32 %v8966, 16
      %v9185 = vrot.slane %v9183, 4
      %v9186 = vshll.u32 %v8966, 16
      %v9188 = vrot.slane %v9186, 5
      %v9189 = vor.u32 %v9185, %v9188
      %v9190 = vrot.slane %v9189, 4
      %v9192 = vshll.u32 %v8967, 16
      %v9194 = vrot.slane %v9192, 5
      %v9195 = vsel %vm1268, %v9190, %v9194
      %v9196 = vshrl.u32 %v8967, 16
      %v9198 = vrot.slane %v9196, 4
      %v9199 = vor.u32 %v9198, %v9194
      %v9200 = vrot.slane %v9199, 4
      %v9202 = vshll.u32 %v8968, 16
      %v9204 = vrot.slane %v9202, 5
      %v9205 = vsel %vm1268, %v9200, %v9204
      %v9207 = vshrl.u32 %v8969, 16
      %v9209 = vrot.slane %v9207, 4
      %v9210 = vshll.u32 %v8969, 16
      %v9212 = vrot.slane %v9210, 5
      %v9213 = vor.u32 %v9209, %v9212
      %v9214 = vrot.slane %v9213, 4
      %v9216 = vshll.u32 %v8970, 16
      %v9218 = vrot.slane %v9216, 5
      %v9219 = vsel %vm1268, %v9214, %v9218
      %v9220 = vshrl.u32 %v8970, 16
      %v9222 = vrot.slane %v9220, 4
      %v9223 = vor.u32 %v9222, %v9218
      %v9224 = vrot.slane %v9223, 4
      %v9226 = vshll.u32 %v8971, 16
      %v9228 = vrot.slane %v9226, 5
      %v9229 = vsel %vm1268, %v9224, %v9228
      %v9231 = vshrl.u32 %v8972, 16
      %v9233 = vrot.slane %v9231, 4
      %v9234 = vshll.u32 %v8972, 16
      %v9236 = vrot.slane %v9234, 5
      %v9237 = vor.u32 %v9233, %v9236
      %v9238 = vrot.slane %v9237, 4
      %v9240 = vshll.u32 %v8973, 16
      %v9242 = vrot.slane %v9240, 5
      %v9243 = vsel %vm1268, %v9238, %v9242
      %v9244 = vshrl.u32 %v8973, 16
      %v9246 = vrot.slane %v9244, 4
      %v9247 = vor.u32 %v9246, %v9242
      %v9248 = vrot.slane %v9247, 4
      %v9250 = vshll.u32 %v8974, 16
      %v9252 = vrot.slane %v9250, 5
      %v9253 = vsel %vm1268, %v9248, %v9252
      %v9255 = vshrl.u32 %v8975, 16
      %v9257 = vrot.slane %v9255, 4
      %v9258 = vshll.u32 %v8975, 16
      %v9260 = vrot.slane %v9258, 5
      %v9261 = vor.u32 %v9257, %v9260
      %v9262 = vrot.slane %v9261, 4
      %v9264 = vshll.u32 %v8976, 16
      %v9266 = vrot.slane %v9264, 5
      %v9267 = vsel %vm1268, %v9262, %v9266
      %v9268 = vshrl.u32 %v8976, 16
      %v9270 = vrot.slane %v9268, 4
      %v9271 = vor.u32 %v9270, %v9266
      %v9272 = vrot.slane %v9271, 4
      %v9274 = vshll.u32 %v8977, 16
      %v9276 = vrot.slane %v9274, 5
      %v9277 = vsel %vm1268, %v9272, %v9276
      %v9279 = vshrl.u32 %v8978, 16
      %v9281 = vrot.slane %v9279, 4
      %v9282 = vshll.u32 %v8978, 16
      %v9284 = vrot.slane %v9282, 5
      %v9285 = vor.u32 %v9281, %v9284
      %v9286 = vrot.slane %v9285, 4
      %v9288 = vshll.u32 %v8979, 16
      %v9290 = vrot.slane %v9288, 5
      %v9291 = vsel %vm1268, %v9286, %v9290
      %v9292 = vshrl.u32 %v8979, 16
      %v9294 = vrot.slane %v9292, 4
      %v9295 = vor.u32 %v9294, %v9290
      %v9296 = vrot.slane %v9295, 4
      %v9298 = vshll.u32 %v8980, 16
      %v9300 = vrot.slane %v9298, 5
      %v9301 = vsel %vm1268, %v9296, %v9300
      %v9303 = vshrl.u32 %v8981, 16
      %v9305 = vrot.slane %v9303, 4
      %v9306 = vshll.u32 %v8981, 16
      %v9308 = vrot.slane %v9306, 5
      %v9309 = vor.u32 %v9305, %v9308
      %v9310 = vrot.slane %v9309, 4
      %v9312 = vshll.u32 %v8982, 16
      %v9314 = vrot.slane %v9312, 5
      %v9315 = vsel %vm1268, %v9310, %v9314
      %v9316 = vshrl.u32 %v8982, 16
      %v9318 = vrot.slane %v9316, 4
      %v9319 = vor.u32 %v9318, %v9314
      %v9320 = vrot.slane %v9319, 4
      %v9322 = vshll.u32 %v8983, 16
      %v9324 = vrot.slane %v9322, 5
      %v9325 = vsel %vm1268, %v9320, %v9324
      %v9327 = vshrl.u32 %v8984, 16
      %v9329 = vrot.slane %v9327, 4
      %v9330 = vshll.u32 %v8984, 16
      %v9332 = vrot.slane %v9330, 5
      %v9333 = vor.u32 %v9329, %v9332
      %v9334 = vrot.slane %v9333, 4
      %v9336 = vshll.u32 %v8985, 16
      %v9338 = vrot.slane %v9336, 5
      %v9339 = vsel %vm1268, %v9334, %v9338
      %v9340 = vshrl.u32 %v8985, 16
      %v9342 = vrot.slane %v9340, 4
      %v9343 = vor.u32 %v9342, %v9338
      %v9344 = vrot.slane %v9343, 4
      %v9346 = vshll.u32 %v8986, 16
      %v9348 = vrot.slane %v9346, 5
      %v9349 = vsel %vm1268, %v9344, %v9348
      %v9351 = vshrl.u32 %v8987, 16
      %v9353 = vrot.slane %v9351, 4
      %v9354 = vshll.u32 %v8987, 16
      %v9356 = vrot.slane %v9354, 5
      %v9357 = vor.u32 %v9353, %v9356
      %v9358 = vrot.slane %v9357, 4
      %v9360 = vshll.u32 %v8988, 16
      %v9362 = vrot.slane %v9360, 5
      %v9363 = vsel %vm1268, %v9358, %v9362
      %v9364 = vshrl.u32 %v8988, 16
      %v9366 = vrot.slane %v9364, 4
      %v9367 = vor.u32 %v9366, %v9362
      %v9368 = vrot.slane %v9367, 4
      %v9370 = vshll.u32 %v8989, 16
      %v9372 = vrot.slane %v9370, 5
      %v9373 = vsel %vm1268, %v9368, %v9372
      %s9374 = scalar_lea.vmem %s2, 8
      %v9375 = vld [vmem:[%s9374] sm:$0x3]
      %v9376 = vunpack.c.l.b16 %v9003
      %v9377 = vunpack.c.l.b16 %v9013
      %v9378 = vunpack.c.l.b16 %v9027
      %v9379 = vunpack.c.l.b16 %v9037
      %v9380 = vunpack.c.l.b16 %v9051
      %v9381 = vunpack.c.l.b16 %v9061
      %v9382 = vunpack.c.l.b16 %v9075
      %v9383 = vunpack.c.l.b16 %v9085
      %v9384 = vunpack.c.l.b16 %v9099
      %v9385 = vunpack.c.l.b16 %v9109
      %v9386 = vunpack.c.l.b16 %v9123
      %v9387 = vunpack.c.l.b16 %v9133
      %v9388 = vunpack.c.l.b16 %v9147
      %v9389 = vunpack.c.l.b16 %v9157
      %v9390 = vunpack.c.l.b16 %v9171
      %v9391 = vunpack.c.l.b16 %v9181
      %v9392 = vunpack.c.l.b16 %v9195
      %v9393 = vunpack.c.l.b16 %v9205
      %v9394 = vunpack.c.l.b16 %v9219
      %v9395 = vunpack.c.l.b16 %v9229
      %v9396 = vunpack.c.l.b16 %v9243
      %v9397 = vunpack.c.l.b16 %v9253
      %v9398 = vunpack.c.l.b16 %v9267
      %v9399 = vunpack.c.l.b16 %v9277
      %v9400 = vunpack.c.l.b16 %v9291
      %v9401 = vunpack.c.l.b16 %v9301
      %v9402 = vunpack.c.l.b16 %v9315
      %v9403 = vunpack.c.l.b16 %v9325
      %v9404 = vunpack.c.l.b16 %v9339
      %v9405 = vunpack.c.l.b16 %v9349
      %v9406 = vunpack.c.l.b16 %v9363
      %v9407 = vunpack.c.l.b16 %v9373
      %v9408 = vpack.c.b16 %v9377, %v9376
      %v9409 = vpack.c.b16 %v9379, %v9378
      %v9410 = vpack.c.b16 %v9381, %v9380
      %v9411 = vpack.c.b16 %v9383, %v9382
      %v9412 = vpack.c.b16 %v9385, %v9384
      %v9413 = vpack.c.b16 %v9387, %v9386
      %v9414 = vpack.c.b16 %v9389, %v9388
      %v9415 = vpack.c.b16 %v9391, %v9390
      %v9416 = vpack.c.b16 %v9393, %v9392
      %v9417 = vpack.c.b16 %v9395, %v9394
      %v9418 = vpack.c.b16 %v9397, %v9396
      %v9419 = vpack.c.b16 %v9399, %v9398
      %v9420 = vpack.c.b16 %v9401, %v9400
      %v9421 = vpack.c.b16 %v9403, %v9402
      %v9422 = vpack.c.b16 %v9405, %v9404
      %v9423 = vpack.c.b16 %v9407, %v9406
      %v9425 = vsel %vm972, %v9408, 0
      %v9428 = vsel %vm972, %v9409, 0
      %v9431 = vsel %vm972, %v9410, 0
      %v9434 = vsel %vm972, %v9411, 0
      %v9437 = vsel %vm972, %v9412, 0
      %v9440 = vsel %vm972, %v9413, 0
      %v9443 = vsel %vm972, %v9414, 0
      %v9446 = vsel %vm972, %v9415, 0
      %v9449 = vsel %vm972, %v9416, 0
      %v9452 = vsel %vm972, %v9417, 0
      %v9455 = vsel %vm972, %v9418, 0
      %v9458 = vsel %vm972, %v9419, 0
      %v9461 = vsel %vm972, %v9420, 0
      %v9464 = vsel %vm972, %v9421, 0
      %v9467 = vsel %vm972, %v9422, 0
      %v9470 = vsel %vm972, %v9423, 0
      %v9473 = vsel %vm1021, %v9375, 0
      %9475 = vmatprep.subr.bf16.mxu0 0
      %9476 = vmatpush1.bf16.msra.mxu0 0
      %9477 = vmatprep.subr.bf16.mxu0 0
      %9478 = vmatpush1.bf16.msra.mxu0 0
      %9479 = vmatprep.subr.bf16.mxu0 0
      %9480 = vmatpush1.bf16.msra.mxu0 0
      %9481 = vmatprep.subr.bf16.mxu0 0
      %9482 = vmatpush1.bf16.msra.mxu0 0
      %9483 = vmatprep.subr.bf16.mxu0 0
      %9484 = vmatpush1.bf16.msra.mxu0 0
      %9485 = vmatprep.subr.bf16.mxu0 0
      %9486 = vmatpush1.bf16.msra.mxu0 0
      %9487 = vmatprep.subr.bf16.mxu0 0
      %9488 = vmatpush1.bf16.msra.mxu0 0
      %9489 = vmatprep.subr.bf16.mxu0 0
      %9490 = vmatpush1.bf16.msra.mxu0 %v9473
      %9491 = vmatprep.subr.bf16.mxu0 0
      %9492 = vmatpush2.bf16.msra.mxu0 0
      %9493 = vmatprep.subr.bf16.mxu0 0
      %9494 = vmatpush2.bf16.msra.mxu0 0
      %9495 = vmatprep.subr.bf16.mxu0 0
      %9496 = vmatpush2.bf16.msra.mxu0 0
      %9497 = vmatprep.subr.bf16.mxu0 0
      %9498 = vmatpush2.bf16.msra.mxu0 0
      %9499 = vmatprep.subr.bf16.mxu0 0
      %9500 = vmatpush2.bf16.msra.mxu0 0
      %9501 = vmatprep.subr.bf16.mxu0 0
      %9502 = vmatpush2.bf16.msra.mxu0 0
      %9503 = vmatprep.subr.bf16.mxu0 0
      %9504 = vmatpush2.bf16.msra.mxu0 0
      %9505 = vmatprep.subr.bf16.mxu0 0
      %9506 = vmatpush2.bf16.msra.mxu0 0
      %9507 = vmatprep.mubr.bf16.mxu0 0
      %9508 = vmatmul.mubr.bf16.gmra.mxu0 %v9425
      %v9509 = vpop.f32.mrf.mxu0
      %v9510 = vadd.f32 0.0, %v9509
      %v9511 = vpop.f32.mrf.mxu0
      %v9512 = vpop.f32.mrf.mxu0
      %v9513 = vadd.f32 0.0, %v9512
      %v9514 = vpop.f32.mrf.mxu0
      %9515 = vmatprep.mubr.bf16.mxu0 0
      %9516 = vmatmul.mubr.bf16.gmra.mxu0 %v9428
      %v9517 = vpop.f32.mrf.mxu0
      %v9518 = vadd.f32 0.0, %v9517
      %v9519 = vpop.f32.mrf.mxu0
      %v9520 = vpop.f32.mrf.mxu0
      %v9521 = vadd.f32 0.0, %v9520
      %v9522 = vpop.f32.mrf.mxu0
      %9523 = vmatprep.mubr.bf16.mxu0 0
      %9524 = vmatmul.mubr.bf16.gmra.mxu0 %v9431
      %v9525 = vpop.f32.mrf.mxu0
      %v9526 = vadd.f32 0.0, %v9525
      %v9527 = vpop.f32.mrf.mxu0
      %v9528 = vpop.f32.mrf.mxu0
      %v9529 = vadd.f32 0.0, %v9528
      %v9530 = vpop.f32.mrf.mxu0
      %9531 = vmatprep.mubr.bf16.mxu0 0
      %9532 = vmatmul.mubr.bf16.gmra.mxu0 %v9434
      %v9533 = vpop.f32.mrf.mxu0
      %v9534 = vadd.f32 0.0, %v9533
      %v9535 = vpop.f32.mrf.mxu0
      %v9536 = vpop.f32.mrf.mxu0
      %v9537 = vadd.f32 0.0, %v9536
      %v9538 = vpop.f32.mrf.mxu0
      %9539 = vmatprep.mubr.bf16.mxu0 0
      %9540 = vmatmul.mubr.bf16.gmra.mxu0 %v9437
      %v9541 = vpop.f32.mrf.mxu0
      %v9542 = vadd.f32 0.0, %v9541
      %v9543 = vpop.f32.mrf.mxu0
      %v9544 = vpop.f32.mrf.mxu0
      %v9545 = vadd.f32 0.0, %v9544
      %v9546 = vpop.f32.mrf.mxu0
      %9547 = vmatprep.mubr.bf16.mxu0 0
      %9548 = vmatmul.mubr.bf16.gmra.mxu0 %v9440
      %v9549 = vpop.f32.mrf.mxu0
      %v9550 = vadd.f32 0.0, %v9549
      %v9551 = vpop.f32.mrf.mxu0
      %v9552 = vpop.f32.mrf.mxu0
      %v9553 = vadd.f32 0.0, %v9552
      %v9554 = vpop.f32.mrf.mxu0
      %9555 = vmatprep.mubr.bf16.mxu0 0
      %9556 = vmatmul.mubr.bf16.gmra.mxu0 %v9443
      %v9557 = vpop.f32.mrf.mxu0
      %v9558 = vadd.f32 0.0, %v9557
      %v9559 = vpop.f32.mrf.mxu0
      %v9560 = vpop.f32.mrf.mxu0
      %v9561 = vadd.f32 0.0, %v9560
      %v9562 = vpop.f32.mrf.mxu0
      %9563 = vmatprep.mubr.bf16.mxu0 0
      %9564 = vmatmul.mubr.bf16.gmra.mxu0 %v9446
      %v9565 = vpop.f32.mrf.mxu0
      %v9566 = vadd.f32 0.0, %v9565
      %v9567 = vpop.f32.mrf.mxu0
      %v9568 = vpop.f32.mrf.mxu0
      %v9569 = vadd.f32 0.0, %v9568
      %v9570 = vpop.f32.mrf.mxu0
      %9571 = vmatprep.mubr.bf16.mxu0 0
      %9572 = vmatmul.mubr.bf16.gmra.mxu0 %v9449
      %v9573 = vpop.f32.mrf.mxu0
      %v9574 = vadd.f32 0.0, %v9573
      %v9575 = vpop.f32.mrf.mxu0
      %v9576 = vpop.f32.mrf.mxu0
      %v9577 = vadd.f32 0.0, %v9576
      %v9578 = vpop.f32.mrf.mxu0
      %9579 = vmatprep.mubr.bf16.mxu0 0
      %9580 = vmatmul.mubr.bf16.gmra.mxu0 %v9452
      %v9581 = vpop.f32.mrf.mxu0
      %v9582 = vadd.f32 0.0, %v9581
      %v9583 = vpop.f32.mrf.mxu0
      %v9584 = vpop.f32.mrf.mxu0
      %v9585 = vadd.f32 0.0, %v9584
      %v9586 = vpop.f32.mrf.mxu0
      %9587 = vmatprep.mubr.bf16.mxu0 0
      %9588 = vmatmul.mubr.bf16.gmra.mxu0 %v9455
      %v9589 = vpop.f32.mrf.mxu0
      %v9590 = vadd.f32 0.0, %v9589
      %v9591 = vpop.f32.mrf.mxu0
      %v9592 = vpop.f32.mrf.mxu0
      %v9593 = vadd.f32 0.0, %v9592
      %v9594 = vpop.f32.mrf.mxu0
      %9595 = vmatprep.mubr.bf16.mxu0 0
      %9596 = vmatmul.mubr.bf16.gmra.mxu0 %v9458
      %v9597 = vpop.f32.mrf.mxu0
      %v9598 = vadd.f32 0.0, %v9597
      %v9599 = vpop.f32.mrf.mxu0
      %v9600 = vpop.f32.mrf.mxu0
      %v9601 = vadd.f32 0.0, %v9600
      %v9602 = vpop.f32.mrf.mxu0
      %9603 = vmatprep.mubr.bf16.mxu0 0
      %9604 = vmatmul.mubr.bf16.gmra.mxu0 %v9461
      %v9605 = vpop.f32.mrf.mxu0
      %v9606 = vadd.f32 0.0, %v9605
      %v9607 = vpop.f32.mrf.mxu0
      %v9608 = vpop.f32.mrf.mxu0
      %v9609 = vadd.f32 0.0, %v9608
      %v9610 = vpop.f32.mrf.mxu0
      %9611 = vmatprep.mubr.bf16.mxu0 0
      %9612 = vmatmul.mubr.bf16.gmra.mxu0 %v9464
      %v9613 = vpop.f32.mrf.mxu0
      %v9614 = vadd.f32 0.0, %v9613
      %v9615 = vpop.f32.mrf.mxu0
      %v9616 = vpop.f32.mrf.mxu0
      %v9617 = vadd.f32 0.0, %v9616
      %v9618 = vpop.f32.mrf.mxu0
      %9619 = vmatprep.mubr.bf16.mxu0 0
      %9620 = vmatmul.mubr.bf16.gmra.mxu0 %v9467
      %v9621 = vpop.f32.mrf.mxu0
      %v9622 = vadd.f32 0.0, %v9621
      %v9623 = vpop.f32.mrf.mxu0
      %v9624 = vpop.f32.mrf.mxu0
      %v9625 = vadd.f32 0.0, %v9624
      %v9626 = vpop.f32.mrf.mxu0
      %9627 = vmatprep.mubr.bf16.mxu0 0
      %9628 = vmatmul.mubr.bf16.gmra.mxu0 %v9470
      %v9629 = vpop.f32.mrf.mxu0
      %v9630 = vadd.f32 0.0, %v9629
      %v9631 = vpop.f32.mrf.mxu0
      %v9632 = vpop.f32.mrf.mxu0
      %v9633 = vadd.f32 0.0, %v9632
      %v9634 = vpop.f32.mrf.mxu0
      %9635 = vdwg.mxu0
      %v9636 = vld [vmem:[#allocation3] sm:$0xff]
      %v9637 = vld [vmem:[#allocation3 + $0x8] sm:$0xff]
      %v9638 = vld [vmem:[#allocation3 + $0x10] sm:$0xff]
      %v9639 = vld [vmem:[#allocation3 + $0x18] sm:$0xff]
      %v9640 = vld [vmem:[#allocation3 + $0x20] sm:$0xff]
      %v9641 = vld [vmem:[#allocation3 + $0x28] sm:$0xff]
      %v9642 = vld [vmem:[#allocation3 + $0x30] sm:$0xff]
      %v9643 = vld [vmem:[#allocation3 + $0x38] sm:$0xff]
      %v9644 = vld [vmem:[#allocation3 + $0x40] sm:$0xff]
      %v9645 = vld [vmem:[#allocation3 + $0x48] sm:$0xff]
      %v9646 = vld [vmem:[#allocation3 + $0x50] sm:$0xff]
      %v9647 = vld [vmem:[#allocation3 + $0x58] sm:$0xff]
      %v9648 = vld [vmem:[#allocation3 + $0x60] sm:$0xff]
      %v9649 = vld [vmem:[#allocation3 + $0x68] sm:$0xff]
      %v9650 = vld [vmem:[#allocation3 + $0x70] sm:$0xff]
      %v9651 = vld [vmem:[#allocation3 + $0x78] sm:$0xff]
      %v9652 = vld [vmem:[#allocation3 + $0x80] sm:$0xff]
      %v9653 = vld [vmem:[#allocation3 + $0x88] sm:$0xff]
      %v9654 = vld [vmem:[#allocation3 + $0x90] sm:$0xff]
      %v9655 = vld [vmem:[#allocation3 + $0x98] sm:$0xff]
      %v9656 = vld [vmem:[#allocation3 + $0xa0] sm:$0xff]
      %v9657 = vld [vmem:[#allocation3 + $0xa8] sm:$0xff]
      %v9658 = vld [vmem:[#allocation3 + $0xb0] sm:$0xff]
      %v9659 = vld [vmem:[#allocation3 + $0xb8] sm:$0xff]
      %v9660 = vld [vmem:[#allocation3 + $0xc0] sm:$0xff]
      %v9661 = vld [vmem:[#allocation3 + $0xc8] sm:$0xff]
      %v9662 = vld [vmem:[#allocation3 + $0xd0] sm:$0xff]
      %v9663 = vld [vmem:[#allocation3 + $0xd8] sm:$0xff]
      %v9664 = vld [vmem:[#allocation3 + $0xe0] sm:$0xff]
      %v9665 = vld [vmem:[#allocation3 + $0xe8] sm:$0xff]
      %v9666 = vld [vmem:[#allocation3 + $0xf0] sm:$0xff]
      %v9667 = vld [vmem:[#allocation3 + $0xf8] sm:$0xff]
      %v9668 = vadd.f32 %v9636, %v9510
      %v9669 = vadd.f32 %v9637, %v9513
      %v9670 = vadd.f32 %v9638, %v9518
      %v9671 = vadd.f32 %v9639, %v9521
      %v9672 = vadd.f32 %v9640, %v9526
      %v9673 = vadd.f32 %v9641, %v9529
      %v9674 = vadd.f32 %v9642, %v9534
      %v9675 = vadd.f32 %v9643, %v9537
      %v9676 = vadd.f32 %v9644, %v9542
      %v9677 = vadd.f32 %v9645, %v9545
      %v9678 = vadd.f32 %v9646, %v9550
      %v9679 = vadd.f32 %v9647, %v9553
      %v9680 = vadd.f32 %v9648, %v9558
      %v9681 = vadd.f32 %v9649, %v9561
      %v9682 = vadd.f32 %v9650, %v9566
      %v9683 = vadd.f32 %v9651, %v9569
      %v9684 = vadd.f32 %v9652, %v9574
      %v9685 = vadd.f32 %v9653, %v9577
      %v9686 = vadd.f32 %v9654, %v9582
      %v9687 = vadd.f32 %v9655, %v9585
      %v9688 = vadd.f32 %v9656, %v9590
      %v9689 = vadd.f32 %v9657, %v9593
      %v9690 = vadd.f32 %v9658, %v9598
      %v9691 = vadd.f32 %v9659, %v9601
      %v9692 = vadd.f32 %v9660, %v9606
      %v9693 = vadd.f32 %v9661, %v9609
      %v9694 = vadd.f32 %v9662, %v9614
      %v9695 = vadd.f32 %v9663, %v9617
      %v9696 = vadd.f32 %v9664, %v9622
      %v9697 = vadd.f32 %v9665, %v9625
      %v9698 = vadd.f32 %v9666, %v9630
      %v9699 = vadd.f32 %v9667, %v9633
      %9700 = vst.msk [vmem:[#allocation3] sm:$0xff] %vm972, %v9668
      %9701 = vst.msk [vmem:[#allocation3 + $0x8] sm:$0xff] %vm972, %v9669
      %9702 = vst.msk [vmem:[#allocation3 + $0x10] sm:$0xff] %vm972, %v9670
      %9703 = vst.msk [vmem:[#allocation3 + $0x18] sm:$0xff] %vm972, %v9671
      %9704 = vst.msk [vmem:[#allocation3 + $0x20] sm:$0xff] %vm972, %v9672
      %9705 = vst.msk [vmem:[#allocation3 + $0x28] sm:$0xff] %vm972, %v9673
      %9706 = vst.msk [vmem:[#allocation3 + $0x30] sm:$0xff] %vm972, %v9674
      %9707 = vst.msk [vmem:[#allocation3 + $0x38] sm:$0xff] %vm972, %v9675
      %9708 = vst.msk [vmem:[#allocation3 + $0x40] sm:$0xff] %vm972, %v9676
      %9709 = vst.msk [vmem:[#allocation3 + $0x48] sm:$0xff] %vm972, %v9677
      %9710 = vst.msk [vmem:[#allocation3 + $0x50] sm:$0xff] %vm972, %v9678
      %9711 = vst.msk [vmem:[#allocation3 + $0x58] sm:$0xff] %vm972, %v9679
      %9712 = vst.msk [vmem:[#allocation3 + $0x60] sm:$0xff] %vm972, %v9680
      %9713 = vst.msk [vmem:[#allocation3 + $0x68] sm:$0xff] %vm972, %v9681
      %9714 = vst.msk [vmem:[#allocation3 + $0x70] sm:$0xff] %vm972, %v9682
      %9715 = vst.msk [vmem:[#allocation3 + $0x78] sm:$0xff] %vm972, %v9683
      %9716 = vst.msk [vmem:[#allocation3 + $0x80] sm:$0xff] %vm972, %v9684
      %9717 = vst.msk [vmem:[#allocation3 + $0x88] sm:$0xff] %vm972, %v9685
      %9718 = vst.msk [vmem:[#allocation3 + $0x90] sm:$0xff] %vm972, %v9686
      %9719 = vst.msk [vmem:[#allocation3 + $0x98] sm:$0xff] %vm972, %v9687
      %9720 = vst.msk [vmem:[#allocation3 + $0xa0] sm:$0xff] %vm972, %v9688
      %9721 = vst.msk [vmem:[#allocation3 + $0xa8] sm:$0xff] %vm972, %v9689
      %9722 = vst.msk [vmem:[#allocation3 + $0xb0] sm:$0xff] %vm972, %v9690
      %9723 = vst.msk [vmem:[#allocation3 + $0xb8] sm:$0xff] %vm972, %v9691
      %9724 = vst.msk [vmem:[#allocation3 + $0xc0] sm:$0xff] %vm972, %v9692
      %9725 = vst.msk [vmem:[#allocation3 + $0xc8] sm:$0xff] %vm972, %v9693
      %9726 = vst.msk [vmem:[#allocation3 + $0xd0] sm:$0xff] %vm972, %v9694
      %9727 = vst.msk [vmem:[#allocation3 + $0xd8] sm:$0xff] %vm972, %v9695
      %9728 = vst.msk [vmem:[#allocation3 + $0xe0] sm:$0xff] %vm972, %v9696
      %9729 = vst.msk [vmem:[#allocation3 + $0xe8] sm:$0xff] %vm972, %v9697
      %9730 = vst.msk [vmem:[#allocation3 + $0xf0] sm:$0xff] %vm972, %v9698
      %9731 = vst.msk [vmem:[#allocation3 + $0xf8] sm:$0xff] %vm972, %v9699
      %v9732 = vld [vmem:[%s289] sm:$0xe]
      %v9733 = vld [vmem:[%s289 + $0x4] sm:$0xf]
      %v9734 = vld [vmem:[%s289 + $0x8] sm:$0x1]
      %v9735 = vld [vmem:[%s289 + $0xc] sm:$0xe]
      %v9736 = vld [vmem:[%s289 + $0x10] sm:$0xf]
      %v9737 = vld [vmem:[%s289 + $0x14] sm:$0x1]
      %v9738 = vld [vmem:[%s289 + $0x18] sm:$0xe]
      %v9739 = vld [vmem:[%s289 + $0x1c] sm:$0xf]
      %v9740 = vld [vmem:[%s289 + $0x20] sm:$0x1]
      %v9741 = vld [vmem:[%s289 + $0x24] sm:$0xe]
      %v9742 = vld [vmem:[%s289 + $0x28] sm:$0xf]
      %v9743 = vld [vmem:[%s289 + $0x2c] sm:$0x1]
      %v9744 = vld [vmem:[%s289 + $0x30] sm:$0xe]
      %v9745 = vld [vmem:[%s289 + $0x34] sm:$0xf]
      %v9746 = vld [vmem:[%s289 + $0x38] sm:$0x1]
      %v9747 = vld [vmem:[%s289 + $0x3c] sm:$0xe]
      %v9748 = vld [vmem:[%s289 + $0x40] sm:$0xf]
      %v9749 = vld [vmem:[%s289 + $0x44] sm:$0x1]
      %v9750 = vld [vmem:[%s289 + $0x48] sm:$0xe]
      %v9751 = vld [vmem:[%s289 + $0x4c] sm:$0xf]
      %v9752 = vld [vmem:[%s289 + $0x50] sm:$0x1]
      %v9753 = vld [vmem:[%s289 + $0x54] sm:$0xe]
      %v9754 = vld [vmem:[%s289 + $0x58] sm:$0xf]
      %v9755 = vld [vmem:[%s289 + $0x5c] sm:$0x1]
      %v9756 = vld [vmem:[%s289 + $0x60] sm:$0xe]
      %v9757 = vld [vmem:[%s289 + $0x64] sm:$0xf]
      %v9758 = vld [vmem:[%s289 + $0x68] sm:$0x1]
      %v9759 = vld [vmem:[%s289 + $0x6c] sm:$0xe]
      %v9760 = vld [vmem:[%s289 + $0x70] sm:$0xf]
      %v9761 = vld [vmem:[%s289 + $0x74] sm:$0x1]
      %v9762 = vld [vmem:[%s289 + $0x78] sm:$0xe]
      %v9763 = vld [vmem:[%s289 + $0x7c] sm:$0xf]
      %v9764 = vld [vmem:[%s289 + $0x80] sm:$0x1]
      %v9765 = vld [vmem:[%s289 + $0x84] sm:$0xe]
      %v9766 = vld [vmem:[%s289 + $0x88] sm:$0xf]
      %v9767 = vld [vmem:[%s289 + $0x8c] sm:$0x1]
      %v9768 = vld [vmem:[%s289 + $0x90] sm:$0xe]
      %v9769 = vld [vmem:[%s289 + $0x94] sm:$0xf]
      %v9770 = vld [vmem:[%s289 + $0x98] sm:$0x1]
      %v9771 = vld [vmem:[%s289 + $0x9c] sm:$0xe]
      %v9772 = vld [vmem:[%s289 + $0xa0] sm:$0xf]
      %v9773 = vld [vmem:[%s289 + $0xa4] sm:$0x1]
      %v9774 = vld [vmem:[%s289 + $0xa8] sm:$0xe]
      %v9775 = vld [vmem:[%s289 + $0xac] sm:$0xf]
      %v9776 = vld [vmem:[%s289 + $0xb0] sm:$0x1]
      %v9777 = vld [vmem:[%s289 + $0xb4] sm:$0xe]
      %v9778 = vld [vmem:[%s289 + $0xb8] sm:$0xf]
      %v9779 = vld [vmem:[%s289 + $0xbc] sm:$0x1]
      %v9828 = vrot.slane %v9732, 5
      %v9829 = vrot.slane %v9828, 4
      %v9830 = vrot.slane %v9733, 5
      %v9831 = vsel %vm2109, %v9829, %v9830
      %v9832 = vrot.slane %v9830, 4
      %v9833 = vrot.slane %v9734, 5
      %v9834 = vsel %vm2109, %v9832, %v9833
      %v9835 = vrot.slane %v9735, 5
      %v9836 = vrot.slane %v9835, 4
      %v9837 = vrot.slane %v9736, 5
      %v9838 = vsel %vm2109, %v9836, %v9837
      %v9839 = vrot.slane %v9837, 4
      %v9840 = vrot.slane %v9737, 5
      %v9841 = vsel %vm2109, %v9839, %v9840
      %v9842 = vrot.slane %v9738, 5
      %v9843 = vrot.slane %v9842, 4
      %v9844 = vrot.slane %v9739, 5
      %v9845 = vsel %vm2109, %v9843, %v9844
      %v9846 = vrot.slane %v9844, 4
      %v9847 = vrot.slane %v9740, 5
      %v9848 = vsel %vm2109, %v9846, %v9847
      %v9849 = vrot.slane %v9741, 5
      %v9850 = vrot.slane %v9849, 4
      %v9851 = vrot.slane %v9742, 5
      %v9852 = vsel %vm2109, %v9850, %v9851
      %v9853 = vrot.slane %v9851, 4
      %v9854 = vrot.slane %v9743, 5
      %v9855 = vsel %vm2109, %v9853, %v9854
      %v9856 = vrot.slane %v9744, 5
      %v9857 = vrot.slane %v9856, 4
      %v9858 = vrot.slane %v9745, 5
      %v9859 = vsel %vm2109, %v9857, %v9858
      %v9860 = vrot.slane %v9858, 4
      %v9861 = vrot.slane %v9746, 5
      %v9862 = vsel %vm2109, %v9860, %v9861
      %v9863 = vrot.slane %v9747, 5
      %v9864 = vrot.slane %v9863, 4
      %v9865 = vrot.slane %v9748, 5
      %v9866 = vsel %vm2109, %v9864, %v9865
      %v9867 = vrot.slane %v9865, 4
      %v9868 = vrot.slane %v9749, 5
      %v9869 = vsel %vm2109, %v9867, %v9868
      %v9870 = vrot.slane %v9750, 5
      %v9871 = vrot.slane %v9870, 4
      %v9872 = vrot.slane %v9751, 5
      %v9873 = vsel %vm2109, %v9871, %v9872
      %v9874 = vrot.slane %v9872, 4
      %v9875 = vrot.slane %v9752, 5
      %v9876 = vsel %vm2109, %v9874, %v9875
      %v9877 = vrot.slane %v9753, 5
      %v9878 = vrot.slane %v9877, 4
      %v9879 = vrot.slane %v9754, 5
      %v9880 = vsel %vm2109, %v9878, %v9879
      %v9881 = vrot.slane %v9879, 4
      %v9882 = vrot.slane %v9755, 5
      %v9883 = vsel %vm2109, %v9881, %v9882
      %v9884 = vrot.slane %v9756, 5
      %v9885 = vrot.slane %v9884, 4
      %v9886 = vrot.slane %v9757, 5
      %v9887 = vsel %vm2109, %v9885, %v9886
      %v9888 = vrot.slane %v9886, 4
      %v9889 = vrot.slane %v9758, 5
      %v9890 = vsel %vm2109, %v9888, %v9889
      %v9891 = vrot.slane %v9759, 5
      %v9892 = vrot.slane %v9891, 4
      %v9893 = vrot.slane %v9760, 5
      %v9894 = vsel %vm2109, %v9892, %v9893
      %v9895 = vrot.slane %v9893, 4
      %v9896 = vrot.slane %v9761, 5
      %v9897 = vsel %vm2109, %v9895, %v9896
      %v9898 = vrot.slane %v9762, 5
      %v9899 = vrot.slane %v9898, 4
      %v9900 = vrot.slane %v9763, 5
      %v9901 = vsel %vm2109, %v9899, %v9900
      %v9902 = vrot.slane %v9900, 4
      %v9903 = vrot.slane %v9764, 5
      %v9904 = vsel %vm2109, %v9902, %v9903
      %v9905 = vrot.slane %v9765, 5
      %v9906 = vrot.slane %v9905, 4
      %v9907 = vrot.slane %v9766, 5
      %v9908 = vsel %vm2109, %v9906, %v9907
      %v9909 = vrot.slane %v9907, 4
      %v9910 = vrot.slane %v9767, 5
      %v9911 = vsel %vm2109, %v9909, %v9910
      %v9912 = vrot.slane %v9768, 5
      %v9913 = vrot.slane %v9912, 4
      %v9914 = vrot.slane %v9769, 5
      %v9915 = vsel %vm2109, %v9913, %v9914
      %v9916 = vrot.slane %v9914, 4
      %v9917 = vrot.slane %v9770, 5
      %v9918 = vsel %vm2109, %v9916, %v9917
      %v9919 = vrot.slane %v9771, 5
      %v9920 = vrot.slane %v9919, 4
      %v9921 = vrot.slane %v9772, 5
      %v9922 = vsel %vm2109, %v9920, %v9921
      %v9923 = vrot.slane %v9921, 4
      %v9924 = vrot.slane %v9773, 5
      %v9925 = vsel %vm2109, %v9923, %v9924
      %v9926 = vrot.slane %v9774, 5
      %v9927 = vrot.slane %v9926, 4
      %v9928 = vrot.slane %v9775, 5
      %v9929 = vsel %vm2109, %v9927, %v9928
      %v9930 = vrot.slane %v9928, 4
      %v9931 = vrot.slane %v9776, 5
      %v9932 = vsel %vm2109, %v9930, %v9931
      %v9933 = vrot.slane %v9777, 5
      %v9934 = vrot.slane %v9933, 4
      %v9935 = vrot.slane %v9778, 5
      %v9936 = vsel %vm2109, %v9934, %v9935
      %v9937 = vrot.slane %v9935, 4
      %v9938 = vrot.slane %v9779, 5
      %v9939 = vsel %vm2109, %v9937, %v9938
      %s9940 = scalar_lea.vmem %s2, 10
      %v9941 = vld [vmem:[%s9940] sm:$0x3]
      %v9942 = vunpack.c.l.b16 %v9831
      %v9943 = vunpack.c.l.b16 %v9834
      %v9944 = vunpack.c.l.b16 %v9838
      %v9945 = vunpack.c.l.b16 %v9841
      %v9946 = vunpack.c.l.b16 %v9845
      %v9947 = vunpack.c.l.b16 %v9848
      %v9948 = vunpack.c.l.b16 %v9852
      %v9949 = vunpack.c.l.b16 %v9855
      %v9950 = vunpack.c.l.b16 %v9859
      %v9951 = vunpack.c.l.b16 %v9862
      %v9952 = vunpack.c.l.b16 %v9866
      %v9953 = vunpack.c.l.b16 %v9869
      %v9954 = vunpack.c.l.b16 %v9873
      %v9955 = vunpack.c.l.b16 %v9876
      %v9956 = vunpack.c.l.b16 %v9880
      %v9957 = vunpack.c.l.b16 %v9883
      %v9958 = vunpack.c.l.b16 %v9887
      %v9959 = vunpack.c.l.b16 %v9890
      %v9960 = vunpack.c.l.b16 %v9894
      %v9961 = vunpack.c.l.b16 %v9897
      %v9962 = vunpack.c.l.b16 %v9901
      %v9963 = vunpack.c.l.b16 %v9904
      %v9964 = vunpack.c.l.b16 %v9908
      %v9965 = vunpack.c.l.b16 %v9911
      %v9966 = vunpack.c.l.b16 %v9915
      %v9967 = vunpack.c.l.b16 %v9918
      %v9968 = vunpack.c.l.b16 %v9922
      %v9969 = vunpack.c.l.b16 %v9925
      %v9970 = vunpack.c.l.b16 %v9929
      %v9971 = vunpack.c.l.b16 %v9932
      %v9972 = vunpack.c.l.b16 %v9936
      %v9973 = vunpack.c.l.b16 %v9939
      %v9974 = vpack.c.b16 %v9943, %v9942
      %v9975 = vpack.c.b16 %v9945, %v9944
      %v9976 = vpack.c.b16 %v9947, %v9946
      %v9977 = vpack.c.b16 %v9949, %v9948
      %v9978 = vpack.c.b16 %v9951, %v9950
      %v9979 = vpack.c.b16 %v9953, %v9952
      %v9980 = vpack.c.b16 %v9955, %v9954
      %v9981 = vpack.c.b16 %v9957, %v9956
      %v9982 = vpack.c.b16 %v9959, %v9958
      %v9983 = vpack.c.b16 %v9961, %v9960
      %v9984 = vpack.c.b16 %v9963, %v9962
      %v9985 = vpack.c.b16 %v9965, %v9964
      %v9986 = vpack.c.b16 %v9967, %v9966
      %v9987 = vpack.c.b16 %v9969, %v9968
      %v9988 = vpack.c.b16 %v9971, %v9970
      %v9989 = vpack.c.b16 %v9973, %v9972
      %v9991 = vsel %vm972, %v9974, 0
      %v9994 = vsel %vm972, %v9975, 0
      %v9997 = vsel %vm972, %v9976, 0
      %v10000 = vsel %vm972, %v9977, 0
      %v10003 = vsel %vm972, %v9978, 0
      %v10006 = vsel %vm972, %v9979, 0
      %v10009 = vsel %vm972, %v9980, 0
      %v10012 = vsel %vm972, %v9981, 0
      %v10015 = vsel %vm972, %v9982, 0
      %v10018 = vsel %vm972, %v9983, 0
      %v10021 = vsel %vm972, %v9984, 0
      %v10024 = vsel %vm972, %v9985, 0
      %v10027 = vsel %vm972, %v9986, 0
      %v10030 = vsel %vm972, %v9987, 0
      %v10033 = vsel %vm972, %v9988, 0
      %v10036 = vsel %vm972, %v9989, 0
      %v10039 = vsel %vm1021, %v9941, 0
      %10041 = vmatprep.subr.bf16.mxu0 0
      %10042 = vmatpush1.bf16.msra.mxu0 0
      %10043 = vmatprep.subr.bf16.mxu0 0
      %10044 = vmatpush1.bf16.msra.mxu0 0
      %10045 = vmatprep.subr.bf16.mxu0 0
      %10046 = vmatpush1.bf16.msra.mxu0 0
      %10047 = vmatprep.subr.bf16.mxu0 0
      %10048 = vmatpush1.bf16.msra.mxu0 0
      %10049 = vmatprep.subr.bf16.mxu0 0
      %10050 = vmatpush1.bf16.msra.mxu0 0
      %10051 = vmatprep.subr.bf16.mxu0 0
      %10052 = vmatpush1.bf16.msra.mxu0 0
      %10053 = vmatprep.subr.bf16.mxu0 0
      %10054 = vmatpush1.bf16.msra.mxu0 0
      %10055 = vmatprep.subr.bf16.mxu0 0
      %10056 = vmatpush1.bf16.msra.mxu0 %v10039
      %10057 = vmatprep.subr.bf16.mxu0 0
      %10058 = vmatpush2.bf16.msra.mxu0 0
      %10059 = vmatprep.subr.bf16.mxu0 0
      %10060 = vmatpush2.bf16.msra.mxu0 0
      %10061 = vmatprep.subr.bf16.mxu0 0
      %10062 = vmatpush2.bf16.msra.mxu0 0
      %10063 = vmatprep.subr.bf16.mxu0 0
      %10064 = vmatpush2.bf16.msra.mxu0 0
      %10065 = vmatprep.subr.bf16.mxu0 0
      %10066 = vmatpush2.bf16.msra.mxu0 0
      %10067 = vmatprep.subr.bf16.mxu0 0
      %10068 = vmatpush2.bf16.msra.mxu0 0
      %10069 = vmatprep.subr.bf16.mxu0 0
      %10070 = vmatpush2.bf16.msra.mxu0 0
      %10071 = vmatprep.subr.bf16.mxu0 0
      %10072 = vmatpush2.bf16.msra.mxu0 0
      %10073 = vmatprep.mubr.bf16.mxu0 0
      %10074 = vmatmul.mubr.bf16.gmra.mxu0 %v9991
      %v10075 = vpop.f32.mrf.mxu0
      %v10076 = vadd.f32 0.0, %v10075
      %v10077 = vpop.f32.mrf.mxu0
      %v10078 = vpop.f32.mrf.mxu0
      %v10079 = vadd.f32 0.0, %v10078
      %v10080 = vpop.f32.mrf.mxu0
      %10081 = vmatprep.mubr.bf16.mxu0 0
      %10082 = vmatmul.mubr.bf16.gmra.mxu0 %v9994
      %v10083 = vpop.f32.mrf.mxu0
      %v10084 = vadd.f32 0.0, %v10083
      %v10085 = vpop.f32.mrf.mxu0
      %v10086 = vpop.f32.mrf.mxu0
      %v10087 = vadd.f32 0.0, %v10086
      %v10088 = vpop.f32.mrf.mxu0
      %10089 = vmatprep.mubr.bf16.mxu0 0
      %10090 = vmatmul.mubr.bf16.gmra.mxu0 %v9997
      %v10091 = vpop.f32.mrf.mxu0
      %v10092 = vadd.f32 0.0, %v10091
      %v10093 = vpop.f32.mrf.mxu0
      %v10094 = vpop.f32.mrf.mxu0
      %v10095 = vadd.f32 0.0, %v10094
      %v10096 = vpop.f32.mrf.mxu0
      %10097 = vmatprep.mubr.bf16.mxu0 0
      %10098 = vmatmul.mubr.bf16.gmra.mxu0 %v10000
      %v10099 = vpop.f32.mrf.mxu0
      %v10100 = vadd.f32 0.0, %v10099
      %v10101 = vpop.f32.mrf.mxu0
      %v10102 = vpop.f32.mrf.mxu0
      %v10103 = vadd.f32 0.0, %v10102
      %v10104 = vpop.f32.mrf.mxu0
      %10105 = vmatprep.mubr.bf16.mxu0 0
      %10106 = vmatmul.mubr.bf16.gmra.mxu0 %v10003
      %v10107 = vpop.f32.mrf.mxu0
      %v10108 = vadd.f32 0.0, %v10107
      %v10109 = vpop.f32.mrf.mxu0
      %v10110 = vpop.f32.mrf.mxu0
      %v10111 = vadd.f32 0.0, %v10110
      %v10112 = vpop.f32.mrf.mxu0
      %10113 = vmatprep.mubr.bf16.mxu0 0
      %10114 = vmatmul.mubr.bf16.gmra.mxu0 %v10006
      %v10115 = vpop.f32.mrf.mxu0
      %v10116 = vadd.f32 0.0, %v10115
      %v10117 = vpop.f32.mrf.mxu0
      %v10118 = vpop.f32.mrf.mxu0
      %v10119 = vadd.f32 0.0, %v10118
      %v10120 = vpop.f32.mrf.mxu0
      %10121 = vmatprep.mubr.bf16.mxu0 0
      %10122 = vmatmul.mubr.bf16.gmra.mxu0 %v10009
      %v10123 = vpop.f32.mrf.mxu0
      %v10124 = vadd.f32 0.0, %v10123
      %v10125 = vpop.f32.mrf.mxu0
      %v10126 = vpop.f32.mrf.mxu0
      %v10127 = vadd.f32 0.0, %v10126
      %v10128 = vpop.f32.mrf.mxu0
      %10129 = vmatprep.mubr.bf16.mxu0 0
      %10130 = vmatmul.mubr.bf16.gmra.mxu0 %v10012
      %v10131 = vpop.f32.mrf.mxu0
      %v10132 = vadd.f32 0.0, %v10131
      %v10133 = vpop.f32.mrf.mxu0
      %v10134 = vpop.f32.mrf.mxu0
      %v10135 = vadd.f32 0.0, %v10134
      %v10136 = vpop.f32.mrf.mxu0
      %10137 = vmatprep.mubr.bf16.mxu0 0
      %10138 = vmatmul.mubr.bf16.gmra.mxu0 %v10015
      %v10139 = vpop.f32.mrf.mxu0
      %v10140 = vadd.f32 0.0, %v10139
      %v10141 = vpop.f32.mrf.mxu0
      %v10142 = vpop.f32.mrf.mxu0
      %v10143 = vadd.f32 0.0, %v10142
      %v10144 = vpop.f32.mrf.mxu0
      %10145 = vmatprep.mubr.bf16.mxu0 0
      %10146 = vmatmul.mubr.bf16.gmra.mxu0 %v10018
      %v10147 = vpop.f32.mrf.mxu0
      %v10148 = vadd.f32 0.0, %v10147
      %v10149 = vpop.f32.mrf.mxu0
      %v10150 = vpop.f32.mrf.mxu0
      %v10151 = vadd.f32 0.0, %v10150
      %v10152 = vpop.f32.mrf.mxu0
      %10153 = vmatprep.mubr.bf16.mxu0 0
      %10154 = vmatmul.mubr.bf16.gmra.mxu0 %v10021
      %v10155 = vpop.f32.mrf.mxu0
      %v10156 = vadd.f32 0.0, %v10155
      %v10157 = vpop.f32.mrf.mxu0
      %v10158 = vpop.f32.mrf.mxu0
      %v10159 = vadd.f32 0.0, %v10158
      %v10160 = vpop.f32.mrf.mxu0
      %10161 = vmatprep.mubr.bf16.mxu0 0
      %10162 = vmatmul.mubr.bf16.gmra.mxu0 %v10024
      %v10163 = vpop.f32.mrf.mxu0
      %v10164 = vadd.f32 0.0, %v10163
      %v10165 = vpop.f32.mrf.mxu0
      %v10166 = vpop.f32.mrf.mxu0
      %v10167 = vadd.f32 0.0, %v10166
      %v10168 = vpop.f32.mrf.mxu0
      %10169 = vmatprep.mubr.bf16.mxu0 0
      %10170 = vmatmul.mubr.bf16.gmra.mxu0 %v10027
      %v10171 = vpop.f32.mrf.mxu0
      %v10172 = vadd.f32 0.0, %v10171
      %v10173 = vpop.f32.mrf.mxu0
      %v10174 = vpop.f32.mrf.mxu0
      %v10175 = vadd.f32 0.0, %v10174
      %v10176 = vpop.f32.mrf.mxu0
      %10177 = vmatprep.mubr.bf16.mxu0 0
      %10178 = vmatmul.mubr.bf16.gmra.mxu0 %v10030
      %v10179 = vpop.f32.mrf.mxu0
      %v10180 = vadd.f32 0.0, %v10179
      %v10181 = vpop.f32.mrf.mxu0
      %v10182 = vpop.f32.mrf.mxu0
      %v10183 = vadd.f32 0.0, %v10182
      %v10184 = vpop.f32.mrf.mxu0
      %10185 = vmatprep.mubr.bf16.mxu0 0
      %10186 = vmatmul.mubr.bf16.gmra.mxu0 %v10033
      %v10187 = vpop.f32.mrf.mxu0
      %v10188 = vadd.f32 0.0, %v10187
      %v10189 = vpop.f32.mrf.mxu0
      %v10190 = vpop.f32.mrf.mxu0
      %v10191 = vadd.f32 0.0, %v10190
      %v10192 = vpop.f32.mrf.mxu0
      %10193 = vmatprep.mubr.bf16.mxu0 0
      %10194 = vmatmul.mubr.bf16.gmra.mxu0 %v10036
      %v10195 = vpop.f32.mrf.mxu0
      %v10196 = vadd.f32 0.0, %v10195
      %v10197 = vpop.f32.mrf.mxu0
      %v10198 = vpop.f32.mrf.mxu0
      %v10199 = vadd.f32 0.0, %v10198
      %v10200 = vpop.f32.mrf.mxu0
      %10201 = vdwg.mxu0
      %v10202 = vld [vmem:[#allocation3] sm:$0xff]
      %v10203 = vld [vmem:[#allocation3 + $0x8] sm:$0xff]
      %v10204 = vld [vmem:[#allocation3 + $0x10] sm:$0xff]
      %v10205 = vld [vmem:[#allocation3 + $0x18] sm:$0xff]
      %v10206 = vld [vmem:[#allocation3 + $0x20] sm:$0xff]
      %v10207 = vld [vmem:[#allocation3 + $0x28] sm:$0xff]
      %v10208 = vld [vmem:[#allocation3 + $0x30] sm:$0xff]
      %v10209 = vld [vmem:[#allocation3 + $0x38] sm:$0xff]
      %v10210 = vld [vmem:[#allocation3 + $0x40] sm:$0xff]
      %v10211 = vld [vmem:[#allocation3 + $0x48] sm:$0xff]
      %v10212 = vld [vmem:[#allocation3 + $0x50] sm:$0xff]
      %v10213 = vld [vmem:[#allocation3 + $0x58] sm:$0xff]
      %v10214 = vld [vmem:[#allocation3 + $0x60] sm:$0xff]
      %v10215 = vld [vmem:[#allocation3 + $0x68] sm:$0xff]
      %v10216 = vld [vmem:[#allocation3 + $0x70] sm:$0xff]
      %v10217 = vld [vmem:[#allocation3 + $0x78] sm:$0xff]
      %v10218 = vld [vmem:[#allocation3 + $0x80] sm:$0xff]
      %v10219 = vld [vmem:[#allocation3 + $0x88] sm:$0xff]
      %v10220 = vld [vmem:[#allocation3 + $0x90] sm:$0xff]
      %v10221 = vld [vmem:[#allocation3 + $0x98] sm:$0xff]
      %v10222 = vld [vmem:[#allocation3 + $0xa0] sm:$0xff]
      %v10223 = vld [vmem:[#allocation3 + $0xa8] sm:$0xff]
      %v10224 = vld [vmem:[#allocation3 + $0xb0] sm:$0xff]
      %v10225 = vld [vmem:[#allocation3 + $0xb8] sm:$0xff]
      %v10226 = vld [vmem:[#allocation3 + $0xc0] sm:$0xff]
      %v10227 = vld [vmem:[#allocation3 + $0xc8] sm:$0xff]
      %v10228 = vld [vmem:[#allocation3 + $0xd0] sm:$0xff]
      %v10229 = vld [vmem:[#allocation3 + $0xd8] sm:$0xff]
      %v10230 = vld [vmem:[#allocation3 + $0xe0] sm:$0xff]
      %v10231 = vld [vmem:[#allocation3 + $0xe8] sm:$0xff]
      %v10232 = vld [vmem:[#allocation3 + $0xf0] sm:$0xff]
      %v10233 = vld [vmem:[#allocation3 + $0xf8] sm:$0xff]
      %v10234 = vadd.f32 %v10202, %v10076
      %v10235 = vadd.f32 %v10203, %v10079
      %v10236 = vadd.f32 %v10204, %v10084
      %v10237 = vadd.f32 %v10205, %v10087
      %v10238 = vadd.f32 %v10206, %v10092
      %v10239 = vadd.f32 %v10207, %v10095
      %v10240 = vadd.f32 %v10208, %v10100
      %v10241 = vadd.f32 %v10209, %v10103
      %v10242 = vadd.f32 %v10210, %v10108
      %v10243 = vadd.f32 %v10211, %v10111
      %v10244 = vadd.f32 %v10212, %v10116
      %v10245 = vadd.f32 %v10213, %v10119
      %v10246 = vadd.f32 %v10214, %v10124
      %v10247 = vadd.f32 %v10215, %v10127
      %v10248 = vadd.f32 %v10216, %v10132
      %v10249 = vadd.f32 %v10217, %v10135
      %v10250 = vadd.f32 %v10218, %v10140
      %v10251 = vadd.f32 %v10219, %v10143
      %v10252 = vadd.f32 %v10220, %v10148
      %v10253 = vadd.f32 %v10221, %v10151
      %v10254 = vadd.f32 %v10222, %v10156
      %v10255 = vadd.f32 %v10223, %v10159
      %v10256 = vadd.f32 %v10224, %v10164
      %v10257 = vadd.f32 %v10225, %v10167
      %v10258 = vadd.f32 %v10226, %v10172
      %v10259 = vadd.f32 %v10227, %v10175
      %v10260 = vadd.f32 %v10228, %v10180
      %v10261 = vadd.f32 %v10229, %v10183
      %v10262 = vadd.f32 %v10230, %v10188
      %v10263 = vadd.f32 %v10231, %v10191
      %v10264 = vadd.f32 %v10232, %v10196
      %v10265 = vadd.f32 %v10233, %v10199
      %10266 = vst.msk [vmem:[#allocation3] sm:$0xff] %vm972, %v10234
      %10267 = vst.msk [vmem:[#allocation3 + $0x8] sm:$0xff] %vm972, %v10235
      %10268 = vst.msk [vmem:[#allocation3 + $0x10] sm:$0xff] %vm972, %v10236
      %10269 = vst.msk [vmem:[#allocation3 + $0x18] sm:$0xff] %vm972, %v10237
      %10270 = vst.msk [vmem:[#allocation3 + $0x20] sm:$0xff] %vm972, %v10238
      %10271 = vst.msk [vmem:[#allocation3 + $0x28] sm:$0xff] %vm972, %v10239
      %10272 = vst.msk [vmem:[#allocation3 + $0x30] sm:$0xff] %vm972, %v10240
      %10273 = vst.msk [vmem:[#allocation3 + $0x38] sm:$0xff] %vm972, %v10241
      %10274 = vst.msk [vmem:[#allocation3 + $0x40] sm:$0xff] %vm972, %v10242
      %10275 = vst.msk [vmem:[#allocation3 + $0x48] sm:$0xff] %vm972, %v10243
      %10276 = vst.msk [vmem:[#allocation3 + $0x50] sm:$0xff] %vm972, %v10244
      %10277 = vst.msk [vmem:[#allocation3 + $0x58] sm:$0xff] %vm972, %v10245
      %10278 = vst.msk [vmem:[#allocation3 + $0x60] sm:$0xff] %vm972, %v10246
      %10279 = vst.msk [vmem:[#allocation3 + $0x68] sm:$0xff] %vm972, %v10247
      %10280 = vst.msk [vmem:[#allocation3 + $0x70] sm:$0xff] %vm972, %v10248
      %10281 = vst.msk [vmem:[#allocation3 + $0x78] sm:$0xff] %vm972, %v10249
      %10282 = vst.msk [vmem:[#allocation3 + $0x80] sm:$0xff] %vm972, %v10250
      %10283 = vst.msk [vmem:[#allocation3 + $0x88] sm:$0xff] %vm972, %v10251
      %10284 = vst.msk [vmem:[#allocation3 + $0x90] sm:$0xff] %vm972, %v10252
      %10285 = vst.msk [vmem:[#allocation3 + $0x98] sm:$0xff] %vm972, %v10253
      %10286 = vst.msk [vmem:[#allocation3 + $0xa0] sm:$0xff] %vm972, %v10254
      %10287 = vst.msk [vmem:[#allocation3 + $0xa8] sm:$0xff] %vm972, %v10255
      %10288 = vst.msk [vmem:[#allocation3 + $0xb0] sm:$0xff] %vm972, %v10256
      %10289 = vst.msk [vmem:[#allocation3 + $0xb8] sm:$0xff] %vm972, %v10257
      %10290 = vst.msk [vmem:[#allocation3 + $0xc0] sm:$0xff] %vm972, %v10258
      %10291 = vst.msk [vmem:[#allocation3 + $0xc8] sm:$0xff] %vm972, %v10259
      %10292 = vst.msk [vmem:[#allocation3 + $0xd0] sm:$0xff] %vm972, %v10260
      %10293 = vst.msk [vmem:[#allocation3 + $0xd8] sm:$0xff] %vm972, %v10261
      %10294 = vst.msk [vmem:[#allocation3 + $0xe0] sm:$0xff] %vm972, %v10262
      %10295 = vst.msk [vmem:[#allocation3 + $0xe8] sm:$0xff] %vm972, %v10263
      %10296 = vst.msk [vmem:[#allocation3 + $0xf0] sm:$0xff] %vm972, %v10264
      %10297 = vst.msk [vmem:[#allocation3 + $0xf8] sm:$0xff] %vm972, %v10265
      %v10298 = vld [vmem:[%s4358] sm:$0xf]
      %v10299 = vld [vmem:[%s4358 + $0x4] sm:$0xf]
      %v10300 = vld [vmem:[%s4358 + $0xc] sm:$0xf]
      %v10301 = vld [vmem:[%s4358 + $0x10] sm:$0xf]
      %v10302 = vld [vmem:[%s4358 + $0x18] sm:$0xf]
      %v10303 = vld [vmem:[%s4358 + $0x1c] sm:$0xf]
      %v10304 = vld [vmem:[%s4358 + $0x24] sm:$0xf]
      %v10305 = vld [vmem:[%s4358 + $0x28] sm:$0xf]
      %v10306 = vld [vmem:[%s4358 + $0x30] sm:$0xf]
      %v10307 = vld [vmem:[%s4358 + $0x34] sm:$0xf]
      %v10308 = vld [vmem:[%s4358 + $0x3c] sm:$0xf]
      %v10309 = vld [vmem:[%s4358 + $0x40] sm:$0xf]
      %v10310 = vld [vmem:[%s4358 + $0x48] sm:$0xf]
      %v10311 = vld [vmem:[%s4358 + $0x4c] sm:$0xf]
      %v10312 = vld [vmem:[%s4358 + $0x54] sm:$0xf]
      %v10313 = vld [vmem:[%s4358 + $0x58] sm:$0xf]
      %v10314 = vld [vmem:[%s4358 + $0x60] sm:$0xf]
      %v10315 = vld [vmem:[%s4358 + $0x64] sm:$0xf]
      %v10316 = vld [vmem:[%s4358 + $0x6c] sm:$0xf]
      %v10317 = vld [vmem:[%s4358 + $0x70] sm:$0xf]
      %v10318 = vld [vmem:[%s4358 + $0x78] sm:$0xf]
      %v10319 = vld [vmem:[%s4358 + $0x7c] sm:$0xf]
      %v10320 = vld [vmem:[%s4358 + $0x84] sm:$0xf]
      %v10321 = vld [vmem:[%s4358 + $0x88] sm:$0xf]
      %v10322 = vld [vmem:[%s4358 + $0x90] sm:$0xf]
      %v10323 = vld [vmem:[%s4358 + $0x94] sm:$0xf]
      %v10324 = vld [vmem:[%s4358 + $0x9c] sm:$0xf]
      %v10325 = vld [vmem:[%s4358 + $0xa0] sm:$0xf]
      %v10326 = vld [vmem:[%s4358 + $0xa8] sm:$0xf]
      %v10327 = vld [vmem:[%s4358 + $0xac] sm:$0xf]
      %v10328 = vld [vmem:[%s4358 + $0xb4] sm:$0xf]
      %v10329 = vld [vmem:[%s4358 + $0xb8] sm:$0xf]
      %s10330 = scalar_lea.vmem %s2, 12
      %v10331 = vld [vmem:[%s10330] sm:$0x3]
      %v10364 = vunpack.c.l.b16 %v10298
      %v10365 = vunpack.c.l.b16 %v10299
      %v10366 = vunpack.c.l.b16 %v10300
      %v10367 = vunpack.c.l.b16 %v10301
      %v10368 = vunpack.c.l.b16 %v10302
      %v10369 = vunpack.c.l.b16 %v10303
      %v10370 = vunpack.c.l.b16 %v10304
      %v10371 = vunpack.c.l.b16 %v10305
      %v10372 = vunpack.c.l.b16 %v10306
      %v10373 = vunpack.c.l.b16 %v10307
      %v10374 = vunpack.c.l.b16 %v10308
      %v10375 = vunpack.c.l.b16 %v10309
      %v10376 = vunpack.c.l.b16 %v10310
      %v10377 = vunpack.c.l.b16 %v10311
      %v10378 = vunpack.c.l.b16 %v10312
      %v10379 = vunpack.c.l.b16 %v10313
      %v10380 = vunpack.c.l.b16 %v10314
      %v10381 = vunpack.c.l.b16 %v10315
      %v10382 = vunpack.c.l.b16 %v10316
      %v10383 = vunpack.c.l.b16 %v10317
      %v10384 = vunpack.c.l.b16 %v10318
      %v10385 = vunpack.c.l.b16 %v10319
      %v10386 = vunpack.c.l.b16 %v10320
      %v10387 = vunpack.c.l.b16 %v10321
      %v10388 = vunpack.c.l.b16 %v10322
      %v10389 = vunpack.c.l.b16 %v10323
      %v10390 = vunpack.c.l.b16 %v10324
      %v10391 = vunpack.c.l.b16 %v10325
      %v10392 = vunpack.c.l.b16 %v10326
      %v10393 = vunpack.c.l.b16 %v10327
      %v10394 = vunpack.c.l.b16 %v10328
      %v10395 = vunpack.c.l.b16 %v10329
      %v10396 = vpack.c.b16 %v10365, %v10364
      %v10397 = vpack.c.b16 %v10367, %v10366
      %v10398 = vpack.c.b16 %v10369, %v10368
      %v10399 = vpack.c.b16 %v10371, %v10370
      %v10400 = vpack.c.b16 %v10373, %v10372
      %v10401 = vpack.c.b16 %v10375, %v10374
      %v10402 = vpack.c.b16 %v10377, %v10376
      %v10403 = vpack.c.b16 %v10379, %v10378
      %v10404 = vpack.c.b16 %v10381, %v10380
      %v10405 = vpack.c.b16 %v10383, %v10382
      %v10406 = vpack.c.b16 %v10385, %v10384
      %v10407 = vpack.c.b16 %v10387, %v10386
      %v10408 = vpack.c.b16 %v10389, %v10388
      %v10409 = vpack.c.b16 %v10391, %v10390
      %v10410 = vpack.c.b16 %v10393, %v10392
      %v10411 = vpack.c.b16 %v10395, %v10394
      %v10413 = vsel %vm972, %v10396, 0
      %v10416 = vsel %vm972, %v10397, 0
      %v10419 = vsel %vm972, %v10398, 0
      %v10422 = vsel %vm972, %v10399, 0
      %v10425 = vsel %vm972, %v10400, 0
      %v10428 = vsel %vm972, %v10401, 0
      %v10431 = vsel %vm972, %v10402, 0
      %v10434 = vsel %vm972, %v10403, 0
      %v10437 = vsel %vm972, %v10404, 0
      %v10440 = vsel %vm972, %v10405, 0
      %v10443 = vsel %vm972, %v10406, 0
      %v10446 = vsel %vm972, %v10407, 0
      %v10449 = vsel %vm972, %v10408, 0
      %v10452 = vsel %vm972, %v10409, 0
      %v10455 = vsel %vm972, %v10410, 0
      %v10458 = vsel %vm972, %v10411, 0
      %v10461 = vsel %vm1021, %v10331, 0
      %10463 = vmatprep.subr.bf16.mxu0 0
      %10464 = vmatpush1.bf16.msra.mxu0 0
      %10465 = vmatprep.subr.bf16.mxu0 0
      %10466 = vmatpush1.bf16.msra.mxu0 0
      %10467 = vmatprep.subr.bf16.mxu0 0
      %10468 = vmatpush1.bf16.msra.mxu0 0
      %10469 = vmatprep.subr.bf16.mxu0 0
      %10470 = vmatpush1.bf16.msra.mxu0 0
      %10471 = vmatprep.subr.bf16.mxu0 0
      %10472 = vmatpush1.bf16.msra.mxu0 0
      %10473 = vmatprep.subr.bf16.mxu0 0
      %10474 = vmatpush1.bf16.msra.mxu0 0
      %10475 = vmatprep.subr.bf16.mxu0 0
      %10476 = vmatpush1.bf16.msra.mxu0 0
      %10477 = vmatprep.subr.bf16.mxu0 0
      %10478 = vmatpush1.bf16.msra.mxu0 %v10461
      %10479 = vmatprep.subr.bf16.mxu0 0
      %10480 = vmatpush2.bf16.msra.mxu0 0
      %10481 = vmatprep.subr.bf16.mxu0 0
      %10482 = vmatpush2.bf16.msra.mxu0 0
      %10483 = vmatprep.subr.bf16.mxu0 0
      %10484 = vmatpush2.bf16.msra.mxu0 0
      %10485 = vmatprep.subr.bf16.mxu0 0
      %10486 = vmatpush2.bf16.msra.mxu0 0
      %10487 = vmatprep.subr.bf16.mxu0 0
      %10488 = vmatpush2.bf16.msra.mxu0 0
      %10489 = vmatprep.subr.bf16.mxu0 0
      %10490 = vmatpush2.bf16.msra.mxu0 0
      %10491 = vmatprep.subr.bf16.mxu0 0
      %10492 = vmatpush2.bf16.msra.mxu0 0
      %10493 = vmatprep.subr.bf16.mxu0 0
      %10494 = vmatpush2.bf16.msra.mxu0 0
      %10495 = vmatprep.mubr.bf16.mxu0 0
      %10496 = vmatmul.mubr.bf16.gmra.mxu0 %v10413
      %v10497 = vpop.f32.mrf.mxu0
      %v10498 = vadd.f32 0.0, %v10497
      %v10499 = vpop.f32.mrf.mxu0
      %v10500 = vpop.f32.mrf.mxu0
      %v10501 = vadd.f32 0.0, %v10500
      %v10502 = vpop.f32.mrf.mxu0
      %10503 = vmatprep.mubr.bf16.mxu0 0
      %10504 = vmatmul.mubr.bf16.gmra.mxu0 %v10416
      %v10505 = vpop.f32.mrf.mxu0
      %v10506 = vadd.f32 0.0, %v10505
      %v10507 = vpop.f32.mrf.mxu0
      %v10508 = vpop.f32.mrf.mxu0
      %v10509 = vadd.f32 0.0, %v10508
      %v10510 = vpop.f32.mrf.mxu0
      %10511 = vmatprep.mubr.bf16.mxu0 0
      %10512 = vmatmul.mubr.bf16.gmra.mxu0 %v10419
      %v10513 = vpop.f32.mrf.mxu0
      %v10514 = vadd.f32 0.0, %v10513
      %v10515 = vpop.f32.mrf.mxu0
      %v10516 = vpop.f32.mrf.mxu0
      %v10517 = vadd.f32 0.0, %v10516
      %v10518 = vpop.f32.mrf.mxu0
      %10519 = vmatprep.mubr.bf16.mxu0 0
      %10520 = vmatmul.mubr.bf16.gmra.mxu0 %v10422
      %v10521 = vpop.f32.mrf.mxu0
      %v10522 = vadd.f32 0.0, %v10521
      %v10523 = vpop.f32.mrf.mxu0
      %v10524 = vpop.f32.mrf.mxu0
      %v10525 = vadd.f32 0.0, %v10524
      %v10526 = vpop.f32.mrf.mxu0
      %10527 = vmatprep.mubr.bf16.mxu0 0
      %10528 = vmatmul.mubr.bf16.gmra.mxu0 %v10425
      %v10529 = vpop.f32.mrf.mxu0
      %v10530 = vadd.f32 0.0, %v10529
      %v10531 = vpop.f32.mrf.mxu0
      %v10532 = vpop.f32.mrf.mxu0
      %v10533 = vadd.f32 0.0, %v10532
      %v10534 = vpop.f32.mrf.mxu0
      %10535 = vmatprep.mubr.bf16.mxu0 0
      %10536 = vmatmul.mubr.bf16.gmra.mxu0 %v10428
      %v10537 = vpop.f32.mrf.mxu0
      %v10538 = vadd.f32 0.0, %v10537
      %v10539 = vpop.f32.mrf.mxu0
      %v10540 = vpop.f32.mrf.mxu0
      %v10541 = vadd.f32 0.0, %v10540
      %v10542 = vpop.f32.mrf.mxu0
      %10543 = vmatprep.mubr.bf16.mxu0 0
      %10544 = vmatmul.mubr.bf16.gmra.mxu0 %v10431
      %v10545 = vpop.f32.mrf.mxu0
      %v10546 = vadd.f32 0.0, %v10545
      %v10547 = vpop.f32.mrf.mxu0
      %v10548 = vpop.f32.mrf.mxu0
      %v10549 = vadd.f32 0.0, %v10548
      %v10550 = vpop.f32.mrf.mxu0
      %10551 = vmatprep.mubr.bf16.mxu0 0
      %10552 = vmatmul.mubr.bf16.gmra.mxu0 %v10434
      %v10553 = vpop.f32.mrf.mxu0
      %v10554 = vadd.f32 0.0, %v10553
      %v10555 = vpop.f32.mrf.mxu0
      %v10556 = vpop.f32.mrf.mxu0
      %v10557 = vadd.f32 0.0, %v10556
      %v10558 = vpop.f32.mrf.mxu0
      %10559 = vmatprep.mubr.bf16.mxu0 0
      %10560 = vmatmul.mubr.bf16.gmra.mxu0 %v10437
      %v10561 = vpop.f32.mrf.mxu0
      %v10562 = vadd.f32 0.0, %v10561
      %v10563 = vpop.f32.mrf.mxu0
      %v10564 = vpop.f32.mrf.mxu0
      %v10565 = vadd.f32 0.0, %v10564
      %v10566 = vpop.f32.mrf.mxu0
      %10567 = vmatprep.mubr.bf16.mxu0 0
      %10568 = vmatmul.mubr.bf16.gmra.mxu0 %v10440
      %v10569 = vpop.f32.mrf.mxu0
      %v10570 = vadd.f32 0.0, %v10569
      %v10571 = vpop.f32.mrf.mxu0
      %v10572 = vpop.f32.mrf.mxu0
      %v10573 = vadd.f32 0.0, %v10572
      %v10574 = vpop.f32.mrf.mxu0
      %10575 = vmatprep.mubr.bf16.mxu0 0
      %10576 = vmatmul.mubr.bf16.gmra.mxu0 %v10443
      %v10577 = vpop.f32.mrf.mxu0
      %v10578 = vadd.f32 0.0, %v10577
      %v10579 = vpop.f32.mrf.mxu0
      %v10580 = vpop.f32.mrf.mxu0
      %v10581 = vadd.f32 0.0, %v10580
      %v10582 = vpop.f32.mrf.mxu0
      %10583 = vmatprep.mubr.bf16.mxu0 0
      %10584 = vmatmul.mubr.bf16.gmra.mxu0 %v10446
      %v10585 = vpop.f32.mrf.mxu0
      %v10586 = vadd.f32 0.0, %v10585
      %v10587 = vpop.f32.mrf.mxu0
      %v10588 = vpop.f32.mrf.mxu0
      %v10589 = vadd.f32 0.0, %v10588
      %v10590 = vpop.f32.mrf.mxu0
      %10591 = vmatprep.mubr.bf16.mxu0 0
      %10592 = vmatmul.mubr.bf16.gmra.mxu0 %v10449
      %v10593 = vpop.f32.mrf.mxu0
      %v10594 = vadd.f32 0.0, %v10593
      %v10595 = vpop.f32.mrf.mxu0
      %v10596 = vpop.f32.mrf.mxu0
      %v10597 = vadd.f32 0.0, %v10596
      %v10598 = vpop.f32.mrf.mxu0
      %10599 = vmatprep.mubr.bf16.mxu0 0
      %10600 = vmatmul.mubr.bf16.gmra.mxu0 %v10452
      %v10601 = vpop.f32.mrf.mxu0
      %v10602 = vadd.f32 0.0, %v10601
      %v10603 = vpop.f32.mrf.mxu0
      %v10604 = vpop.f32.mrf.mxu0
      %v10605 = vadd.f32 0.0, %v10604
      %v10606 = vpop.f32.mrf.mxu0
      %10607 = vmatprep.mubr.bf16.mxu0 0
      %10608 = vmatmul.mubr.bf16.gmra.mxu0 %v10455
      %v10609 = vpop.f32.mrf.mxu0
      %v10610 = vadd.f32 0.0, %v10609
      %v10611 = vpop.f32.mrf.mxu0
      %v10612 = vpop.f32.mrf.mxu0
      %v10613 = vadd.f32 0.0, %v10612
      %v10614 = vpop.f32.mrf.mxu0
      %10615 = vmatprep.mubr.bf16.mxu0 0
      %10616 = vmatmul.mubr.bf16.gmra.mxu0 %v10458
      %v10617 = vpop.f32.mrf.mxu0
      %v10618 = vadd.f32 0.0, %v10617
      %v10619 = vpop.f32.mrf.mxu0
      %v10620 = vpop.f32.mrf.mxu0
      %v10621 = vadd.f32 0.0, %v10620
      %v10622 = vpop.f32.mrf.mxu0
      %10623 = vdwg.mxu0
      %v10624 = vld [vmem:[#allocation3] sm:$0xff]
      %v10625 = vld [vmem:[#allocation3 + $0x8] sm:$0xff]
      %v10626 = vld [vmem:[#allocation3 + $0x10] sm:$0xff]
      %v10627 = vld [vmem:[#allocation3 + $0x18] sm:$0xff]
      %v10628 = vld [vmem:[#allocation3 + $0x20] sm:$0xff]
      %v10629 = vld [vmem:[#allocation3 + $0x28] sm:$0xff]
      %v10630 = vld [vmem:[#allocation3 + $0x30] sm:$0xff]
      %v10631 = vld [vmem:[#allocation3 + $0x38] sm:$0xff]
      %v10632 = vld [vmem:[#allocation3 + $0x40] sm:$0xff]
      %v10633 = vld [vmem:[#allocation3 + $0x48] sm:$0xff]
      %v10634 = vld [vmem:[#allocation3 + $0x50] sm:$0xff]
      %v10635 = vld [vmem:[#allocation3 + $0x58] sm:$0xff]
      %v10636 = vld [vmem:[#allocation3 + $0x60] sm:$0xff]
      %v10637 = vld [vmem:[#allocation3 + $0x68] sm:$0xff]
      %v10638 = vld [vmem:[#allocation3 + $0x70] sm:$0xff]
      %v10639 = vld [vmem:[#allocation3 + $0x78] sm:$0xff]
      %v10640 = vld [vmem:[#allocation3 + $0x80] sm:$0xff]
      %v10641 = vld [vmem:[#allocation3 + $0x88] sm:$0xff]
      %v10642 = vld [vmem:[#allocation3 + $0x90] sm:$0xff]
      %v10643 = vld [vmem:[#allocation3 + $0x98] sm:$0xff]
      %v10644 = vld [vmem:[#allocation3 + $0xa0] sm:$0xff]
      %v10645 = vld [vmem:[#allocation3 + $0xa8] sm:$0xff]
      %v10646 = vld [vmem:[#allocation3 + $0xb0] sm:$0xff]
      %v10647 = vld [vmem:[#allocation3 + $0xb8] sm:$0xff]
      %v10648 = vld [vmem:[#allocation3 + $0xc0] sm:$0xff]
      %v10649 = vld [vmem:[#allocation3 + $0xc8] sm:$0xff]
      %v10650 = vld [vmem:[#allocation3 + $0xd0] sm:$0xff]
      %v10651 = vld [vmem:[#allocation3 + $0xd8] sm:$0xff]
      %v10652 = vld [vmem:[#allocation3 + $0xe0] sm:$0xff]
      %v10653 = vld [vmem:[#allocation3 + $0xe8] sm:$0xff]
      %v10654 = vld [vmem:[#allocation3 + $0xf0] sm:$0xff]
      %v10655 = vld [vmem:[#allocation3 + $0xf8] sm:$0xff]
      %v10656 = vadd.f32 %v10624, %v10498
      %v10657 = vadd.f32 %v10625, %v10501
      %v10658 = vadd.f32 %v10626, %v10506
      %v10659 = vadd.f32 %v10627, %v10509
      %v10660 = vadd.f32 %v10628, %v10514
      %v10661 = vadd.f32 %v10629, %v10517
      %v10662 = vadd.f32 %v10630, %v10522
      %v10663 = vadd.f32 %v10631, %v10525
      %v10664 = vadd.f32 %v10632, %v10530
      %v10665 = vadd.f32 %v10633, %v10533
      %v10666 = vadd.f32 %v10634, %v10538
      %v10667 = vadd.f32 %v10635, %v10541
      %v10668 = vadd.f32 %v10636, %v10546
      %v10669 = vadd.f32 %v10637, %v10549
      %v10670 = vadd.f32 %v10638, %v10554
      %v10671 = vadd.f32 %v10639, %v10557
      %v10672 = vadd.f32 %v10640, %v10562
      %v10673 = vadd.f32 %v10641, %v10565
      %v10674 = vadd.f32 %v10642, %v10570
      %v10675 = vadd.f32 %v10643, %v10573
      %v10676 = vadd.f32 %v10644, %v10578
      %v10677 = vadd.f32 %v10645, %v10581
      %v10678 = vadd.f32 %v10646, %v10586
      %v10679 = vadd.f32 %v10647, %v10589
      %v10680 = vadd.f32 %v10648, %v10594
      %v10681 = vadd.f32 %v10649, %v10597
      %v10682 = vadd.f32 %v10650, %v10602
      %v10683 = vadd.f32 %v10651, %v10605
      %v10684 = vadd.f32 %v10652, %v10610
      %v10685 = vadd.f32 %v10653, %v10613
      %v10686 = vadd.f32 %v10654, %v10618
      %v10687 = vadd.f32 %v10655, %v10621
      %10688 = vst.msk [vmem:[#allocation3] sm:$0xff] %vm972, %v10656
      %10689 = vst.msk [vmem:[#allocation3 + $0x8] sm:$0xff] %vm972, %v10657
      %10690 = vst.msk [vmem:[#allocation3 + $0x10] sm:$0xff] %vm972, %v10658
      %10691 = vst.msk [vmem:[#allocation3 + $0x18] sm:$0xff] %vm972, %v10659
      %10692 = vst.msk [vmem:[#allocation3 + $0x20] sm:$0xff] %vm972, %v10660
      %10693 = vst.msk [vmem:[#allocation3 + $0x28] sm:$0xff] %vm972, %v10661
      %10694 = vst.msk [vmem:[#allocation3 + $0x30] sm:$0xff] %vm972, %v10662
      %10695 = vst.msk [vmem:[#allocation3 + $0x38] sm:$0xff] %vm972, %v10663
      %10696 = vst.msk [vmem:[#allocation3 + $0x40] sm:$0xff] %vm972, %v10664
      %10697 = vst.msk [vmem:[#allocation3 + $0x48] sm:$0xff] %vm972, %v10665
      %10698 = vst.msk [vmem:[#allocation3 + $0x50] sm:$0xff] %vm972, %v10666
      %10699 = vst.msk [vmem:[#allocation3 + $0x58] sm:$0xff] %vm972, %v10667
      %10700 = vst.msk [vmem:[#allocation3 + $0x60] sm:$0xff] %vm972, %v10668
      %10701 = vst.msk [vmem:[#allocation3 + $0x68] sm:$0xff] %vm972, %v10669
      %10702 = vst.msk [vmem:[#allocation3 + $0x70] sm:$0xff] %vm972, %v10670
      %10703 = vst.msk [vmem:[#allocation3 + $0x78] sm:$0xff] %vm972, %v10671
      %10704 = vst.msk [vmem:[#allocation3 + $0x80] sm:$0xff] %vm972, %v10672
      %10705 = vst.msk [vmem:[#allocation3 + $0x88] sm:$0xff] %vm972, %v10673
      %10706 = vst.msk [vmem:[#allocation3 + $0x90] sm:$0xff] %vm972, %v10674
      %10707 = vst.msk [vmem:[#allocation3 + $0x98] sm:$0xff] %vm972, %v10675
      %10708 = vst.msk [vmem:[#allocation3 + $0xa0] sm:$0xff] %vm972, %v10676
      %10709 = vst.msk [vmem:[#allocation3 + $0xa8] sm:$0xff] %vm972, %v10677
      %10710 = vst.msk [vmem:[#allocation3 + $0xb0] sm:$0xff] %vm972, %v10678
      %10711 = vst.msk [vmem:[#allocation3 + $0xb8] sm:$0xff] %vm972, %v10679
      %10712 = vst.msk [vmem:[#allocation3 + $0xc0] sm:$0xff] %vm972, %v10680
      %10713 = vst.msk [vmem:[#allocation3 + $0xc8] sm:$0xff] %vm972, %v10681
      %10714 = vst.msk [vmem:[#allocation3 + $0xd0] sm:$0xff] %vm972, %v10682
      %10715 = vst.msk [vmem:[#allocation3 + $0xd8] sm:$0xff] %vm972, %v10683
      %10716 = vst.msk [vmem:[#allocation3 + $0xe0] sm:$0xff] %vm972, %v10684
      %10717 = vst.msk [vmem:[#allocation3 + $0xe8] sm:$0xff] %vm972, %v10685
      %10718 = vst.msk [vmem:[#allocation3 + $0xf0] sm:$0xff] %vm972, %v10686
      %10719 = vst.msk [vmem:[#allocation3 + $0xf8] sm:$0xff] %vm972, %v10687
      %v10720 = vld [vmem:[%s4358] sm:$0xf]
      %v10721 = vld [vmem:[%s4358 + $0x4] sm:$0xf]
      %v10722 = vld [vmem:[%s4358 + $0x8] sm:$0x1]
      %v10723 = vld [vmem:[%s4358 + $0xc] sm:$0xf]
      %v10724 = vld [vmem:[%s4358 + $0x10] sm:$0xf]
      %v10725 = vld [vmem:[%s4358 + $0x14] sm:$0x1]
      %v10726 = vld [vmem:[%s4358 + $0x18] sm:$0xf]
      %v10727 = vld [vmem:[%s4358 + $0x1c] sm:$0xf]
      %v10728 = vld [vmem:[%s4358 + $0x20] sm:$0x1]
      %v10729 = vld [vmem:[%s4358 + $0x24] sm:$0xf]
      %v10730 = vld [vmem:[%s4358 + $0x28] sm:$0xf]
      %v10731 = vld [vmem:[%s4358 + $0x2c] sm:$0x1]
      %v10732 = vld [vmem:[%s4358 + $0x30] sm:$0xf]
      %v10733 = vld [vmem:[%s4358 + $0x34] sm:$0xf]
      %v10734 = vld [vmem:[%s4358 + $0x38] sm:$0x1]
      %v10735 = vld [vmem:[%s4358 + $0x3c] sm:$0xf]
      %v10736 = vld [vmem:[%s4358 + $0x40] sm:$0xf]
      %v10737 = vld [vmem:[%s4358 + $0x44] sm:$0x1]
      %v10738 = vld [vmem:[%s4358 + $0x48] sm:$0xf]
      %v10739 = vld [vmem:[%s4358 + $0x4c] sm:$0xf]
      %v10740 = vld [vmem:[%s4358 + $0x50] sm:$0x1]
      %v10741 = vld [vmem:[%s4358 + $0x54] sm:$0xf]
      %v10742 = vld [vmem:[%s4358 + $0x58] sm:$0xf]
      %v10743 = vld [vmem:[%s4358 + $0x5c] sm:$0x1]
      %v10744 = vld [vmem:[%s4358 + $0x60] sm:$0xf]
      %v10745 = vld [vmem:[%s4358 + $0x64] sm:$0xf]
      %v10746 = vld [vmem:[%s4358 + $0x68] sm:$0x1]
      %v10747 = vld [vmem:[%s4358 + $0x6c] sm:$0xf]
      %v10748 = vld [vmem:[%s4358 + $0x70] sm:$0xf]
      %v10749 = vld [vmem:[%s4358 + $0x74] sm:$0x1]
      %v10750 = vld [vmem:[%s4358 + $0x78] sm:$0xf]
      %v10751 = vld [vmem:[%s4358 + $0x7c] sm:$0xf]
      %v10752 = vld [vmem:[%s4358 + $0x80] sm:$0x1]
      %v10753 = vld [vmem:[%s4358 + $0x84] sm:$0xf]
      %v10754 = vld [vmem:[%s4358 + $0x88] sm:$0xf]
      %v10755 = vld [vmem:[%s4358 + $0x8c] sm:$0x1]
      %v10756 = vld [vmem:[%s4358 + $0x90] sm:$0xf]
      %v10757 = vld [vmem:[%s4358 + $0x94] sm:$0xf]
      %v10758 = vld [vmem:[%s4358 + $0x98] sm:$0x1]
      %v10759 = vld [vmem:[%s4358 + $0x9c] sm:$0xf]
      %v10760 = vld [vmem:[%s4358 + $0xa0] sm:$0xf]
      %v10761 = vld [vmem:[%s4358 + $0xa4] sm:$0x1]
      %v10762 = vld [vmem:[%s4358 + $0xa8] sm:$0xf]
      %v10763 = vld [vmem:[%s4358 + $0xac] sm:$0xf]
      %v10764 = vld [vmem:[%s4358 + $0xb0] sm:$0x1]
      %v10765 = vld [vmem:[%s4358 + $0xb4] sm:$0xf]
      %v10766 = vld [vmem:[%s4358 + $0xb8] sm:$0xf]
      %v10767 = vld [vmem:[%s4358 + $0xbc] sm:$0x1]
      %v10769 = vshrl.u32 %v10720, 16
      %v10771 = vrot.slane %v10769, 4
      %v10772 = vshll.u32 %v10720, 16
      %v10774 = vrot.slane %v10772, 5
      %v10775 = vor.u32 %v10771, %v10774
      %v10776 = vrot.slane %v10775, 4
      %v10778 = vshll.u32 %v10721, 16
      %v10780 = vrot.slane %v10778, 5
      %v10781 = vsel %vm1268, %v10776, %v10780
      %v10782 = vshrl.u32 %v10721, 16
      %v10784 = vrot.slane %v10782, 4
      %v10785 = vor.u32 %v10784, %v10780
      %v10786 = vrot.slane %v10785, 4
      %v10788 = vshll.u32 %v10722, 16
      %v10790 = vrot.slane %v10788, 5
      %v10791 = vsel %vm1268, %v10786, %v10790
      %v10793 = vshrl.u32 %v10723, 16
      %v10795 = vrot.slane %v10793, 4
      %v10796 = vshll.u32 %v10723, 16
      %v10798 = vrot.slane %v10796, 5
      %v10799 = vor.u32 %v10795, %v10798
      %v10800 = vrot.slane %v10799, 4
      %v10802 = vshll.u32 %v10724, 16
      %v10804 = vrot.slane %v10802, 5
      %v10805 = vsel %vm1268, %v10800, %v10804
      %v10806 = vshrl.u32 %v10724, 16
      %v10808 = vrot.slane %v10806, 4
      %v10809 = vor.u32 %v10808, %v10804
      %v10810 = vrot.slane %v10809, 4
      %v10812 = vshll.u32 %v10725, 16
      %v10814 = vrot.slane %v10812, 5
      %v10815 = vsel %vm1268, %v10810, %v10814
      %v10817 = vshrl.u32 %v10726, 16
      %v10819 = vrot.slane %v10817, 4
      %v10820 = vshll.u32 %v10726, 16
      %v10822 = vrot.slane %v10820, 5
      %v10823 = vor.u32 %v10819, %v10822
      %v10824 = vrot.slane %v10823, 4
      %v10826 = vshll.u32 %v10727, 16
      %v10828 = vrot.slane %v10826, 5
      %v10829 = vsel %vm1268, %v10824, %v10828
      %v10830 = vshrl.u32 %v10727, 16
      %v10832 = vrot.slane %v10830, 4
      %v10833 = vor.u32 %v10832, %v10828
      %v10834 = vrot.slane %v10833, 4
      %v10836 = vshll.u32 %v10728, 16
      %v10838 = vrot.slane %v10836, 5
      %v10839 = vsel %vm1268, %v10834, %v10838
      %v10841 = vshrl.u32 %v10729, 16
      %v10843 = vrot.slane %v10841, 4
      %v10844 = vshll.u32 %v10729, 16
      %v10846 = vrot.slane %v10844, 5
      %v10847 = vor.u32 %v10843, %v10846
      %v10848 = vrot.slane %v10847, 4
      %v10850 = vshll.u32 %v10730, 16
      %v10852 = vrot.slane %v10850, 5
      %v10853 = vsel %vm1268, %v10848, %v10852
      %v10854 = vshrl.u32 %v10730, 16
      %v10856 = vrot.slane %v10854, 4
      %v10857 = vor.u32 %v10856, %v10852
      %v10858 = vrot.slane %v10857, 4
      %v10860 = vshll.u32 %v10731, 16
      %v10862 = vrot.slane %v10860, 5
      %v10863 = vsel %vm1268, %v10858, %v10862
      %v10865 = vshrl.u32 %v10732, 16
      %v10867 = vrot.slane %v10865, 4
      %v10868 = vshll.u32 %v10732, 16
      %v10870 = vrot.slane %v10868, 5
      %v10871 = vor.u32 %v10867, %v10870
      %v10872 = vrot.slane %v10871, 4
      %v10874 = vshll.u32 %v10733, 16
      %v10876 = vrot.slane %v10874, 5
      %v10877 = vsel %vm1268, %v10872, %v10876
      %v10878 = vshrl.u32 %v10733, 16
      %v10880 = vrot.slane %v10878, 4
      %v10881 = vor.u32 %v10880, %v10876
      %v10882 = vrot.slane %v10881, 4
      %v10884 = vshll.u32 %v10734, 16
      %v10886 = vrot.slane %v10884, 5
      %v10887 = vsel %vm1268, %v10882, %v10886
      %v10889 = vshrl.u32 %v10735, 16
      %v10891 = vrot.slane %v10889, 4
      %v10892 = vshll.u32 %v10735, 16
      %v10894 = vrot.slane %v10892, 5
      %v10895 = vor.u32 %v10891, %v10894
      %v10896 = vrot.slane %v10895, 4
      %v10898 = vshll.u32 %v10736, 16
      %v10900 = vrot.slane %v10898, 5
      %v10901 = vsel %vm1268, %v10896, %v10900
      %v10902 = vshrl.u32 %v10736, 16
      %v10904 = vrot.slane %v10902, 4
      %v10905 = vor.u32 %v10904, %v10900
      %v10906 = vrot.slane %v10905, 4
      %v10908 = vshll.u32 %v10737, 16
      %v10910 = vrot.slane %v10908, 5
      %v10911 = vsel %vm1268, %v10906, %v10910
      %v10913 = vshrl.u32 %v10738, 16
      %v10915 = vrot.slane %v10913, 4
      %v10916 = vshll.u32 %v10738, 16
      %v10918 = vrot.slane %v10916, 5
      %v10919 = vor.u32 %v10915, %v10918
      %v10920 = vrot.slane %v10919, 4
      %v10922 = vshll.u32 %v10739, 16
      %v10924 = vrot.slane %v10922, 5
      %v10925 = vsel %vm1268, %v10920, %v10924
      %v10926 = vshrl.u32 %v10739, 16
      %v10928 = vrot.slane %v10926, 4
      %v10929 = vor.u32 %v10928, %v10924
      %v10930 = vrot.slane %v10929, 4
      %v10932 = vshll.u32 %v10740, 16
      %v10934 = vrot.slane %v10932, 5
      %v10935 = vsel %vm1268, %v10930, %v10934
      %v10937 = vshrl.u32 %v10741, 16
      %v10939 = vrot.slane %v10937, 4
      %v10940 = vshll.u32 %v10741, 16
      %v10942 = vrot.slane %v10940, 5
      %v10943 = vor.u32 %v10939, %v10942
      %v10944 = vrot.slane %v10943, 4
      %v10946 = vshll.u32 %v10742, 16
      %v10948 = vrot.slane %v10946, 5
      %v10949 = vsel %vm1268, %v10944, %v10948
      %v10950 = vshrl.u32 %v10742, 16
      %v10952 = vrot.slane %v10950, 4
      %v10953 = vor.u32 %v10952, %v10948
      %v10954 = vrot.slane %v10953, 4
      %v10956 = vshll.u32 %v10743, 16
      %v10958 = vrot.slane %v10956, 5
      %v10959 = vsel %vm1268, %v10954, %v10958
      %v10961 = vshrl.u32 %v10744, 16
      %v10963 = vrot.slane %v10961, 4
      %v10964 = vshll.u32 %v10744, 16
      %v10966 = vrot.slane %v10964, 5
      %v10967 = vor.u32 %v10963, %v10966
      %v10968 = vrot.slane %v10967, 4
      %v10970 = vshll.u32 %v10745, 16
      %v10972 = vrot.slane %v10970, 5
      %v10973 = vsel %vm1268, %v10968, %v10972
      %v10974 = vshrl.u32 %v10745, 16
      %v10976 = vrot.slane %v10974, 4
      %v10977 = vor.u32 %v10976, %v10972
      %v10978 = vrot.slane %v10977, 4
      %v10980 = vshll.u32 %v10746, 16
      %v10982 = vrot.slane %v10980, 5
      %v10983 = vsel %vm1268, %v10978, %v10982
      %v10985 = vshrl.u32 %v10747, 16
      %v10987 = vrot.slane %v10985, 4
      %v10988 = vshll.u32 %v10747, 16
      %v10990 = vrot.slane %v10988, 5
      %v10991 = vor.u32 %v10987, %v10990
      %v10992 = vrot.slane %v10991, 4
      %v10994 = vshll.u32 %v10748, 16
      %v10996 = vrot.slane %v10994, 5
      %v10997 = vsel %vm1268, %v10992, %v10996
      %v10998 = vshrl.u32 %v10748, 16
      %v11000 = vrot.slane %v10998, 4
      %v11001 = vor.u32 %v11000, %v10996
      %v11002 = vrot.slane %v11001, 4
      %v11004 = vshll.u32 %v10749, 16
      %v11006 = vrot.slane %v11004, 5
      %v11007 = vsel %vm1268, %v11002, %v11006
      %v11009 = vshrl.u32 %v10750, 16
      %v11011 = vrot.slane %v11009, 4
      %v11012 = vshll.u32 %v10750, 16
      %v11014 = vrot.slane %v11012, 5
      %v11015 = vor.u32 %v11011, %v11014
      %v11016 = vrot.slane %v11015, 4
      %v11018 = vshll.u32 %v10751, 16
      %v11020 = vrot.slane %v11018, 5
      %v11021 = vsel %vm1268, %v11016, %v11020
      %v11022 = vshrl.u32 %v10751, 16
      %v11024 = vrot.slane %v11022, 4
      %v11025 = vor.u32 %v11024, %v11020
      %v11026 = vrot.slane %v11025, 4
      %v11028 = vshll.u32 %v10752, 16
      %v11030 = vrot.slane %v11028, 5
      %v11031 = vsel %vm1268, %v11026, %v11030
      %v11033 = vshrl.u32 %v10753, 16
      %v11035 = vrot.slane %v11033, 4
      %v11036 = vshll.u32 %v10753, 16
      %v11038 = vrot.slane %v11036, 5
      %v11039 = vor.u32 %v11035, %v11038
      %v11040 = vrot.slane %v11039, 4
      %v11042 = vshll.u32 %v10754, 16
      %v11044 = vrot.slane %v11042, 5
      %v11045 = vsel %vm1268, %v11040, %v11044
      %v11046 = vshrl.u32 %v10754, 16
      %v11048 = vrot.slane %v11046, 4
      %v11049 = vor.u32 %v11048, %v11044
      %v11050 = vrot.slane %v11049, 4
      %v11052 = vshll.u32 %v10755, 16
      %v11054 = vrot.slane %v11052, 5
      %v11055 = vsel %vm1268, %v11050, %v11054
      %v11057 = vshrl.u32 %v10756, 16
      %v11059 = vrot.slane %v11057, 4
      %v11060 = vshll.u32 %v10756, 16
      %v11062 = vrot.slane %v11060, 5
      %v11063 = vor.u32 %v11059, %v11062
      %v11064 = vrot.slane %v11063, 4
      %v11066 = vshll.u32 %v10757, 16
      %v11068 = vrot.slane %v11066, 5
      %v11069 = vsel %vm1268, %v11064, %v11068
      %v11070 = vshrl.u32 %v10757, 16
      %v11072 = vrot.slane %v11070, 4
      %v11073 = vor.u32 %v11072, %v11068
      %v11074 = vrot.slane %v11073, 4
      %v11076 = vshll.u32 %v10758, 16
      %v11078 = vrot.slane %v11076, 5
      %v11079 = vsel %vm1268, %v11074, %v11078
      %v11081 = vshrl.u32 %v10759, 16
      %v11083 = vrot.slane %v11081, 4
      %v11084 = vshll.u32 %v10759, 16
      %v11086 = vrot.slane %v11084, 5
      %v11087 = vor.u32 %v11083, %v11086
      %v11088 = vrot.slane %v11087, 4
      %v11090 = vshll.u32 %v10760, 16
      %v11092 = vrot.slane %v11090, 5
      %v11093 = vsel %vm1268, %v11088, %v11092
      %v11094 = vshrl.u32 %v10760, 16
      %v11096 = vrot.slane %v11094, 4
      %v11097 = vor.u32 %v11096, %v11092
      %v11098 = vrot.slane %v11097, 4
      %v11100 = vshll.u32 %v10761, 16
      %v11102 = vrot.slane %v11100, 5
      %v11103 = vsel %vm1268, %v11098, %v11102
      %v11105 = vshrl.u32 %v10762, 16
      %v11107 = vrot.slane %v11105, 4
      %v11108 = vshll.u32 %v10762, 16
      %v11110 = vrot.slane %v11108, 5
      %v11111 = vor.u32 %v11107, %v11110
      %v11112 = vrot.slane %v11111, 4
      %v11114 = vshll.u32 %v10763, 16
      %v11116 = vrot.slane %v11114, 5
      %v11117 = vsel %vm1268, %v11112, %v11116
      %v11118 = vshrl.u32 %v10763, 16
      %v11120 = vrot.slane %v11118, 4
      %v11121 = vor.u32 %v11120, %v11116
      %v11122 = vrot.slane %v11121, 4
      %v11124 = vshll.u32 %v10764, 16
      %v11126 = vrot.slane %v11124, 5
      %v11127 = vsel %vm1268, %v11122, %v11126
      %v11129 = vshrl.u32 %v10765, 16
      %v11131 = vrot.slane %v11129, 4
      %v11132 = vshll.u32 %v10765, 16
      %v11134 = vrot.slane %v11132, 5
      %v11135 = vor.u32 %v11131, %v11134
      %v11136 = vrot.slane %v11135, 4
      %v11138 = vshll.u32 %v10766, 16
      %v11140 = vrot.slane %v11138, 5
      %v11141 = vsel %vm1268, %v11136, %v11140
      %v11142 = vshrl.u32 %v10766, 16
      %v11144 = vrot.slane %v11142, 4
      %v11145 = vor.u32 %v11144, %v11140
      %v11146 = vrot.slane %v11145, 4
      %v11148 = vshll.u32 %v10767, 16
      %v11150 = vrot.slane %v11148, 5
      %v11151 = vsel %vm1268, %v11146, %v11150
      %s11152 = scalar_lea.vmem %s2, 14
      %v11153 = vld [vmem:[%s11152] sm:$0x3]
      %v11154 = vunpack.c.l.b16 %v10781
      %v11155 = vunpack.c.l.b16 %v10791
      %v11156 = vunpack.c.l.b16 %v10805
      %v11157 = vunpack.c.l.b16 %v10815
      %v11158 = vunpack.c.l.b16 %v10829
      %v11159 = vunpack.c.l.b16 %v10839
      %v11160 = vunpack.c.l.b16 %v10853
      %v11161 = vunpack.c.l.b16 %v10863
      %v11162 = vunpack.c.l.b16 %v10877
      %v11163 = vunpack.c.l.b16 %v10887
      %v11164 = vunpack.c.l.b16 %v10901
      %v11165 = vunpack.c.l.b16 %v10911
      %v11166 = vunpack.c.l.b16 %v10925
      %v11167 = vunpack.c.l.b16 %v10935
      %v11168 = vunpack.c.l.b16 %v10949
      %v11169 = vunpack.c.l.b16 %v10959
      %v11170 = vunpack.c.l.b16 %v10973
      %v11171 = vunpack.c.l.b16 %v10983
      %v11172 = vunpack.c.l.b16 %v10997
      %v11173 = vunpack.c.l.b16 %v11007
      %v11174 = vunpack.c.l.b16 %v11021
      %v11175 = vunpack.c.l.b16 %v11031
      %v11176 = vunpack.c.l.b16 %v11045
      %v11177 = vunpack.c.l.b16 %v11055
      %v11178 = vunpack.c.l.b16 %v11069
      %v11179 = vunpack.c.l.b16 %v11079
      %v11180 = vunpack.c.l.b16 %v11093
      %v11181 = vunpack.c.l.b16 %v11103
      %v11182 = vunpack.c.l.b16 %v11117
      %v11183 = vunpack.c.l.b16 %v11127
      %v11184 = vunpack.c.l.b16 %v11141
      %v11185 = vunpack.c.l.b16 %v11151
      %v11186 = vpack.c.b16 %v11155, %v11154
      %v11187 = vpack.c.b16 %v11157, %v11156
      %v11188 = vpack.c.b16 %v11159, %v11158
      %v11189 = vpack.c.b16 %v11161, %v11160
      %v11190 = vpack.c.b16 %v11163, %v11162
      %v11191 = vpack.c.b16 %v11165, %v11164
      %v11192 = vpack.c.b16 %v11167, %v11166
      %v11193 = vpack.c.b16 %v11169, %v11168
      %v11194 = vpack.c.b16 %v11171, %v11170
      %v11195 = vpack.c.b16 %v11173, %v11172
      %v11196 = vpack.c.b16 %v11175, %v11174
      %v11197 = vpack.c.b16 %v11177, %v11176
      %v11198 = vpack.c.b16 %v11179, %v11178
      %v11199 = vpack.c.b16 %v11181, %v11180
      %v11200 = vpack.c.b16 %v11183, %v11182
      %v11201 = vpack.c.b16 %v11185, %v11184
      %v11203 = vsel %vm972, %v11186, 0
      %v11206 = vsel %vm972, %v11187, 0
      %v11209 = vsel %vm972, %v11188, 0
      %v11212 = vsel %vm972, %v11189, 0
      %v11215 = vsel %vm972, %v11190, 0
      %v11218 = vsel %vm972, %v11191, 0
      %v11221 = vsel %vm972, %v11192, 0
      %v11224 = vsel %vm972, %v11193, 0
      %v11227 = vsel %vm972, %v11194, 0
      %v11230 = vsel %vm972, %v11195, 0
      %v11233 = vsel %vm972, %v11196, 0
      %v11236 = vsel %vm972, %v11197, 0
      %v11239 = vsel %vm972, %v11198, 0
      %v11242 = vsel %vm972, %v11199, 0
      %v11245 = vsel %vm972, %v11200, 0
      %v11248 = vsel %vm972, %v11201, 0
      %v11251 = vsel %vm1021, %v11153, 0
      %11253 = vmatprep.subr.bf16.mxu0 0
      %11254 = vmatpush1.bf16.msra.mxu0 0
      %11255 = vmatprep.subr.bf16.mxu0 0
      %11256 = vmatpush1.bf16.msra.mxu0 0
      %11257 = vmatprep.subr.bf16.mxu0 0
      %11258 = vmatpush1.bf16.msra.mxu0 0
      %11259 = vmatprep.subr.bf16.mxu0 0
      %11260 = vmatpush1.bf16.msra.mxu0 0
      %11261 = vmatprep.subr.bf16.mxu0 0
      %11262 = vmatpush1.bf16.msra.mxu0 0
      %11263 = vmatprep.subr.bf16.mxu0 0
      %11264 = vmatpush1.bf16.msra.mxu0 0
      %11265 = vmatprep.subr.bf16.mxu0 0
      %11266 = vmatpush1.bf16.msra.mxu0 0
      %11267 = vmatprep.subr.bf16.mxu0 0
      %11268 = vmatpush1.bf16.msra.mxu0 %v11251
      %11269 = vmatprep.subr.bf16.mxu0 0
      %11270 = vmatpush2.bf16.msra.mxu0 0
      %11271 = vmatprep.subr.bf16.mxu0 0
      %11272 = vmatpush2.bf16.msra.mxu0 0
      %11273 = vmatprep.subr.bf16.mxu0 0
      %11274 = vmatpush2.bf16.msra.mxu0 0
      %11275 = vmatprep.subr.bf16.mxu0 0
      %11276 = vmatpush2.bf16.msra.mxu0 0
      %11277 = vmatprep.subr.bf16.mxu0 0
      %11278 = vmatpush2.bf16.msra.mxu0 0
      %11279 = vmatprep.subr.bf16.mxu0 0
      %11280 = vmatpush2.bf16.msra.mxu0 0
      %11281 = vmatprep.subr.bf16.mxu0 0
      %11282 = vmatpush2.bf16.msra.mxu0 0
      %11283 = vmatprep.subr.bf16.mxu0 0
      %11284 = vmatpush2.bf16.msra.mxu0 0
      %11285 = vmatprep.mubr.bf16.mxu0 0
      %11286 = vmatmul.mubr.bf16.gmra.mxu0 %v11203
      %v11287 = vpop.f32.mrf.mxu0
      %v11288 = vadd.f32 0.0, %v11287
      %v11289 = vpop.f32.mrf.mxu0
      %v11290 = vpop.f32.mrf.mxu0
      %v11291 = vadd.f32 0.0, %v11290
      %v11292 = vpop.f32.mrf.mxu0
      %11293 = vmatprep.mubr.bf16.mxu0 0
      %11294 = vmatmul.mubr.bf16.gmra.mxu0 %v11206
      %v11295 = vpop.f32.mrf.mxu0
      %v11296 = vadd.f32 0.0, %v11295
      %v11297 = vpop.f32.mrf.mxu0
      %v11298 = vpop.f32.mrf.mxu0
      %v11299 = vadd.f32 0.0, %v11298
      %v11300 = vpop.f32.mrf.mxu0
      %11301 = vmatprep.mubr.bf16.mxu0 0
      %11302 = vmatmul.mubr.bf16.gmra.mxu0 %v11209
      %v11303 = vpop.f32.mrf.mxu0
      %v11304 = vadd.f32 0.0, %v11303
      %v11305 = vpop.f32.mrf.mxu0
      %v11306 = vpop.f32.mrf.mxu0
      %v11307 = vadd.f32 0.0, %v11306
      %v11308 = vpop.f32.mrf.mxu0
      %11309 = vmatprep.mubr.bf16.mxu0 0
      %11310 = vmatmul.mubr.bf16.gmra.mxu0 %v11212
      %v11311 = vpop.f32.mrf.mxu0
      %v11312 = vadd.f32 0.0, %v11311
      %v11313 = vpop.f32.mrf.mxu0
      %v11314 = vpop.f32.mrf.mxu0
      %v11315 = vadd.f32 0.0, %v11314
      %v11316 = vpop.f32.mrf.mxu0
      %11317 = vmatprep.mubr.bf16.mxu0 0
      %11318 = vmatmul.mubr.bf16.gmra.mxu0 %v11215
      %v11319 = vpop.f32.mrf.mxu0
      %v11320 = vadd.f32 0.0, %v11319
      %v11321 = vpop.f32.mrf.mxu0
      %v11322 = vpop.f32.mrf.mxu0
      %v11323 = vadd.f32 0.0, %v11322
      %v11324 = vpop.f32.mrf.mxu0
      %11325 = vmatprep.mubr.bf16.mxu0 0
      %11326 = vmatmul.mubr.bf16.gmra.mxu0 %v11218
      %v11327 = vpop.f32.mrf.mxu0
      %v11328 = vadd.f32 0.0, %v11327
      %v11329 = vpop.f32.mrf.mxu0
      %v11330 = vpop.f32.mrf.mxu0
      %v11331 = vadd.f32 0.0, %v11330
      %v11332 = vpop.f32.mrf.mxu0
      %11333 = vmatprep.mubr.bf16.mxu0 0
      %11334 = vmatmul.mubr.bf16.gmra.mxu0 %v11221
      %v11335 = vpop.f32.mrf.mxu0
      %v11336 = vadd.f32 0.0, %v11335
      %v11337 = vpop.f32.mrf.mxu0
      %v11338 = vpop.f32.mrf.mxu0
      %v11339 = vadd.f32 0.0, %v11338
      %v11340 = vpop.f32.mrf.mxu0
      %11341 = vmatprep.mubr.bf16.mxu0 0
      %11342 = vmatmul.mubr.bf16.gmra.mxu0 %v11224
      %v11343 = vpop.f32.mrf.mxu0
      %v11344 = vadd.f32 0.0, %v11343
      %v11345 = vpop.f32.mrf.mxu0
      %v11346 = vpop.f32.mrf.mxu0
      %v11347 = vadd.f32 0.0, %v11346
      %v11348 = vpop.f32.mrf.mxu0
      %11349 = vmatprep.mubr.bf16.mxu0 0
      %11350 = vmatmul.mubr.bf16.gmra.mxu0 %v11227
      %v11351 = vpop.f32.mrf.mxu0
      %v11352 = vadd.f32 0.0, %v11351
      %v11353 = vpop.f32.mrf.mxu0
      %v11354 = vpop.f32.mrf.mxu0
      %v11355 = vadd.f32 0.0, %v11354
      %v11356 = vpop.f32.mrf.mxu0
      %11357 = vmatprep.mubr.bf16.mxu0 0
      %11358 = vmatmul.mubr.bf16.gmra.mxu0 %v11230
      %v11359 = vpop.f32.mrf.mxu0
      %v11360 = vadd.f32 0.0, %v11359
      %v11361 = vpop.f32.mrf.mxu0
      %v11362 = vpop.f32.mrf.mxu0
      %v11363 = vadd.f32 0.0, %v11362
      %v11364 = vpop.f32.mrf.mxu0
      %11365 = vmatprep.mubr.bf16.mxu0 0
      %11366 = vmatmul.mubr.bf16.gmra.mxu0 %v11233
      %v11367 = vpop.f32.mrf.mxu0
      %v11368 = vadd.f32 0.0, %v11367
      %v11369 = vpop.f32.mrf.mxu0
      %v11370 = vpop.f32.mrf.mxu0
      %v11371 = vadd.f32 0.0, %v11370
      %v11372 = vpop.f32.mrf.mxu0
      %11373 = vmatprep.mubr.bf16.mxu0 0
      %11374 = vmatmul.mubr.bf16.gmra.mxu0 %v11236
      %v11375 = vpop.f32.mrf.mxu0
      %v11376 = vadd.f32 0.0, %v11375
      %v11377 = vpop.f32.mrf.mxu0
      %v11378 = vpop.f32.mrf.mxu0
      %v11379 = vadd.f32 0.0, %v11378
      %v11380 = vpop.f32.mrf.mxu0
      %11381 = vmatprep.mubr.bf16.mxu0 0
      %11382 = vmatmul.mubr.bf16.gmra.mxu0 %v11239
      %v11383 = vpop.f32.mrf.mxu0
      %v11384 = vadd.f32 0.0, %v11383
      %v11385 = vpop.f32.mrf.mxu0
      %v11386 = vpop.f32.mrf.mxu0
      %v11387 = vadd.f32 0.0, %v11386
      %v11388 = vpop.f32.mrf.mxu0
      %11389 = vmatprep.mubr.bf16.mxu0 0
      %11390 = vmatmul.mubr.bf16.gmra.mxu0 %v11242
      %v11391 = vpop.f32.mrf.mxu0
      %v11392 = vadd.f32 0.0, %v11391
      %v11393 = vpop.f32.mrf.mxu0
      %v11394 = vpop.f32.mrf.mxu0
      %v11395 = vadd.f32 0.0, %v11394
      %v11396 = vpop.f32.mrf.mxu0
      %11397 = vmatprep.mubr.bf16.mxu0 0
      %11398 = vmatmul.mubr.bf16.gmra.mxu0 %v11245
      %v11399 = vpop.f32.mrf.mxu0
      %v11400 = vadd.f32 0.0, %v11399
      %v11401 = vpop.f32.mrf.mxu0
      %v11402 = vpop.f32.mrf.mxu0
      %v11403 = vadd.f32 0.0, %v11402
      %v11404 = vpop.f32.mrf.mxu0
      %11405 = vmatprep.mubr.bf16.mxu0 0
      %11406 = vmatmul.mubr.bf16.gmra.mxu0 %v11248
      %v11407 = vpop.f32.mrf.mxu0
      %v11408 = vadd.f32 0.0, %v11407
      %v11409 = vpop.f32.mrf.mxu0
      %v11410 = vpop.f32.mrf.mxu0
      %v11411 = vadd.f32 0.0, %v11410
      %v11412 = vpop.f32.mrf.mxu0
      %11413 = vdwg.mxu0
      %v11414 = vld [vmem:[#allocation3] sm:$0xff]
      %v11415 = vld [vmem:[#allocation3 + $0x8] sm:$0xff]
      %v11416 = vld [vmem:[#allocation3 + $0x10] sm:$0xff]
      %v11417 = vld [vmem:[#allocation3 + $0x18] sm:$0xff]
      %v11418 = vld [vmem:[#allocation3 + $0x20] sm:$0xff]
      %v11419 = vld [vmem:[#allocation3 + $0x28] sm:$0xff]
      %v11420 = vld [vmem:[#allocation3 + $0x30] sm:$0xff]
      %v11421 = vld [vmem:[#allocation3 + $0x38] sm:$0xff]
      %v11422 = vld [vmem:[#allocation3 + $0x40] sm:$0xff]
      %v11423 = vld [vmem:[#allocation3 + $0x48] sm:$0xff]
      %v11424 = vld [vmem:[#allocation3 + $0x50] sm:$0xff]
      %v11425 = vld [vmem:[#allocation3 + $0x58] sm:$0xff]
      %v11426 = vld [vmem:[#allocation3 + $0x60] sm:$0xff]
      %v11427 = vld [vmem:[#allocation3 + $0x68] sm:$0xff]
      %v11428 = vld [vmem:[#allocation3 + $0x70] sm:$0xff]
      %v11429 = vld [vmem:[#allocation3 + $0x78] sm:$0xff]
      %v11430 = vld [vmem:[#allocation3 + $0x80] sm:$0xff]
      %v11431 = vld [vmem:[#allocation3 + $0x88] sm:$0xff]
      %v11432 = vld [vmem:[#allocation3 + $0x90] sm:$0xff]
      %v11433 = vld [vmem:[#allocation3 + $0x98] sm:$0xff]
      %v11434 = vld [vmem:[#allocation3 + $0xa0] sm:$0xff]
      %v11435 = vld [vmem:[#allocation3 + $0xa8] sm:$0xff]
      %v11436 = vld [vmem:[#allocation3 + $0xb0] sm:$0xff]
      %v11437 = vld [vmem:[#allocation3 + $0xb8] sm:$0xff]
      %v11438 = vld [vmem:[#allocation3 + $0xc0] sm:$0xff]
      %v11439 = vld [vmem:[#allocation3 + $0xc8] sm:$0xff]
      %v11440 = vld [vmem:[#allocation3 + $0xd0] sm:$0xff]
      %v11441 = vld [vmem:[#allocation3 + $0xd8] sm:$0xff]
      %v11442 = vld [vmem:[#allocation3 + $0xe0] sm:$0xff]
      %v11443 = vld [vmem:[#allocation3 + $0xe8] sm:$0xff]
      %v11444 = vld [vmem:[#allocation3 + $0xf0] sm:$0xff]
      %v11445 = vld [vmem:[#allocation3 + $0xf8] sm:$0xff]
      %v11446 = vadd.f32 %v11414, %v11288
      %v11447 = vadd.f32 %v11415, %v11291
      %v11448 = vadd.f32 %v11416, %v11296
      %v11449 = vadd.f32 %v11417, %v11299
      %v11450 = vadd.f32 %v11418, %v11304
      %v11451 = vadd.f32 %v11419, %v11307
      %v11452 = vadd.f32 %v11420, %v11312
      %v11453 = vadd.f32 %v11421, %v11315
      %v11454 = vadd.f32 %v11422, %v11320
      %v11455 = vadd.f32 %v11423, %v11323
      %v11456 = vadd.f32 %v11424, %v11328
      %v11457 = vadd.f32 %v11425, %v11331
      %v11458 = vadd.f32 %v11426, %v11336
      %v11459 = vadd.f32 %v11427, %v11339
      %v11460 = vadd.f32 %v11428, %v11344
      %v11461 = vadd.f32 %v11429, %v11347
      %v11462 = vadd.f32 %v11430, %v11352
      %v11463 = vadd.f32 %v11431, %v11355
      %v11464 = vadd.f32 %v11432, %v11360
      %v11465 = vadd.f32 %v11433, %v11363
      %v11466 = vadd.f32 %v11434, %v11368
      %v11467 = vadd.f32 %v11435, %v11371
      %v11468 = vadd.f32 %v11436, %v11376
      %v11469 = vadd.f32 %v11437, %v11379
      %v11470 = vadd.f32 %v11438, %v11384
      %v11471 = vadd.f32 %v11439, %v11387
      %v11472 = vadd.f32 %v11440, %v11392
      %v11473 = vadd.f32 %v11441, %v11395
      %v11474 = vadd.f32 %v11442, %v11400
      %v11475 = vadd.f32 %v11443, %v11403
      %v11476 = vadd.f32 %v11444, %v11408
      %v11477 = vadd.f32 %v11445, %v11411
      %11478 = vst.msk [vmem:[#allocation3] sm:$0xff] %vm972, %v11446
      %11479 = vst.msk [vmem:[#allocation3 + $0x8] sm:$0xff] %vm972, %v11447
      %11480 = vst.msk [vmem:[#allocation3 + $0x10] sm:$0xff] %vm972, %v11448
      %11481 = vst.msk [vmem:[#allocation3 + $0x18] sm:$0xff] %vm972, %v11449
      %11482 = vst.msk [vmem:[#allocation3 + $0x20] sm:$0xff] %vm972, %v11450
      %11483 = vst.msk [vmem:[#allocation3 + $0x28] sm:$0xff] %vm972, %v11451
      %11484 = vst.msk [vmem:[#allocation3 + $0x30] sm:$0xff] %vm972, %v11452
      %11485 = vst.msk [vmem:[#allocation3 + $0x38] sm:$0xff] %vm972, %v11453
      %11486 = vst.msk [vmem:[#allocation3 + $0x40] sm:$0xff] %vm972, %v11454
      %11487 = vst.msk [vmem:[#allocation3 + $0x48] sm:$0xff] %vm972, %v11455
      %11488 = vst.msk [vmem:[#allocation3 + $0x50] sm:$0xff] %vm972, %v11456
      %11489 = vst.msk [vmem:[#allocation3 + $0x58] sm:$0xff] %vm972, %v11457
      %11490 = vst.msk [vmem:[#allocation3 + $0x60] sm:$0xff] %vm972, %v11458
      %11491 = vst.msk [vmem:[#allocation3 + $0x68] sm:$0xff] %vm972, %v11459
      %11492 = vst.msk [vmem:[#allocation3 + $0x70] sm:$0xff] %vm972, %v11460
      %11493 = vst.msk [vmem:[#allocation3 + $0x78] sm:$0xff] %vm972, %v11461
      %11494 = vst.msk [vmem:[#allocation3 + $0x80] sm:$0xff] %vm972, %v11462
      %11495 = vst.msk [vmem:[#allocation3 + $0x88] sm:$0xff] %vm972, %v11463
      %11496 = vst.msk [vmem:[#allocation3 + $0x90] sm:$0xff] %vm972, %v11464
      %11497 = vst.msk [vmem:[#allocation3 + $0x98] sm:$0xff] %vm972, %v11465
      %11498 = vst.msk [vmem:[#allocation3 + $0xa0] sm:$0xff] %vm972, %v11466
      %11499 = vst.msk [vmem:[#allocation3 + $0xa8] sm:$0xff] %vm972, %v11467
      %11500 = vst.msk [vmem:[#allocation3 + $0xb0] sm:$0xff] %vm972, %v11468
      %11501 = vst.msk [vmem:[#allocation3 + $0xb8] sm:$0xff] %vm972, %v11469
      %11502 = vst.msk [vmem:[#allocation3 + $0xc0] sm:$0xff] %vm972, %v11470
      %11503 = vst.msk [vmem:[#allocation3 + $0xc8] sm:$0xff] %vm972, %v11471
      %11504 = vst.msk [vmem:[#allocation3 + $0xd0] sm:$0xff] %vm972, %v11472
      %11505 = vst.msk [vmem:[#allocation3 + $0xd8] sm:$0xff] %vm972, %v11473
      %11506 = vst.msk [vmem:[#allocation3 + $0xe0] sm:$0xff] %vm972, %v11474
      %11507 = vst.msk [vmem:[#allocation3 + $0xe8] sm:$0xff] %vm972, %v11475
      %11508 = vst.msk [vmem:[#allocation3 + $0xf0] sm:$0xff] %vm972, %v11476
      %11509 = vst.msk [vmem:[#allocation3 + $0xf8] sm:$0xff] %vm972, %v11477
      %v11510 = vld [vmem:[%s4358] sm:$0xe]
      %v11511 = vld [vmem:[%s4358 + $0x4] sm:$0xf]
      %v11512 = vld [vmem:[%s4358 + $0x8] sm:$0x1]
      %v11513 = vld [vmem:[%s4358 + $0xc] sm:$0xe]
      %v11514 = vld [vmem:[%s4358 + $0x10] sm:$0xf]
      %v11515 = vld [vmem:[%s4358 + $0x14] sm:$0x1]
      %v11516 = vld [vmem:[%s4358 + $0x18] sm:$0xe]
      %v11517 = vld [vmem:[%s4358 + $0x1c] sm:$0xf]
      %v11518 = vld [vmem:[%s4358 + $0x20] sm:$0x1]
      %v11519 = vld [vmem:[%s4358 + $0x24] sm:$0xe]
      %v11520 = vld [vmem:[%s4358 + $0x28] sm:$0xf]
      %v11521 = vld [vmem:[%s4358 + $0x2c] sm:$0x1]
      %v11522 = vld [vmem:[%s4358 + $0x30] sm:$0xe]
      %v11523 = vld [vmem:[%s4358 + $0x34] sm:$0xf]
      %v11524 = vld [vmem:[%s4358 + $0x38] sm:$0x1]
      %v11525 = vld [vmem:[%s4358 + $0x3c] sm:$0xe]
      %v11526 = vld [vmem:[%s4358 + $0x40] sm:$0xf]
      %v11527 = vld [vmem:[%s4358 + $0x44] sm:$0x1]
      %v11528 = vld [vmem:[%s4358 + $0x48] sm:$0xe]
      %v11529 = vld [vmem:[%s4358 + $0x4c] sm:$0xf]
      %v11530 = vld [vmem:[%s4358 + $0x50] sm:$0x1]
      %v11531 = vld [vmem:[%s4358 + $0x54] sm:$0xe]
      %v11532 = vld [vmem:[%s4358 + $0x58] sm:$0xf]
      %v11533 = vld [vmem:[%s4358 + $0x5c] sm:$0x1]
      %v11534 = vld [vmem:[%s4358 + $0x60] sm:$0xe]
      %v11535 = vld [vmem:[%s4358 + $0x64] sm:$0xf]
      %v11536 = vld [vmem:[%s4358 + $0x68] sm:$0x1]
      %v11537 = vld [vmem:[%s4358 + $0x6c] sm:$0xe]
      %v11538 = vld [vmem:[%s4358 + $0x70] sm:$0xf]
      %v11539 = vld [vmem:[%s4358 + $0x74] sm:$0x1]
      %v11540 = vld [vmem:[%s4358 + $0x78] sm:$0xe]
      %v11541 = vld [vmem:[%s4358 + $0x7c] sm:$0xf]
      %v11542 = vld [vmem:[%s4358 + $0x80] sm:$0x1]
      %v11543 = vld [vmem:[%s4358 + $0x84] sm:$0xe]
      %v11544 = vld [vmem:[%s4358 + $0x88] sm:$0xf]
      %v11545 = vld [vmem:[%s4358 + $0x8c] sm:$0x1]
      %v11546 = vld [vmem:[%s4358 + $0x90] sm:$0xe]
      %v11547 = vld [vmem:[%s4358 + $0x94] sm:$0xf]
      %v11548 = vld [vmem:[%s4358 + $0x98] sm:$0x1]
      %v11549 = vld [vmem:[%s4358 + $0x9c] sm:$0xe]
      %v11550 = vld [vmem:[%s4358 + $0xa0] sm:$0xf]
      %v11551 = vld [vmem:[%s4358 + $0xa4] sm:$0x1]
      %v11552 = vld [vmem:[%s4358 + $0xa8] sm:$0xe]
      %v11553 = vld [vmem:[%s4358 + $0xac] sm:$0xf]
      %v11554 = vld [vmem:[%s4358 + $0xb0] sm:$0x1]
      %v11555 = vld [vmem:[%s4358 + $0xb4] sm:$0xe]
      %v11556 = vld [vmem:[%s4358 + $0xb8] sm:$0xf]
      %v11557 = vld [vmem:[%s4358 + $0xbc] sm:$0x1]
      %v11606 = vrot.slane %v11510, 5
      %v11607 = vrot.slane %v11606, 4
      %v11608 = vrot.slane %v11511, 5
      %v11609 = vsel %vm2109, %v11607, %v11608
      %v11610 = vrot.slane %v11608, 4
      %v11611 = vrot.slane %v11512, 5
      %v11612 = vsel %vm2109, %v11610, %v11611
      %v11613 = vrot.slane %v11513, 5
      %v11614 = vrot.slane %v11613, 4
      %v11615 = vrot.slane %v11514, 5
      %v11616 = vsel %vm2109, %v11614, %v11615
      %v11617 = vrot.slane %v11615, 4
      %v11618 = vrot.slane %v11515, 5
      %v11619 = vsel %vm2109, %v11617, %v11618
      %v11620 = vrot.slane %v11516, 5
      %v11621 = vrot.slane %v11620, 4
      %v11622 = vrot.slane %v11517, 5
      %v11623 = vsel %vm2109, %v11621, %v11622
      %v11624 = vrot.slane %v11622, 4
      %v11625 = vrot.slane %v11518, 5
      %v11626 = vsel %vm2109, %v11624, %v11625
      %v11627 = vrot.slane %v11519, 5
      %v11628 = vrot.slane %v11627, 4
      %v11629 = vrot.slane %v11520, 5
      %v11630 = vsel %vm2109, %v11628, %v11629
      %v11631 = vrot.slane %v11629, 4
      %v11632 = vrot.slane %v11521, 5
      %v11633 = vsel %vm2109, %v11631, %v11632
      %v11634 = vrot.slane %v11522, 5
      %v11635 = vrot.slane %v11634, 4
      %v11636 = vrot.slane %v11523, 5
      %v11637 = vsel %vm2109, %v11635, %v11636
      %v11638 = vrot.slane %v11636, 4
      %v11639 = vrot.slane %v11524, 5
      %v11640 = vsel %vm2109, %v11638, %v11639
      %v11641 = vrot.slane %v11525, 5
      %v11642 = vrot.slane %v11641, 4
      %v11643 = vrot.slane %v11526, 5
      %v11644 = vsel %vm2109, %v11642, %v11643
      %v11645 = vrot.slane %v11643, 4
      %v11646 = vrot.slane %v11527, 5
      %v11647 = vsel %vm2109, %v11645, %v11646
      %v11648 = vrot.slane %v11528, 5
      %v11649 = vrot.slane %v11648, 4
      %v11650 = vrot.slane %v11529, 5
      %v11651 = vsel %vm2109, %v11649, %v11650
      %v11652 = vrot.slane %v11650, 4
      %v11653 = vrot.slane %v11530, 5
      %v11654 = vsel %vm2109, %v11652, %v11653
      %v11655 = vrot.slane %v11531, 5
      %v11656 = vrot.slane %v11655, 4
      %v11657 = vrot.slane %v11532, 5
      %v11658 = vsel %vm2109, %v11656, %v11657
      %v11659 = vrot.slane %v11657, 4
      %v11660 = vrot.slane %v11533, 5
      %v11661 = vsel %vm2109, %v11659, %v11660
      %v11662 = vrot.slane %v11534, 5
      %v11663 = vrot.slane %v11662, 4
      %v11664 = vrot.slane %v11535, 5
      %v11665 = vsel %vm2109, %v11663, %v11664
      %v11666 = vrot.slane %v11664, 4
      %v11667 = vrot.slane %v11536, 5
      %v11668 = vsel %vm2109, %v11666, %v11667
      %v11669 = vrot.slane %v11537, 5
      %v11670 = vrot.slane %v11669, 4
      %v11671 = vrot.slane %v11538, 5
      %v11672 = vsel %vm2109, %v11670, %v11671
      %v11673 = vrot.slane %v11671, 4
      %v11674 = vrot.slane %v11539, 5
      %v11675 = vsel %vm2109, %v11673, %v11674
      %v11676 = vrot.slane %v11540, 5
      %v11677 = vrot.slane %v11676, 4
      %v11678 = vrot.slane %v11541, 5
      %v11679 = vsel %vm2109, %v11677, %v11678
      %v11680 = vrot.slane %v11678, 4
      %v11681 = vrot.slane %v11542, 5
      %v11682 = vsel %vm2109, %v11680, %v11681
      %v11683 = vrot.slane %v11543, 5
      %v11684 = vrot.slane %v11683, 4
      %v11685 = vrot.slane %v11544, 5
      %v11686 = vsel %vm2109, %v11684, %v11685
      %v11687 = vrot.slane %v11685, 4
      %v11688 = vrot.slane %v11545, 5
      %v11689 = vsel %vm2109, %v11687, %v11688
      %v11690 = vrot.slane %v11546, 5
      %v11691 = vrot.slane %v11690, 4
      %v11692 = vrot.slane %v11547, 5
      %v11693 = vsel %vm2109, %v11691, %v11692
      %v11694 = vrot.slane %v11692, 4
      %v11695 = vrot.slane %v11548, 5
      %v11696 = vsel %vm2109, %v11694, %v11695
      %v11697 = vrot.slane %v11549, 5
      %v11698 = vrot.slane %v11697, 4
      %v11699 = vrot.slane %v11550, 5
      %v11700 = vsel %vm2109, %v11698, %v11699
      %v11701 = vrot.slane %v11699, 4
      %v11702 = vrot.slane %v11551, 5
      %v11703 = vsel %vm2109, %v11701, %v11702
      %v11704 = vrot.slane %v11552, 5
      %v11705 = vrot.slane %v11704, 4
      %v11706 = vrot.slane %v11553, 5
      %v11707 = vsel %vm2109, %v11705, %v11706
      %v11708 = vrot.slane %v11706, 4
      %v11709 = vrot.slane %v11554, 5
      %v11710 = vsel %vm2109, %v11708, %v11709
      %v11711 = vrot.slane %v11555, 5
      %v11712 = vrot.slane %v11711, 4
      %v11713 = vrot.slane %v11556, 5
      %v11714 = vsel %vm2109, %v11712, %v11713
      %v11715 = vrot.slane %v11713, 4
      %v11716 = vrot.slane %v11557, 5
      %v11717 = vsel %vm2109, %v11715, %v11716
      %s11718 = scalar_lea.vmem %s2, 16
      %v11719 = vld [vmem:[%s11718] sm:$0x3]
      %v11720 = vunpack.c.l.b16 %v11609
      %v11721 = vunpack.c.l.b16 %v11612
      %v11722 = vunpack.c.l.b16 %v11616
      %v11723 = vunpack.c.l.b16 %v11619
      %v11724 = vunpack.c.l.b16 %v11623
      %v11725 = vunpack.c.l.b16 %v11626
      %v11726 = vunpack.c.l.b16 %v11630
      %v11727 = vunpack.c.l.b16 %v11633
      %v11728 = vunpack.c.l.b16 %v11637
      %v11729 = vunpack.c.l.b16 %v11640
      %v11730 = vunpack.c.l.b16 %v11644
      %v11731 = vunpack.c.l.b16 %v11647
      %v11732 = vunpack.c.l.b16 %v11651
      %v11733 = vunpack.c.l.b16 %v11654
      %v11734 = vunpack.c.l.b16 %v11658
      %v11735 = vunpack.c.l.b16 %v11661
      %v11736 = vunpack.c.l.b16 %v11665
      %v11737 = vunpack.c.l.b16 %v11668
      %v11738 = vunpack.c.l.b16 %v11672
      %v11739 = vunpack.c.l.b16 %v11675
      %v11740 = vunpack.c.l.b16 %v11679
      %v11741 = vunpack.c.l.b16 %v11682
      %v11742 = vunpack.c.l.b16 %v11686
      %v11743 = vunpack.c.l.b16 %v11689
      %v11744 = vunpack.c.l.b16 %v11693
      %v11745 = vunpack.c.l.b16 %v11696
      %v11746 = vunpack.c.l.b16 %v11700
      %v11747 = vunpack.c.l.b16 %v11703
      %v11748 = vunpack.c.l.b16 %v11707
      %v11749 = vunpack.c.l.b16 %v11710
      %v11750 = vunpack.c.l.b16 %v11714
      %v11751 = vunpack.c.l.b16 %v11717
      %v11752 = vpack.c.b16 %v11721, %v11720
      %v11753 = vpack.c.b16 %v11723, %v11722
      %v11754 = vpack.c.b16 %v11725, %v11724
      %v11755 = vpack.c.b16 %v11727, %v11726
      %v11756 = vpack.c.b16 %v11729, %v11728
      %v11757 = vpack.c.b16 %v11731, %v11730
      %v11758 = vpack.c.b16 %v11733, %v11732
      %v11759 = vpack.c.b16 %v11735, %v11734
      %v11760 = vpack.c.b16 %v11737, %v11736
      %v11761 = vpack.c.b16 %v11739, %v11738
      %v11762 = vpack.c.b16 %v11741, %v11740
      %v11763 = vpack.c.b16 %v11743, %v11742
      %v11764 = vpack.c.b16 %v11745, %v11744
      %v11765 = vpack.c.b16 %v11747, %v11746
      %v11766 = vpack.c.b16 %v11749, %v11748
      %v11767 = vpack.c.b16 %v11751, %v11750
      %v11769 = vsel %vm972, %v11752, 0
      %v11772 = vsel %vm972, %v11753, 0
      %v11775 = vsel %vm972, %v11754, 0
      %v11778 = vsel %vm972, %v11755, 0
      %v11781 = vsel %vm972, %v11756, 0
      %v11784 = vsel %vm972, %v11757, 0
      %v11787 = vsel %vm972, %v11758, 0
      %v11790 = vsel %vm972, %v11759, 0
      %v11793 = vsel %vm972, %v11760, 0
      %v11796 = vsel %vm972, %v11761, 0
      %v11799 = vsel %vm972, %v11762, 0
      %v11802 = vsel %vm972, %v11763, 0
      %v11805 = vsel %vm972, %v11764, 0
      %v11808 = vsel %vm972, %v11765, 0
      %v11811 = vsel %vm972, %v11766, 0
      %v11814 = vsel %vm972, %v11767, 0
      %v11817 = vsel %vm1021, %v11719, 0
      %11819 = vmatprep.subr.bf16.mxu0 0
      %11820 = vmatpush1.bf16.msra.mxu0 0
      %11821 = vmatprep.subr.bf16.mxu0 0
      %11822 = vmatpush1.bf16.msra.mxu0 0
      %11823 = vmatprep.subr.bf16.mxu0 0
      %11824 = vmatpush1.bf16.msra.mxu0 0
      %11825 = vmatprep.subr.bf16.mxu0 0
      %11826 = vmatpush1.bf16.msra.mxu0 0
      %11827 = vmatprep.subr.bf16.mxu0 0
      %11828 = vmatpush1.bf16.msra.mxu0 0
      %11829 = vmatprep.subr.bf16.mxu0 0
      %11830 = vmatpush1.bf16.msra.mxu0 0
      %11831 = vmatprep.subr.bf16.mxu0 0
      %11832 = vmatpush1.bf16.msra.mxu0 0
      %11833 = vmatprep.subr.bf16.mxu0 0
      %11834 = vmatpush1.bf16.msra.mxu0 %v11817
      %11835 = vmatprep.subr.bf16.mxu0 0
      %11836 = vmatpush2.bf16.msra.mxu0 0
      %11837 = vmatprep.subr.bf16.mxu0 0
      %11838 = vmatpush2.bf16.msra.mxu0 0
      %11839 = vmatprep.subr.bf16.mxu0 0
      %11840 = vmatpush2.bf16.msra.mxu0 0
      %11841 = vmatprep.subr.bf16.mxu0 0
      %11842 = vmatpush2.bf16.msra.mxu0 0
      %11843 = vmatprep.subr.bf16.mxu0 0
      %11844 = vmatpush2.bf16.msra.mxu0 0
      %11845 = vmatprep.subr.bf16.mxu0 0
      %11846 = vmatpush2.bf16.msra.mxu0 0
      %11847 = vmatprep.subr.bf16.mxu0 0
      %11848 = vmatpush2.bf16.msra.mxu0 0
      %11849 = vmatprep.subr.bf16.mxu0 0
      %11850 = vmatpush2.bf16.msra.mxu0 0
      %11851 = vmatprep.mubr.bf16.mxu0 0
      %11852 = vmatmul.mubr.bf16.gmra.mxu0 %v11769
      %v11853 = vpop.f32.mrf.mxu0
      %v11854 = vadd.f32 0.0, %v11853
      %v11855 = vpop.f32.mrf.mxu0
      %v11856 = vpop.f32.mrf.mxu0
      %v11857 = vadd.f32 0.0, %v11856
      %v11858 = vpop.f32.mrf.mxu0
      %11859 = vmatprep.mubr.bf16.mxu0 0
      %11860 = vmatmul.mubr.bf16.gmra.mxu0 %v11772
      %v11861 = vpop.f32.mrf.mxu0
      %v11862 = vadd.f32 0.0, %v11861
      %v11863 = vpop.f32.mrf.mxu0
      %v11864 = vpop.f32.mrf.mxu0
      %v11865 = vadd.f32 0.0, %v11864
      %v11866 = vpop.f32.mrf.mxu0
      %11867 = vmatprep.mubr.bf16.mxu0 0
      %11868 = vmatmul.mubr.bf16.gmra.mxu0 %v11775
      %v11869 = vpop.f32.mrf.mxu0
      %v11870 = vadd.f32 0.0, %v11869
      %v11871 = vpop.f32.mrf.mxu0
      %v11872 = vpop.f32.mrf.mxu0
      %v11873 = vadd.f32 0.0, %v11872
      %v11874 = vpop.f32.mrf.mxu0
      %11875 = vmatprep.mubr.bf16.mxu0 0
      %11876 = vmatmul.mubr.bf16.gmra.mxu0 %v11778
      %v11877 = vpop.f32.mrf.mxu0
      %v11878 = vadd.f32 0.0, %v11877
      %v11879 = vpop.f32.mrf.mxu0
      %v11880 = vpop.f32.mrf.mxu0
      %v11881 = vadd.f32 0.0, %v11880
      %v11882 = vpop.f32.mrf.mxu0
      %11883 = vmatprep.mubr.bf16.mxu0 0
      %11884 = vmatmul.mubr.bf16.gmra.mxu0 %v11781
      %v11885 = vpop.f32.mrf.mxu0
      %v11886 = vadd.f32 0.0, %v11885
      %v11887 = vpop.f32.mrf.mxu0
      %v11888 = vpop.f32.mrf.mxu0
      %v11889 = vadd.f32 0.0, %v11888
      %v11890 = vpop.f32.mrf.mxu0
      %11891 = vmatprep.mubr.bf16.mxu0 0
      %11892 = vmatmul.mubr.bf16.gmra.mxu0 %v11784
      %v11893 = vpop.f32.mrf.mxu0
      %v11894 = vadd.f32 0.0, %v11893
      %v11895 = vpop.f32.mrf.mxu0
      %v11896 = vpop.f32.mrf.mxu0
      %v11897 = vadd.f32 0.0, %v11896
      %v11898 = vpop.f32.mrf.mxu0
      %11899 = vmatprep.mubr.bf16.mxu0 0
      %11900 = vmatmul.mubr.bf16.gmra.mxu0 %v11787
      %v11901 = vpop.f32.mrf.mxu0
      %v11902 = vadd.f32 0.0, %v11901
      %v11903 = vpop.f32.mrf.mxu0
      %v11904 = vpop.f32.mrf.mxu0
      %v11905 = vadd.f32 0.0, %v11904
      %v11906 = vpop.f32.mrf.mxu0
      %11907 = vmatprep.mubr.bf16.mxu0 0
      %11908 = vmatmul.mubr.bf16.gmra.mxu0 %v11790
      %v11909 = vpop.f32.mrf.mxu0
      %v11910 = vadd.f32 0.0, %v11909
      %v11911 = vpop.f32.mrf.mxu0
      %v11912 = vpop.f32.mrf.mxu0
      %v11913 = vadd.f32 0.0, %v11912
      %v11914 = vpop.f32.mrf.mxu0
      %11915 = vmatprep.mubr.bf16.mxu0 0
      %11916 = vmatmul.mubr.bf16.gmra.mxu0 %v11793
      %v11917 = vpop.f32.mrf.mxu0
      %v11918 = vadd.f32 0.0, %v11917
      %v11919 = vpop.f32.mrf.mxu0
      %v11920 = vpop.f32.mrf.mxu0
      %v11921 = vadd.f32 0.0, %v11920
      %v11922 = vpop.f32.mrf.mxu0
      %11923 = vmatprep.mubr.bf16.mxu0 0
      %11924 = vmatmul.mubr.bf16.gmra.mxu0 %v11796
      %v11925 = vpop.f32.mrf.mxu0
      %v11926 = vadd.f32 0.0, %v11925
      %v11927 = vpop.f32.mrf.mxu0
      %v11928 = vpop.f32.mrf.mxu0
      %v11929 = vadd.f32 0.0, %v11928
      %v11930 = vpop.f32.mrf.mxu0
      %11931 = vmatprep.mubr.bf16.mxu0 0
      %11932 = vmatmul.mubr.bf16.gmra.mxu0 %v11799
      %v11933 = vpop.f32.mrf.mxu0
      %v11934 = vadd.f32 0.0, %v11933
      %v11935 = vpop.f32.mrf.mxu0
      %v11936 = vpop.f32.mrf.mxu0
      %v11937 = vadd.f32 0.0, %v11936
      %v11938 = vpop.f32.mrf.mxu0
      %11939 = vmatprep.mubr.bf16.mxu0 0
      %11940 = vmatmul.mubr.bf16.gmra.mxu0 %v11802
      %v11941 = vpop.f32.mrf.mxu0
      %v11942 = vadd.f32 0.0, %v11941
      %v11943 = vpop.f32.mrf.mxu0
      %v11944 = vpop.f32.mrf.mxu0
      %v11945 = vadd.f32 0.0, %v11944
      %v11946 = vpop.f32.mrf.mxu0
      %11947 = vmatprep.mubr.bf16.mxu0 0
      %11948 = vmatmul.mubr.bf16.gmra.mxu0 %v11805
      %v11949 = vpop.f32.mrf.mxu0
      %v11950 = vadd.f32 0.0, %v11949
      %v11951 = vpop.f32.mrf.mxu0
      %v11952 = vpop.f32.mrf.mxu0
      %v11953 = vadd.f32 0.0, %v11952
      %v11954 = vpop.f32.mrf.mxu0
      %11955 = vmatprep.mubr.bf16.mxu0 0
      %11956 = vmatmul.mubr.bf16.gmra.mxu0 %v11808
      %v11957 = vpop.f32.mrf.mxu0
      %v11958 = vadd.f32 0.0, %v11957
      %v11959 = vpop.f32.mrf.mxu0
      %v11960 = vpop.f32.mrf.mxu0
      %v11961 = vadd.f32 0.0, %v11960
      %v11962 = vpop.f32.mrf.mxu0
      %11963 = vmatprep.mubr.bf16.mxu0 0
      %11964 = vmatmul.mubr.bf16.gmra.mxu0 %v11811
      %v11965 = vpop.f32.mrf.mxu0
      %v11966 = vadd.f32 0.0, %v11965
      %v11967 = vpop.f32.mrf.mxu0
      %v11968 = vpop.f32.mrf.mxu0
      %v11969 = vadd.f32 0.0, %v11968
      %v11970 = vpop.f32.mrf.mxu0
      %11971 = vmatprep.mubr.bf16.mxu0 0
      %11972 = vmatmul.mubr.bf16.gmra.mxu0 %v11814
      %v11973 = vpop.f32.mrf.mxu0
      %v11974 = vadd.f32 0.0, %v11973
      %v11975 = vpop.f32.mrf.mxu0
      %v11976 = vpop.f32.mrf.mxu0
      %v11977 = vadd.f32 0.0, %v11976
      %v11978 = vpop.f32.mrf.mxu0
      %11979 = vdwg.mxu0
      %v11980 = vld [vmem:[#allocation3] sm:$0xff]
      %v11981 = vld [vmem:[#allocation3 + $0x8] sm:$0xff]
      %v11982 = vld [vmem:[#allocation3 + $0x10] sm:$0xff]
      %v11983 = vld [vmem:[#allocation3 + $0x18] sm:$0xff]
      %v11984 = vld [vmem:[#allocation3 + $0x20] sm:$0xff]
      %v11985 = vld [vmem:[#allocation3 + $0x28] sm:$0xff]
      %v11986 = vld [vmem:[#allocation3 + $0x30] sm:$0xff]
      %v11987 = vld [vmem:[#allocation3 + $0x38] sm:$0xff]
      %v11988 = vld [vmem:[#allocation3 + $0x40] sm:$0xff]
      %v11989 = vld [vmem:[#allocation3 + $0x48] sm:$0xff]
      %v11990 = vld [vmem:[#allocation3 + $0x50] sm:$0xff]
      %v11991 = vld [vmem:[#allocation3 + $0x58] sm:$0xff]
      %v11992 = vld [vmem:[#allocation3 + $0x60] sm:$0xff]
      %v11993 = vld [vmem:[#allocation3 + $0x68] sm:$0xff]
      %v11994 = vld [vmem:[#allocation3 + $0x70] sm:$0xff]
      %v11995 = vld [vmem:[#allocation3 + $0x78] sm:$0xff]
      %v11996 = vld [vmem:[#allocation3 + $0x80] sm:$0xff]
      %v11997 = vld [vmem:[#allocation3 + $0x88] sm:$0xff]
      %v11998 = vld [vmem:[#allocation3 + $0x90] sm:$0xff]
      %v11999 = vld [vmem:[#allocation3 + $0x98] sm:$0xff]
      %v12000 = vld [vmem:[#allocation3 + $0xa0] sm:$0xff]
      %v12001 = vld [vmem:[#allocation3 + $0xa8] sm:$0xff]
      %v12002 = vld [vmem:[#allocation3 + $0xb0] sm:$0xff]
      %v12003 = vld [vmem:[#allocation3 + $0xb8] sm:$0xff]
      %v12004 = vld [vmem:[#allocation3 + $0xc0] sm:$0xff]
      %v12005 = vld [vmem:[#allocation3 + $0xc8] sm:$0xff]
      %v12006 = vld [vmem:[#allocation3 + $0xd0] sm:$0xff]
      %v12007 = vld [vmem:[#allocation3 + $0xd8] sm:$0xff]
      %v12008 = vld [vmem:[#allocation3 + $0xe0] sm:$0xff]
      %v12009 = vld [vmem:[#allocation3 + $0xe8] sm:$0xff]
      %v12010 = vld [vmem:[#allocation3 + $0xf0] sm:$0xff]
      %v12011 = vld [vmem:[#allocation3 + $0xf8] sm:$0xff]
      %v12012 = vadd.f32 %v11980, %v11854
      %v12013 = vadd.f32 %v11981, %v11857
      %v12014 = vadd.f32 %v11982, %v11862
      %v12015 = vadd.f32 %v11983, %v11865
      %v12016 = vadd.f32 %v11984, %v11870
      %v12017 = vadd.f32 %v11985, %v11873
      %v12018 = vadd.f32 %v11986, %v11878
      %v12019 = vadd.f32 %v11987, %v11881
      %v12020 = vadd.f32 %v11988, %v11886
      %v12021 = vadd.f32 %v11989, %v11889
      %v12022 = vadd.f32 %v11990, %v11894
      %v12023 = vadd.f32 %v11991, %v11897
      %v12024 = vadd.f32 %v11992, %v11902
      %v12025 = vadd.f32 %v11993, %v11905
      %v12026 = vadd.f32 %v11994, %v11910
      %v12027 = vadd.f32 %v11995, %v11913
      %v12028 = vadd.f32 %v11996, %v11918
      %v12029 = vadd.f32 %v11997, %v11921
      %v12030 = vadd.f32 %v11998, %v11926
      %v12031 = vadd.f32 %v11999, %v11929
      %v12032 = vadd.f32 %v12000, %v11934
      %v12033 = vadd.f32 %v12001, %v11937
      %v12034 = vadd.f32 %v12002, %v11942
      %v12035 = vadd.f32 %v12003, %v11945
      %v12036 = vadd.f32 %v12004, %v11950
      %v12037 = vadd.f32 %v12005, %v11953
      %v12038 = vadd.f32 %v12006, %v11958
      %v12039 = vadd.f32 %v12007, %v11961
      %v12040 = vadd.f32 %v12008, %v11966
      %v12041 = vadd.f32 %v12009, %v11969
      %v12042 = vadd.f32 %v12010, %v11974
      %v12043 = vadd.f32 %v12011, %v11977
      %12044 = vst.msk [vmem:[#allocation3] sm:$0xff] %vm972, %v12012
      %12045 = vst.msk [vmem:[#allocation3 + $0x8] sm:$0xff] %vm972, %v12013
      %12046 = vst.msk [vmem:[#allocation3 + $0x10] sm:$0xff] %vm972, %v12014
      %12047 = vst.msk [vmem:[#allocation3 + $0x18] sm:$0xff] %vm972, %v12015
      %12048 = vst.msk [vmem:[#allocation3 + $0x20] sm:$0xff] %vm972, %v12016
      %12049 = vst.msk [vmem:[#allocation3 + $0x28] sm:$0xff] %vm972, %v12017
      %12050 = vst.msk [vmem:[#allocation3 + $0x30] sm:$0xff] %vm972, %v12018
      %12051 = vst.msk [vmem:[#allocation3 + $0x38] sm:$0xff] %vm972, %v12019
      %12052 = vst.msk [vmem:[#allocation3 + $0x40] sm:$0xff] %vm972, %v12020
      %12053 = vst.msk [vmem:[#allocation3 + $0x48] sm:$0xff] %vm972, %v12021
      %12054 = vst.msk [vmem:[#allocation3 + $0x50] sm:$0xff] %vm972, %v12022
      %12055 = vst.msk [vmem:[#allocation3 + $0x58] sm:$0xff] %vm972, %v12023
      %12056 = vst.msk [vmem:[#allocation3 + $0x60] sm:$0xff] %vm972, %v12024
      %12057 = vst.msk [vmem:[#allocation3 + $0x68] sm:$0xff] %vm972, %v12025
      %12058 = vst.msk [vmem:[#allocation3 + $0x70] sm:$0xff] %vm972, %v12026
      %12059 = vst.msk [vmem:[#allocation3 + $0x78] sm:$0xff] %vm972, %v12027
      %12060 = vst.msk [vmem:[#allocation3 + $0x80] sm:$0xff] %vm972, %v12028
      %12061 = vst.msk [vmem:[#allocation3 + $0x88] sm:$0xff] %vm972, %v12029
      %12062 = vst.msk [vmem:[#allocation3 + $0x90] sm:$0xff] %vm972, %v12030
      %12063 = vst.msk [vmem:[#allocation3 + $0x98] sm:$0xff] %vm972, %v12031
      %12064 = vst.msk [vmem:[#allocation3 + $0xa0] sm:$0xff] %vm972, %v12032
      %12065 = vst.msk [vmem:[#allocation3 + $0xa8] sm:$0xff] %vm972, %v12033
      %12066 = vst.msk [vmem:[#allocation3 + $0xb0] sm:$0xff] %vm972, %v12034
      %12067 = vst.msk [vmem:[#allocation3 + $0xb8] sm:$0xff] %vm972, %v12035
      %12068 = vst.msk [vmem:[#allocation3 + $0xc0] sm:$0xff] %vm972, %v12036
      %12069 = vst.msk [vmem:[#allocation3 + $0xc8] sm:$0xff] %vm972, %v12037
      %12070 = vst.msk [vmem:[#allocation3 + $0xd0] sm:$0xff] %vm972, %v12038
      %12071 = vst.msk [vmem:[#allocation3 + $0xd8] sm:$0xff] %vm972, %v12039
      %12072 = vst.msk [vmem:[#allocation3 + $0xe0] sm:$0xff] %vm972, %v12040
      %12073 = vst.msk [vmem:[#allocation3 + $0xe8] sm:$0xff] %vm972, %v12041
      %12074 = vst.msk [vmem:[#allocation3 + $0xf0] sm:$0xff] %vm972, %v12042
      %12075 = vst.msk [vmem:[#allocation3 + $0xf8] sm:$0xff] %vm972, %v12043
      %v12076 = vld [vmem:[#allocation3] sm:$0xff]
      %v12077 = vld [vmem:[#allocation3 + $0x8] sm:$0xff]
      %v12078 = vld [vmem:[#allocation3 + $0x10] sm:$0xff]
      %v12079 = vld [vmem:[#allocation3 + $0x18] sm:$0xff]
      %v12080 = vld [vmem:[#allocation3 + $0x20] sm:$0xff]
      %v12081 = vld [vmem:[#allocation3 + $0x28] sm:$0xff]
      %v12082 = vld [vmem:[#allocation3 + $0x30] sm:$0xff]
      %v12083 = vld [vmem:[#allocation3 + $0x38] sm:$0xff]
      %v12084 = vld [vmem:[#allocation3 + $0x40] sm:$0xff]
      %v12085 = vld [vmem:[#allocation3 + $0x48] sm:$0xff]
      %v12086 = vld [vmem:[#allocation3 + $0x50] sm:$0xff]
      %v12087 = vld [vmem:[#allocation3 + $0x58] sm:$0xff]
      %v12088 = vld [vmem:[#allocation3 + $0x60] sm:$0xff]
      %v12089 = vld [vmem:[#allocation3 + $0x68] sm:$0xff]
      %v12090 = vld [vmem:[#allocation3 + $0x70] sm:$0xff]
      %v12091 = vld [vmem:[#allocation3 + $0x78] sm:$0xff]
      %v12092 = vld [vmem:[#allocation3 + $0x80] sm:$0xff]
      %v12093 = vld [vmem:[#allocation3 + $0x88] sm:$0xff]
      %v12094 = vld [vmem:[#allocation3 + $0x90] sm:$0xff]
      %v12095 = vld [vmem:[#allocation3 + $0x98] sm:$0xff]
      %v12096 = vld [vmem:[#allocation3 + $0xa0] sm:$0xff]
      %v12097 = vld [vmem:[#allocation3 + $0xa8] sm:$0xff]
      %v12098 = vld [vmem:[#allocation3 + $0xb0] sm:$0xff]
      %v12099 = vld [vmem:[#allocation3 + $0xb8] sm:$0xff]
      %v12100 = vld [vmem:[#allocation3 + $0xc0] sm:$0xff]
      %v12101 = vld [vmem:[#allocation3 + $0xc8] sm:$0xff]
      %v12102 = vld [vmem:[#allocation3 + $0xd0] sm:$0xff]
      %v12103 = vld [vmem:[#allocation3 + $0xd8] sm:$0xff]
      %v12104 = vld [vmem:[#allocation3 + $0xe0] sm:$0xff]
      %v12105 = vld [vmem:[#allocation3 + $0xe8] sm:$0xff]
      %v12106 = vld [vmem:[#allocation3 + $0xf0] sm:$0xff]
      %v12107 = vld [vmem:[#allocation3 + $0xf8] sm:$0xff]
      %v12108 = vld [vmem:[%s5] sm:$0x1]
      %v12110 = vlaneseq
      %v12111 = vshrl.u32 %v12110, 7
      %v12112 = vsub.s32 0, %v12111
      %v12113 = vrot.slane %v12108, %v12112
      %v12115 = vmul.f32 %v12076, %v12113
      %v12116 = vmul.f32 %v12077, %v12113
      %v12117 = vmul.f32 %v12078, %v12113
      %v12118 = vmul.f32 %v12079, %v12113
      %v12119 = vmul.f32 %v12080, %v12113
      %v12120 = vmul.f32 %v12081, %v12113
      %v12121 = vmul.f32 %v12082, %v12113
      %v12122 = vmul.f32 %v12083, %v12113
      %v12123 = vmul.f32 %v12084, %v12113
      %v12124 = vmul.f32 %v12085, %v12113
      %v12125 = vmul.f32 %v12086, %v12113
      %v12126 = vmul.f32 %v12087, %v12113
      %v12127 = vmul.f32 %v12088, %v12113
      %v12128 = vmul.f32 %v12089, %v12113
      %v12129 = vmul.f32 %v12090, %v12113
      %v12130 = vmul.f32 %v12091, %v12113
      %v12131 = vmul.f32 %v12092, %v12113
      %v12132 = vmul.f32 %v12093, %v12113
      %v12133 = vmul.f32 %v12094, %v12113
      %v12134 = vmul.f32 %v12095, %v12113
      %v12135 = vmul.f32 %v12096, %v12113
      %v12136 = vmul.f32 %v12097, %v12113
      %v12137 = vmul.f32 %v12098, %v12113
      %v12138 = vmul.f32 %v12099, %v12113
      %v12139 = vmul.f32 %v12100, %v12113
      %v12140 = vmul.f32 %v12101, %v12113
      %v12141 = vmul.f32 %v12102, %v12113
      %v12142 = vmul.f32 %v12103, %v12113
      %v12143 = vmul.f32 %v12104, %v12113
      %v12144 = vmul.f32 %v12105, %v12113
      %v12145 = vmul.f32 %v12106, %v12113
      %v12146 = vmul.f32 %v12107, %v12113
      %v12147 = vld [vmem:[%s6] sm:$0x1]
      %v12149 = vlaneseq
      %v12150 = vshrl.u32 %v12149, 7
      %v12151 = vsub.s32 0, %v12150
      %v12152 = vrot.slane %v12147, %v12151
      %v12154 = vadd.f32 %v12115, %v12152
      %v12155 = vadd.f32 %v12116, %v12152
      %v12156 = vadd.f32 %v12117, %v12152
      %v12157 = vadd.f32 %v12118, %v12152
      %v12158 = vadd.f32 %v12119, %v12152
      %v12159 = vadd.f32 %v12120, %v12152
      %v12160 = vadd.f32 %v12121, %v12152
      %v12161 = vadd.f32 %v12122, %v12152
      %v12162 = vadd.f32 %v12123, %v12152
      %v12163 = vadd.f32 %v12124, %v12152
      %v12164 = vadd.f32 %v12125, %v12152
      %v12165 = vadd.f32 %v12126, %v12152
      %v12166 = vadd.f32 %v12127, %v12152
      %v12167 = vadd.f32 %v12128, %v12152
      %v12168 = vadd.f32 %v12129, %v12152
      %v12169 = vadd.f32 %v12130, %v12152
      %v12170 = vadd.f32 %v12131, %v12152
      %v12171 = vadd.f32 %v12132, %v12152
      %v12172 = vadd.f32 %v12133, %v12152
      %v12173 = vadd.f32 %v12134, %v12152
      %v12174 = vadd.f32 %v12135, %v12152
      %v12175 = vadd.f32 %v12136, %v12152
      %v12176 = vadd.f32 %v12137, %v12152
      %v12177 = vadd.f32 %v12138, %v12152
      %v12178 = vadd.f32 %v12139, %v12152
      %v12179 = vadd.f32 %v12140, %v12152
      %v12180 = vadd.f32 %v12141, %v12152
      %v12181 = vadd.f32 %v12142, %v12152
      %v12182 = vadd.f32 %v12143, %v12152
      %v12183 = vadd.f32 %v12144, %v12152
      %v12184 = vadd.f32 %v12145, %v12152
      %v12185 = vadd.f32 %v12146, %v12152
      %v12186 = vunpack.c.l.bf16 %v391
      %v12187 = vunpack.c.l.bf16 %v392
      %v12188 = vunpack.c.l.bf16 %v393
      %v12189 = vunpack.c.l.bf16 %v394
      %v12190 = vunpack.c.l.bf16 %v395
      %v12191 = vunpack.c.l.bf16 %v396
      %v12192 = vunpack.c.l.bf16 %v397
      %v12193 = vunpack.c.l.bf16 %v398
      %v12194 = vunpack.c.l.bf16 %v399
      %v12195 = vunpack.c.l.bf16 %v400
      %v12196 = vunpack.c.l.bf16 %v401
      %v12197 = vunpack.c.l.bf16 %v402
      %v12198 = vunpack.c.l.bf16 %v403
      %v12199 = vunpack.c.l.bf16 %v404
      %v12200 = vunpack.c.l.bf16 %v405
      %v12201 = vunpack.c.l.bf16 %v406
      %v12202 = vunpack.c.l.bf16 %v407
      %v12203 = vunpack.c.l.bf16 %v408
      %v12204 = vunpack.c.l.bf16 %v409
      %v12205 = vunpack.c.l.bf16 %v410
      %v12206 = vunpack.c.l.bf16 %v411
      %v12207 = vunpack.c.l.bf16 %v412
      %v12208 = vunpack.c.l.bf16 %v413
      %v12209 = vunpack.c.l.bf16 %v414
      %v12210 = vunpack.c.l.bf16 %v415
      %v12211 = vunpack.c.l.bf16 %v416
      %v12212 = vunpack.c.l.bf16 %v417
      %v12213 = vunpack.c.l.bf16 %v418
      %v12214 = vunpack.c.l.bf16 %v419
      %v12215 = vunpack.c.l.bf16 %v420
      %v12216 = vunpack.c.l.bf16 %v421
      %v12217 = vunpack.c.l.bf16 %v422
      %v12218 = vadd.f32 %v12154, %v12186
      %v12219 = vadd.f32 %v12155, %v12187
      %v12220 = vadd.f32 %v12156, %v12188
      %v12221 = vadd.f32 %v12157, %v12189
      %v12222 = vadd.f32 %v12158, %v12190
      %v12223 = vadd.f32 %v12159, %v12191
      %v12224 = vadd.f32 %v12160, %v12192
      %v12225 = vadd.f32 %v12161, %v12193
      %v12226 = vadd.f32 %v12162, %v12194
      %v12227 = vadd.f32 %v12163, %v12195
      %v12228 = vadd.f32 %v12164, %v12196
      %v12229 = vadd.f32 %v12165, %v12197
      %v12230 = vadd.f32 %v12166, %v12198
      %v12231 = vadd.f32 %v12167, %v12199
      %v12232 = vadd.f32 %v12168, %v12200
      %v12233 = vadd.f32 %v12169, %v12201
      %v12234 = vadd.f32 %v12170, %v12202
      %v12235 = vadd.f32 %v12171, %v12203
      %v12236 = vadd.f32 %v12172, %v12204
      %v12237 = vadd.f32 %v12173, %v12205
      %v12238 = vadd.f32 %v12174, %v12206
      %v12239 = vadd.f32 %v12175, %v12207
      %v12240 = vadd.f32 %v12176, %v12208
      %v12241 = vadd.f32 %v12177, %v12209
      %v12242 = vadd.f32 %v12178, %v12210
      %v12243 = vadd.f32 %v12179, %v12211
      %v12244 = vadd.f32 %v12180, %v12212
      %v12245 = vadd.f32 %v12181, %v12213
      %v12246 = vadd.f32 %v12182, %v12214
      %v12247 = vadd.f32 %v12183, %v12215
      %v12248 = vadd.f32 %v12184, %v12216
      %v12249 = vadd.f32 %v12185, %v12217
      %v12250 = vmax.f32 %v12218, 0.0
      %v12251 = vmax.f32 %v12219, 0.0
      %v12252 = vmax.f32 %v12220, 0.0
      %v12253 = vmax.f32 %v12221, 0.0
      %v12254 = vmax.f32 %v12222, 0.0
      %v12255 = vmax.f32 %v12223, 0.0
      %v12256 = vmax.f32 %v12224, 0.0
      %v12257 = vmax.f32 %v12225, 0.0
      %v12258 = vmax.f32 %v12226, 0.0
      %v12259 = vmax.f32 %v12227, 0.0
      %v12260 = vmax.f32 %v12228, 0.0
      %v12261 = vmax.f32 %v12229, 0.0
      %v12262 = vmax.f32 %v12230, 0.0
      %v12263 = vmax.f32 %v12231, 0.0
      %v12264 = vmax.f32 %v12232, 0.0
      %v12265 = vmax.f32 %v12233, 0.0
      %v12266 = vmax.f32 %v12234, 0.0
      %v12267 = vmax.f32 %v12235, 0.0
      %v12268 = vmax.f32 %v12236, 0.0
      %v12269 = vmax.f32 %v12237, 0.0
      %v12270 = vmax.f32 %v12238, 0.0
      %v12271 = vmax.f32 %v12239, 0.0
      %v12272 = vmax.f32 %v12240, 0.0
      %v12273 = vmax.f32 %v12241, 0.0
      %v12274 = vmax.f32 %v12242, 0.0
      %v12275 = vmax.f32 %v12243, 0.0
      %v12276 = vmax.f32 %v12244, 0.0
      %v12277 = vmax.f32 %v12245, 0.0
      %v12278 = vmax.f32 %v12246, 0.0
      %v12279 = vmax.f32 %v12247, 0.0
      %v12280 = vmax.f32 %v12248, 0.0
      %v12281 = vmax.f32 %v12249, 0.0
      %v12282 = vpack.c.bf16 %v12251, %v12250
      %v12283 = vpack.c.bf16 %v12253, %v12252
      %v12284 = vpack.c.bf16 %v12255, %v12254
      %v12285 = vpack.c.bf16 %v12257, %v12256
      %v12286 = vpack.c.bf16 %v12259, %v12258
      %v12287 = vpack.c.bf16 %v12261, %v12260
      %v12288 = vpack.c.bf16 %v12263, %v12262
      %v12289 = vpack.c.bf16 %v12265, %v12264
      %v12290 = vpack.c.bf16 %v12267, %v12266
      %v12291 = vpack.c.bf16 %v12269, %v12268
      %v12292 = vpack.c.bf16 %v12271, %v12270
      %v12293 = vpack.c.bf16 %v12273, %v12272
      %v12294 = vpack.c.bf16 %v12275, %v12274
      %v12295 = vpack.c.bf16 %v12277, %v12276
      %v12296 = vpack.c.bf16 %v12279, %v12278
      %v12297 = vpack.c.bf16 %v12281, %v12280
      %v12314 = vunpack.c.l.b16 %v12282
      %v12315 = vunpack.c.h.b16 %v12282
      %v12316 = vunpack.c.l.b16 %v12283
      %v12317 = vunpack.c.h.b16 %v12283
      %v12318 = vunpack.c.l.b16 %v12284
      %v12319 = vunpack.c.h.b16 %v12284
      %v12320 = vunpack.c.l.b16 %v12285
      %v12321 = vunpack.c.h.b16 %v12285
      %v12322 = vunpack.c.l.b16 %v12286
      %v12323 = vunpack.c.h.b16 %v12286
      %v12324 = vunpack.c.l.b16 %v12287
      %v12325 = vunpack.c.h.b16 %v12287
      %v12326 = vunpack.c.l.b16 %v12288
      %v12327 = vunpack.c.h.b16 %v12288
      %v12328 = vunpack.c.l.b16 %v12289
      %v12329 = vunpack.c.h.b16 %v12289
      %v12330 = vunpack.c.l.b16 %v12290
      %v12331 = vunpack.c.h.b16 %v12290
      %v12332 = vunpack.c.l.b16 %v12291
      %v12333 = vunpack.c.h.b16 %v12291
      %v12334 = vunpack.c.l.b16 %v12292
      %v12335 = vunpack.c.h.b16 %v12292
      %v12336 = vunpack.c.l.b16 %v12293
      %v12337 = vunpack.c.h.b16 %v12293
      %v12338 = vunpack.c.l.b16 %v12294
      %v12339 = vunpack.c.h.b16 %v12294
      %v12340 = vunpack.c.l.b16 %v12295
      %v12341 = vunpack.c.h.b16 %v12295
      %v12342 = vunpack.c.l.b16 %v12296
      %v12343 = vunpack.c.h.b16 %v12296
      %v12344 = vunpack.c.l.b16 %v12297
      %v12345 = vunpack.c.h.b16 %v12297
      %v12346 = vpack.c.b16 %v12314, %v12314
      %v12347 = vpack.c.b16 %v12315, %v12315
      %v12348 = vpack.c.b16 %v12316, %v12316
      %v12349 = vpack.c.b16 %v12317, %v12317
      %v12350 = vpack.c.b16 %v12318, %v12318
      %v12351 = vpack.c.b16 %v12319, %v12319
      %v12352 = vpack.c.b16 %v12320, %v12320
      %v12353 = vpack.c.b16 %v12321, %v12321
      %v12354 = vpack.c.b16 %v12322, %v12322
      %v12355 = vpack.c.b16 %v12323, %v12323
      %v12356 = vpack.c.b16 %v12324, %v12324
      %v12357 = vpack.c.b16 %v12325, %v12325
      %v12358 = vpack.c.b16 %v12326, %v12326
      %v12359 = vpack.c.b16 %v12327, %v12327
      %v12360 = vpack.c.b16 %v12328, %v12328
      %v12361 = vpack.c.b16 %v12329, %v12329
      %v12362 = vpack.c.b16 %v12330, %v12330
      %v12363 = vpack.c.b16 %v12331, %v12331
      %v12364 = vpack.c.b16 %v12332, %v12332
      %v12365 = vpack.c.b16 %v12333, %v12333
      %v12366 = vpack.c.b16 %v12334, %v12334
      %v12367 = vpack.c.b16 %v12335, %v12335
      %v12368 = vpack.c.b16 %v12336, %v12336
      %v12369 = vpack.c.b16 %v12337, %v12337
      %v12370 = vpack.c.b16 %v12338, %v12338
      %v12371 = vpack.c.b16 %v12339, %v12339
      %v12372 = vpack.c.b16 %v12340, %v12340
      %v12373 = vpack.c.b16 %v12341, %v12341
      %v12374 = vpack.c.b16 %v12342, %v12342
      %v12375 = vpack.c.b16 %v12343, %v12343
      %v12376 = vpack.c.b16 %v12344, %v12344
      %v12377 = vpack.c.b16 %v12345, %v12345
      %12410 = vst.msk [vmem:[%s278] sm:$0xf] %vm280, %v12346
      %12411 = vst.msk [vmem:[%s278 + $0x4] sm:$0xf] %vm280, %v12347
      %12412 = vst.msk [vmem:[%s278 + $0x8] sm:$0xf] %vm280, %v12348
      %12413 = vst.msk [vmem:[%s278 + $0xc] sm:$0xf] %vm280, %v12349
      %12414 = vst.msk [vmem:[%s278 + $0x10] sm:$0xf] %vm280, %v12350
      %12415 = vst.msk [vmem:[%s278 + $0x14] sm:$0xf] %vm280, %v12351
      %12416 = vst.msk [vmem:[%s278 + $0x18] sm:$0xf] %vm280, %v12352
      %12417 = vst.msk [vmem:[%s278 + $0x1c] sm:$0xf] %vm280, %v12353
      %12418 = vst.msk [vmem:[%s278 + $0x20] sm:$0xf] %vm280, %v12354
      %12419 = vst.msk [vmem:[%s278 + $0x24] sm:$0xf] %vm280, %v12355
      %12420 = vst.msk [vmem:[%s278 + $0x28] sm:$0xf] %vm280, %v12356
      %12421 = vst.msk [vmem:[%s278 + $0x2c] sm:$0xf] %vm280, %v12357
      %12422 = vst.msk [vmem:[%s278 + $0x30] sm:$0xf] %vm280, %v12358
      %12423 = vst.msk [vmem:[%s278 + $0x34] sm:$0xf] %vm280, %v12359
      %12424 = vst.msk [vmem:[%s278 + $0x38] sm:$0xf] %vm280, %v12360
      %12425 = vst.msk [vmem:[%s278 + $0x3c] sm:$0xf] %vm280, %v12361
      %12426 = vst.msk [vmem:[%s278 + $0x40] sm:$0xf] %vm280, %v12362
      %12427 = vst.msk [vmem:[%s278 + $0x44] sm:$0xf] %vm280, %v12363
      %12428 = vst.msk [vmem:[%s278 + $0x48] sm:$0xf] %vm280, %v12364
      %12429 = vst.msk [vmem:[%s278 + $0x4c] sm:$0xf] %vm280, %v12365
      %12430 = vst.msk [vmem:[%s278 + $0x50] sm:$0xf] %vm280, %v12366
      %12431 = vst.msk [vmem:[%s278 + $0x54] sm:$0xf] %vm280, %v12367
      %12432 = vst.msk [vmem:[%s278 + $0x58] sm:$0xf] %vm280, %v12368
      %12433 = vst.msk [vmem:[%s278 + $0x5c] sm:$0xf] %vm280, %v12369
      %12434 = vst.msk [vmem:[%s278 + $0x60] sm:$0xf] %vm280, %v12370
      %12435 = vst.msk [vmem:[%s278 + $0x64] sm:$0xf] %vm280, %v12371
      %12436 = vst.msk [vmem:[%s278 + $0x68] sm:$0xf] %vm280, %v12372
      %12437 = vst.msk [vmem:[%s278 + $0x6c] sm:$0xf] %vm280, %v12373
      %12438 = vst.msk [vmem:[%s278 + $0x70] sm:$0xf] %vm280, %v12374
      %12439 = vst.msk [vmem:[%s278 + $0x74] sm:$0xf] %vm280, %v12375
      %12440 = vst.msk [vmem:[%s278 + $0x78] sm:$0xf] %vm280, %v12376
      %12441 = vst.msk [vmem:[%s278 + $0x7c] sm:$0xf] %vm280, %v12377
      %p12442 = scmp.lt.s32.totalorder %s18, 1
      %s12443 = scalar_select %p12442, %s18, 1
      %s12444 = smul.addr %s12443, 32
      %s12445 = smul.addr %s12444, 4
      %s12446 = scalar_lea.vmem %s7, %s12445
      // Predicated region
      $region49: #{basic_block_forward.1} parent=47 // pred_check
        %p12447 = pneg %p188
      $region50: #{basic_block_forward.1} parent=47 // pred_check_branch
        %12449 = sbr.rel (%p12447) target = $region52
      $region51: #{basic_block_forward.1} parent=47 // pred_region
        _
      $region52: #{basic_block_forward.1} parent=47 // pred_fallthru
        _
    $region48: #{basic_block_forward.1} parent=5 // pred_fallthru
      _
    %p12450 = scmp.le.s32.totalorder 2, %s13
    // Predicated region
    $region53: #{basic_block_forward.1} parent=5 // pred_check
      %p12451 = pneg %p12450
    $region54: #{basic_block_forward.1} parent=5 // pred_check_branch
      %12453 = sbr.rel (%p12451) target = $region56
    $region55: #{basic_block_forward.1} parent=5 // pred_region
      %s12454 = ssub.s32 %s13, 2
      // Predicated region
      $region57: #{basic_block_forward.1} parent=55 // pred_check
        %p12455 = pneg %p194
      $region58: #{basic_block_forward.1} parent=55 // pred_check_branch
        %12457 = sbr.rel (%p12455) target = $region60
      $region59: #{basic_block_forward.1} parent=55 // pred_region
        %p12458 = scmp.lt.s32.totalorder %s19, 1
        %s12459 = scalar_select %p12458, %s19, 1
        %s12460 = smul.addr %s12459, 32
        %s12461 = smul.addr %s12460, 4
        %s12462 = scalar_lea.vmem %s7, %s12461
      $region60: #{basic_block_forward.1} parent=55 // pred_fallthru
        _
    $region56: #{basic_block_forward.1} parent=5 // pred_fallthru
      _
  $region6: #{basic_block_forward.1} parent=0 // loop_footer
    %s17 = sadd.s32 1, %s13
  $region7: #{basic_block_forward.1} parent=0 // loop_footer_branch
    %12 = sbr.rel target = $region3
  $region8: #{basic_block_forward.1} parent=0 // loop_exit
    _

</llo_original>
